<compile_context>
chip_gen: v6e
topology: v6e:2x2x1
jax: 0.10.0
libtpu: 0.0.40
codegen_flags: <defaults>
</compile_context>

<pallas_src>
import functools

import jax
import jax.numpy as jnp
from jax.experimental import pallas as pl
from jax.experimental.pallas import tpu as pltpu


# --------------------------------------------------------------------------------------
# Tiling helper
# --------------------------------------------------------------------------------------

def _tiling(n, cap=None):
    """Point-tile size + explicit VMEM limit. Tile need not divide n (cdiv grid + masking)."""
    vmem_limit = 32 << 20
    if cap is None:
        cap = 1024                                   # fine for v7x (64 MiB physical VMEM)
        try:
            info = pltpu.get_tpu_info()
            if info.vmem_capacity_bytes >= (96 << 20):   # v5e / v6e: 128 MiB VMEM
                cap = 2048
                vmem_limit = 64 << 20
        except Exception:
            pass
    if n <= cap:
        return n, vmem_limit                         # full-dim block (always legal)
    return cap - (cap % 8), vmem_limit               # multiple of 8; tail tile masked


# --------------------------------------------------------------------------------------
# Kernel 1: STN3d — convs + global max + FC stack, all fused (grid = (B, ceil(N/tile_n)))
# --------------------------------------------------------------------------------------

def _stn_chain_kernel(x_ref, c1w_ref, c1b_ref, c2w_ref, c2b_ref, c3w_ref, c3b_ref,
                      f1w_ref, f1b_ref, f2w_ref, f2b_ref, f3w_ref, f3b_ref,
                      trans_ref, acc_ref, *, n_pts, tile_n):
    t = pl.program_id(1)

    @pl.when(t == 0)
    def _():
        acc_ref[...] = jnp.full(acc_ref.shape, -jnp.inf, dtype=jnp.float32)

    # relu(c1) -> relu(c2) -> c3 -> masked max over points (relu of c3 commutes with max).
    h = jnp.dot(x_ref[0], c1w_ref[...], preferred_element_type=jnp.float32)
    h = jnp.maximum(h + c1b_ref[...], 0.0).astype(jnp.bfloat16)
    h = jnp.dot(h, c2w_ref[...], preferred_element_type=jnp.float32)
    h = jnp.maximum(h + c2b_ref[...], 0.0).astype(jnp.bfloat16)
    g = jnp.dot(h, c3w_ref[...], preferred_element_type=jnp.float32)        # (tile_n, 1024)
    if n_pts % tile_n != 0:
        idx = t * tile_n + jax.lax.broadcasted_iota(jnp.int32, (tile_n, 1), 0)
        g = jnp.where(idx < n_pts, g, -jnp.inf)
    acc_ref[...] = jnp.maximum(acc_ref[...], jnp.max(g, axis=0, keepdims=True))

    @pl.when(t == pl.num_programs(1) - 1)
    def _():
        # global feature (relu/max commute), then the fused STN FC stack -> trans9 (f32).
        gf = jnp.maximum(acc_ref[...] + c3b_ref[...], 0.0).astype(jnp.bfloat16)  # (1,1024)
        u = jnp.dot(gf, f1w_ref[...], preferred_element_type=jnp.float32)
        u = jnp.maximum(u + f1b_ref[...], 0.0).astype(jnp.bfloat16)
        u = jnp.dot(u, f2w_ref[...], preferred_element_type=jnp.float32)
        u = jnp.maximum(u + f2b_ref[...], 0.0).astype(jnp.bfloat16)
        t9 = (jnp.dot(u, f3w_ref[...], preferred_element_type=jnp.float32)
              + f3b_ref[...])                                               # identity in bias
        trans_ref[0] = t9.astype(trans_ref.dtype)


def stn_chain(x, p, tile_n, vmem_limit):
    B, N, cin = x.shape
    c1w, c1b = p["stn_c1"]
    c2w, c2b = p["stn_c2"]
    c3w, c3b = p["stn_c3"]
    f1w, f1b = p["stn_f1"]
    f2w, f2b = p["stn_f2"]
    f3w, f3b = p["stn_f3"]
    T = pl.cdiv(N, tile_n)
    const = lambda a: pl.BlockSpec(a.shape, lambda b, t: (0, 0))
    return pl.pallas_call(
        functools.partial(_stn_chain_kernel, n_pts=N, tile_n=tile_n),
        out_shape=jax.ShapeDtypeStruct((B, 1, 9), jnp.float32),
        grid=(B, T),
        in_specs=[
            pl.BlockSpec((1, tile_n, cin), lambda b, t: (b, t, 0)),
            const(c1w), const(c1b), const(c2w), const(c2b), const(c3w), const(c3b),
            const(f1w), const(f1b), const(f2w), const(f2b), const(f3w), const(f3b),
        ],
        out_specs=pl.BlockSpec((1, 1, 9), lambda b, t: (b, 0, 0)),
        scratch_shapes=[pltpu.VMEM((1, 1024), jnp.float32)],
        compiler_params=pltpu.CompilerParams(
            dimension_semantics=("parallel", "arbitrary"),
            vmem_limit_bytes=vmem_limit),
    )(x, c1w, c1b, c2w, c2b, c3w, c3b, f1w, f1b, f2w, f2b, f3w, f3b)


# --------------------------------------------------------------------------------------
# Kernel 2: PointNetfeat + head convs, two-phase fused kernel (grid = (B, 2 * T))
#   phase 1 (t <  T): pf -> c2 -> c3, accumulate 1024-wide global max in VMEM
#   t == T          : gterm = gfeat @ Wg + b1 (computed once per batch, stays in VMEM)
#   phase 2 (t >= T): recompute pf, relu(pf @ Wp + gterm), c2, accumulate 256-wide max
# No pointfeat / gfeat HBM round trips; no (B,N,1088) concat; no 64-lane masked stores.
# --------------------------------------------------------------------------------------

def _feat_head_kernel(x_ref, w1b_ref, fb1_ref, fw2_ref, fb2_ref, fw3_ref, fb3_ref,
                      wg_ref, wp_ref, hb1_ref, hw2_ref, hb2_ref,
                      o_ref, gacc_ref, gterm_ref, hacc_ref, *, n_pts, tile_n, n_tiles):
    t = pl.program_id(1)

    @pl.when(t == 0)
    def _():
        gacc_ref[...] = jnp.full(gacc_ref.shape, -jnp.inf, dtype=jnp.float32)
        hacc_ref[...] = jnp.full(hacc_ref.shape, -jnp.inf, dtype=jnp.float32)

    # pointfeat for the current tile (STN transform folded into w1b per batch).
    # Recomputed in phase 2 instead of being round-tripped through HBM (K=3, negligible).
    pf = jnp.dot(x_ref[0], w1b_ref[0], preferred_element_type=jnp.float32)
    pf = jnp.maximum(pf + fb1_ref[...], 0.0).astype(jnp.bfloat16)            # (tile_n, 64)

    tail_mask = None
    if n_pts % tile_n != 0:
        idx = (t % n_tiles) * tile_n + jax.lax.broadcasted_iota(jnp.int32, (tile_n, 1), 0)
        tail_mask = idx < n_pts

    @pl.when(t < n_tiles)
    def _():
        # phase 1: relu(c2) -> c3 (no relu, matches PointNetfeat) -> masked global max.
        h = jnp.dot(pf, fw2_ref[...], preferred_element_type=jnp.float32)
        h = jnp.maximum(h + fb2_ref[...], 0.0).astype(jnp.bfloat16)
        g = jnp.dot(h, fw3_ref[...], preferred_element_type=jnp.float32)     # (tile_n, 1024)
        if tail_mask is not None:
            g = jnp.where(tail_mask, g, -jnp.inf)
        gacc_ref[...] = jnp.maximum(gacc_ref[...], jnp.max(g, axis=0, keepdims=True))

    @pl.when(t == n_tiles)
    def _():
        # phase boundary: finished global feature -> head-conv1 global term (once per batch).
        gfeat = (gacc_ref[...] + fb3_ref[...]).astype(jnp.bfloat16)          # (1, 1024)
        gterm_ref[...] = (jnp.dot(gfeat, wg_ref[...], preferred_element_type=jnp.float32)
                          + hb1_ref[...])                                    # (1, 512) f32

    @pl.when(t >= n_tiles)
    def _():
        # phase 2: split-K head conv1 (pointfeat part + resident global term), conv2, max.
        y = jnp.dot(pf, wp_ref[...], preferred_element_type=jnp.float32)
        y = jnp.maximum(y + gterm_ref[...], 0.0).astype(jnp.bfloat16)        # relu(conv1)
        h2 = jnp.dot(y, hw2_ref[...], preferred_element_type=jnp.float32)    # (tile_n, 256)
        if tail_mask is not None:
            h2 = jnp.where(tail_mask, h2, -jnp.inf)
        hacc_ref[...] = jnp.maximum(hacc_ref[...], jnp.max(h2, axis=0, keepdims=True))

    @pl.when(t == 2 * n_tiles - 1)
    def _():
        o_ref[0] = jnp.maximum(hacc_ref[...] + hb2_ref[...], 0.0).astype(o_ref.dtype)


def feat_head_chain(x, w1b, p, tile_n, vmem_limit):
    B, N, cin = x.shape
    fb1 = p["feat_c1"][1]
    fw2, fb2 = p["feat_c2"]
    fw3, fb3 = p["feat_c3"]
    wg = p["head_c1_wg"]
    wp = p["head_c1_wp"]
    hb1 = p["head_c1_b"]
    hw2, hb2 = p["head_c2"]
    T = pl.cdiv(N, tile_n)
    const = lambda a: pl.BlockSpec(a.shape, lambda b, t: (0, 0))
    return pl.pallas_call(
        functools.partial(_feat_head_kernel, n_pts=N, tile_n=tile_n, n_tiles=T),
        out_shape=jax.ShapeDtypeStruct((B, 1, 256), jnp.float32),
        grid=(B, 2 * T),
        in_specs=[
            pl.BlockSpec((1, tile_n, cin), lambda b, t: (b, t % T, 0)),
            pl.BlockSpec((1, cin, 64), lambda b, t: (b, 0, 0)),   # per-batch folded c1 weight
            const(fb1), const(fw2), const(fb2), const(fw3), const(fb3),
            const(wg), const(wp), const(hb1), const(hw2), const(hb2),
        ],
        out_specs=pl.BlockSpec((1, 1, 256), lambda b, t: (b, 0, 0)),
        scratch_shapes=[pltpu.VMEM((1, 1024), jnp.float32),   # global-feature max acc
                        pltpu.VMEM((1, 512), jnp.float32),    # gterm (head conv1 global part)
                        pltpu.VMEM((1, 256), jnp.float32)],   # head max acc
        compiler_params=pltpu.CompilerParams(
            dimension_semantics=("parallel", "arbitrary"),
            vmem_limit_bytes=vmem_limit),
    )(x, w1b, fb1, fw2, fb2, fw3, fb3, wg, wp, hb1, hw2, hb2)


# --------------------------------------------------------------------------------------
# Kernel 3: head FC stack + siamese abs-diff + fc4 (cross-batch -> tiny single-core call)
# --------------------------------------------------------------------------------------

def _head_fc_kernel(x_ref, w1_ref, b1_ref, w2_ref, b2_ref, w3_ref, b3_ref,
                    w4_ref, b4_ref, o_ref, *, half):
    h = jnp.dot(x_ref[...].astype(jnp.bfloat16), w1_ref[...],
                preferred_element_type=jnp.float32)
    h = jnp.maximum(h + b1_ref[...], 0.0).astype(jnp.bfloat16)            # fc1 + fc_bn1
    h = jnp.dot(h, w2_ref[...], preferred_element_type=jnp.float32)
    h = jnp.maximum(h + b2_ref[...], 0.0).astype(jnp.bfloat16)            # fc2 (+drop) + fc_bn2
    h = (jnp.dot(h, w3_ref[...], preferred_element_type=jnp.float32)
         + b3_ref[...])                                                   # fc3 (B, 64) f32
    d = jnp.abs(h[:half, :] - h[half:, :])                                # siamese abs-diff
    o_ref[...] = (jnp.dot(d, w4_ref[...].astype(jnp.float32),
                          preferred_element_type=jnp.float32)
                  + b4_ref[...]).astype(o_ref.dtype)                      # fc4


def head_fc_stack(x, p):
    B = x.shape[0]
    half = B // 2
    w1, b1 = p["head_f1"]
    w2, b2 = p["head_f2"]
    w3, b3 = p["head_f3"]
    w4, b4 = p["head_f4"]
    full = lambda a: pl.BlockSpec(a.shape, lambda i: (0, 0))
    return pl.pallas_call(
        functools.partial(_head_fc_kernel, half=half),
        out_shape=jax.ShapeDtypeStruct((half, 2), jnp.float32),
        grid=(1,),
        in_specs=[full(x), full(w1), full(b1), full(w2), full(b2),
                  full(w3), full(b3), full(w4), full(b4)],
        out_specs=pl.BlockSpec((half, 2), lambda i: (0, 0)),
    )(x, w1, b1, w2, b2, w3, b3, w4, b4)


# --------------------------------------------------------------------------------------
# Deterministic parameter construction (+ BatchNorm folding, bf16 weights / f32 biases)
# --------------------------------------------------------------------------------------

def _init_affine(key, cin, cout):
    kw, kb = jax.random.split(key)
    scale = 1.0 / (cin ** 0.5)
    w = jax.random.uniform(kw, (cin, cout), jnp.float32, -scale, scale)
    b = jax.random.uniform(kb, (cout,), jnp.float32, -scale, scale)
    return w, b


def _init_bn(key, c):
    k1, k2, k3, k4 = jax.random.split(key, 4)
    gamma = 1.0 + 0.1 * jax.random.normal(k1, (c,), jnp.float32)
    beta = 0.1 * jax.random.normal(k2, (c,), jnp.float32)
    mean = 0.1 * jax.random.normal(k3, (c,), jnp.float32)
    var = 1.0 + 0.1 * jnp.abs(jax.random.normal(k4, (c,), jnp.float32))
    return gamma, beta, mean, var


def _fold_bn(w, b, bn, eps=1e-5):
    gamma, beta, mean, var = bn
    s = gamma / jnp.sqrt(var + eps)
    w2 = (w * s[None, :]).astype(jnp.bfloat16)
    b2 = ((b - mean) * s + beta).reshape(1, -1)          # keep bias in f32
    return w2, b2


def init_params(key):
    keys = iter(jax.random.split(key, 40))
    nxt = lambda: next(keys)

    def conv_bn(cin, cout):
        w, b = _init_affine(nxt(), cin, cout)
        return _fold_bn(w, b, _init_bn(nxt(), cout))

    def plain(cin, cout):
        w, b = _init_affine(nxt(), cin, cout)
        return w.astype(jnp.bfloat16), b.reshape(1, -1)

    p = {}
    # STN3d
    p["stn_c1"] = conv_bn(3, 64)
    p["stn_c2"] = conv_bn(64, 128)
    p["stn_c3"] = conv_bn(128, 1024)
    p["stn_f1"] = conv_bn(1024, 512)
    p["stn_f2"] = conv_bn(512, 256)
    w, b = _init_affine(nxt(), 256, 9)
    b = b + jnp.eye(3, dtype=jnp.float32).reshape(-1)     # identity added in STN3d forward
    p["stn_f3"] = (w.astype(jnp.bfloat16), b.reshape(1, -1))
    # PointNetfeat
    p["feat_c1"] = conv_bn(3, 64)
    p["feat_c2"] = conv_bn(64, 128)
    p["feat_c3"] = conv_bn(128, 1024)
    # SiamesePointNet head: conv1 split along K; concat order is [global(1024), pointfeat(64)]
    w, b = conv_bn(1088, 512)
    p["head_c1_wg"] = w[:1024, :]
    p["head_c1_wp"] = w[1024:, :]
    p["head_c1_b"] = b
    p["head_c2"] = conv_bn(512, 256)
    p["head_f1"] = conv_bn(256, 512)   # fc1 + fc_bn1
    p["head_f2"] = conv_bn(512, 256)   # fc2 + fc_bn2 (dropout = identity in eval)
    p["head_f3"] = plain(256, 64)
    p["head_f4"] = plain(64, 2)
    return p


# --------------------------------------------------------------------------------------
# Forward pass (mirrors SiamesePointNet.forward)
# --------------------------------------------------------------------------------------

def siamese_pointnet_forward(x_ncl, p, tile_cap=None):
    """x_ncl: (B, 3, N) float32 (PyTorch NCL). Returns (logits (B//2, 2), trans (B,3,3), None)."""
    x = jnp.transpose(x_ncl, (0, 2, 1)).astype(jnp.bfloat16)   # (B, N, 3) channels-last
    B, N, _ = x.shape
    tile_n, vmem_limit = _tiling(N, tile_cap)

    # ---- STN3d: fused convs + max + FC stack (single call), f32 output ----
    trans9 = stn_chain(x, p, tile_n, vmem_limit)                # (B, 1, 9) f32
    trans = trans9.reshape(B, 3, 3)

    # ---- Fold the 3x3 input transform into feat conv1's weights (per batch) ----
    # (x @ trans) @ W1 == x @ (trans @ W1); BN scale (on Cout) commutes with the fold.
    w1 = p["feat_c1"][0].astype(jnp.float32)                    # (3, 64)
    w1b = jnp.einsum("bij,jk->bik", trans, w1).astype(jnp.bfloat16)   # (B, 3, 64)

    # ---- PointNetfeat + head convs: single two-phase fused call, f32 output ----
    h = feat_head_chain(x, w1b, p, tile_n, vmem_limit)          # (B, 1, 256) f32

    # ---- FC stack + siamese abs-diff + fc4 ----
    logits = head_fc_stack(h.reshape(B, 256), p)                # (B//2, 2) f32

    return logits, trans, None   # trans_feat is None (feature_transform=False)


# --------------------------------------------------------------------------------------

if __name__ == "__main__":
    key = jax.random.PRNGKey(0)
    kp, kx = jax.random.split(key)

    params = init_params(kp)

    B, N = 4, 256                     # B must be even (siamese split); N = points per cloud
    x = jax.random.normal(kx, (B, 3, N), jnp.float32)

    # tile_cap=96: 3 point-tiles with a ragged tail (256 = 2*96 + 64), exercising the
    # max-accumulator path, the two-phase boundary, and the tail masking.
    fwd = jax.jit(functools.partial(siamese_pointnet_forward, tile_cap=96))
    logits, trans, trans_feat = fwd(x, params)
    jax.block_until_ready(logits)
    jax.block_until_ready(trans)

    assert logits.shape == (B // 2, 2)
    assert trans.shape == (B, 3, 3)
    assert trans_feat is None
    assert bool(jnp.all(jnp.isfinite(logits)))
    assert bool(jnp.all(jnp.isfinite(trans)))

    print("KERNEL_OK")
</pallas_src>

<mosaic_0001>
module attributes {stable_mosaic.version = 11 : i64} {
  func.func @_stn_chain_kernel(%arg0: i32, %arg1: i32, %arg2: memref<1x96x3xbf16, #tpu.memory_space<vmem>>, %arg3: memref<3x64xbf16, #tpu.memory_space<vmem>>, %arg4: memref<1x64xf32, #tpu.memory_space<vmem>>, %arg5: memref<64x128xbf16, #tpu.memory_space<vmem>>, %arg6: memref<1x128xf32, #tpu.memory_space<vmem>>, %arg7: memref<128x1024xbf16, #tpu.memory_space<vmem>>, %arg8: memref<1x1024xf32, #tpu.memory_space<vmem>>, %arg9: memref<1024x512xbf16, #tpu.memory_space<vmem>>, %arg10: memref<1x512xf32, #tpu.memory_space<vmem>>, %arg11: memref<512x256xbf16, #tpu.memory_space<vmem>>, %arg12: memref<1x256xf32, #tpu.memory_space<vmem>>, %arg13: memref<256x9xbf16, #tpu.memory_space<vmem>>, %arg14: memref<1x9xf32, #tpu.memory_space<vmem>>, %arg15: memref<1x1x9xf32, #tpu.memory_space<vmem>>, %arg16: memref<1x1024xf32, #tpu.memory_space<vmem>>) attributes {dimension_semantics = [#tpu.dimension_semantics<parallel>, #tpu.dimension_semantics<arbitrary>], iteration_bounds = array<i64: 4, 3>, scalar_prefetch = 0 : i64, scratch_operands = 1 : i64, tpu.core_type = #tpu.core_type<tc>, window_params = [{transform_indices = @transform_0, window_bounds = array<i64: 1, 96, 3>}, {pipeline_mode = #tpu.pipeline_mode<synchronous>, transform_indices = @transform_1, window_bounds = array<i64: 3, 64>}, {pipeline_mode = #tpu.pipeline_mode<synchronous>, transform_indices = @transform_2, window_bounds = array<i64: 1, 64>}, {pipeline_mode = #tpu.pipeline_mode<synchronous>, transform_indices = @transform_3, window_bounds = array<i64: 64, 128>}, {pipeline_mode = #tpu.pipeline_mode<synchronous>, transform_indices = @transform_4, window_bounds = array<i64: 1, 128>}, {pipeline_mode = #tpu.pipeline_mode<synchronous>, transform_indices = @transform_5, window_bounds = array<i64: 128, 1024>}, {pipeline_mode = #tpu.pipeline_mode<synchronous>, transform_indices = @transform_6, window_bounds = array<i64: 1, 1024>}, {pipeline_mode = #tpu.pipeline_mode<synchronous>, transform_indices = @transform_7, window_bounds = array<i64: 1024, 512>}, {pipeline_mode = #tpu.pipeline_mode<synchronous>, transform_indices = @transform_8, window_bounds = array<i64: 1, 512>}, {pipeline_mode = #tpu.pipeline_mode<synchronous>, transform_indices = @transform_9, window_bounds = array<i64: 512, 256>}, {pipeline_mode = #tpu.pipeline_mode<synchronous>, transform_indices = @transform_10, window_bounds = array<i64: 1, 256>}, {pipeline_mode = #tpu.pipeline_mode<synchronous>, transform_indices = @transform_11, window_bounds = array<i64: 256, 9>}, {pipeline_mode = #tpu.pipeline_mode<synchronous>, transform_indices = @transform_12, window_bounds = array<i64: 1, 9>}, {transform_indices = @transform_13, window_bounds = array<i64: 1, 1, 9>}]} {
    %c0_i32 = arith.constant 0 : i32
    %0 = arith.cmpi eq, %arg1, %c0_i32 : i32
    %1 = arith.extui %0 : i1 to i32
    %c0_i32_0 = arith.constant 0 : i32
    %2 = arith.cmpi ne, %1, %c0_i32_0 : i32
    scf.if %2 {
      %cst_24 = arith.constant 0xFF800000 : f32
      %41 = vector.broadcast %cst_24 : f32 to vector<1x1024xf32>
      %c0_25 = arith.constant 0 : index
      %c0_26 = arith.constant 0 : index
      %42 = vector.load %arg16[%c0_25, %c0_26] : memref<1x1024xf32, #tpu.memory_space<vmem>>, vector<1x1024xf32>
      tpu.vector_store %arg16[%c0_25, %c0_26], %41 {strides = array<i32>} : memref<1x1024xf32, #tpu.memory_space<vmem>>, vector<1x1024xf32>,
    } else {
    }
    %c0 = arith.constant 0 : index
    %c0_1 = arith.constant 0 : index
    %c0_2 = arith.constant 0 : index
    %3 = vector.load %arg2[%c0, %c0_1, %c0_2] : memref<1x96x3xbf16, #tpu.memory_space<vmem>>, vector<1x96x3xbf16>
    %4 = vector.shape_cast %3 : vector<1x96x3xbf16> to vector<96x3xbf16>
    %c0_3 = arith.constant 0 : index
    %c0_4 = arith.constant 0 : index
    %5 = vector.load %arg3[%c0_3, %c0_4] : memref<3x64xbf16, #tpu.memory_space<vmem>>, vector<3x64xbf16>
    %cst = arith.constant dense<0.000000e+00> : vector<96x64xf32>
    %6 = tpu.matmul %4, %5, %cst {dimension_numbers = #tpu.dot_dimension_numbers<[1], [0], [0], [1], [0, 0, 1, 1], [], []>} : vector<96x3xbf16>, vector<3x64xbf16>, vector<96x64xf32> -> vector<96x64xf32>
    %c0_5 = arith.constant 0 : index
    %c0_6 = arith.constant 0 : index
    %7 = vector.load %arg4[%c0_5, %c0_6] : memref<1x64xf32, #tpu.memory_space<vmem>>, vector<1x64xf32>
    %8 = vector.broadcast %7 : vector<1x64xf32> to vector<96x64xf32>
    %9 = arith.addf %6, %8 : vector<96x64xf32>
    %cst_7 = arith.constant 0.000000e+00 : f32
    %10 = vector.broadcast %cst_7 : f32 to vector<96x64xf32>
    %11 = arith.maximumf %9, %10 : vector<96x64xf32>
    %12 = arith.truncf %11 : vector<96x64xf32> to vector<96x64xbf16>
    %c0_8 = arith.constant 0 : index
    %c0_9 = arith.constant 0 : index
    %13 = vector.load %arg5[%c0_8, %c0_9] : memref<64x128xbf16, #tpu.memory_space<vmem>>, vector<64x128xbf16>
    %cst_10 = arith.constant dense<0.000000e+00> : vector<96x128xf32>
    %14 = tpu.matmul %12, %13, %cst_10 {dimension_numbers = #tpu.dot_dimension_numbers<[1], [0], [0], [1], [0, 0, 1, 1], [], []>} : vector<96x64xbf16>, vector<64x128xbf16>, vector<96x128xf32> -> vector<96x128xf32>
    %c0_11 = arith.constant 0 : index
    %c0_12 = arith.constant 0 : index
    %15 = vector.load %arg6[%c0_11, %c0_12] : memref<1x128xf32, #tpu.memory_space<vmem>>, vector<1x128xf32>
    %16 = vector.broadcast %15 : vector<1x128xf32> to vector<96x128xf32>
    %17 = arith.addf %14, %16 : vector<96x128xf32>
    %cst_13 = arith.constant 0.000000e+00 : f32
    %18 = vector.broadcast %cst_13 : f32 to vector<96x128xf32>
    %19 = arith.maximumf %17, %18 : vector<96x128xf32>
    %20 = arith.truncf %19 : vector<96x128xf32> to vector<96x128xbf16>
    %c0_14 = arith.constant 0 : index
    %c0_15 = arith.constant 0 : index
    %21 = vector.load %arg7[%c0_14, %c0_15] : memref<128x1024xbf16, #tpu.memory_space<vmem>>, vector<128x1024xbf16>
    %cst_16 = arith.constant dense<0.000000e+00> : vector<96x1024xf32>
    %22 = tpu.matmul %20, %21, %cst_16 {dimension_numbers = #tpu.dot_dimension_numbers<[1], [0], [0], [1], [0, 0, 1, 1], [], []>} : vector<96x128xbf16>, vector<128x1024xbf16>, vector<96x1024xf32> -> vector<96x1024xf32>
    %c96_i32 = arith.constant 96 : i32
    %23 = arith.muli %arg1, %c96_i32 : i32
    %24 = tpu.iota {dimensions = array<i32: 0>} : vector<96x1xi32>
    %25 = vector.broadcast %23 : i32 to vector<96x1xi32>
    %26 = arith.addi %25, %24 : vector<96x1xi32>
    %c256_i32 = arith.constant 256 : i32
    %27 = vector.broadcast %c256_i32 : i32 to vector<96x1xi32>
    %28 = arith.cmpi slt, %26, %27 : vector<96x1xi32>
    %cst_17 = arith.constant 0xFF800000 : f32
    %29 = vector.shape_cast %28 : vector<96x1xi1> to vector<96x1xi1>
    %30 = vector.broadcast %29 : vector<96x1xi1> to vector<96x1024xi1>
    %31 = vector.broadcast %cst_17 : f32 to vector<96x1024xf32>
    %32 = arith.select %30, %22, %31 : vector<96x1024xi1>, vector<96x1024xf32>
    %c0_18 = arith.constant 0 : index
    %c0_19 = arith.constant 0 : index
    %33 = vector.load %arg16[%c0_18, %c0_19] : memref<1x1024xf32, #tpu.memory_space<vmem>>, vector<1x1024xf32>
    %cst_20 = arith.constant dense<0xFF800000> : vector<1024xf32>
    %34 = vector.multi_reduction <maximumf>, %32, %cst_20 [0] : vector<96x1024xf32> to vector<1024xf32>
    %35 = vector.shape_cast %34 : vector<1024xf32> to vector<1x1024xf32>
    %36 = arith.maximumf %33, %35 : vector<1x1024xf32>
    %c0_21 = arith.constant 0 : index
    %c0_22 = arith.constant 0 : index
    %37 = vector.load %arg16[%c0_21, %c0_22] : memref<1x1024xf32, #tpu.memory_space<vmem>>, vector<1x1024xf32>
    tpu.vector_store %arg16[%c0_21, %c0_22], %36 {strides = array<i32>} : memref<1x1024xf32, #tpu.memory_space<vmem>>, vector<1x1024xf32>,
    %c2_i32 = arith.constant 2 : i32
    %38 = arith.cmpi eq, %arg1, %c2_i32 : i32
    %39 = arith.extui %38 : i1 to i32
    %c0_i32_23 = arith.constant 0 : i32
    %40 = arith.cmpi ne, %39, %c0_i32_23 : i32
    scf.if %40 {
      %c0_24 = arith.constant 0 : index
      %c0_25 = arith.constant 0 : index
      %41 = vector.load %arg16[%c0_24, %c0_25] : memref<1x1024xf32, #tpu.memory_space<vmem>>, vector<1x1024xf32>
      %c0_26 = arith.constant 0 : index
      %c0_27 = arith.constant 0 : index
      %42 = vector.load %arg8[%c0_26, %c0_27] : memref<1x1024xf32, #tpu.memory_space<vmem>>, vector<1x1024xf32>
      %43 = arith.addf %41, %42 : vector<1x1024xf32>
      %cst_28 = arith.constant 0.000000e+00 : f32
      %44 = vector.broadcast %cst_28 : f32 to vector<1x1024xf32>
      %45 = arith.maximumf %43, %44 : vector<1x1024xf32>
      %46 = arith.truncf %45 : vector<1x1024xf32> to vector<1x1024xbf16>
      %c0_29 = arith.constant 0 : index
      %c0_30 = arith.constant 0 : index
      %47 = vector.load %arg9[%c0_29, %c0_30] : memref<1024x512xbf16, #tpu.memory_space<vmem>>, vector<1024x512xbf16>
      %cst_31 = arith.constant dense<0.000000e+00> : vector<1x512xf32>
      %48 = tpu.matmul %46, %47, %cst_31 {dimension_numbers = #tpu.dot_dimension_numbers<[1], [0], [0], [1], [0, 0, 1, 1], [], []>} : vector<1x1024xbf16>, vector<1024x512xbf16>, vector<1x512xf32> -> vector<1x512xf32>
      %c0_32 = arith.constant 0 : index
      %c0_33 = arith.constant 0 : index
      %49 = vector.load %arg10[%c0_32, %c0_33] : memref<1x512xf32, #tpu.memory_space<vmem>>, vector<1x512xf32>
      %50 = arith.addf %48, %49 : vector<1x512xf32>
      %cst_34 = arith.constant 0.000000e+00 : f32
      %51 = vector.broadcast %cst_34 : f32 to vector<1x512xf32>
      %52 = arith.maximumf %50, %51 : vector<1x512xf32>
      %53 = arith.truncf %52 : vector<1x512xf32> to vector<1x512xbf16>
      %c0_35 = arith.constant 0 : index
      %c0_36 = arith.constant 0 : index
      %54 = vector.load %arg11[%c0_35, %c0_36] : memref<512x256xbf16, #tpu.memory_space<vmem>>, vector<512x256xbf16>
      %cst_37 = arith.constant dense<0.000000e+00> : vector<1x256xf32>
      %55 = tpu.matmul %53, %54, %cst_37 {dimension_numbers = #tpu.dot_dimension_numbers<[1], [0], [0], [1], [0, 0, 1, 1], [], []>} : vector<1x512xbf16>, vector<512x256xbf16>, vector<1x256xf32> -> vector<1x256xf32>
      %c0_38 = arith.constant 0 : index
      %c0_39 = arith.constant 0 : index
      %56 = vector.load %arg12[%c0_38, %c0_39] : memref<1x256xf32, #tpu.memory_space<vmem>>, vector<1x256xf32>
      %57 = arith.addf %55, %56 : vector<1x256xf32>
      %cst_40 = arith.constant 0.000000e+00 : f32
      %58 = vector.broadcast %cst_40 : f32 to vector<1x256xf32>
      %59 = arith.maximumf %57, %58 : vector<1x256xf32>
      %60 = arith.truncf %59 : vector<1x256xf32> to vector<1x256xbf16>
      %c0_41 = arith.constant 0 : index
      %c0_42 = arith.constant 0 : index
      %61 = vector.load %arg13[%c0_41, %c0_42] : memref<256x9xbf16, #tpu.memory_space<vmem>>, vector<256x9xbf16>
      %cst_43 = arith.constant dense<0.000000e+00> : vector<1x9xf32>
      %62 = tpu.matmul %60, %61, %cst_43 {dimension_numbers = #tpu.dot_dimension_numbers<[1], [0], [0], [1], [0, 0, 1, 1], [], []>} : vector<1x256xbf16>, vector<256x9xbf16>, vector<1x9xf32> -> vector<1x9xf32>
      %c0_44 = arith.constant 0 : index
      %c0_45 = arith.constant 0 : index
      %63 = vector.load %arg14[%c0_44, %c0_45] : memref<1x9xf32, #tpu.memory_space<vmem>>, vector<1x9xf32>
      %64 = arith.addf %62, %63 : vector<1x9xf32>
      %c0_46 = arith.constant 0 : index
      %c0_47 = arith.constant 0 : index
      %c0_48 = arith.constant 0 : index
      %65 = vector.load %arg15[%c0_46, %c0_47, %c0_48] : memref<1x1x9xf32, #tpu.memory_space<vmem>>, vector<1x1x9xf32>
      %66 = vector.shape_cast %65 : vector<1x1x9xf32> to vector<1x9xf32>
      %67 = vector.shape_cast %64 : vector<1x9xf32> to vector<1x1x9xf32>
      tpu.vector_store %arg15[%c0_46, %c0_47, %c0_48], %67 {strides = array<i32>} : memref<1x1x9xf32, #tpu.memory_space<vmem>>, vector<1x1x9xf32>,
    } else {
    }
    return
  }
  func.func @transform_0(%arg0: i32, %arg1: i32) -> (i32, i32, i32) {
    %c0_i32 = arith.constant 0 : i32
    %c0_i32_0 = arith.constant 0 : i32
    return %arg0, %arg1, %c0_i32 : i32, i32, i32
  }
  func.func @transform_1(%arg0: i32, %arg1: i32) -> (i32, i32) {
    %c0_i32 = arith.constant 0 : i32
    %c0_i32_0 = arith.constant 0 : i32
    %c0_i32_1 = arith.constant 0 : i32
    return %c0_i32, %c0_i32_0 : i32, i32
  }
  func.func @transform_2(%arg0: i32, %arg1: i32) -> (i32, i32) {
    %c0_i32 = arith.constant 0 : i32
    %c0_i32_0 = arith.constant 0 : i32
    %c0_i32_1 = arith.constant 0 : i32
    return %c0_i32, %c0_i32_0 : i32, i32
  }
  func.func @transform_3(%arg0: i32, %arg1: i32) -> (i32, i32) {
    %c0_i32 = arith.constant 0 : i32
    %c0_i32_0 = arith.constant 0 : i32
    %c0_i32_1 = arith.constant 0 : i32
    return %c0_i32, %c0_i32_0 : i32, i32
  }
  func.func @transform_4(%arg0: i32, %arg1: i32) -> (i32, i32) {
    %c0_i32 = arith.constant 0 : i32
    %c0_i32_0 = arith.constant 0 : i32
    %c0_i32_1 = arith.constant 0 : i32
    return %c0_i32, %c0_i32_0 : i32, i32
  }
  func.func @transform_5(%arg0: i32, %arg1: i32) -> (i32, i32) {
    %c0_i32 = arith.constant 0 : i32
    %c0_i32_0 = arith.constant 0 : i32
    %c0_i32_1 = arith.constant 0 : i32
    return %c0_i32, %c0_i32_0 : i32, i32
  }
  func.func @transform_6(%arg0: i32, %arg1: i32) -> (i32, i32) {
    %c0_i32 = arith.constant 0 : i32
    %c0_i32_0 = arith.constant 0 : i32
    %c0_i32_1 = arith.constant 0 : i32
    return %c0_i32, %c0_i32_0 : i32, i32
  }
  func.func @transform_7(%arg0: i32, %arg1: i32) -> (i32, i32) {
    %c0_i32 = arith.constant 0 : i32
    %c0_i32_0 = arith.constant 0 : i32
    %c0_i32_1 = arith.constant 0 : i32
    return %c0_i32, %c0_i32_0 : i32, i32
  }
  func.func @transform_8(%arg0: i32, %arg1: i32) -> (i32, i32) {
    %c0_i32 = arith.constant 0 : i32
    %c0_i32_0 = arith.constant 0 : i32
    %c0_i32_1 = arith.constant 0 : i32
    return %c0_i32, %c0_i32_0 : i32, i32
  }
  func.func @transform_9(%arg0: i32, %arg1: i32) -> (i32, i32) {
    %c0_i32 = arith.constant 0 : i32
    %c0_i32_0 = arith.constant 0 : i32
    %c0_i32_1 = arith.constant 0 : i32
    return %c0_i32, %c0_i32_0 : i32, i32
  }
  func.func @transform_10(%arg0: i32, %arg1: i32) -> (i32, i32) {
    %c0_i32 = arith.constant 0 : i32
    %c0_i32_0 = arith.constant 0 : i32
    %c0_i32_1 = arith.constant 0 : i32
    return %c0_i32, %c0_i32_0 : i32, i32
  }
  func.func @transform_11(%arg0: i32, %arg1: i32) -> (i32, i32) {
    %c0_i32 = arith.constant 0 : i32
    %c0_i32_0 = arith.constant 0 : i32
    %c0_i32_1 = arith.constant 0 : i32
    return %c0_i32, %c0_i32_0 : i32, i32
  }
  func.func @transform_12(%arg0: i32, %arg1: i32) -> (i32, i32) {
    %c0_i32 = arith.constant 0 : i32
    %c0_i32_0 = arith.constant 0 : i32
    %c0_i32_1 = arith.constant 0 : i32
    return %c0_i32, %c0_i32_0 : i32, i32
  }
  func.func @transform_13(%arg0: i32, %arg1: i32) -> (i32, i32, i32) {
    %c0_i32 = arith.constant 0 : i32
    %c0_i32_0 = arith.constant 0 : i32
    %c0_i32_1 = arith.constant 0 : i32
    return %arg0, %c0_i32, %c0_i32_0 : i32, i32, i32
  }
}

module attributes {stable_mosaic.version = 11 : i64} {
  func.func @_feat_head_kernel(%arg0: i32, %arg1: i32, %arg2: memref<1x96x3xbf16, #tpu.memory_space<vmem>>, %arg3: memref<1x3x64xbf16, #tpu.memory_space<vmem>>, %arg4: memref<1x64xf32, #tpu.memory_space<vmem>>, %arg5: memref<64x128xbf16, #tpu.memory_space<vmem>>, %arg6: memref<1x128xf32, #tpu.memory_space<vmem>>, %arg7: memref<128x1024xbf16, #tpu.memory_space<vmem>>, %arg8: memref<1x1024xf32, #tpu.memory_space<vmem>>, %arg9: memref<1024x512xbf16, #tpu.memory_space<vmem>>, %arg10: memref<64x512xbf16, #tpu.memory_space<vmem>>, %arg11: memref<1x512xf32, #tpu.memory_space<vmem>>, %arg12: memref<512x256xbf16, #tpu.memory_space<vmem>>, %arg13: memref<1x256xf32, #tpu.memory_space<vmem>>, %arg14: memref<1x1x256xf32, #tpu.memory_space<vmem>>, %arg15: memref<1x1024xf32, #tpu.memory_space<vmem>>, %arg16: memref<1x512xf32, #tpu.memory_space<vmem>>, %arg17: memref<1x256xf32, #tpu.memory_space<vmem>>) attributes {dimension_semantics = [#tpu.dimension_semantics<parallel>, #tpu.dimension_semantics<arbitrary>], iteration_bounds = array<i64: 4, 6>, scalar_prefetch = 0 : i64, scratch_operands = 3 : i64, tpu.core_type = #tpu.core_type<tc>, window_params = [{transform_indices = @transform_0, window_bounds = array<i64: 1, 96, 3>}, {transform_indices = @transform_1, window_bounds = array<i64: 1, 3, 64>}, {pipeline_mode = #tpu.pipeline_mode<synchronous>, transform_indices = @transform_2, window_bounds = array<i64: 1, 64>}, {pipeline_mode = #tpu.pipeline_mode<synchronous>, transform_indices = @transform_3, window_bounds = array<i64: 64, 128>}, {pipeline_mode = #tpu.pipeline_mode<synchronous>, transform_indices = @transform_4, window_bounds = array<i64: 1, 128>}, {pipeline_mode = #tpu.pipeline_mode<synchronous>, transform_indices = @transform_5, window_bounds = array<i64: 128, 1024>}, {pipeline_mode = #tpu.pipeline_mode<synchronous>, transform_indices = @transform_6, window_bounds = array<i64: 1, 1024>}, {pipeline_mode = #tpu.pipeline_mode<synchronous>, transform_indices = @transform_7, window_bounds = array<i64: 1024, 512>}, {pipeline_mode = #tpu.pipeline_mode<synchronous>, transform_indices = @transform_8, window_bounds = array<i64: 64, 512>}, {pipeline_mode = #tpu.pipeline_mode<synchronous>, transform_indices = @transform_9, window_bounds = array<i64: 1, 512>}, {pipeline_mode = #tpu.pipeline_mode<synchronous>, transform_indices = @transform_10, window_bounds = array<i64: 512, 256>}, {pipeline_mode = #tpu.pipeline_mode<synchronous>, transform_indices = @transform_11, window_bounds = array<i64: 1, 256>}, {transform_indices = @transform_12, window_bounds = array<i64: 1, 1, 256>}]} {
    %c0_i32 = arith.constant 0 : i32
    %0 = arith.cmpi eq, %arg1, %c0_i32 : i32
    %1 = arith.extui %0 : i1 to i32
    %c0_i32_0 = arith.constant 0 : i32
    %2 = arith.cmpi ne, %1, %c0_i32_0 : i32
    scf.if %2 {
      %cst_20 = arith.constant 0xFF800000 : f32
      %42 = vector.broadcast %cst_20 : f32 to vector<1x1024xf32>
      %c0_21 = arith.constant 0 : index
      %c0_22 = arith.constant 0 : index
      %43 = vector.load %arg15[%c0_21, %c0_22] : memref<1x1024xf32, #tpu.memory_space<vmem>>, vector<1x1024xf32>
      tpu.vector_store %arg15[%c0_21, %c0_22], %42 {strides = array<i32>} : memref<1x1024xf32, #tpu.memory_space<vmem>>, vector<1x1024xf32>,
      %cst_23 = arith.constant 0xFF800000 : f32
      %44 = vector.broadcast %cst_23 : f32 to vector<1x256xf32>
      %c0_24 = arith.constant 0 : index
      %c0_25 = arith.constant 0 : index
      %45 = vector.load %arg17[%c0_24, %c0_25] : memref<1x256xf32, #tpu.memory_space<vmem>>, vector<1x256xf32>
      tpu.vector_store %arg17[%c0_24, %c0_25], %44 {strides = array<i32>} : memref<1x256xf32, #tpu.memory_space<vmem>>, vector<1x256xf32>,
    } else {
    }
    %c0 = arith.constant 0 : index
    %c0_1 = arith.constant 0 : index
    %c0_2 = arith.constant 0 : index
    %3 = vector.load %arg2[%c0, %c0_1, %c0_2] : memref<1x96x3xbf16, #tpu.memory_space<vmem>>, vector<1x96x3xbf16>
    %4 = vector.shape_cast %3 : vector<1x96x3xbf16> to vector<96x3xbf16>
    %c0_3 = arith.constant 0 : index
    %c0_4 = arith.constant 0 : index
    %c0_5 = arith.constant 0 : index
    %5 = vector.load %arg3[%c0_3, %c0_4, %c0_5] : memref<1x3x64xbf16, #tpu.memory_space<vmem>>, vector<1x3x64xbf16>
    %6 = vector.shape_cast %5 : vector<1x3x64xbf16> to vector<3x64xbf16>
    %cst = arith.constant dense<0.000000e+00> : vector<96x64xf32>
    %7 = tpu.matmul %4, %6, %cst {dimension_numbers = #tpu.dot_dimension_numbers<[1], [0], [0], [1], [0, 0, 1, 1], [], []>} : vector<96x3xbf16>, vector<3x64xbf16>, vector<96x64xf32> -> vector<96x64xf32>
    %c0_6 = arith.constant 0 : index
    %c0_7 = arith.constant 0 : index
    %8 = vector.load %arg4[%c0_6, %c0_7] : memref<1x64xf32, #tpu.memory_space<vmem>>, vector<1x64xf32>
    %9 = vector.broadcast %8 : vector<1x64xf32> to vector<96x64xf32>
    %10 = arith.addf %7, %9 : vector<96x64xf32>
    %cst_8 = arith.constant 0.000000e+00 : f32
    %11 = vector.broadcast %cst_8 : f32 to vector<96x64xf32>
    %12 = arith.maximumf %10, %11 : vector<96x64xf32>
    %13 = arith.truncf %12 : vector<96x64xf32> to vector<96x64xbf16>
    %c3_i32 = arith.constant 3 : i32
    %c0_i32_9 = arith.constant 0 : i32
    %14 = arith.cmpi eq, %c3_i32, %c0_i32_9 : i32
    %c1_i32 = arith.constant 1 : i32
    %15 = arith.select %14, %c1_i32, %c3_i32 : i32
    %16 = arith.remsi %arg1, %15 : i32
    %c0_i32_10 = arith.constant 0 : i32
    %17 = arith.cmpi ne, %16, %c0_i32_10 : i32
    %c0_i32_11 = arith.constant 0 : i32
    %18 = arith.cmpi slt, %16, %c0_i32_11 : i32
    %c0_i32_12 = arith.constant 0 : i32
    %19 = arith.cmpi slt, %15, %c0_i32_12 : i32
    %20 = arith.xori %18, %19 : i1
    %21 = arith.andi %20, %17 : i1
    %22 = arith.addi %16, %15 : i32
    %23 = arith.select %21, %22, %16 : i32
    %c96_i32 = arith.constant 96 : i32
    %24 = arith.muli %23, %c96_i32 : i32
    %25 = tpu.iota {dimensions = array<i32: 0>} : vector<96x1xi32>
    %26 = vector.broadcast %24 : i32 to vector<96x1xi32>
    %27 = arith.addi %26, %25 : vector<96x1xi32>
    %c256_i32 = arith.constant 256 : i32
    %28 = vector.broadcast %c256_i32 : i32 to vector<96x1xi32>
    %29 = arith.cmpi slt, %27, %28 : vector<96x1xi32>
    %c3_i32_13 = arith.constant 3 : i32
    %30 = arith.cmpi slt, %arg1, %c3_i32_13 : i32
    %31 = arith.extui %30 : i1 to i32
    %c0_i32_14 = arith.constant 0 : i32
    %32 = arith.cmpi ne, %31, %c0_i32_14 : i32
    scf.if %32 {
      %c0_20 = arith.constant 0 : index
      %c0_21 = arith.constant 0 : index
      %42 = vector.load %arg5[%c0_20, %c0_21] : memref<64x128xbf16, #tpu.memory_space<vmem>>, vector<64x128xbf16>
      %cst_22 = arith.constant dense<0.000000e+00> : vector<96x128xf32>
      %43 = tpu.matmul %13, %42, %cst_22 {dimension_numbers = #tpu.dot_dimension_numbers<[1], [0], [0], [1], [0, 0, 1, 1], [], []>} : vector<96x64xbf16>, vector<64x128xbf16>, vector<96x128xf32> -> vector<96x128xf32>
      %c0_23 = arith.constant 0 : index
      %c0_24 = arith.constant 0 : index
      %44 = vector.load %arg6[%c0_23, %c0_24] : memref<1x128xf32, #tpu.memory_space<vmem>>, vector<1x128xf32>
      %45 = vector.broadcast %44 : vector<1x128xf32> to vector<96x128xf32>
      %46 = arith.addf %43, %45 : vector<96x128xf32>
      %cst_25 = arith.constant 0.000000e+00 : f32
      %47 = vector.broadcast %cst_25 : f32 to vector<96x128xf32>
      %48 = arith.maximumf %46, %47 : vector<96x128xf32>
      %49 = arith.truncf %48 : vector<96x128xf32> to vector<96x128xbf16>
      %c0_26 = arith.constant 0 : index
      %c0_27 = arith.constant 0 : index
      %50 = vector.load %arg7[%c0_26, %c0_27] : memref<128x1024xbf16, #tpu.memory_space<vmem>>, vector<128x1024xbf16>
      %cst_28 = arith.constant dense<0.000000e+00> : vector<96x1024xf32>
      %51 = tpu.matmul %49, %50, %cst_28 {dimension_numbers = #tpu.dot_dimension_numbers<[1], [0], [0], [1], [0, 0, 1, 1], [], []>} : vector<96x128xbf16>, vector<128x1024xbf16>, vector<96x1024xf32> -> vector<96x1024xf32>
      %cst_29 = arith.constant 0xFF800000 : f32
      %52 = vector.shape_cast %29 : vector<96x1xi1> to vector<96x1xi1>
      %53 = vector.broadcast %52 : vector<96x1xi1> to vector<96x1024xi1>
      %54 = vector.broadcast %cst_29 : f32 to vector<96x1024xf32>
      %55 = arith.select %53, %51, %54 : vector<96x1024xi1>, vector<96x1024xf32>
      %c0_30 = arith.constant 0 : index
      %c0_31 = arith.constant 0 : index
      %56 = vector.load %arg15[%c0_30, %c0_31] : memref<1x1024xf32, #tpu.memory_space<vmem>>, vector<1x1024xf32>
      %cst_32 = arith.constant dense<0xFF800000> : vector<1024xf32>
      %57 = vector.multi_reduction <maximumf>, %55, %cst_32 [0] : vector<96x1024xf32> to vector<1024xf32>
      %58 = vector.shape_cast %57 : vector<1024xf32> to vector<1x1024xf32>
      %59 = arith.maximumf %56, %58 : vector<1x1024xf32>
      %c0_33 = arith.constant 0 : index
      %c0_34 = arith.constant 0 : index
      %60 = vector.load %arg15[%c0_33, %c0_34] : memref<1x1024xf32, #tpu.memory_space<vmem>>, vector<1x1024xf32>
      tpu.vector_store %arg15[%c0_33, %c0_34], %59 {strides = array<i32>} : memref<1x1024xf32, #tpu.memory_space<vmem>>, vector<1x1024xf32>,
    } else {
    }
    %c3_i32_15 = arith.constant 3 : i32
    %33 = arith.cmpi eq, %arg1, %c3_i32_15 : i32
    %34 = arith.extui %33 : i1 to i32
    %c0_i32_16 = arith.constant 0 : i32
    %35 = arith.cmpi ne, %34, %c0_i32_16 : i32
    scf.if %35 {
      %c0_20 = arith.constant 0 : index
      %c0_21 = arith.constant 0 : index
      %42 = vector.load %arg15[%c0_20, %c0_21] : memref<1x1024xf32, #tpu.memory_space<vmem>>, vector<1x1024xf32>
      %c0_22 = arith.constant 0 : index
      %c0_23 = arith.constant 0 : index
      %43 = vector.load %arg8[%c0_22, %c0_23] : memref<1x1024xf32, #tpu.memory_space<vmem>>, vector<1x1024xf32>
      %44 = arith.addf %42, %43 : vector<1x1024xf32>
      %45 = arith.truncf %44 : vector<1x1024xf32> to vector<1x1024xbf16>
      %c0_24 = arith.constant 0 : index
      %c0_25 = arith.constant 0 : index
      %46 = vector.load %arg9[%c0_24, %c0_25] : memref<1024x512xbf16, #tpu.memory_space<vmem>>, vector<1024x512xbf16>
      %cst_26 = arith.constant dense<0.000000e+00> : vector<1x512xf32>
      %47 = tpu.matmul %45, %46, %cst_26 {dimension_numbers = #tpu.dot_dimension_numbers<[1], [0], [0], [1], [0, 0, 1, 1], [], []>} : vector<1x1024xbf16>, vector<1024x512xbf16>, vector<1x512xf32> -> vector<1x512xf32>
      %c0_27 = arith.constant 0 : index
      %c0_28 = arith.constant 0 : index
      %48 = vector.load %arg11[%c0_27, %c0_28] : memref<1x512xf32, #tpu.memory_space<vmem>>, vector<1x512xf32>
      %49 = arith.addf %47, %48 : vector<1x512xf32>
      %c0_29 = arith.constant 0 : index
      %c0_30 = arith.constant 0 : index
      %50 = vector.load %arg16[%c0_29, %c0_30] : memref<1x512xf32, #tpu.memory_space<vmem>>, vector<1x512xf32>
      tpu.vector_store %arg16[%c0_29, %c0_30], %49 {strides = array<i32>} : memref<1x512xf32, #tpu.memory_space<vmem>>, vector<1x512xf32>,
    } else {
    }
    %c3_i32_17 = arith.constant 3 : i32
    %36 = arith.cmpi sge, %arg1, %c3_i32_17 : i32
    %37 = arith.extui %36 : i1 to i32
    %c0_i32_18 = arith.constant 0 : i32
    %38 = arith.cmpi ne, %37, %c0_i32_18 : i32
    scf.if %38 {
      %c0_20 = arith.constant 0 : index
      %c0_21 = arith.constant 0 : index
      %42 = vector.load %arg10[%c0_20, %c0_21] : memref<64x512xbf16, #tpu.memory_space<vmem>>, vector<64x512xbf16>
      %cst_22 = arith.constant dense<0.000000e+00> : vector<96x512xf32>
      %43 = tpu.matmul %13, %42, %cst_22 {dimension_numbers = #tpu.dot_dimension_numbers<[1], [0], [0], [1], [0, 0, 1, 1], [], []>} : vector<96x64xbf16>, vector<64x512xbf16>, vector<96x512xf32> -> vector<96x512xf32>
      %c0_23 = arith.constant 0 : index
      %c0_24 = arith.constant 0 : index
      %44 = vector.load %arg16[%c0_23, %c0_24] : memref<1x512xf32, #tpu.memory_space<vmem>>, vector<1x512xf32>
      %45 = vector.broadcast %44 : vector<1x512xf32> to vector<96x512xf32>
      %46 = arith.addf %43, %45 : vector<96x512xf32>
      %cst_25 = arith.constant 0.000000e+00 : f32
      %47 = vector.broadcast %cst_25 : f32 to vector<96x512xf32>
      %48 = arith.maximumf %46, %47 : vector<96x512xf32>
      %49 = arith.truncf %48 : vector<96x512xf32> to vector<96x512xbf16>
      %c0_26 = arith.constant 0 : index
      %c0_27 = arith.constant 0 : index
      %50 = vector.load %arg12[%c0_26, %c0_27] : memref<512x256xbf16, #tpu.memory_space<vmem>>, vector<512x256xbf16>
      %cst_28 = arith.constant dense<0.000000e+00> : vector<96x256xf32>
      %51 = tpu.matmul %49, %50, %cst_28 {dimension_numbers = #tpu.dot_dimension_numbers<[1], [0], [0], [1], [0, 0, 1, 1], [], []>} : vector<96x512xbf16>, vector<512x256xbf16>, vector<96x256xf32> -> vector<96x256xf32>
      %cst_29 = arith.constant 0xFF800000 : f32
      %52 = vector.shape_cast %29 : vector<96x1xi1> to vector<96x1xi1>
      %53 = vector.broadcast %52 : vector<96x1xi1> to vector<96x256xi1>
      %54 = vector.broadcast %cst_29 : f32 to vector<96x256xf32>
      %55 = arith.select %53, %51, %54 : vector<96x256xi1>, vector<96x256xf32>
      %c0_30 = arith.constant 0 : index
      %c0_31 = arith.constant 0 : index
      %56 = vector.load %arg17[%c0_30, %c0_31] : memref<1x256xf32, #tpu.memory_space<vmem>>, vector<1x256xf32>
      %cst_32 = arith.constant dense<0xFF800000> : vector<256xf32>
      %57 = vector.multi_reduction <maximumf>, %55, %cst_32 [0] : vector<96x256xf32> to vector<256xf32>
      %58 = vector.shape_cast %57 : vector<256xf32> to vector<1x256xf32>
      %59 = arith.maximumf %56, %58 : vector<1x256xf32>
      %c0_33 = arith.constant 0 : index
      %c0_34 = arith.constant 0 : index
      %60 = vector.load %arg17[%c0_33, %c0_34] : memref<1x256xf32, #tpu.memory_space<vmem>>, vector<1x256xf32>
      tpu.vector_store %arg17[%c0_33, %c0_34], %59 {strides = array<i32>} : memref<1x256xf32, #tpu.memory_space<vmem>>, vector<1x256xf32>,
    } else {
    }
    %c5_i32 = arith.constant 5 : i32
    %39 = arith.cmpi eq, %arg1, %c5_i32 : i32
    %40 = arith.extui %39 : i1 to i32
    %c0_i32_19 = arith.constant 0 : i32
    %41 = arith.cmpi ne, %40, %c0_i32_19 : i32
    scf.if %41 {
      %c0_20 = arith.constant 0 : index
      %c0_21 = arith.constant 0 : index
      %42 = vector.load %arg17[%c0_20, %c0_21] : memref<1x256xf32, #tpu.memory_space<vmem>>, vector<1x256xf32>
      %c0_22 = arith.constant 0 : index
      %c0_23 = arith.constant 0 : index
      %43 = vector.load %arg13[%c0_22, %c0_23] : memref<1x256xf32, #tpu.memory_space<vmem>>, vector<1x256xf32>
      %44 = arith.addf %42, %43 : vector<1x256xf32>
      %cst_24 = arith.constant 0.000000e+00 : f32
      %45 = vector.broadcast %cst_24 : f32 to vector<1x256xf32>
      %46 = arith.maximumf %44, %45 : vector<1x256xf32>
      %c0_25 = arith.constant 0 : index
      %c0_26 = arith.constant 0 : index
      %c0_27 = arith.constant 0 : index
      %47 = vector.load %arg14[%c0_25, %c0_26, %c0_27] : memref<1x1x256xf32, #tpu.memory_space<vmem>>, vector<1x1x256xf32>
      %48 = vector.shape_cast %47 : vector<1x1x256xf32> to vector<1x256xf32>
      %49 = vector.shape_cast %46 : vector<1x256xf32> to vector<1x1x256xf32>
      tpu.vector_store %arg14[%c0_25, %c0_26, %c0_27], %49 {strides = array<i32>} : memref<1x1x256xf32, #tpu.memory_space<vmem>>, vector<1x1x256xf32>,
    } else {
    }
    return
  }
  func.func @transform_0(%arg0: i32, %arg1: i32) -> (i32, i32, i32) {
    %c3_i32 = arith.constant 3 : i32
    %c0_i32 = arith.constant 0 : i32
    %0 = arith.cmpi eq, %c3_i32, %c0_i32 : i32
    %c1_i32 = arith.constant 1 : i32
    %1 = arith.select %0, %c1_i32, %c3_i32 : i32
    %2 = arith.remsi %arg1, %1 : i32
    %c0_i32_0 = arith.constant 0 : i32
    %3 = arith.cmpi ne, %2, %c0_i32_0 : i32
    %c0_i32_1 = arith.constant 0 : i32
    %4 = arith.cmpi slt, %2, %c0_i32_1 : i32
    %c0_i32_2 = arith.constant 0 : i32
    %5 = arith.cmpi slt, %1, %c0_i32_2 : i32
    %6 = arith.xori %4, %5 : i1
    %7 = arith.andi %6, %3 : i1
    %8 = arith.addi %2, %1 : i32
    %9 = arith.select %7, %8, %2 : i32
    %c0_i32_3 = arith.constant 0 : i32
    %c0_i32_4 = arith.constant 0 : i32
    return %arg0, %9, %c0_i32_3 : i32, i32, i32
  }
  func.func @transform_1(%arg0: i32, %arg1: i32) -> (i32, i32, i32) {
    %c0_i32 = arith.constant 0 : i32
    %c0_i32_0 = arith.constant 0 : i32
    %c0_i32_1 = arith.constant 0 : i32
    return %arg0, %c0_i32, %c0_i32_0 : i32, i32, i32
  }
  func.func @transform_2(%arg0: i32, %arg1: i32) -> (i32, i32) {
    %c0_i32 = arith.constant 0 : i32
    %c0_i32_0 = arith.constant 0 : i32
    %c0_i32_1 = arith.constant 0 : i32
    return %c0_i32, %c0_i32_0 : i32, i32
  }
  func.func @transform_3(%arg0: i32, %arg1: i32) -> (i32, i32) {
    %c0_i32 = arith.constant 0 : i32
    %c0_i32_0 = arith.constant 0 : i32
    %c0_i32_1 = arith.constant 0 : i32
    return %c0_i32, %c0_i32_0 : i32, i32
  }
  func.func @transform_4(%arg0: i32, %arg1: i32) -> (i32, i32) {
    %c0_i32 = arith.constant 0 : i32
    %c0_i32_0 = arith.constant 0 : i32
    %c0_i32_1 = arith.constant 0 : i32
    return %c0_i32, %c0_i32_0 : i32, i32
  }
  func.func @transform_5(%arg0: i32, %arg1: i32) -> (i32, i32) {
    %c0_i32 = arith.constant 0 : i32
    %c0_i32_0 = arith.constant 0 : i32
    %c0_i32_1 = arith.constant 0 : i32
    return %c0_i32, %c0_i32_0 : i32, i32
  }
  func.func @transform_6(%arg0: i32, %arg1: i32) -> (i32, i32) {
    %c0_i32 = arith.constant 0 : i32
    %c0_i32_0 = arith.constant 0 : i32
    %c0_i32_1 = arith.constant 0 : i32
    return %c0_i32, %c0_i32_0 : i32, i32
  }
  func.func @transform_7(%arg0: i32, %arg1: i32) -> (i32, i32) {
    %c0_i32 = arith.constant 0 : i32
    %c0_i32_0 = arith.constant 0 : i32
    %c0_i32_1 = arith.constant 0 : i32
    return %c0_i32, %c0_i32_0 : i32, i32
  }
  func.func @transform_8(%arg0: i32, %arg1: i32) -> (i32, i32) {
    %c0_i32 = arith.constant 0 : i32
    %c0_i32_0 = arith.constant 0 : i32
    %c0_i32_1 = arith.constant 0 : i32
    return %c0_i32, %c0_i32_0 : i32, i32
  }
  func.func @transform_9(%arg0: i32, %arg1: i32) -> (i32, i32) {
    %c0_i32 = arith.constant 0 : i32
    %c0_i32_0 = arith.constant 0 : i32
    %c0_i32_1 = arith.constant 0 : i32
    return %c0_i32, %c0_i32_0 : i32, i32
  }
  func.func @transform_10(%arg0: i32, %arg1: i32) -> (i32, i32) {
    %c0_i32 = arith.constant 0 : i32
    %c0_i32_0 = arith.constant 0 : i32
    %c0_i32_1 = arith.constant 0 : i32
    return %c0_i32, %c0_i32_0 : i32, i32
  }
  func.func @transform_11(%arg0: i32, %arg1: i32) -> (i32, i32) {
    %c0_i32 = arith.constant 0 : i32
    %c0_i32_0 = arith.constant 0 : i32
    %c0_i32_1 = arith.constant 0 : i32
    return %c0_i32, %c0_i32_0 : i32, i32
  }
  func.func @transform_12(%arg0: i32, %arg1: i32) -> (i32, i32, i32) {
    %c0_i32 = arith.constant 0 : i32
    %c0_i32_0 = arith.constant 0 : i32
    %c0_i32_1 = arith.constant 0 : i32
    return %arg0, %c0_i32, %c0_i32_0 : i32, i32, i32
  }
}

module attributes {stable_mosaic.version = 11 : i64} {
  func.func @_head_fc_kernel(%arg0: i32, %arg1: memref<4x256xf32, #tpu.memory_space<vmem>>, %arg2: memref<256x512xbf16, #tpu.memory_space<vmem>>, %arg3: memref<1x512xf32, #tpu.memory_space<vmem>>, %arg4: memref<512x256xbf16, #tpu.memory_space<vmem>>, %arg5: memref<1x256xf32, #tpu.memory_space<vmem>>, %arg6: memref<256x64xbf16, #tpu.memory_space<vmem>>, %arg7: memref<1x64xf32, #tpu.memory_space<vmem>>, %arg8: memref<64x2xbf16, #tpu.memory_space<vmem>>, %arg9: memref<1x2xf32, #tpu.memory_space<vmem>>, %arg10: memref<2x2xf32, #tpu.memory_space<vmem>>) attributes {dimension_semantics = [#tpu.dimension_semantics<arbitrary>], iteration_bounds = array<i64: 1>, scalar_prefetch = 0 : i64, scratch_operands = 0 : i64, tpu.core_type = #tpu.core_type<tc>, window_params = [{pipeline_mode = #tpu.pipeline_mode<synchronous>, transform_indices = @transform_0, window_bounds = array<i64: 4, 256>}, {pipeline_mode = #tpu.pipeline_mode<synchronous>, transform_indices = @transform_1, window_bounds = array<i64: 256, 512>}, {pipeline_mode = #tpu.pipeline_mode<synchronous>, transform_indices = @transform_2, window_bounds = array<i64: 1, 512>}, {pipeline_mode = #tpu.pipeline_mode<synchronous>, transform_indices = @transform_3, window_bounds = array<i64: 512, 256>}, {pipeline_mode = #tpu.pipeline_mode<synchronous>, transform_indices = @transform_4, window_bounds = array<i64: 1, 256>}, {pipeline_mode = #tpu.pipeline_mode<synchronous>, transform_indices = @transform_5, window_bounds = array<i64: 256, 64>}, {pipeline_mode = #tpu.pipeline_mode<synchronous>, transform_indices = @transform_6, window_bounds = array<i64: 1, 64>}, {pipeline_mode = #tpu.pipeline_mode<synchronous>, transform_indices = @transform_7, window_bounds = array<i64: 64, 2>}, {pipeline_mode = #tpu.pipeline_mode<synchronous>, transform_indices = @transform_8, window_bounds = array<i64: 1, 2>}, {pipeline_mode = #tpu.pipeline_mode<synchronous>, transform_indices = @transform_9, window_bounds = array<i64: 2, 2>}]} {
    %c0 = arith.constant 0 : index
    %c0_0 = arith.constant 0 : index
    %0 = vector.load %arg1[%c0, %c0_0] : memref<4x256xf32, #tpu.memory_space<vmem>>, vector<4x256xf32>
    %1 = arith.truncf %0 : vector<4x256xf32> to vector<4x256xbf16>
    %c0_1 = arith.constant 0 : index
    %c0_2 = arith.constant 0 : index
    %2 = vector.load %arg2[%c0_1, %c0_2] : memref<256x512xbf16, #tpu.memory_space<vmem>>, vector<256x512xbf16>
    %cst = arith.constant dense<0.000000e+00> : vector<4x512xf32>
    %3 = tpu.matmul %1, %2, %cst {dimension_numbers = #tpu.dot_dimension_numbers<[1], [0], [0], [1], [0, 0, 1, 1], [], []>} : vector<4x256xbf16>, vector<256x512xbf16>, vector<4x512xf32> -> vector<4x512xf32>
    %c0_3 = arith.constant 0 : index
    %c0_4 = arith.constant 0 : index
    %4 = vector.load %arg3[%c0_3, %c0_4] : memref<1x512xf32, #tpu.memory_space<vmem>>, vector<1x512xf32>
    %5 = vector.broadcast %4 : vector<1x512xf32> to vector<4x512xf32>
    %6 = arith.addf %3, %5 : vector<4x512xf32>
    %cst_5 = arith.constant 0.000000e+00 : f32
    %7 = vector.broadcast %cst_5 : f32 to vector<4x512xf32>
    %8 = arith.maximumf %6, %7 : vector<4x512xf32>
    %9 = arith.truncf %8 : vector<4x512xf32> to vector<4x512xbf16>
    %c0_6 = arith.constant 0 : index
    %c0_7 = arith.constant 0 : index
    %10 = vector.load %arg4[%c0_6, %c0_7] : memref<512x256xbf16, #tpu.memory_space<vmem>>, vector<512x256xbf16>
    %cst_8 = arith.constant dense<0.000000e+00> : vector<4x256xf32>
    %11 = tpu.matmul %9, %10, %cst_8 {dimension_numbers = #tpu.dot_dimension_numbers<[1], [0], [0], [1], [0, 0, 1, 1], [], []>} : vector<4x512xbf16>, vector<512x256xbf16>, vector<4x256xf32> -> vector<4x256xf32>
    %c0_9 = arith.constant 0 : index
    %c0_10 = arith.constant 0 : index
    %12 = vector.load %arg5[%c0_9, %c0_10] : memref<1x256xf32, #tpu.memory_space<vmem>>, vector<1x256xf32>
    %13 = vector.broadcast %12 : vector<1x256xf32> to vector<4x256xf32>
    %14 = arith.addf %11, %13 : vector<4x256xf32>
    %cst_11 = arith.constant 0.000000e+00 : f32
    %15 = vector.broadcast %cst_11 : f32 to vector<4x256xf32>
    %16 = arith.maximumf %14, %15 : vector<4x256xf32>
    %17 = arith.truncf %16 : vector<4x256xf32> to vector<4x256xbf16>
    %c0_12 = arith.constant 0 : index
    %c0_13 = arith.constant 0 : index
    %18 = vector.load %arg6[%c0_12, %c0_13] : memref<256x64xbf16, #tpu.memory_space<vmem>>, vector<256x64xbf16>
    %cst_14 = arith.constant dense<0.000000e+00> : vector<4x64xf32>
    %19 = tpu.matmul %17, %18, %cst_14 {dimension_numbers = #tpu.dot_dimension_numbers<[1], [0], [0], [1], [0, 0, 1, 1], [], []>} : vector<4x256xbf16>, vector<256x64xbf16>, vector<4x64xf32> -> vector<4x64xf32>
    %c0_15 = arith.constant 0 : index
    %c0_16 = arith.constant 0 : index
    %20 = vector.load %arg7[%c0_15, %c0_16] : memref<1x64xf32, #tpu.memory_space<vmem>>, vector<1x64xf32>
    %21 = vector.broadcast %20 : vector<1x64xf32> to vector<4x64xf32>
    %22 = arith.addf %19, %21 : vector<4x64xf32>
    %23 = vector.extract_strided_slice %22 {offsets = [0, 0], sizes = [2, 64], strides = [1, 1]} : vector<4x64xf32> to vector<2x64xf32>
    %24 = vector.extract_strided_slice %22 {offsets = [2, 0], sizes = [2, 64], strides = [1, 1]} : vector<4x64xf32> to vector<2x64xf32>
    %25 = arith.subf %23, %24 : vector<2x64xf32>
    %26 = math.absf %25 : vector<2x64xf32>
    %c0_17 = arith.constant 0 : index
    %c0_18 = arith.constant 0 : index
    %27 = vector.load %arg8[%c0_17, %c0_18] : memref<64x2xbf16, #tpu.memory_space<vmem>>, vector<64x2xbf16>
    %28 = arith.extf %27 : vector<64x2xbf16> to vector<64x2xf32>
    %cst_19 = arith.constant dense<0.000000e+00> : vector<2x2xf32>
    %29 = tpu.matmul %26, %28, %cst_19 {dimension_numbers = #tpu.dot_dimension_numbers<[1], [0], [0], [1], [0, 0, 1, 1], [], []>} : vector<2x64xf32>, vector<64x2xf32>, vector<2x2xf32> -> vector<2x2xf32>
    %c0_20 = arith.constant 0 : index
    %c0_21 = arith.constant 0 : index
    %30 = vector.load %arg9[%c0_20, %c0_21] : memref<1x2xf32, #tpu.memory_space<vmem>>, vector<1x2xf32>
    %31 = vector.broadcast %30 : vector<1x2xf32> to vector<2x2xf32>
    %32 = arith.addf %29, %31 : vector<2x2xf32>
    %c0_22 = arith.constant 0 : index
    %c0_23 = arith.constant 0 : index
    %33 = vector.load %arg10[%c0_22, %c0_23] : memref<2x2xf32, #tpu.memory_space<vmem>>, vector<2x2xf32>
    tpu.vector_store %arg10[%c0_22, %c0_23], %32 {strides = array<i32>} : memref<2x2xf32, #tpu.memory_space<vmem>>, vector<2x2xf32>,
    return
  }
  func.func @transform_0(%arg0: i32) -> (i32, i32) {
    %c0_i32 = arith.constant 0 : i32
    %c0_i32_0 = arith.constant 0 : i32
    %c0_i32_1 = arith.constant 0 : i32
    return %c0_i32, %c0_i32_0 : i32, i32
  }
  func.func @transform_1(%arg0: i32) -> (i32, i32) {
    %c0_i32 = arith.constant 0 : i32
    %c0_i32_0 = arith.constant 0 : i32
    %c0_i32_1 = arith.constant 0 : i32
    return %c0_i32, %c0_i32_0 : i32, i32
  }
  func.func @transform_2(%arg0: i32) -> (i32, i32) {
    %c0_i32 = arith.constant 0 : i32
    %c0_i32_0 = arith.constant 0 : i32
    %c0_i32_1 = arith.constant 0 : i32
    return %c0_i32, %c0_i32_0 : i32, i32
  }
  func.func @transform_3(%arg0: i32) -> (i32, i32) {
    %c0_i32 = arith.constant 0 : i32
    %c0_i32_0 = arith.constant 0 : i32
    %c0_i32_1 = arith.constant 0 : i32
    return %c0_i32, %c0_i32_0 : i32, i32
  }
  func.func @transform_4(%arg0: i32) -> (i32, i32) {
    %c0_i32 = arith.constant 0 : i32
    %c0_i32_0 = arith.constant 0 : i32
    %c0_i32_1 = arith.constant 0 : i32
    return %c0_i32, %c0_i32_0 : i32, i32
  }
  func.func @transform_5(%arg0: i32) -> (i32, i32) {
    %c0_i32 = arith.constant 0 : i32
    %c0_i32_0 = arith.constant 0 : i32
    %c0_i32_1 = arith.constant 0 : i32
    return %c0_i32, %c0_i32_0 : i32, i32
  }
  func.func @transform_6(%arg0: i32) -> (i32, i32) {
    %c0_i32 = arith.constant 0 : i32
    %c0_i32_0 = arith.constant 0 : i32
    %c0_i32_1 = arith.constant 0 : i32
    return %c0_i32, %c0_i32_0 : i32, i32
  }
  func.func @transform_7(%arg0: i32) -> (i32, i32) {
    %c0_i32 = arith.constant 0 : i32
    %c0_i32_0 = arith.constant 0 : i32
    %c0_i32_1 = arith.constant 0 : i32
    return %c0_i32, %c0_i32_0 : i32, i32
  }
  func.func @transform_8(%arg0: i32) -> (i32, i32) {
    %c0_i32 = arith.constant 0 : i32
    %c0_i32_0 = arith.constant 0 : i32
    %c0_i32_1 = arith.constant 0 : i32
    return %c0_i32, %c0_i32_0 : i32, i32
  }
  func.func @transform_9(%arg0: i32) -> (i32, i32) {
    %c0_i32 = arith.constant 0 : i32
    %c0_i32_0 = arith.constant 0 : i32
    %c0_i32_1 = arith.constant 0 : i32
    return %c0_i32, %c0_i32_0 : i32, i32
  }
}

</mosaic_0001>

<llo_original>
// kernel: siamese_pointnet_forward.5
$region0: #{siamese_pointnet_forward.5}
  #allocation0 [shape = 'u32[]', space=smem, size = 0x4, offset = 0x4, fixed_abs, tag = 'smem constant byte address 0x4 - core index']
  #allocation1 [shape = 'u32[144,128]{1,0:T(1,128)}', space=vmem, size = 0x12000, scoped, tag = 'internal scratch']
  %s0 = inlined_call_operand.vmem [shape: f32[4,256], index: 0, kind: input, shape index: {}]
  %s1 = inlined_call_operand.vmem [shape: bf16[256,512], index: 1, kind: input, shape index: {}]
  %s2 = inlined_call_operand.vmem [shape: f32[1,512], index: 2, kind: input, shape index: {}]
  %s3 = inlined_call_operand.vmem [shape: bf16[512,256], index: 3, kind: input, shape index: {}]
  %s4 = inlined_call_operand.vmem [shape: f32[1,256], index: 4, kind: input, shape index: {}]
  %s5 = inlined_call_operand.vmem [shape: bf16[256,64], index: 5, kind: input, shape index: {}]
  %s6 = inlined_call_operand.vmem [shape: f32[1,64], index: 6, kind: input, shape index: {}]
  %s7 = inlined_call_operand.vmem [shape: bf16[64,2], index: 7, kind: input, shape index: {}]
  %s8 = inlined_call_operand.vmem [shape: f32[1,2], index: 8, kind: input, shape index: {}]
  %s9 = inlined_call_operand.hbm [shape: f32[2,2], index: 9, kind: output, shape index: {}]
  %s10 = sld [smem:[#allocation0]]
  $region46: #{siamese_pointnet_forward.5} parent=0
    _
  %s12 = ssub.s32 1, %s10
  %s13 = scalar_select 0, %s12, %s10
  $region1: #{siamese_pointnet_forward.5} parent=0
    #allocation2 [shape = 'u8[1024]{0}', space=vmem, size = 0x400, scoped, tag = 'output window, operand 0, single buffered']
    #allocation3 [shape = 's32[1]{0}', space=sflag, size = 0x4, scoped, tag = 'scoped memory for siamese_pointnet_forward.5']
    %14 = vsyncpa [#allocation3], 0
    // Predicated region
    $region2: #{siamese_pointnet_forward.5} parent=1 // pred_check
      _
    $region3: #{siamese_pointnet_forward.5} parent=1 // pred_check_branch
      %16 = sbr.rel (0) target = $region5
    $region4: #{siamese_pointnet_forward.5} parent=1 // pred_region
      _
    $region5: #{siamese_pointnet_forward.5} parent=1 // pred_fallthru
      _
    // Predicated region
    $region6: #{siamese_pointnet_forward.5} parent=1 // pred_check
      _
    $region7: #{siamese_pointnet_forward.5} parent=1 // pred_check_branch
      %18 = sbr.rel (0) target = $region9
    $region8: #{siamese_pointnet_forward.5} parent=1 // pred_region
      _
    $region9: #{siamese_pointnet_forward.5} parent=1 // pred_fallthru
      _
    // Predicated region
    $region10: #{siamese_pointnet_forward.5} parent=1 // pred_check
      _
    $region11: #{siamese_pointnet_forward.5} parent=1 // pred_check_branch
      %20 = sbr.rel (0) target = $region13
    $region12: #{siamese_pointnet_forward.5} parent=1 // pred_region
      _
    $region13: #{siamese_pointnet_forward.5} parent=1 // pred_fallthru
      _
    // Predicated region
    $region14: #{siamese_pointnet_forward.5} parent=1 // pred_check
      _
    $region15: #{siamese_pointnet_forward.5} parent=1 // pred_check_branch
      %22 = sbr.rel (0) target = $region17
    $region16: #{siamese_pointnet_forward.5} parent=1 // pred_region
      _
    $region17: #{siamese_pointnet_forward.5} parent=1 // pred_fallthru
      _
    // Predicated region
    $region18: #{siamese_pointnet_forward.5} parent=1 // pred_check
      _
    $region19: #{siamese_pointnet_forward.5} parent=1 // pred_check_branch
      %24 = sbr.rel (0) target = $region21
    $region20: #{siamese_pointnet_forward.5} parent=1 // pred_region
      _
    $region21: #{siamese_pointnet_forward.5} parent=1 // pred_fallthru
      _
    // Predicated region
    $region22: #{siamese_pointnet_forward.5} parent=1 // pred_check
      _
    $region23: #{siamese_pointnet_forward.5} parent=1 // pred_check_branch
      %26 = sbr.rel (0) target = $region25
    $region24: #{siamese_pointnet_forward.5} parent=1 // pred_region
      _
    $region25: #{siamese_pointnet_forward.5} parent=1 // pred_fallthru
      _
    // Predicated region
    $region26: #{siamese_pointnet_forward.5} parent=1 // pred_check
      _
    $region27: #{siamese_pointnet_forward.5} parent=1 // pred_check_branch
      %28 = sbr.rel (0) target = $region29
    $region28: #{siamese_pointnet_forward.5} parent=1 // pred_region
      _
    $region29: #{siamese_pointnet_forward.5} parent=1 // pred_fallthru
      _
    // Predicated region
    $region30: #{siamese_pointnet_forward.5} parent=1 // pred_check
      _
    $region31: #{siamese_pointnet_forward.5} parent=1 // pred_check_branch
      %30 = sbr.rel (0) target = $region33
    $region32: #{siamese_pointnet_forward.5} parent=1 // pred_region
      _
    $region33: #{siamese_pointnet_forward.5} parent=1 // pred_fallthru
      _
    // Predicated region
    $region34: #{siamese_pointnet_forward.5} parent=1 // pred_check
      _
    $region35: #{siamese_pointnet_forward.5} parent=1 // pred_check_branch
      %32 = sbr.rel (0) target = $region37
    $region36: #{siamese_pointnet_forward.5} parent=1 // pred_region
      _
    $region37: #{siamese_pointnet_forward.5} parent=1 // pred_fallthru
      _
    %v34 = vld [vmem:[%s0] sm:$0xff]
    %v36 = vcombine.high %v34, %v34
    %v38 = vpack.c.bf16 %v34, %v34
    %v39 = vpack.c.bf16 %v36, %v36
    %v40 = vld [vmem:[%s1] sm:$0xff]
    %v41 = vld [vmem:[%s1 + $0x8] sm:$0xff]
    %v42 = vld [vmem:[%s1 + $0x10] sm:$0xff]
    %v43 = vld [vmem:[%s1 + $0x18] sm:$0xff]
    %v44 = vld [vmem:[%s1 + $0x20] sm:$0xff]
    %v45 = vld [vmem:[%s1 + $0x28] sm:$0xff]
    %v46 = vld [vmem:[%s1 + $0x30] sm:$0xff]
    %v47 = vld [vmem:[%s1 + $0x38] sm:$0xff]
    %v48 = vld [vmem:[%s1 + $0x40] sm:$0xff]
    %v49 = vld [vmem:[%s1 + $0x48] sm:$0xff]
    %v50 = vld [vmem:[%s1 + $0x50] sm:$0xff]
    %v51 = vld [vmem:[%s1 + $0x58] sm:$0xff]
    %v52 = vld [vmem:[%s1 + $0x60] sm:$0xff]
    %v53 = vld [vmem:[%s1 + $0x68] sm:$0xff]
    %v54 = vld [vmem:[%s1 + $0x70] sm:$0xff]
    %v55 = vld [vmem:[%s1 + $0x78] sm:$0xff]
    %v56 = vld [vmem:[%s1 + $0x80] sm:$0xff]
    %v57 = vld [vmem:[%s1 + $0x88] sm:$0xff]
    %v58 = vld [vmem:[%s1 + $0x90] sm:$0xff]
    %v59 = vld [vmem:[%s1 + $0x98] sm:$0xff]
    %v60 = vld [vmem:[%s1 + $0xa0] sm:$0xff]
    %v61 = vld [vmem:[%s1 + $0xa8] sm:$0xff]
    %v62 = vld [vmem:[%s1 + $0xb0] sm:$0xff]
    %v63 = vld [vmem:[%s1 + $0xb8] sm:$0xff]
    %v64 = vld [vmem:[%s1 + $0xc0] sm:$0xff]
    %v65 = vld [vmem:[%s1 + $0xc8] sm:$0xff]
    %v66 = vld [vmem:[%s1 + $0xd0] sm:$0xff]
    %v67 = vld [vmem:[%s1 + $0xd8] sm:$0xff]
    %v68 = vld [vmem:[%s1 + $0xe0] sm:$0xff]
    %v69 = vld [vmem:[%s1 + $0xe8] sm:$0xff]
    %v70 = vld [vmem:[%s1 + $0xf0] sm:$0xff]
    %v71 = vld [vmem:[%s1 + $0xf8] sm:$0xff]
    %v72 = vld [vmem:[%s1 + $0x100] sm:$0xff]
    %v73 = vld [vmem:[%s1 + $0x108] sm:$0xff]
    %v74 = vld [vmem:[%s1 + $0x110] sm:$0xff]
    %v75 = vld [vmem:[%s1 + $0x118] sm:$0xff]
    %v76 = vld [vmem:[%s1 + $0x120] sm:$0xff]
    %v77 = vld [vmem:[%s1 + $0x128] sm:$0xff]
    %v78 = vld [vmem:[%s1 + $0x130] sm:$0xff]
    %v79 = vld [vmem:[%s1 + $0x138] sm:$0xff]
    %v80 = vld [vmem:[%s1 + $0x140] sm:$0xff]
    %v81 = vld [vmem:[%s1 + $0x148] sm:$0xff]
    %v82 = vld [vmem:[%s1 + $0x150] sm:$0xff]
    %v83 = vld [vmem:[%s1 + $0x158] sm:$0xff]
    %v84 = vld [vmem:[%s1 + $0x160] sm:$0xff]
    %v85 = vld [vmem:[%s1 + $0x168] sm:$0xff]
    %v86 = vld [vmem:[%s1 + $0x170] sm:$0xff]
    %v87 = vld [vmem:[%s1 + $0x178] sm:$0xff]
    %v88 = vld [vmem:[%s1 + $0x180] sm:$0xff]
    %v89 = vld [vmem:[%s1 + $0x188] sm:$0xff]
    %v90 = vld [vmem:[%s1 + $0x190] sm:$0xff]
    %v91 = vld [vmem:[%s1 + $0x198] sm:$0xff]
    %v92 = vld [vmem:[%s1 + $0x1a0] sm:$0xff]
    %v93 = vld [vmem:[%s1 + $0x1a8] sm:$0xff]
    %v94 = vld [vmem:[%s1 + $0x1b0] sm:$0xff]
    %v95 = vld [vmem:[%s1 + $0x1b8] sm:$0xff]
    %v96 = vld [vmem:[%s1 + $0x1c0] sm:$0xff]
    %v97 = vld [vmem:[%s1 + $0x1c8] sm:$0xff]
    %v98 = vld [vmem:[%s1 + $0x1d0] sm:$0xff]
    %v99 = vld [vmem:[%s1 + $0x1d8] sm:$0xff]
    %v100 = vld [vmem:[%s1 + $0x1e0] sm:$0xff]
    %v101 = vld [vmem:[%s1 + $0x1e8] sm:$0xff]
    %v102 = vld [vmem:[%s1 + $0x1f0] sm:$0xff]
    %v103 = vld [vmem:[%s1 + $0x1f8] sm:$0xff]
    %v104 = vld [vmem:[%s2] sm:$0xf]
    %v106 = vlaneseq
    %v107 = vshrl.u32 %v106, 7
    %v108 = vsub.s32 0, %v107
    %v109 = vrot.slane %v104, %v108
    %v110 = vlaneseq
    %v111 = vshrl.u32 %v110, 7
    %v112 = vsub.s32 1, %v111
    %v113 = vrot.slane %v104, %v112
    %v114 = vlaneseq
    %v115 = vshrl.u32 %v114, 7
    %v116 = vsub.s32 2, %v115
    %v117 = vrot.slane %v104, %v116
    %v118 = vlaneseq
    %v119 = vshrl.u32 %v118, 7
    %v120 = vsub.s32 3, %v119
    %v121 = vrot.slane %v104, %v120
    %v190 = vunpack.c.l.b16 %v40
    %v191 = vunpack.c.h.b16 %v40
    %v192 = vunpack.c.l.b16 %v41
    %v193 = vunpack.c.h.b16 %v41
    %v194 = vunpack.c.l.b16 %v42
    %v195 = vunpack.c.h.b16 %v42
    %v196 = vunpack.c.l.b16 %v43
    %v197 = vunpack.c.h.b16 %v43
    %v198 = vunpack.c.l.b16 %v44
    %v199 = vunpack.c.h.b16 %v44
    %v200 = vunpack.c.l.b16 %v45
    %v201 = vunpack.c.h.b16 %v45
    %v202 = vunpack.c.l.b16 %v46
    %v203 = vunpack.c.h.b16 %v46
    %v204 = vunpack.c.l.b16 %v47
    %v205 = vunpack.c.h.b16 %v47
    %v206 = vunpack.c.l.b16 %v48
    %v207 = vunpack.c.h.b16 %v48
    %v208 = vunpack.c.l.b16 %v49
    %v209 = vunpack.c.h.b16 %v49
    %v210 = vunpack.c.l.b16 %v50
    %v211 = vunpack.c.h.b16 %v50
    %v212 = vunpack.c.l.b16 %v51
    %v213 = vunpack.c.h.b16 %v51
    %v214 = vunpack.c.l.b16 %v52
    %v215 = vunpack.c.h.b16 %v52
    %v216 = vunpack.c.l.b16 %v53
    %v217 = vunpack.c.h.b16 %v53
    %v218 = vunpack.c.l.b16 %v54
    %v219 = vunpack.c.h.b16 %v54
    %v220 = vunpack.c.l.b16 %v55
    %v221 = vunpack.c.h.b16 %v55
    %v222 = vunpack.c.l.b16 %v56
    %v223 = vunpack.c.h.b16 %v56
    %v224 = vunpack.c.l.b16 %v57
    %v225 = vunpack.c.h.b16 %v57
    %v226 = vunpack.c.l.b16 %v58
    %v227 = vunpack.c.h.b16 %v58
    %v228 = vunpack.c.l.b16 %v59
    %v229 = vunpack.c.h.b16 %v59
    %v230 = vunpack.c.l.b16 %v60
    %v231 = vunpack.c.h.b16 %v60
    %v232 = vunpack.c.l.b16 %v61
    %v233 = vunpack.c.h.b16 %v61
    %v234 = vunpack.c.l.b16 %v62
    %v235 = vunpack.c.h.b16 %v62
    %v236 = vunpack.c.l.b16 %v63
    %v237 = vunpack.c.h.b16 %v63
    %v238 = vunpack.c.l.b16 %v64
    %v239 = vunpack.c.h.b16 %v64
    %v240 = vunpack.c.l.b16 %v65
    %v241 = vunpack.c.h.b16 %v65
    %v242 = vunpack.c.l.b16 %v66
    %v243 = vunpack.c.h.b16 %v66
    %v244 = vunpack.c.l.b16 %v67
    %v245 = vunpack.c.h.b16 %v67
    %v246 = vunpack.c.l.b16 %v68
    %v247 = vunpack.c.h.b16 %v68
    %v248 = vunpack.c.l.b16 %v69
    %v249 = vunpack.c.h.b16 %v69
    %v250 = vunpack.c.l.b16 %v70
    %v251 = vunpack.c.h.b16 %v70
    %v252 = vunpack.c.l.b16 %v71
    %v253 = vunpack.c.h.b16 %v71
    %v254 = vunpack.c.l.b16 %v72
    %v255 = vunpack.c.h.b16 %v72
    %v256 = vunpack.c.l.b16 %v73
    %v257 = vunpack.c.h.b16 %v73
    %v258 = vunpack.c.l.b16 %v74
    %v259 = vunpack.c.h.b16 %v74
    %v260 = vunpack.c.l.b16 %v75
    %v261 = vunpack.c.h.b16 %v75
    %v262 = vunpack.c.l.b16 %v76
    %v263 = vunpack.c.h.b16 %v76
    %v264 = vunpack.c.l.b16 %v77
    %v265 = vunpack.c.h.b16 %v77
    %v266 = vunpack.c.l.b16 %v78
    %v267 = vunpack.c.h.b16 %v78
    %v268 = vunpack.c.l.b16 %v79
    %v269 = vunpack.c.h.b16 %v79
    %v270 = vunpack.c.l.b16 %v80
    %v271 = vunpack.c.h.b16 %v80
    %v272 = vunpack.c.l.b16 %v81
    %v273 = vunpack.c.h.b16 %v81
    %v274 = vunpack.c.l.b16 %v82
    %v275 = vunpack.c.h.b16 %v82
    %v276 = vunpack.c.l.b16 %v83
    %v277 = vunpack.c.h.b16 %v83
    %v278 = vunpack.c.l.b16 %v84
    %v279 = vunpack.c.h.b16 %v84
    %v280 = vunpack.c.l.b16 %v85
    %v281 = vunpack.c.h.b16 %v85
    %v282 = vunpack.c.l.b16 %v86
    %v283 = vunpack.c.h.b16 %v86
    %v284 = vunpack.c.l.b16 %v87
    %v285 = vunpack.c.h.b16 %v87
    %v286 = vunpack.c.l.b16 %v88
    %v287 = vunpack.c.h.b16 %v88
    %v288 = vunpack.c.l.b16 %v89
    %v289 = vunpack.c.h.b16 %v89
    %v290 = vunpack.c.l.b16 %v90
    %v291 = vunpack.c.h.b16 %v90
    %v292 = vunpack.c.l.b16 %v91
    %v293 = vunpack.c.h.b16 %v91
    %v294 = vunpack.c.l.b16 %v92
    %v295 = vunpack.c.h.b16 %v92
    %v296 = vunpack.c.l.b16 %v93
    %v297 = vunpack.c.h.b16 %v93
    %v298 = vunpack.c.l.b16 %v94
    %v299 = vunpack.c.h.b16 %v94
    %v300 = vunpack.c.l.b16 %v95
    %v301 = vunpack.c.h.b16 %v95
    %v302 = vunpack.c.l.b16 %v96
    %v303 = vunpack.c.h.b16 %v96
    %v304 = vunpack.c.l.b16 %v97
    %v305 = vunpack.c.h.b16 %v97
    %v306 = vunpack.c.l.b16 %v98
    %v307 = vunpack.c.h.b16 %v98
    %v308 = vunpack.c.l.b16 %v99
    %v309 = vunpack.c.h.b16 %v99
    %v310 = vunpack.c.l.b16 %v100
    %v311 = vunpack.c.h.b16 %v100
    %v312 = vunpack.c.l.b16 %v101
    %v313 = vunpack.c.h.b16 %v101
    %v314 = vunpack.c.l.b16 %v102
    %v315 = vunpack.c.h.b16 %v102
    %v316 = vunpack.c.l.b16 %v103
    %v317 = vunpack.c.h.b16 %v103
    %v318 = vpack.c.b16 %v194, %v190
    %v319 = vpack.c.b16 %v195, %v191
    %v320 = vpack.c.b16 %v196, %v192
    %v321 = vpack.c.b16 %v197, %v193
    %v322 = vpack.c.b16 %v202, %v198
    %v323 = vpack.c.b16 %v203, %v199
    %v324 = vpack.c.b16 %v204, %v200
    %v325 = vpack.c.b16 %v205, %v201
    %v326 = vpack.c.b16 %v210, %v206
    %v327 = vpack.c.b16 %v211, %v207
    %v328 = vpack.c.b16 %v212, %v208
    %v329 = vpack.c.b16 %v213, %v209
    %v330 = vpack.c.b16 %v218, %v214
    %v331 = vpack.c.b16 %v219, %v215
    %v332 = vpack.c.b16 %v220, %v216
    %v333 = vpack.c.b16 %v221, %v217
    %v334 = vpack.c.b16 %v226, %v222
    %v335 = vpack.c.b16 %v227, %v223
    %v336 = vpack.c.b16 %v228, %v224
    %v337 = vpack.c.b16 %v229, %v225
    %v338 = vpack.c.b16 %v234, %v230
    %v339 = vpack.c.b16 %v235, %v231
    %v340 = vpack.c.b16 %v236, %v232
    %v341 = vpack.c.b16 %v237, %v233
    %v342 = vpack.c.b16 %v242, %v238
    %v343 = vpack.c.b16 %v243, %v239
    %v344 = vpack.c.b16 %v244, %v240
    %v345 = vpack.c.b16 %v245, %v241
    %v346 = vpack.c.b16 %v250, %v246
    %v347 = vpack.c.b16 %v251, %v247
    %v348 = vpack.c.b16 %v252, %v248
    %v349 = vpack.c.b16 %v253, %v249
    %v350 = vpack.c.b16 %v258, %v254
    %v351 = vpack.c.b16 %v259, %v255
    %v352 = vpack.c.b16 %v260, %v256
    %v353 = vpack.c.b16 %v261, %v257
    %v354 = vpack.c.b16 %v266, %v262
    %v355 = vpack.c.b16 %v267, %v263
    %v356 = vpack.c.b16 %v268, %v264
    %v357 = vpack.c.b16 %v269, %v265
    %v358 = vpack.c.b16 %v274, %v270
    %v359 = vpack.c.b16 %v275, %v271
    %v360 = vpack.c.b16 %v276, %v272
    %v361 = vpack.c.b16 %v277, %v273
    %v362 = vpack.c.b16 %v282, %v278
    %v363 = vpack.c.b16 %v283, %v279
    %v364 = vpack.c.b16 %v284, %v280
    %v365 = vpack.c.b16 %v285, %v281
    %v366 = vpack.c.b16 %v290, %v286
    %v367 = vpack.c.b16 %v291, %v287
    %v368 = vpack.c.b16 %v292, %v288
    %v369 = vpack.c.b16 %v293, %v289
    %v370 = vpack.c.b16 %v298, %v294
    %v371 = vpack.c.b16 %v299, %v295
    %v372 = vpack.c.b16 %v300, %v296
    %v373 = vpack.c.b16 %v301, %v297
    %v374 = vpack.c.b16 %v306, %v302
    %v375 = vpack.c.b16 %v307, %v303
    %v376 = vpack.c.b16 %v308, %v304
    %v377 = vpack.c.b16 %v309, %v305
    %v378 = vpack.c.b16 %v314, %v310
    %v379 = vpack.c.b16 %v315, %v311
    %v380 = vpack.c.b16 %v316, %v312
    %v381 = vpack.c.b16 %v317, %v313
    %446 = vmatprep.subr.bf16.mxu0 %v347
    %447 = vmatpush1.bf16.msra.mxu0 %v346
    %448 = vmatprep.subr.bf16.mxu0 %v343
    %449 = vmatpush1.bf16.msra.mxu0 %v342
    %450 = vmatprep.subr.bf16.mxu0 %v339
    %451 = vmatpush1.bf16.msra.mxu0 %v338
    %452 = vmatprep.subr.bf16.mxu0 %v335
    %453 = vmatpush1.bf16.msra.mxu0 %v334
    %454 = vmatprep.subr.bf16.mxu0 %v331
    %455 = vmatpush1.bf16.msra.mxu0 %v330
    %456 = vmatprep.subr.bf16.mxu0 %v327
    %457 = vmatpush1.bf16.msra.mxu0 %v326
    %458 = vmatprep.subr.bf16.mxu0 %v323
    %459 = vmatpush1.bf16.msra.mxu0 %v322
    %460 = vmatprep.subr.bf16.mxu0 %v319
    %461 = vmatpush1.bf16.msra.mxu0 %v318
    %462 = vmatprep.subr.bf16.mxu0 %v379
    %463 = vmatpush2.bf16.msra.mxu0 %v378
    %464 = vmatprep.subr.bf16.mxu0 %v375
    %465 = vmatpush2.bf16.msra.mxu0 %v374
    %466 = vmatprep.subr.bf16.mxu0 %v371
    %467 = vmatpush2.bf16.msra.mxu0 %v370
    %468 = vmatprep.subr.bf16.mxu0 %v367
    %469 = vmatpush2.bf16.msra.mxu0 %v366
    %470 = vmatprep.subr.bf16.mxu0 %v363
    %471 = vmatpush2.bf16.msra.mxu0 %v362
    %472 = vmatprep.subr.bf16.mxu0 %v359
    %473 = vmatpush2.bf16.msra.mxu0 %v358
    %474 = vmatprep.subr.bf16.mxu0 %v355
    %475 = vmatpush2.bf16.msra.mxu0 %v354
    %476 = vmatprep.subr.bf16.mxu0 %v351
    %477 = vmatpush2.bf16.msra.mxu0 %v350
    %478 = vmatprep.mubr.bf16.mxu0 %v39
    %479 = vmatmul.mubr.bf16.gmra.mxu0 %v38
    %v480 = vpop.f32.mrf.mxu0
    %v481 = vadd.f32 %v109, %v480
    %v482 = vpop.f32.mrf.mxu0
    %v483 = vadd.f32 %v113, %v482
    %v484 = vpop.f32.mrf.mxu0
    %v485 = vpop.f32.mrf.mxu0
    %486 = vdwg.mxu0
    %487 = vmatprep.subr.bf16.mxu0 %v349
    %488 = vmatpush1.bf16.msra.mxu0 %v348
    %489 = vmatprep.subr.bf16.mxu0 %v345
    %490 = vmatpush1.bf16.msra.mxu0 %v344
    %491 = vmatprep.subr.bf16.mxu0 %v341
    %492 = vmatpush1.bf16.msra.mxu0 %v340
    %493 = vmatprep.subr.bf16.mxu0 %v337
    %494 = vmatpush1.bf16.msra.mxu0 %v336
    %495 = vmatprep.subr.bf16.mxu0 %v333
    %496 = vmatpush1.bf16.msra.mxu0 %v332
    %497 = vmatprep.subr.bf16.mxu0 %v329
    %498 = vmatpush1.bf16.msra.mxu0 %v328
    %499 = vmatprep.subr.bf16.mxu0 %v325
    %500 = vmatpush1.bf16.msra.mxu0 %v324
    %501 = vmatprep.subr.bf16.mxu0 %v321
    %502 = vmatpush1.bf16.msra.mxu0 %v320
    %503 = vmatprep.subr.bf16.mxu0 %v381
    %504 = vmatpush2.bf16.msra.mxu0 %v380
    %505 = vmatprep.subr.bf16.mxu0 %v377
    %506 = vmatpush2.bf16.msra.mxu0 %v376
    %507 = vmatprep.subr.bf16.mxu0 %v373
    %508 = vmatpush2.bf16.msra.mxu0 %v372
    %509 = vmatprep.subr.bf16.mxu0 %v369
    %510 = vmatpush2.bf16.msra.mxu0 %v368
    %511 = vmatprep.subr.bf16.mxu0 %v365
    %512 = vmatpush2.bf16.msra.mxu0 %v364
    %513 = vmatprep.subr.bf16.mxu0 %v361
    %514 = vmatpush2.bf16.msra.mxu0 %v360
    %515 = vmatprep.subr.bf16.mxu0 %v357
    %516 = vmatpush2.bf16.msra.mxu0 %v356
    %517 = vmatprep.subr.bf16.mxu0 %v353
    %518 = vmatpush2.bf16.msra.mxu0 %v352
    %519 = vmatprep.mubr.bf16.mxu0 %v39
    %520 = vmatmul.mubr.bf16.gmra.mxu0 %v38
    %v521 = vpop.f32.mrf.mxu0
    %v522 = vadd.f32 %v117, %v521
    %v523 = vpop.f32.mrf.mxu0
    %v524 = vadd.f32 %v121, %v523
    %v525 = vpop.f32.mrf.mxu0
    %v526 = vpop.f32.mrf.mxu0
    %527 = vdwg.mxu0
    %v528 = vmax.f32 %v481, 0.0
    %v529 = vmax.f32 %v483, 0.0
    %v530 = vmax.f32 %v522, 0.0
    %v531 = vmax.f32 %v524, 0.0
    %v532 = vpack.c.bf16 %v528, %v528
    %v533 = vpack.c.bf16 %v529, %v529
    %v534 = vpack.c.bf16 %v530, %v530
    %v535 = vpack.c.bf16 %v531, %v531
    %v536 = vld [vmem:[%s3] sm:$0xff]
    %v537 = vld [vmem:[%s3 + $0x8] sm:$0xff]
    %v538 = vld [vmem:[%s3 + $0x10] sm:$0xff]
    %v539 = vld [vmem:[%s3 + $0x18] sm:$0xff]
    %v540 = vld [vmem:[%s3 + $0x20] sm:$0xff]
    %v541 = vld [vmem:[%s3 + $0x28] sm:$0xff]
    %v542 = vld [vmem:[%s3 + $0x30] sm:$0xff]
    %v543 = vld [vmem:[%s3 + $0x38] sm:$0xff]
    %v544 = vld [vmem:[%s3 + $0x40] sm:$0xff]
    %v545 = vld [vmem:[%s3 + $0x48] sm:$0xff]
    %v546 = vld [vmem:[%s3 + $0x50] sm:$0xff]
    %v547 = vld [vmem:[%s3 + $0x58] sm:$0xff]
    %v548 = vld [vmem:[%s3 + $0x60] sm:$0xff]
    %v549 = vld [vmem:[%s3 + $0x68] sm:$0xff]
    %v550 = vld [vmem:[%s3 + $0x70] sm:$0xff]
    %v551 = vld [vmem:[%s3 + $0x78] sm:$0xff]
    %v552 = vld [vmem:[%s3 + $0x80] sm:$0xff]
    %v553 = vld [vmem:[%s3 + $0x88] sm:$0xff]
    %v554 = vld [vmem:[%s3 + $0x90] sm:$0xff]
    %v555 = vld [vmem:[%s3 + $0x98] sm:$0xff]
    %v556 = vld [vmem:[%s3 + $0xa0] sm:$0xff]
    %v557 = vld [vmem:[%s3 + $0xa8] sm:$0xff]
    %v558 = vld [vmem:[%s3 + $0xb0] sm:$0xff]
    %v559 = vld [vmem:[%s3 + $0xb8] sm:$0xff]
    %v560 = vld [vmem:[%s3 + $0xc0] sm:$0xff]
    %v561 = vld [vmem:[%s3 + $0xc8] sm:$0xff]
    %v562 = vld [vmem:[%s3 + $0xd0] sm:$0xff]
    %v563 = vld [vmem:[%s3 + $0xd8] sm:$0xff]
    %v564 = vld [vmem:[%s3 + $0xe0] sm:$0xff]
    %v565 = vld [vmem:[%s3 + $0xe8] sm:$0xff]
    %v566 = vld [vmem:[%s3 + $0xf0] sm:$0xff]
    %v567 = vld [vmem:[%s3 + $0xf8] sm:$0xff]
    %v568 = vld [vmem:[%s3 + $0x100] sm:$0xff]
    %v569 = vld [vmem:[%s3 + $0x108] sm:$0xff]
    %v570 = vld [vmem:[%s3 + $0x110] sm:$0xff]
    %v571 = vld [vmem:[%s3 + $0x118] sm:$0xff]
    %v572 = vld [vmem:[%s3 + $0x120] sm:$0xff]
    %v573 = vld [vmem:[%s3 + $0x128] sm:$0xff]
    %v574 = vld [vmem:[%s3 + $0x130] sm:$0xff]
    %v575 = vld [vmem:[%s3 + $0x138] sm:$0xff]
    %v576 = vld [vmem:[%s3 + $0x140] sm:$0xff]
    %v577 = vld [vmem:[%s3 + $0x148] sm:$0xff]
    %v578 = vld [vmem:[%s3 + $0x150] sm:$0xff]
    %v579 = vld [vmem:[%s3 + $0x158] sm:$0xff]
    %v580 = vld [vmem:[%s3 + $0x160] sm:$0xff]
    %v581 = vld [vmem:[%s3 + $0x168] sm:$0xff]
    %v582 = vld [vmem:[%s3 + $0x170] sm:$0xff]
    %v583 = vld [vmem:[%s3 + $0x178] sm:$0xff]
    %v584 = vld [vmem:[%s3 + $0x180] sm:$0xff]
    %v585 = vld [vmem:[%s3 + $0x188] sm:$0xff]
    %v586 = vld [vmem:[%s3 + $0x190] sm:$0xff]
    %v587 = vld [vmem:[%s3 + $0x198] sm:$0xff]
    %v588 = vld [vmem:[%s3 + $0x1a0] sm:$0xff]
    %v589 = vld [vmem:[%s3 + $0x1a8] sm:$0xff]
    %v590 = vld [vmem:[%s3 + $0x1b0] sm:$0xff]
    %v591 = vld [vmem:[%s3 + $0x1b8] sm:$0xff]
    %v592 = vld [vmem:[%s3 + $0x1c0] sm:$0xff]
    %v593 = vld [vmem:[%s3 + $0x1c8] sm:$0xff]
    %v594 = vld [vmem:[%s3 + $0x1d0] sm:$0xff]
    %v595 = vld [vmem:[%s3 + $0x1d8] sm:$0xff]
    %v596 = vld [vmem:[%s3 + $0x1e0] sm:$0xff]
    %v597 = vld [vmem:[%s3 + $0x1e8] sm:$0xff]
    %v598 = vld [vmem:[%s3 + $0x1f0] sm:$0xff]
    %v599 = vld [vmem:[%s3 + $0x1f8] sm:$0xff]
    %v600 = vld [vmem:[%s4] sm:$0x3]
    %v602 = vlaneseq
    %v603 = vshrl.u32 %v602, 7
    %v604 = vsub.s32 0, %v603
    %v605 = vrot.slane %v600, %v604
    %v606 = vlaneseq
    %v607 = vshrl.u32 %v606, 7
    %v608 = vsub.s32 1, %v607
    %v609 = vrot.slane %v600, %v608
    %v676 = vunpack.c.l.b16 %v536
    %v677 = vunpack.c.h.b16 %v536
    %v678 = vunpack.c.l.b16 %v537
    %v679 = vunpack.c.h.b16 %v537
    %v680 = vunpack.c.l.b16 %v538
    %v681 = vunpack.c.h.b16 %v538
    %v682 = vunpack.c.l.b16 %v539
    %v683 = vunpack.c.h.b16 %v539
    %v684 = vunpack.c.l.b16 %v540
    %v685 = vunpack.c.h.b16 %v540
    %v686 = vunpack.c.l.b16 %v541
    %v687 = vunpack.c.h.b16 %v541
    %v688 = vunpack.c.l.b16 %v542
    %v689 = vunpack.c.h.b16 %v542
    %v690 = vunpack.c.l.b16 %v543
    %v691 = vunpack.c.h.b16 %v543
    %v692 = vunpack.c.l.b16 %v544
    %v693 = vunpack.c.h.b16 %v544
    %v694 = vunpack.c.l.b16 %v545
    %v695 = vunpack.c.h.b16 %v545
    %v696 = vunpack.c.l.b16 %v546
    %v697 = vunpack.c.h.b16 %v546
    %v698 = vunpack.c.l.b16 %v547
    %v699 = vunpack.c.h.b16 %v547
    %v700 = vunpack.c.l.b16 %v548
    %v701 = vunpack.c.h.b16 %v548
    %v702 = vunpack.c.l.b16 %v549
    %v703 = vunpack.c.h.b16 %v549
    %v704 = vunpack.c.l.b16 %v550
    %v705 = vunpack.c.h.b16 %v550
    %v706 = vunpack.c.l.b16 %v551
    %v707 = vunpack.c.h.b16 %v551
    %v708 = vunpack.c.l.b16 %v552
    %v709 = vunpack.c.h.b16 %v552
    %v710 = vunpack.c.l.b16 %v553
    %v711 = vunpack.c.h.b16 %v553
    %v712 = vunpack.c.l.b16 %v554
    %v713 = vunpack.c.h.b16 %v554
    %v714 = vunpack.c.l.b16 %v555
    %v715 = vunpack.c.h.b16 %v555
    %v716 = vunpack.c.l.b16 %v556
    %v717 = vunpack.c.h.b16 %v556
    %v718 = vunpack.c.l.b16 %v557
    %v719 = vunpack.c.h.b16 %v557
    %v720 = vunpack.c.l.b16 %v558
    %v721 = vunpack.c.h.b16 %v558
    %v722 = vunpack.c.l.b16 %v559
    %v723 = vunpack.c.h.b16 %v559
    %v724 = vunpack.c.l.b16 %v560
    %v725 = vunpack.c.h.b16 %v560
    %v726 = vunpack.c.l.b16 %v561
    %v727 = vunpack.c.h.b16 %v561
    %v728 = vunpack.c.l.b16 %v562
    %v729 = vunpack.c.h.b16 %v562
    %v730 = vunpack.c.l.b16 %v563
    %v731 = vunpack.c.h.b16 %v563
    %v732 = vunpack.c.l.b16 %v564
    %v733 = vunpack.c.h.b16 %v564
    %v734 = vunpack.c.l.b16 %v565
    %v735 = vunpack.c.h.b16 %v565
    %v736 = vunpack.c.l.b16 %v566
    %v737 = vunpack.c.h.b16 %v566
    %v738 = vunpack.c.l.b16 %v567
    %v739 = vunpack.c.h.b16 %v567
    %v740 = vunpack.c.l.b16 %v568
    %v741 = vunpack.c.h.b16 %v568
    %v742 = vunpack.c.l.b16 %v569
    %v743 = vunpack.c.h.b16 %v569
    %v744 = vunpack.c.l.b16 %v570
    %v745 = vunpack.c.h.b16 %v570
    %v746 = vunpack.c.l.b16 %v571
    %v747 = vunpack.c.h.b16 %v571
    %v748 = vunpack.c.l.b16 %v572
    %v749 = vunpack.c.h.b16 %v572
    %v750 = vunpack.c.l.b16 %v573
    %v751 = vunpack.c.h.b16 %v573
    %v752 = vunpack.c.l.b16 %v574
    %v753 = vunpack.c.h.b16 %v574
    %v754 = vunpack.c.l.b16 %v575
    %v755 = vunpack.c.h.b16 %v575
    %v756 = vunpack.c.l.b16 %v576
    %v757 = vunpack.c.h.b16 %v576
    %v758 = vunpack.c.l.b16 %v577
    %v759 = vunpack.c.h.b16 %v577
    %v760 = vunpack.c.l.b16 %v578
    %v761 = vunpack.c.h.b16 %v578
    %v762 = vunpack.c.l.b16 %v579
    %v763 = vunpack.c.h.b16 %v579
    %v764 = vunpack.c.l.b16 %v580
    %v765 = vunpack.c.h.b16 %v580
    %v766 = vunpack.c.l.b16 %v581
    %v767 = vunpack.c.h.b16 %v581
    %v768 = vunpack.c.l.b16 %v582
    %v769 = vunpack.c.h.b16 %v582
    %v770 = vunpack.c.l.b16 %v583
    %v771 = vunpack.c.h.b16 %v583
    %v772 = vunpack.c.l.b16 %v584
    %v773 = vunpack.c.h.b16 %v584
    %v774 = vunpack.c.l.b16 %v585
    %v775 = vunpack.c.h.b16 %v585
    %v776 = vunpack.c.l.b16 %v586
    %v777 = vunpack.c.h.b16 %v586
    %v778 = vunpack.c.l.b16 %v587
    %v779 = vunpack.c.h.b16 %v587
    %v780 = vunpack.c.l.b16 %v588
    %v781 = vunpack.c.h.b16 %v588
    %v782 = vunpack.c.l.b16 %v589
    %v783 = vunpack.c.h.b16 %v589
    %v784 = vunpack.c.l.b16 %v590
    %v785 = vunpack.c.h.b16 %v590
    %v786 = vunpack.c.l.b16 %v591
    %v787 = vunpack.c.h.b16 %v591
    %v788 = vunpack.c.l.b16 %v592
    %v789 = vunpack.c.h.b16 %v592
    %v790 = vunpack.c.l.b16 %v593
    %v791 = vunpack.c.h.b16 %v593
    %v792 = vunpack.c.l.b16 %v594
    %v793 = vunpack.c.h.b16 %v594
    %v794 = vunpack.c.l.b16 %v595
    %v795 = vunpack.c.h.b16 %v595
    %v796 = vunpack.c.l.b16 %v596
    %v797 = vunpack.c.h.b16 %v596
    %v798 = vunpack.c.l.b16 %v597
    %v799 = vunpack.c.h.b16 %v597
    %v800 = vunpack.c.l.b16 %v598
    %v801 = vunpack.c.h.b16 %v598
    %v802 = vunpack.c.l.b16 %v599
    %v803 = vunpack.c.h.b16 %v599
    %v804 = vpack.c.b16 %v678, %v676
    %v805 = vpack.c.b16 %v679, %v677
    %v806 = vpack.c.b16 %v682, %v680
    %v807 = vpack.c.b16 %v683, %v681
    %v808 = vpack.c.b16 %v686, %v684
    %v809 = vpack.c.b16 %v687, %v685
    %v810 = vpack.c.b16 %v690, %v688
    %v811 = vpack.c.b16 %v691, %v689
    %v812 = vpack.c.b16 %v694, %v692
    %v813 = vpack.c.b16 %v695, %v693
    %v814 = vpack.c.b16 %v698, %v696
    %v815 = vpack.c.b16 %v699, %v697
    %v816 = vpack.c.b16 %v702, %v700
    %v817 = vpack.c.b16 %v703, %v701
    %v818 = vpack.c.b16 %v706, %v704
    %v819 = vpack.c.b16 %v707, %v705
    %v820 = vpack.c.b16 %v710, %v708
    %v821 = vpack.c.b16 %v711, %v709
    %v822 = vpack.c.b16 %v714, %v712
    %v823 = vpack.c.b16 %v715, %v713
    %v824 = vpack.c.b16 %v718, %v716
    %v825 = vpack.c.b16 %v719, %v717
    %v826 = vpack.c.b16 %v722, %v720
    %v827 = vpack.c.b16 %v723, %v721
    %v828 = vpack.c.b16 %v726, %v724
    %v829 = vpack.c.b16 %v727, %v725
    %v830 = vpack.c.b16 %v730, %v728
    %v831 = vpack.c.b16 %v731, %v729
    %v832 = vpack.c.b16 %v734, %v732
    %v833 = vpack.c.b16 %v735, %v733
    %v834 = vpack.c.b16 %v738, %v736
    %v835 = vpack.c.b16 %v739, %v737
    %v836 = vpack.c.b16 %v742, %v740
    %v837 = vpack.c.b16 %v743, %v741
    %v838 = vpack.c.b16 %v746, %v744
    %v839 = vpack.c.b16 %v747, %v745
    %v840 = vpack.c.b16 %v750, %v748
    %v841 = vpack.c.b16 %v751, %v749
    %v842 = vpack.c.b16 %v754, %v752
    %v843 = vpack.c.b16 %v755, %v753
    %v844 = vpack.c.b16 %v758, %v756
    %v845 = vpack.c.b16 %v759, %v757
    %v846 = vpack.c.b16 %v762, %v760
    %v847 = vpack.c.b16 %v763, %v761
    %v848 = vpack.c.b16 %v766, %v764
    %v849 = vpack.c.b16 %v767, %v765
    %v850 = vpack.c.b16 %v770, %v768
    %v851 = vpack.c.b16 %v771, %v769
    %v852 = vpack.c.b16 %v774, %v772
    %v853 = vpack.c.b16 %v775, %v773
    %v854 = vpack.c.b16 %v778, %v776
    %v855 = vpack.c.b16 %v779, %v777
    %v856 = vpack.c.b16 %v782, %v780
    %v857 = vpack.c.b16 %v783, %v781
    %v858 = vpack.c.b16 %v786, %v784
    %v859 = vpack.c.b16 %v787, %v785
    %v860 = vpack.c.b16 %v790, %v788
    %v861 = vpack.c.b16 %v791, %v789
    %v862 = vpack.c.b16 %v794, %v792
    %v863 = vpack.c.b16 %v795, %v793
    %v864 = vpack.c.b16 %v798, %v796
    %v865 = vpack.c.b16 %v799, %v797
    %v866 = vpack.c.b16 %v802, %v800
    %v867 = vpack.c.b16 %v803, %v801
    %932 = vmatprep.subr.bf16.mxu0 %v819
    %933 = vmatpush1.bf16.msra.mxu0 %v818
    %934 = vmatprep.subr.bf16.mxu0 %v817
    %935 = vmatpush1.bf16.msra.mxu0 %v816
    %936 = vmatprep.subr.bf16.mxu0 %v815
    %937 = vmatpush1.bf16.msra.mxu0 %v814
    %938 = vmatprep.subr.bf16.mxu0 %v813
    %939 = vmatpush1.bf16.msra.mxu0 %v812
    %940 = vmatprep.subr.bf16.mxu0 %v811
    %941 = vmatpush1.bf16.msra.mxu0 %v810
    %942 = vmatprep.subr.bf16.mxu0 %v809
    %943 = vmatpush1.bf16.msra.mxu0 %v808
    %944 = vmatprep.subr.bf16.mxu0 %v807
    %945 = vmatpush1.bf16.msra.mxu0 %v806
    %946 = vmatprep.subr.bf16.mxu0 %v805
    %947 = vmatpush1.bf16.msra.mxu0 %v804
    %948 = vmatprep.subr.bf16.mxu0 %v835
    %949 = vmatpush2.bf16.msra.mxu0 %v834
    %950 = vmatprep.subr.bf16.mxu0 %v833
    %951 = vmatpush2.bf16.msra.mxu0 %v832
    %952 = vmatprep.subr.bf16.mxu0 %v831
    %953 = vmatpush2.bf16.msra.mxu0 %v830
    %954 = vmatprep.subr.bf16.mxu0 %v829
    %955 = vmatpush2.bf16.msra.mxu0 %v828
    %956 = vmatprep.subr.bf16.mxu0 %v827
    %957 = vmatpush2.bf16.msra.mxu0 %v826
    %958 = vmatprep.subr.bf16.mxu0 %v825
    %959 = vmatpush2.bf16.msra.mxu0 %v824
    %960 = vmatprep.subr.bf16.mxu0 %v823
    %961 = vmatpush2.bf16.msra.mxu0 %v822
    %962 = vmatprep.subr.bf16.mxu0 %v821
    %963 = vmatpush2.bf16.msra.mxu0 %v820
    %964 = vmatprep.mubr.bf16.mxu0 %v533
    %965 = vmatmul.mubr.bf16.gmra.mxu0 %v532
    %v966 = vpop.f32.mrf.mxu0
    %v967 = vadd.f32 %v605, %v966
    %v968 = vpop.f32.mrf.mxu0
    %v969 = vadd.f32 %v609, %v968
    %v970 = vpop.f32.mrf.mxu0
    %v971 = vpop.f32.mrf.mxu0
    %972 = vdwg.mxu0
    %973 = vmatprep.subr.bf16.mxu0 %v851
    %974 = vmatpush1.bf16.msra.mxu0 %v850
    %975 = vmatprep.subr.bf16.mxu0 %v849
    %976 = vmatpush1.bf16.msra.mxu0 %v848
    %977 = vmatprep.subr.bf16.mxu0 %v847
    %978 = vmatpush1.bf16.msra.mxu0 %v846
    %979 = vmatprep.subr.bf16.mxu0 %v845
    %980 = vmatpush1.bf16.msra.mxu0 %v844
    %981 = vmatprep.subr.bf16.mxu0 %v843
    %982 = vmatpush1.bf16.msra.mxu0 %v842
    %983 = vmatprep.subr.bf16.mxu0 %v841
    %984 = vmatpush1.bf16.msra.mxu0 %v840
    %985 = vmatprep.subr.bf16.mxu0 %v839
    %986 = vmatpush1.bf16.msra.mxu0 %v838
    %987 = vmatprep.subr.bf16.mxu0 %v837
    %988 = vmatpush1.bf16.msra.mxu0 %v836
    %989 = vmatprep.subr.bf16.mxu0 %v867
    %990 = vmatpush2.bf16.msra.mxu0 %v866
    %991 = vmatprep.subr.bf16.mxu0 %v865
    %992 = vmatpush2.bf16.msra.mxu0 %v864
    %993 = vmatprep.subr.bf16.mxu0 %v863
    %994 = vmatpush2.bf16.msra.mxu0 %v862
    %995 = vmatprep.subr.bf16.mxu0 %v861
    %996 = vmatpush2.bf16.msra.mxu0 %v860
    %997 = vmatprep.subr.bf16.mxu0 %v859
    %998 = vmatpush2.bf16.msra.mxu0 %v858
    %999 = vmatprep.subr.bf16.mxu0 %v857
    %1000 = vmatpush2.bf16.msra.mxu0 %v856
    %1001 = vmatprep.subr.bf16.mxu0 %v855
    %1002 = vmatpush2.bf16.msra.mxu0 %v854
    %1003 = vmatprep.subr.bf16.mxu0 %v853
    %1004 = vmatpush2.bf16.msra.mxu0 %v852
    %1005 = vmatprep.mubr.bf16.mxu0 %v535
    %1006 = vmatmul.mubr.bf16.gmra.mxu0 %v534
    %v1007 = vpop.f32.mrf.mxu0
    %v1008 = vadd.f32 %v967, %v1007
    %v1009 = vpop.f32.mrf.mxu0
    %v1010 = vadd.f32 %v969, %v1009
    %v1011 = vpop.f32.mrf.mxu0
    %v1012 = vpop.f32.mrf.mxu0
    %1013 = vdwg.mxu0
    %v1014 = vmax.f32 %v1008, 0.0
    %v1015 = vmax.f32 %v1010, 0.0
    %v1016 = vpack.c.bf16 %v1014, %v1014
    %v1017 = vpack.c.bf16 %v1015, %v1015
    %v1018 = vld [vmem:[%s5] sm:$0xf]
    %v1019 = vld [vmem:[%s5 + $0x4] sm:$0xf]
    %v1020 = vld [vmem:[%s5 + $0x8] sm:$0xf]
    %v1021 = vld [vmem:[%s5 + $0xc] sm:$0xf]
    %v1022 = vld [vmem:[%s5 + $0x10] sm:$0xf]
    %v1023 = vld [vmem:[%s5 + $0x14] sm:$0xf]
    %v1024 = vld [vmem:[%s5 + $0x18] sm:$0xf]
    %v1025 = vld [vmem:[%s5 + $0x1c] sm:$0xf]
    %v1026 = vld [vmem:[%s5 + $0x20] sm:$0xf]
    %v1027 = vld [vmem:[%s5 + $0x24] sm:$0xf]
    %v1028 = vld [vmem:[%s5 + $0x28] sm:$0xf]
    %v1029 = vld [vmem:[%s5 + $0x2c] sm:$0xf]
    %v1030 = vld [vmem:[%s5 + $0x30] sm:$0xf]
    %v1031 = vld [vmem:[%s5 + $0x34] sm:$0xf]
    %v1032 = vld [vmem:[%s5 + $0x38] sm:$0xf]
    %v1033 = vld [vmem:[%s5 + $0x3c] sm:$0xf]
    %v1034 = vld [vmem:[%s5 + $0x40] sm:$0xf]
    %v1035 = vld [vmem:[%s5 + $0x44] sm:$0xf]
    %v1036 = vld [vmem:[%s5 + $0x48] sm:$0xf]
    %v1037 = vld [vmem:[%s5 + $0x4c] sm:$0xf]
    %v1038 = vld [vmem:[%s5 + $0x50] sm:$0xf]
    %v1039 = vld [vmem:[%s5 + $0x54] sm:$0xf]
    %v1040 = vld [vmem:[%s5 + $0x58] sm:$0xf]
    %v1041 = vld [vmem:[%s5 + $0x5c] sm:$0xf]
    %v1042 = vld [vmem:[%s5 + $0x60] sm:$0xf]
    %v1043 = vld [vmem:[%s5 + $0x64] sm:$0xf]
    %v1044 = vld [vmem:[%s5 + $0x68] sm:$0xf]
    %v1045 = vld [vmem:[%s5 + $0x6c] sm:$0xf]
    %v1046 = vld [vmem:[%s5 + $0x70] sm:$0xf]
    %v1047 = vld [vmem:[%s5 + $0x74] sm:$0xf]
    %v1048 = vld [vmem:[%s5 + $0x78] sm:$0xf]
    %v1049 = vld [vmem:[%s5 + $0x7c] sm:$0xf]
    %v1050 = vld [vmem:[%s6] sm:$0x1]
    %v1052 = vlaneseq
    %v1053 = vshrl.u32 %v1052, 7
    %v1054 = vsub.s32 0, %v1053
    %v1055 = vrot.slane %v1050, %v1054
    %v1089 = vunpack.c.l.b16 %v1018
    %v1090 = vunpack.c.l.b16 %v1019
    %v1091 = vunpack.c.l.b16 %v1020
    %v1092 = vunpack.c.l.b16 %v1021
    %v1093 = vunpack.c.l.b16 %v1022
    %v1094 = vunpack.c.l.b16 %v1023
    %v1095 = vunpack.c.l.b16 %v1024
    %v1096 = vunpack.c.l.b16 %v1025
    %v1097 = vunpack.c.l.b16 %v1026
    %v1098 = vunpack.c.l.b16 %v1027
    %v1099 = vunpack.c.l.b16 %v1028
    %v1100 = vunpack.c.l.b16 %v1029
    %v1101 = vunpack.c.l.b16 %v1030
    %v1102 = vunpack.c.l.b16 %v1031
    %v1103 = vunpack.c.l.b16 %v1032
    %v1104 = vunpack.c.l.b16 %v1033
    %v1105 = vunpack.c.l.b16 %v1034
    %v1106 = vunpack.c.l.b16 %v1035
    %v1107 = vunpack.c.l.b16 %v1036
    %v1108 = vunpack.c.l.b16 %v1037
    %v1109 = vunpack.c.l.b16 %v1038
    %v1110 = vunpack.c.l.b16 %v1039
    %v1111 = vunpack.c.l.b16 %v1040
    %v1112 = vunpack.c.l.b16 %v1041
    %v1113 = vunpack.c.l.b16 %v1042
    %v1114 = vunpack.c.l.b16 %v1043
    %v1115 = vunpack.c.l.b16 %v1044
    %v1116 = vunpack.c.l.b16 %v1045
    %v1117 = vunpack.c.l.b16 %v1046
    %v1118 = vunpack.c.l.b16 %v1047
    %v1119 = vunpack.c.l.b16 %v1048
    %v1120 = vunpack.c.l.b16 %v1049
    %v1121 = vpack.c.b16 %v1090, %v1089
    %v1122 = vpack.c.b16 %v1092, %v1091
    %v1123 = vpack.c.b16 %v1094, %v1093
    %v1124 = vpack.c.b16 %v1096, %v1095
    %v1125 = vpack.c.b16 %v1098, %v1097
    %v1126 = vpack.c.b16 %v1100, %v1099
    %v1127 = vpack.c.b16 %v1102, %v1101
    %v1128 = vpack.c.b16 %v1104, %v1103
    %v1129 = vpack.c.b16 %v1106, %v1105
    %v1130 = vpack.c.b16 %v1108, %v1107
    %v1131 = vpack.c.b16 %v1110, %v1109
    %v1132 = vpack.c.b16 %v1112, %v1111
    %v1133 = vpack.c.b16 %v1114, %v1113
    %v1134 = vpack.c.b16 %v1116, %v1115
    %v1135 = vpack.c.b16 %v1118, %v1117
    %v1136 = vpack.c.b16 %v1120, %v1119
    %1153 = vmatprep.subr.bf16.mxu0 0
    %1154 = vmatpush1.bf16.msra.mxu0 %v1128
    %1155 = vmatprep.subr.bf16.mxu0 0
    %1156 = vmatpush1.bf16.msra.mxu0 %v1127
    %1157 = vmatprep.subr.bf16.mxu0 0
    %1158 = vmatpush1.bf16.msra.mxu0 %v1126
    %1159 = vmatprep.subr.bf16.mxu0 0
    %1160 = vmatpush1.bf16.msra.mxu0 %v1125
    %1161 = vmatprep.subr.bf16.mxu0 0
    %1162 = vmatpush1.bf16.msra.mxu0 %v1124
    %1163 = vmatprep.subr.bf16.mxu0 0
    %1164 = vmatpush1.bf16.msra.mxu0 %v1123
    %1165 = vmatprep.subr.bf16.mxu0 0
    %1166 = vmatpush1.bf16.msra.mxu0 %v1122
    %1167 = vmatprep.subr.bf16.mxu0 0
    %1168 = vmatpush1.bf16.msra.mxu0 %v1121
    %1169 = vmatprep.subr.bf16.mxu0 0
    %1170 = vmatpush2.bf16.msra.mxu0 %v1136
    %1171 = vmatprep.subr.bf16.mxu0 0
    %1172 = vmatpush2.bf16.msra.mxu0 %v1135
    %1173 = vmatprep.subr.bf16.mxu0 0
    %1174 = vmatpush2.bf16.msra.mxu0 %v1134
    %1175 = vmatprep.subr.bf16.mxu0 0
    %1176 = vmatpush2.bf16.msra.mxu0 %v1133
    %1177 = vmatprep.subr.bf16.mxu0 0
    %1178 = vmatpush2.bf16.msra.mxu0 %v1132
    %1179 = vmatprep.subr.bf16.mxu0 0
    %1180 = vmatpush2.bf16.msra.mxu0 %v1131
    %1181 = vmatprep.subr.bf16.mxu0 0
    %1182 = vmatpush2.bf16.msra.mxu0 %v1130
    %1183 = vmatprep.subr.bf16.mxu0 0
    %1184 = vmatpush2.bf16.msra.mxu0 %v1129
    %1185 = vmatprep.mubr.bf16.mxu0 %v1017
    %1186 = vmatmul.mubr.bf16.gmra.mxu0 %v1016
    %v1187 = vpop.f32.mrf.mxu0
    %v1188 = vadd.f32 %v1055, %v1187
    %v1189 = vpop.f32.mrf.mxu0
    %v1190 = vpop.f32.mrf.mxu0
    %v1191 = vpop.f32.mrf.mxu0
    %1192 = vdwg.mxu0
    %v1194 = vrot.slane %v1188, 2
    %v1196 = vsub.f32 %v1188, %v1194
    %v1197 = vand.u32 2147483647, %v1196
    %v1198 = vld [vmem:[%s7] sm:$0xf]
    %v1199 = vld [vmem:[%s7 + $0x4] sm:$0xf]
    %v1200 = vld [vmem:[%s7 + $0x8] sm:$0xf]
    %v1201 = vld [vmem:[%s7 + $0xc] sm:$0xf]
    %v1202 = vld [vmem:[%s7 + $0x10] sm:$0xf]
    %v1203 = vld [vmem:[%s7 + $0x14] sm:$0xf]
    %v1204 = vld [vmem:[%s7 + $0x18] sm:$0xf]
    %v1205 = vld [vmem:[%s7 + $0x1c] sm:$0xf]
    %v1206 = vunpack.c.l.bf16 %v1198
    %v1207 = vunpack.c.l.bf16 %v1199
    %v1208 = vunpack.c.l.bf16 %v1200
    %v1209 = vunpack.c.l.bf16 %v1201
    %v1210 = vunpack.c.l.bf16 %v1202
    %v1211 = vunpack.c.l.bf16 %v1203
    %v1212 = vunpack.c.l.bf16 %v1204
    %v1213 = vunpack.c.l.bf16 %v1205
    %v1214 = vld [vmem:[%s8] sm:$0x1]
    %v1216 = vlaneseq
    %v1217 = vshrl.u32 %v1216, 7
    %v1218 = vsub.s32 0, %v1217
    %v1219 = vrot.slane %v1214, %v1218
    %vm1221 = vcmask 523264
    %v1223 = vsel %vm1221, %v1197, 0
    %1225 = vmatprep.subr.mxu0 0.0
    %1226 = vmatpush1.msra.mxu0 0.0
    %1227 = vmatprep.subr.mxu0 0.0
    %1228 = vmatpush1.msra.mxu0 0.0
    %1229 = vmatprep.subr.mxu0 0.0
    %1230 = vmatpush1.msra.mxu0 0.0
    %1231 = vmatprep.subr.mxu0 0.0
    %1232 = vmatpush1.msra.mxu0 0.0
    %1233 = vmatprep.subr.mxu0 0.0
    %1234 = vmatpush1.msra.mxu0 0.0
    %1235 = vmatprep.subr.mxu0 0.0
    %1236 = vmatpush1.msra.mxu0 0.0
    %1237 = vmatprep.subr.mxu0 0.0
    %1238 = vmatpush1.msra.mxu0 0.0
    %1239 = vmatprep.subr.mxu0 0.0
    %1240 = vmatpush1.msra.mxu0 0.0
    %1241 = vmatprep.subr.mxu0 0.0
    %1242 = vmatpush1.msra.mxu0 %v1213
    %1243 = vmatprep.subr.mxu0 0.0
    %1244 = vmatpush1.msra.mxu0 %v1212
    %1245 = vmatprep.subr.mxu0 0.0
    %1246 = vmatpush1.msra.mxu0 %v1211
    %1247 = vmatprep.subr.mxu0 0.0
    %1248 = vmatpush1.msra.mxu0 %v1210
    %1249 = vmatprep.subr.mxu0 0.0
    %1250 = vmatpush1.msra.mxu0 %v1209
    %1251 = vmatprep.subr.mxu0 0.0
    %1252 = vmatpush1.msra.mxu0 %v1208
    %1253 = vmatprep.subr.mxu0 0.0
    %1254 = vmatpush1.msra.mxu0 %v1207
    %1255 = vmatprep.subr.mxu0 0.0
    %1256 = vmatpush1.msra.mxu0 %v1206
    %1257 = vmatprep.subr.mxu0 0.0
    %1258 = vmatpush2.msra.mxu0 0.0
    %1259 = vmatprep.subr.mxu0 0.0
    %1260 = vmatpush2.msra.mxu0 0.0
    %1261 = vmatprep.subr.mxu0 0.0
    %1262 = vmatpush2.msra.mxu0 0.0
    %1263 = vmatprep.subr.mxu0 0.0
    %1264 = vmatpush2.msra.mxu0 0.0
    %1265 = vmatprep.subr.mxu0 0.0
    %1266 = vmatpush2.msra.mxu0 0.0
    %1267 = vmatprep.subr.mxu0 0.0
    %1268 = vmatpush2.msra.mxu0 0.0
    %1269 = vmatprep.subr.mxu0 0.0
    %1270 = vmatpush2.msra.mxu0 0.0
    %1271 = vmatprep.subr.mxu0 0.0
    %1272 = vmatpush2.msra.mxu0 0.0
    %1273 = vmatprep.subr.mxu0 0.0
    %1274 = vmatpush2.msra.mxu0 0.0
    %1275 = vmatprep.subr.mxu0 0.0
    %1276 = vmatpush2.msra.mxu0 0.0
    %1277 = vmatprep.subr.mxu0 0.0
    %1278 = vmatpush2.msra.mxu0 0.0
    %1279 = vmatprep.subr.mxu0 0.0
    %1280 = vmatpush2.msra.mxu0 0.0
    %1281 = vmatprep.subr.mxu0 0.0
    %1282 = vmatpush2.msra.mxu0 0.0
    %1283 = vmatprep.subr.mxu0 0.0
    %1284 = vmatpush2.msra.mxu0 0.0
    %1285 = vmatprep.subr.mxu0 0.0
    %1286 = vmatpush2.msra.mxu0 0.0
    %1287 = vmatprep.subr.mxu0 0.0
    %1288 = vmatpush2.msra.mxu0 0.0
    %1289 = vmatprep.mubr.f32.mxu0 0.0
    %1290 = vmatmul.mubr.f32.gmra.mxu0 %v1223
    %v1291 = vpop.f32.mrf.mxu0
    %v1292 = vadd.f32 %v1219, %v1291
    %v1293 = vpop.f32.mrf.mxu0
    %1294 = vdwg.mxu0
    %vm1295 = vcmask 9216
    %1296 = vst.msk [vmem:[#allocation2] sm:$0x3] %vm1295, %v1292
    // Predicated region
    $region38: #{siamese_pointnet_forward.5} parent=1 // pred_check
      _
    $region39: #{siamese_pointnet_forward.5} parent=1 // pred_check_branch
      %1298 = sbr.rel (0) target = $region41
    $region40: #{siamese_pointnet_forward.5} parent=1 // pred_region
      %s1300 = ssub.s32 32, 32
      %1301 = vsyncadd [#allocation3], %s1300
      %s1303 = sshll.u32 [#allocation2], 4
      %s1304 = int_to_ptr.vmem [resolvable:$true] %s1303
      %1306 = dma.vmem_to_hbm [thread:$0]  %s1304, 32, %s9, [#allocation3]
    $region41: #{siamese_pointnet_forward.5} parent=1 // pred_fallthru
      _
    // Predicated region
    $region42: #{siamese_pointnet_forward.5} parent=1 // pred_check
      _
    $region43: #{siamese_pointnet_forward.5} parent=1 // pred_check_branch
      %1308 = sbr.rel (0) target = $region45
    $region44: #{siamese_pointnet_forward.5} parent=1 // pred_region
      %1309 = dma.done [#allocation3], 32
    $region45: #{siamese_pointnet_forward.5} parent=1 // pred_fallthru
      _
    %1310 = vsyncpa [#allocation3], 1

// kernel: siamese_pointnet_forward.3
$region0: #{siamese_pointnet_forward.3}
  #allocation0 [shape = 'u32[]', space=smem, size = 0x4, offset = 0x4, fixed_abs, tag = 'smem constant byte address 0x4 - core index']
  #allocation1 [shape = 'u32[144,128]{1,0:T(1,128)}', space=vmem, size = 0x12000, scoped, tag = 'internal scratch']
  #allocation2 [shape = 'f32[1,1024]{1,0:T(1,128)}', space=vmem, size = 0x1000, scoped, tag = 'scratch operand']
  %s0 = inlined_call_operand.vmem [shape: bf16[4,256,3], index: 0, kind: input, shape index: {}]
  %s1 = inlined_call_operand.vmem [shape: bf16[3,64], index: 1, kind: input, shape index: {}]
  %s2 = inlined_call_operand.vmem [shape: f32[1,64], index: 2, kind: input, shape index: {}]
  %s3 = inlined_call_operand.vmem [shape: bf16[64,128], index: 3, kind: input, shape index: {}]
  %s4 = inlined_call_operand.vmem [shape: f32[1,128], index: 4, kind: input, shape index: {}]
  %s5 = inlined_call_operand.vmem [shape: bf16[128,1024], index: 5, kind: input, shape index: {}]
  %s6 = inlined_call_operand.vmem [shape: f32[1,1024], index: 6, kind: input, shape index: {}]
  %s7 = inlined_call_operand.hbm [shape: bf16[1024,512], index: 7, kind: input, shape index: {}]
  %s8 = inlined_call_operand.vmem [shape: f32[1,512], index: 8, kind: input, shape index: {}]
  %s9 = inlined_call_operand.hbm [shape: bf16[512,256], index: 9, kind: input, shape index: {}]
  %s10 = inlined_call_operand.vmem [shape: f32[1,256], index: 10, kind: input, shape index: {}]
  %s11 = inlined_call_operand.vmem [shape: bf16[256,9], index: 11, kind: input, shape index: {}]
  %s12 = inlined_call_operand.vmem [shape: f32[1,9], index: 12, kind: input, shape index: {}]
  %s13 = inlined_call_operand.vmem [shape: f32[4,1,9], index: 13, kind: output, shape index: {}]
  %s14 = sld [smem:[#allocation0]]
  $region101: #{siamese_pointnet_forward.3} parent=0
    _
  %s16 = ssub.s32 1, %s14
  %s17 = scalar_select 0, %s16, %s14
  $region1: #{siamese_pointnet_forward.3} parent=0
    #allocation3 [shape = 'u8[1048576]{0}', space=vmem, size = 0x100000, scoped, tag = 'input window, operand 7, single buffered']
    #allocation4 [shape = 's32[2]{0}', space=sflag, size = 0x8, scoped, tag = 'scoped memory for siamese_pointnet_forward.3']
    #allocation5 [shape = 'u8[262144]{0}', space=vmem, size = 0x40000, scoped, tag = 'input window, operand 9, single buffered']
    #allocation6 [shape = 's32[1]{0}', space=sflag, size = 0x4, scoped, tag = 'scoped memory for siamese_pointnet_forward.3']
    %18 = vsyncpa [#allocation4], 0
    %19 = vsyncpa [#allocation6], 0
    loop: start=0, step=1, limit=14
    $region2: #{siamese_pointnet_forward.3} parent=1 // loop_pre_header
      _
    $region3: #{siamese_pointnet_forward.3} parent=1 // loop_header
      %s21 = sphi 0, %s25
      %p22 = scmp.ge.s32.totalorder %s21, 14
      %s28 = sphi 0, %s40
      %s29 = sphi 0, %s36
      %s30 = sphi 0, %s28
      %s31 = sphi 0, %s29
      %s32 = sphi 0, %s30
      %s33 = sphi 0, %s31
      %s45 = sphi 0, %s47
      %s48 = sphi 0, %s45
      %s49 = sphi 0, %s48
      %s65 = sphi 0, %s49
      %s69 = sphi 0, %s69
      %s71 = sphi 0, %s69
      %s72 = sphi 0, %s71
      %s86 = sphi 0, %s72
      %s90 = sphi 0, %s90
      %s92 = sphi 0, %s90
      %s93 = sphi 0, %s92
      %s107 = sphi 0, %s93
      %s111 = sphi 0, %s111
      %s113 = sphi 0, %s111
      %s114 = sphi 0, %s113
      %s128 = sphi 0, %s114
      %s132 = sphi 0, %s132
      %s134 = sphi 0, %s132
      %s135 = sphi 0, %s134
      %s149 = sphi 0, %s135
      %s153 = sphi 0, %s153
      %s155 = sphi 0, %s153
      %s156 = sphi 0, %s155
      %s170 = sphi 0, %s156
      %s174 = sphi 0, %s174
      %s176 = sphi 0, %s174
      %s177 = sphi 0, %s176
      %s191 = sphi 0, %s177
      %s195 = sphi 0, %s195
      %s197 = sphi 0, %s195
      %s198 = sphi 0, %s197
      %s212 = sphi 0, %s198
      %s216 = sphi 0, %s216
      %s218 = sphi 0, %s216
      %s219 = sphi 0, %s218
      %s233 = sphi 0, %s219
      %s237 = sphi 0, %s237
      %s239 = sphi 0, %s237
      %s240 = sphi 0, %s239
      %s254 = sphi 0, %s240
      %s258 = sphi 0, %s258
      %s260 = sphi 0, %s258
      %s261 = sphi 0, %s260
      %s275 = sphi 0, %s261
      %s279 = sphi 0, %s279
      %s281 = sphi 0, %s279
      %s282 = sphi 0, %s281
      %s296 = sphi 0, %s282
      %s300 = sphi 0, %s300
      %s302 = sphi 0, %s300
      %s303 = sphi 0, %s302
      %s317 = sphi 0, %s303
      %s323 = sphi 0, %s325
      %s326 = sphi 0, %s323
      %s327 = sphi 0, %s326
      %s343 = sphi 0, %s327
    $region4: #{siamese_pointnet_forward.3} parent=1 // loop_header_branch
      %24 = sbr.rel (%p22) target = $region8
    $region5: #{siamese_pointnet_forward.3} parent=1 // loop_body
      %s26 = ssub.s32 %s21, 1
      %s27 = ssub.s32 %s21, 2
      %s34 = sadd.s32 1, %s29
      %p35 = scmp.ge.s32.totalorder %s34, 3
      %s36 = scalar_select %p35, 0, %s34
      %s37 = sadd.s32 1, %s28
      %s38 = scalar_select %p35, %s37, %s28
      %p39 = scmp.ge.s32.totalorder %s38, 4
      %s40 = scalar_select %p39, 0, %s38
      %s41 = ssub.s32 %s28, %s40
      %s42 = ssub.s32 %s29, %s36
      %s43 = sor.u32 %s41, %s42
      %p44 = scmp.eq.s32.totalorder %s43, 0
      %s46 = sadd.s32 %s45, 1
      %s47 = scalar_select %p44, %s45, %s46
      %p50 = pneg %p44
      %p51 = scmp.eq.s32.totalorder %s21, 11
      %p52 = por %p50, %p51
      %p53 = scmp.ne.s32.totalorder %s45, %s48
      %p54 = scmp.eq.s32.totalorder %s21, 0
      %p55 = por %p53, %p54
      %p56 = scmp.ne.s32.totalorder %s45, %s48
      %p57 = scmp.eq.s32.totalorder %s26, 11
      %p58 = por %p56, %p57
      %p59 = scmp.ne.s32.totalorder %s48, %s49
      %p60 = scmp.eq.s32.totalorder %s26, 0
      %p61 = por %p59, %p60
      %p62 = scmp.ne.s32.totalorder %s48, %s49
      %p63 = scmp.eq.s32.totalorder %s27, 11
      %p64 = por %p62, %p63
      %p66 = scmp.ne.s32.totalorder %s49, %s65
      %p67 = scmp.eq.s32.totalorder %s27, 0
      %p68 = por %p66, %p67
      %s70 = sadd.s32 %s69, 1
      %p73 = scmp.eq.s32.totalorder %s21, 11
      %p74 = scmp.ne.s32.totalorder %s69, %s71
      %p75 = scmp.eq.s32.totalorder %s21, 0
      %p76 = por %p74, %p75
      %p77 = scmp.ne.s32.totalorder %s69, %s71
      %p78 = scmp.eq.s32.totalorder %s26, 11
      %p79 = por %p77, %p78
      %p80 = scmp.ne.s32.totalorder %s71, %s72
      %p81 = scmp.eq.s32.totalorder %s26, 0
      %p82 = por %p80, %p81
      %p83 = scmp.ne.s32.totalorder %s71, %s72
      %p84 = scmp.eq.s32.totalorder %s27, 11
      %p85 = por %p83, %p84
      %p87 = scmp.ne.s32.totalorder %s72, %s86
      %p88 = scmp.eq.s32.totalorder %s27, 0
      %p89 = por %p87, %p88
      %s91 = sadd.s32 %s90, 1
      %p94 = scmp.eq.s32.totalorder %s21, 11
      %p95 = scmp.ne.s32.totalorder %s90, %s92
      %p96 = scmp.eq.s32.totalorder %s21, 0
      %p97 = por %p95, %p96
      %p98 = scmp.ne.s32.totalorder %s90, %s92
      %p99 = scmp.eq.s32.totalorder %s26, 11
      %p100 = por %p98, %p99
      %p101 = scmp.ne.s32.totalorder %s92, %s93
      %p102 = scmp.eq.s32.totalorder %s26, 0
      %p103 = por %p101, %p102
      %p104 = scmp.ne.s32.totalorder %s92, %s93
      %p105 = scmp.eq.s32.totalorder %s27, 11
      %p106 = por %p104, %p105
      %p108 = scmp.ne.s32.totalorder %s93, %s107
      %p109 = scmp.eq.s32.totalorder %s27, 0
      %p110 = por %p108, %p109
      %s112 = sadd.s32 %s111, 1
      %p115 = scmp.eq.s32.totalorder %s21, 11
      %p116 = scmp.ne.s32.totalorder %s111, %s113
      %p117 = scmp.eq.s32.totalorder %s21, 0
      %p118 = por %p116, %p117
      %p119 = scmp.ne.s32.totalorder %s111, %s113
      %p120 = scmp.eq.s32.totalorder %s26, 11
      %p121 = por %p119, %p120
      %p122 = scmp.ne.s32.totalorder %s113, %s114
      %p123 = scmp.eq.s32.totalorder %s26, 0
      %p124 = por %p122, %p123
      %p125 = scmp.ne.s32.totalorder %s113, %s114
      %p126 = scmp.eq.s32.totalorder %s27, 11
      %p127 = por %p125, %p126
      %p129 = scmp.ne.s32.totalorder %s114, %s128
      %p130 = scmp.eq.s32.totalorder %s27, 0
      %p131 = por %p129, %p130
      %s133 = sadd.s32 %s132, 1
      %p136 = scmp.eq.s32.totalorder %s21, 11
      %p137 = scmp.ne.s32.totalorder %s132, %s134
      %p138 = scmp.eq.s32.totalorder %s21, 0
      %p139 = por %p137, %p138
      %p140 = scmp.ne.s32.totalorder %s132, %s134
      %p141 = scmp.eq.s32.totalorder %s26, 11
      %p142 = por %p140, %p141
      %p143 = scmp.ne.s32.totalorder %s134, %s135
      %p144 = scmp.eq.s32.totalorder %s26, 0
      %p145 = por %p143, %p144
      %p146 = scmp.ne.s32.totalorder %s134, %s135
      %p147 = scmp.eq.s32.totalorder %s27, 11
      %p148 = por %p146, %p147
      %p150 = scmp.ne.s32.totalorder %s135, %s149
      %p151 = scmp.eq.s32.totalorder %s27, 0
      %p152 = por %p150, %p151
      %s154 = sadd.s32 %s153, 1
      %p157 = scmp.eq.s32.totalorder %s21, 11
      %p158 = scmp.ne.s32.totalorder %s153, %s155
      %p159 = scmp.eq.s32.totalorder %s21, 0
      %p160 = por %p158, %p159
      %p161 = scmp.ne.s32.totalorder %s153, %s155
      %p162 = scmp.eq.s32.totalorder %s26, 11
      %p163 = por %p161, %p162
      %p164 = scmp.ne.s32.totalorder %s155, %s156
      %p165 = scmp.eq.s32.totalorder %s26, 0
      %p166 = por %p164, %p165
      %p167 = scmp.ne.s32.totalorder %s155, %s156
      %p168 = scmp.eq.s32.totalorder %s27, 11
      %p169 = por %p167, %p168
      %p171 = scmp.ne.s32.totalorder %s156, %s170
      %p172 = scmp.eq.s32.totalorder %s27, 0
      %p173 = por %p171, %p172
      %s175 = sadd.s32 %s174, 1
      %p178 = scmp.eq.s32.totalorder %s21, 11
      %p179 = scmp.ne.s32.totalorder %s174, %s176
      %p180 = scmp.eq.s32.totalorder %s21, 0
      %p181 = por %p179, %p180
      %p182 = scmp.ne.s32.totalorder %s174, %s176
      %p183 = scmp.eq.s32.totalorder %s26, 11
      %p184 = por %p182, %p183
      %p185 = scmp.ne.s32.totalorder %s176, %s177
      %p186 = scmp.eq.s32.totalorder %s26, 0
      %p187 = por %p185, %p186
      %p188 = scmp.ne.s32.totalorder %s176, %s177
      %p189 = scmp.eq.s32.totalorder %s27, 11
      %p190 = por %p188, %p189
      %p192 = scmp.ne.s32.totalorder %s177, %s191
      %p193 = scmp.eq.s32.totalorder %s27, 0
      %p194 = por %p192, %p193
      %s196 = sadd.s32 %s195, 1
      %p199 = scmp.eq.s32.totalorder %s21, 11
      %p200 = scmp.ne.s32.totalorder %s195, %s197
      %p201 = scmp.eq.s32.totalorder %s21, 0
      %p202 = por %p200, %p201
      %p203 = scmp.ne.s32.totalorder %s195, %s197
      %p204 = scmp.eq.s32.totalorder %s26, 11
      %p205 = por %p203, %p204
      %p206 = scmp.ne.s32.totalorder %s197, %s198
      %p207 = scmp.eq.s32.totalorder %s26, 0
      %p208 = por %p206, %p207
      %p209 = scmp.ne.s32.totalorder %s197, %s198
      %p210 = scmp.eq.s32.totalorder %s27, 11
      %p211 = por %p209, %p210
      %p213 = scmp.ne.s32.totalorder %s198, %s212
      %p214 = scmp.eq.s32.totalorder %s27, 0
      %p215 = por %p213, %p214
      %s217 = sadd.s32 %s216, 1
      %p220 = scmp.eq.s32.totalorder %s21, 11
      %p221 = scmp.ne.s32.totalorder %s216, %s218
      %p222 = scmp.eq.s32.totalorder %s21, 0
      %p223 = por %p221, %p222
      %p224 = scmp.ne.s32.totalorder %s216, %s218
      %p225 = scmp.eq.s32.totalorder %s26, 11
      %p226 = por %p224, %p225
      %p227 = scmp.ne.s32.totalorder %s218, %s219
      %p228 = scmp.eq.s32.totalorder %s26, 0
      %p229 = por %p227, %p228
      %p230 = scmp.ne.s32.totalorder %s218, %s219
      %p231 = scmp.eq.s32.totalorder %s27, 11
      %p232 = por %p230, %p231
      %p234 = scmp.ne.s32.totalorder %s219, %s233
      %p235 = scmp.eq.s32.totalorder %s27, 0
      %p236 = por %p234, %p235
      %s238 = sadd.s32 %s237, 1
      %p241 = scmp.eq.s32.totalorder %s21, 11
      %p242 = scmp.ne.s32.totalorder %s237, %s239
      %p243 = scmp.eq.s32.totalorder %s21, 0
      %p244 = por %p242, %p243
      %p245 = scmp.ne.s32.totalorder %s237, %s239
      %p246 = scmp.eq.s32.totalorder %s26, 11
      %p247 = por %p245, %p246
      %p248 = scmp.ne.s32.totalorder %s239, %s240
      %p249 = scmp.eq.s32.totalorder %s26, 0
      %p250 = por %p248, %p249
      %p251 = scmp.ne.s32.totalorder %s239, %s240
      %p252 = scmp.eq.s32.totalorder %s27, 11
      %p253 = por %p251, %p252
      %p255 = scmp.ne.s32.totalorder %s240, %s254
      %p256 = scmp.eq.s32.totalorder %s27, 0
      %p257 = por %p255, %p256
      %s259 = sadd.s32 %s258, 1
      %p262 = scmp.eq.s32.totalorder %s21, 11
      %p263 = scmp.ne.s32.totalorder %s258, %s260
      %p264 = scmp.eq.s32.totalorder %s21, 0
      %p265 = por %p263, %p264
      %p266 = scmp.ne.s32.totalorder %s258, %s260
      %p267 = scmp.eq.s32.totalorder %s26, 11
      %p268 = por %p266, %p267
      %p269 = scmp.ne.s32.totalorder %s260, %s261
      %p270 = scmp.eq.s32.totalorder %s26, 0
      %p271 = por %p269, %p270
      %p272 = scmp.ne.s32.totalorder %s260, %s261
      %p273 = scmp.eq.s32.totalorder %s27, 11
      %p274 = por %p272, %p273
      %p276 = scmp.ne.s32.totalorder %s261, %s275
      %p277 = scmp.eq.s32.totalorder %s27, 0
      %p278 = por %p276, %p277
      %s280 = sadd.s32 %s279, 1
      %p283 = scmp.eq.s32.totalorder %s21, 11
      %p284 = scmp.ne.s32.totalorder %s279, %s281
      %p285 = scmp.eq.s32.totalorder %s21, 0
      %p286 = por %p284, %p285
      %p287 = scmp.ne.s32.totalorder %s279, %s281
      %p288 = scmp.eq.s32.totalorder %s26, 11
      %p289 = por %p287, %p288
      %p290 = scmp.ne.s32.totalorder %s281, %s282
      %p291 = scmp.eq.s32.totalorder %s26, 0
      %p292 = por %p290, %p291
      %p293 = scmp.ne.s32.totalorder %s281, %s282
      %p294 = scmp.eq.s32.totalorder %s27, 11
      %p295 = por %p293, %p294
      %p297 = scmp.ne.s32.totalorder %s282, %s296
      %p298 = scmp.eq.s32.totalorder %s27, 0
      %p299 = por %p297, %p298
      %s301 = sadd.s32 %s300, 1
      %p304 = scmp.eq.s32.totalorder %s21, 11
      %p305 = scmp.ne.s32.totalorder %s300, %s302
      %p306 = scmp.eq.s32.totalorder %s21, 0
      %p307 = por %p305, %p306
      %p308 = scmp.ne.s32.totalorder %s300, %s302
      %p309 = scmp.eq.s32.totalorder %s26, 11
      %p310 = por %p308, %p309
      %p311 = scmp.ne.s32.totalorder %s302, %s303
      %p312 = scmp.eq.s32.totalorder %s26, 0
      %p313 = por %p311, %p312
      %p314 = scmp.ne.s32.totalorder %s302, %s303
      %p315 = scmp.eq.s32.totalorder %s27, 11
      %p316 = por %p314, %p315
      %p318 = scmp.ne.s32.totalorder %s303, %s317
      %p319 = scmp.eq.s32.totalorder %s27, 0
      %p320 = por %p318, %p319
      %s321 = ssub.s32 %s28, %s40
      %p322 = scmp.eq.s32.totalorder %s321, 0
      %s324 = sadd.s32 %s323, 1
      %s325 = scalar_select %p322, %s323, %s324
      %p328 = pneg %p322
      %p329 = scmp.eq.s32.totalorder %s21, 11
      %p330 = por %p328, %p329
      %p331 = scmp.ne.s32.totalorder %s323, %s326
      %p332 = scmp.eq.s32.totalorder %s21, 0
      %p333 = por %p331, %p332
      %p334 = scmp.ne.s32.totalorder %s323, %s326
      %p335 = scmp.eq.s32.totalorder %s26, 11
      %p336 = por %p334, %p335
      %p337 = scmp.ne.s32.totalorder %s326, %s327
      %p338 = scmp.eq.s32.totalorder %s26, 0
      %p339 = por %p337, %p338
      %p340 = scmp.ne.s32.totalorder %s326, %s327
      %p341 = scmp.eq.s32.totalorder %s27, 11
      %p342 = por %p340, %p341
      %p344 = scmp.ne.s32.totalorder %s327, %s343
      %p345 = scmp.eq.s32.totalorder %s27, 0
      %p346 = por %p344, %p345
      %p347 = scmp.le.s32.totalorder 1, %s21
      %p348 = scmp.lt.s32.totalorder %s21, 13
      %p349 = pnand %p347, %p348
      %p350 = pneg %p349
      // Predicated region
      $region9: #{siamese_pointnet_forward.3} parent=5 // pred_check
        _
      $region10: #{siamese_pointnet_forward.3} parent=5 // pred_check_branch
        %352 = sbr.rel (%p349) target = $region12
      $region11: #{siamese_pointnet_forward.3} parent=5 // pred_region
        %s353 = ssub.s32 %s21, 1
        // Predicated region
        $region13: #{siamese_pointnet_forward.3} parent=11 // pred_check
          %p354 = pneg %p82
        $region14: #{siamese_pointnet_forward.3} parent=11 // pred_check_branch
          %356 = sbr.rel (%p354) target = $region16
        $region15: #{siamese_pointnet_forward.3} parent=11 // pred_region
          _
        $region16: #{siamese_pointnet_forward.3} parent=11 // pred_fallthru
          _
        // Predicated region
        $region17: #{siamese_pointnet_forward.3} parent=11 // pred_check
          %p357 = pneg %p103
        $region18: #{siamese_pointnet_forward.3} parent=11 // pred_check_branch
          %359 = sbr.rel (%p357) target = $region20
        $region19: #{siamese_pointnet_forward.3} parent=11 // pred_region
          _
        $region20: #{siamese_pointnet_forward.3} parent=11 // pred_fallthru
          _
        // Predicated region
        $region21: #{siamese_pointnet_forward.3} parent=11 // pred_check
          %p360 = pneg %p124
        $region22: #{siamese_pointnet_forward.3} parent=11 // pred_check_branch
          %362 = sbr.rel (%p360) target = $region24
        $region23: #{siamese_pointnet_forward.3} parent=11 // pred_region
          _
        $region24: #{siamese_pointnet_forward.3} parent=11 // pred_fallthru
          _
        // Predicated region
        $region25: #{siamese_pointnet_forward.3} parent=11 // pred_check
          %p363 = pneg %p145
        $region26: #{siamese_pointnet_forward.3} parent=11 // pred_check_branch
          %365 = sbr.rel (%p363) target = $region28
        $region27: #{siamese_pointnet_forward.3} parent=11 // pred_region
          _
        $region28: #{siamese_pointnet_forward.3} parent=11 // pred_fallthru
          _
        // Predicated region
        $region29: #{siamese_pointnet_forward.3} parent=11 // pred_check
          %p366 = pneg %p166
        $region30: #{siamese_pointnet_forward.3} parent=11 // pred_check_branch
          %368 = sbr.rel (%p366) target = $region32
        $region31: #{siamese_pointnet_forward.3} parent=11 // pred_region
          _
        $region32: #{siamese_pointnet_forward.3} parent=11 // pred_fallthru
          _
        // Predicated region
        $region33: #{siamese_pointnet_forward.3} parent=11 // pred_check
          %p369 = pneg %p187
        $region34: #{siamese_pointnet_forward.3} parent=11 // pred_check_branch
          %371 = sbr.rel (%p369) target = $region36
        $region35: #{siamese_pointnet_forward.3} parent=11 // pred_region
          _
        $region36: #{siamese_pointnet_forward.3} parent=11 // pred_fallthru
          _
        // Predicated region
        $region37: #{siamese_pointnet_forward.3} parent=11 // pred_check
          %p372 = pneg %p208
        $region38: #{siamese_pointnet_forward.3} parent=11 // pred_check_branch
          %374 = sbr.rel (%p372) target = $region40
        $region39: #{siamese_pointnet_forward.3} parent=11 // pred_region
          %s376 = ssub.s32 32768, 32768
          %377 = vsyncadd [#allocation4], %s376
          %s378 = sshll.u32 [#allocation3], 4
          %s379 = int_to_ptr.vmem [resolvable:$true] %s378
          %384 = dma.hbm_to_vmem [thread:$0]  %s7, 32768, %s379, [#allocation4], 256, 256, 16
        $region40: #{siamese_pointnet_forward.3} parent=11 // pred_fallthru
          _
        // Predicated region
        $region41: #{siamese_pointnet_forward.3} parent=11 // pred_check
          %p385 = pneg %p229
        $region42: #{siamese_pointnet_forward.3} parent=11 // pred_check_branch
          %387 = sbr.rel (%p385) target = $region44
        $region43: #{siamese_pointnet_forward.3} parent=11 // pred_region
          _
        $region44: #{siamese_pointnet_forward.3} parent=11 // pred_fallthru
          _
        // Predicated region
        $region45: #{siamese_pointnet_forward.3} parent=11 // pred_check
          %p388 = pneg %p250
        $region46: #{siamese_pointnet_forward.3} parent=11 // pred_check_branch
          %390 = sbr.rel (%p388) target = $region48
        $region47: #{siamese_pointnet_forward.3} parent=11 // pred_region
          %s392 = ssub.s32 8192, 8192
          %393 = vsyncadd [#allocation6], %s392
          %s394 = sshll.u32 [#allocation5], 4
          %s395 = int_to_ptr.vmem [resolvable:$true] %s394
          %400 = dma.hbm_to_vmem [thread:$0]  %s9, 8192, %s395, [#allocation6], 128, 128, 8
        $region48: #{siamese_pointnet_forward.3} parent=11 // pred_fallthru
          _
        // Predicated region
        $region49: #{siamese_pointnet_forward.3} parent=11 // pred_check
          %p401 = pneg %p271
        $region50: #{siamese_pointnet_forward.3} parent=11 // pred_check_branch
          %403 = sbr.rel (%p401) target = $region52
        $region51: #{siamese_pointnet_forward.3} parent=11 // pred_region
          _
        $region52: #{siamese_pointnet_forward.3} parent=11 // pred_fallthru
          _
        // Predicated region
        $region53: #{siamese_pointnet_forward.3} parent=11 // pred_check
          %p404 = pneg %p292
        $region54: #{siamese_pointnet_forward.3} parent=11 // pred_check_branch
          %406 = sbr.rel (%p404) target = $region56
        $region55: #{siamese_pointnet_forward.3} parent=11 // pred_region
          _
        $region56: #{siamese_pointnet_forward.3} parent=11 // pred_fallthru
          _
        // Predicated region
        $region57: #{siamese_pointnet_forward.3} parent=11 // pred_check
          %p407 = pneg %p313
        $region58: #{siamese_pointnet_forward.3} parent=11 // pred_check_branch
          %409 = sbr.rel (%p407) target = $region60
        $region59: #{siamese_pointnet_forward.3} parent=11 // pred_region
          _
        $region60: #{siamese_pointnet_forward.3} parent=11 // pred_fallthru
          _
      $region12: #{siamese_pointnet_forward.3} parent=5 // pred_fallthru
        _
      %p410 = scmp.lt.s32.totalorder %s21, 12
      // Predicated region
      $region61: #{siamese_pointnet_forward.3} parent=5 // pred_check
        %p411 = pneg %p410
      $region62: #{siamese_pointnet_forward.3} parent=5 // pred_check_branch
        %413 = sbr.rel (%p411) target = $region64
      $region63: #{siamese_pointnet_forward.3} parent=5 // pred_region
        // Predicated region
        $region65: #{siamese_pointnet_forward.3} parent=63 // pred_check
          %p414 = pneg %p55
        $region66: #{siamese_pointnet_forward.3} parent=63 // pred_check_branch
          %416 = sbr.rel (%p414) target = $region68
        $region67: #{siamese_pointnet_forward.3} parent=63 // pred_region
          %s417 = smul.u32 12, %s29
          %s418 = ssub.s32 32, %s417
          %p419 = scmp.lt.s32.totalorder %s418, 12
          %s420 = scalar_select %p419, %s418, 12
          %s421 = smul.u32 64, %s420
          %p422 = scmp.lt.s32.totalorder %s28, 3
          %s423 = scalar_select %p422, %s28, 3
          %p424 = scmp.lt.s32.totalorder %s417, 31
          %s425 = scalar_select %p424, %s417, 31
          %s426 = smul.addr %s423, 32
          %s427 = sadd.s32 %s425, %s426
          %s428 = smul.addr %s427, 4
          %s429 = scalar_lea.vmem %s0, %s428
          %s430 = smul.u32 12, %s29
          %s431 = ssub.s32 32, %s430
          %p432 = scmp.lt.s32.totalorder %s431, 12
          %s433 = scalar_select %p432, %s431, 12
          %s434 = smul.u32 64, %s433
        $region68: #{siamese_pointnet_forward.3} parent=63 // pred_fallthru
          _
      $region64: #{siamese_pointnet_forward.3} parent=5 // pred_fallthru
        _
      %p435 = scmp.le.s32.totalorder 1, %s21
      %p436 = scmp.lt.s32.totalorder %s21, 13
      %p437 = pnand %p435, %p436
      %p438 = pneg %p437
      // Predicated region
      $region69: #{siamese_pointnet_forward.3} parent=5 // pred_check
        _
      $region70: #{siamese_pointnet_forward.3} parent=5 // pred_check_branch
        %440 = sbr.rel (%p437) target = $region72
      $region71: #{siamese_pointnet_forward.3} parent=5 // pred_region
        %s441 = ssub.s32 %s21, 1
        // Predicated region
        $region73: #{siamese_pointnet_forward.3} parent=71 // pred_check
          %p442 = pneg %p208
        $region74: #{siamese_pointnet_forward.3} parent=71 // pred_check_branch
          %444 = sbr.rel (%p442) target = $region76
        $region75: #{siamese_pointnet_forward.3} parent=71 // pred_region
          %445 = dma.done [#allocation4], 32768
        $region76: #{siamese_pointnet_forward.3} parent=71 // pred_fallthru
          _
        // Predicated region
        $region77: #{siamese_pointnet_forward.3} parent=71 // pred_check
          %p446 = pneg %p250
        $region78: #{siamese_pointnet_forward.3} parent=71 // pred_check_branch
          %448 = sbr.rel (%p446) target = $region80
        $region79: #{siamese_pointnet_forward.3} parent=71 // pred_region
          %449 = dma.done [#allocation6], 8192
        $region80: #{siamese_pointnet_forward.3} parent=71 // pred_fallthru
          _
        %s450 = smul.u32 12, %s31
        %s451 = ssub.s32 32, %s450
        %p452 = scmp.lt.s32.totalorder %s451, 12
        %s453 = scalar_select %p452, %s451, 12
        %s454 = smul.u32 64, %s453
        %p455 = scmp.lt.s32.totalorder %s30, 3
        %s456 = scalar_select %p455, %s30, 3
        %p457 = scmp.lt.s32.totalorder %s450, 31
        %s458 = scalar_select %p457, %s450, 31
        %s459 = smul.addr %s456, 32
        %s460 = sadd.s32 %s458, %s459
        %s461 = smul.addr %s460, 4
        %s462 = scalar_lea.vmem %s0, %s461
        %p463 = pneg %p61
        %p464 = pneg %p58
        %p465 = pneg %p82
        %p466 = pneg %p79
        %p467 = pneg %p103
        %p468 = pneg %p100
        %p469 = pneg %p124
        %p470 = pneg %p121
        %p471 = pneg %p145
        %p472 = pneg %p142
        %p473 = pneg %p166
        %p474 = pneg %p163
        %p475 = pneg %p187
        %p476 = pneg %p184
        %p477 = pneg %p208
        %p478 = pneg %p205
        %p479 = pneg %p229
        %p480 = pneg %p226
        %p481 = pneg %p250
        %p482 = pneg %p247
        %p483 = pneg %p271
        %p484 = pneg %p268
        %p485 = pneg %p292
        %p486 = pneg %p289
        %p487 = pneg %p313
        %p488 = pneg %p310
        %p489 = pneg %p339
        %p490 = pneg %p336
        %p491 = scmp.lt.s32.totalorder %s30, 3
        %s492 = scalar_select %p491, %s30, 3
        %s493 = scalar_lea.vmem %s13, %s492
        %s494 = smul.u32 12, %s31
        %s495 = ssub.s32 32, %s494
        %p496 = scmp.lt.s32.totalorder %s495, 12
        %s497 = scalar_select %p496, %s495, 12
        %s498 = smul.u32 64, %s497
        %p499 = scmp.lt.s32.totalorder %s30, 3
        %s500 = scalar_select %p499, %s30, 3
        %p501 = scmp.lt.s32.totalorder %s494, 31
        %s502 = scalar_select %p501, %s494, 31
        %s503 = smul.addr %s500, 32
        %s504 = sadd.s32 %s502, %s503
        %s505 = smul.addr %s504, 4
        %s506 = scalar_lea.vmem %s0, %s505
        %s507 = smul.u32 12, %s31
        %s508 = ssub.s32 32, %s507
        %p509 = scmp.lt.s32.totalorder %s508, 12
        %s510 = scalar_select %p509, %s508, 12
        %s511 = smul.u32 64, %s510
        %p512 = scmp.lt.s32.totalorder %s30, 3
        %s513 = scalar_select %p512, %s30, 3
        %s514 = scalar_lea.vmem %s13, %s513
        %p516 = scmp.eq.s32.totalorder %s31, 0
        // Predicated region
        $region81: #{siamese_pointnet_forward.3} parent=71 // pred_check
          %p517 = pneg %p516
        $region82: #{siamese_pointnet_forward.3} parent=71 // pred_check_branch
          %519 = sbr.rel (%p517) target = $region84
        $region83: #{siamese_pointnet_forward.3} parent=71 // pred_region
          %520 = vst [vmem:[#allocation2] sm:$0xff] -inf
        $region84: #{siamese_pointnet_forward.3} parent=71 // pred_fallthru
          _
        %v521 = vld [vmem:[%s506] sm:$0xf]
        %v522 = vld [vmem:[%s506 + $0x4] sm:$0xf]
        %v523 = vld [vmem:[%s506 + $0x8] sm:$0xf]
        %v524 = vld [vmem:[%s506 + $0xc] sm:$0xf]
        %v525 = vld [vmem:[%s506 + $0x10] sm:$0xf]
        %v526 = vld [vmem:[%s506 + $0x14] sm:$0xf]
        %v527 = vld [vmem:[%s506 + $0x18] sm:$0xf]
        %v528 = vld [vmem:[%s506 + $0x1c] sm:$0xf]
        %v529 = vld [vmem:[%s506 + $0x20] sm:$0xf]
        %v530 = vld [vmem:[%s506 + $0x24] sm:$0xf]
        %v531 = vld [vmem:[%s506 + $0x28] sm:$0xf]
        %v532 = vld [vmem:[%s506 + $0x2c] sm:$0xf]
        %v533 = vld [vmem:[%s1] sm:$0x3]
        %v534 = vld [vmem:[%s2] sm:$0x1]
        %v536 = vlaneseq
        %v537 = vshrl.u32 %v536, 7
        %v538 = vsub.s32 0, %v537
        %v539 = vrot.slane %v534, %v538
        %v553 = vunpack.c.l.b16 %v521
        %v554 = vunpack.c.l.b16 %v522
        %v555 = vunpack.c.l.b16 %v523
        %v556 = vunpack.c.l.b16 %v524
        %v557 = vunpack.c.l.b16 %v525
        %v558 = vunpack.c.l.b16 %v526
        %v559 = vunpack.c.l.b16 %v527
        %v560 = vunpack.c.l.b16 %v528
        %v561 = vunpack.c.l.b16 %v529
        %v562 = vunpack.c.l.b16 %v530
        %v563 = vunpack.c.l.b16 %v531
        %v564 = vunpack.c.l.b16 %v532
        %v565 = vpack.c.b16 %v554, %v553
        %v566 = vpack.c.b16 %v556, %v555
        %v567 = vpack.c.b16 %v558, %v557
        %v568 = vpack.c.b16 %v560, %v559
        %v569 = vpack.c.b16 %v562, %v561
        %v570 = vpack.c.b16 %v564, %v563
        %vm571 = vcmask 23552
        %v573 = vsel %vm571, %v565, 0
        %v576 = vsel %vm571, %v566, 0
        %v579 = vsel %vm571, %v567, 0
        %v582 = vsel %vm571, %v568, 0
        %v585 = vsel %vm571, %v569, 0
        %v588 = vsel %vm571, %v570, 0
        %vm590 = vcmask 1040384
        %vm591 = vcmask 1041408
        %v592 = vsel %vm590, 4294967295, 65535
        %v593 = vsel %vm591, %v592, 0
        %v595 = vand.u32 %v533, %v593
        %597 = vmatprep.subr.bf16.mxu0 0
        %598 = vmatpush1.bf16.msra.mxu0 0
        %599 = vmatprep.subr.bf16.mxu0 0
        %600 = vmatpush1.bf16.msra.mxu0 0
        %601 = vmatprep.subr.bf16.mxu0 0
        %602 = vmatpush1.bf16.msra.mxu0 0
        %603 = vmatprep.subr.bf16.mxu0 0
        %604 = vmatpush1.bf16.msra.mxu0 0
        %605 = vmatprep.subr.bf16.mxu0 0
        %606 = vmatpush1.bf16.msra.mxu0 0
        %607 = vmatprep.subr.bf16.mxu0 0
        %608 = vmatpush1.bf16.msra.mxu0 0
        %609 = vmatprep.subr.bf16.mxu0 0
        %610 = vmatpush1.bf16.msra.mxu0 0
        %611 = vmatprep.subr.bf16.mxu0 0
        %612 = vmatpush1.bf16.msra.mxu0 %v595
        %613 = vmatprep.subr.bf16.mxu0 0
        %614 = vmatpush2.bf16.msra.mxu0 0
        %615 = vmatprep.subr.bf16.mxu0 0
        %616 = vmatpush2.bf16.msra.mxu0 0
        %617 = vmatprep.subr.bf16.mxu0 0
        %618 = vmatpush2.bf16.msra.mxu0 0
        %619 = vmatprep.subr.bf16.mxu0 0
        %620 = vmatpush2.bf16.msra.mxu0 0
        %621 = vmatprep.subr.bf16.mxu0 0
        %622 = vmatpush2.bf16.msra.mxu0 0
        %623 = vmatprep.subr.bf16.mxu0 0
        %624 = vmatpush2.bf16.msra.mxu0 0
        %625 = vmatprep.subr.bf16.mxu0 0
        %626 = vmatpush2.bf16.msra.mxu0 0
        %627 = vmatprep.subr.bf16.mxu0 0
        %628 = vmatpush2.bf16.msra.mxu0 0
        %629 = vmatprep.mubr.bf16.mxu0 0
        %630 = vmatmul.mubr.bf16.gmra.mxu0 %v573
        %v631 = vpop.f32.mrf.mxu0
        %v632 = vadd.f32 %v539, %v631
        %v633 = vpop.f32.mrf.mxu0
        %v634 = vpop.f32.mrf.mxu0
        %v635 = vadd.f32 %v539, %v634
        %v636 = vpop.f32.mrf.mxu0
        %637 = vmatprep.mubr.bf16.mxu0 0
        %638 = vmatmul.mubr.bf16.gmra.mxu0 %v576
        %v639 = vpop.f32.mrf.mxu0
        %v640 = vadd.f32 %v539, %v639
        %v641 = vpop.f32.mrf.mxu0
        %v642 = vpop.f32.mrf.mxu0
        %v643 = vadd.f32 %v539, %v642
        %v644 = vpop.f32.mrf.mxu0
        %645 = vmatprep.mubr.bf16.mxu0 0
        %646 = vmatmul.mubr.bf16.gmra.mxu0 %v579
        %v647 = vpop.f32.mrf.mxu0
        %v648 = vadd.f32 %v539, %v647
        %v649 = vpop.f32.mrf.mxu0
        %v650 = vpop.f32.mrf.mxu0
        %v651 = vadd.f32 %v539, %v650
        %v652 = vpop.f32.mrf.mxu0
        %653 = vmatprep.mubr.bf16.mxu0 0
        %654 = vmatmul.mubr.bf16.gmra.mxu0 %v582
        %v655 = vpop.f32.mrf.mxu0
        %v656 = vadd.f32 %v539, %v655
        %v657 = vpop.f32.mrf.mxu0
        %v658 = vpop.f32.mrf.mxu0
        %v659 = vadd.f32 %v539, %v658
        %v660 = vpop.f32.mrf.mxu0
        %661 = vmatprep.mubr.bf16.mxu0 0
        %662 = vmatmul.mubr.bf16.gmra.mxu0 %v585
        %v663 = vpop.f32.mrf.mxu0
        %v664 = vadd.f32 %v539, %v663
        %v665 = vpop.f32.mrf.mxu0
        %v666 = vpop.f32.mrf.mxu0
        %v667 = vadd.f32 %v539, %v666
        %v668 = vpop.f32.mrf.mxu0
        %669 = vmatprep.mubr.bf16.mxu0 0
        %670 = vmatmul.mubr.bf16.gmra.mxu0 %v588
        %v671 = vpop.f32.mrf.mxu0
        %v672 = vadd.f32 %v539, %v671
        %v673 = vpop.f32.mrf.mxu0
        %v674 = vpop.f32.mrf.mxu0
        %v675 = vadd.f32 %v539, %v674
        %v676 = vpop.f32.mrf.mxu0
        %677 = vdwg.mxu0
        %v678 = vmax.f32 %v632, 0.0
        %v679 = vmax.f32 %v635, 0.0
        %v680 = vmax.f32 %v640, 0.0
        %v681 = vmax.f32 %v643, 0.0
        %v682 = vmax.f32 %v648, 0.0
        %v683 = vmax.f32 %v651, 0.0
        %v684 = vmax.f32 %v656, 0.0
        %v685 = vmax.f32 %v659, 0.0
        %v686 = vmax.f32 %v664, 0.0
        %v687 = vmax.f32 %v667, 0.0
        %v688 = vmax.f32 %v672, 0.0
        %v689 = vmax.f32 %v675, 0.0
        %v690 = vpack.c.bf16 %v679, %v678
        %v691 = vpack.c.bf16 %v681, %v680
        %v692 = vpack.c.bf16 %v683, %v682
        %v693 = vpack.c.bf16 %v685, %v684
        %v694 = vpack.c.bf16 %v687, %v686
        %v695 = vpack.c.bf16 %v689, %v688
        %v696 = vld [vmem:[%s3] sm:$0xf]
        %v697 = vld [vmem:[%s3 + $0x4] sm:$0xf]
        %v698 = vld [vmem:[%s3 + $0x8] sm:$0xf]
        %v699 = vld [vmem:[%s3 + $0xc] sm:$0xf]
        %v700 = vld [vmem:[%s3 + $0x10] sm:$0xf]
        %v701 = vld [vmem:[%s3 + $0x14] sm:$0xf]
        %v702 = vld [vmem:[%s3 + $0x18] sm:$0xf]
        %v703 = vld [vmem:[%s3 + $0x1c] sm:$0xf]
        %v704 = vld [vmem:[%s4] sm:$0x1]
        %v706 = vlaneseq
        %v707 = vshrl.u32 %v706, 7
        %v708 = vsub.s32 0, %v707
        %v709 = vrot.slane %v704, %v708
        %v719 = vunpack.c.l.b16 %v696
        %v720 = vunpack.c.l.b16 %v697
        %v721 = vunpack.c.l.b16 %v698
        %v722 = vunpack.c.l.b16 %v699
        %v723 = vunpack.c.l.b16 %v700
        %v724 = vunpack.c.l.b16 %v701
        %v725 = vunpack.c.l.b16 %v702
        %v726 = vunpack.c.l.b16 %v703
        %v727 = vpack.c.b16 %v720, %v719
        %v728 = vpack.c.b16 %v722, %v721
        %v729 = vpack.c.b16 %v724, %v723
        %v730 = vpack.c.b16 %v726, %v725
        %vm735 = vcmask 523264
        %v737 = vsel %vm735, %v690, 0
        %v740 = vsel %vm735, %v691, 0
        %v743 = vsel %vm735, %v692, 0
        %v746 = vsel %vm735, %v693, 0
        %v749 = vsel %vm735, %v694, 0
        %v752 = vsel %vm735, %v695, 0
        %754 = vmatprep.subr.bf16.mxu0 0
        %755 = vmatpush1.bf16.msra.mxu0 0
        %756 = vmatprep.subr.bf16.mxu0 0
        %757 = vmatpush1.bf16.msra.mxu0 0
        %758 = vmatprep.subr.bf16.mxu0 0
        %759 = vmatpush1.bf16.msra.mxu0 0
        %760 = vmatprep.subr.bf16.mxu0 0
        %761 = vmatpush1.bf16.msra.mxu0 0
        %762 = vmatprep.subr.bf16.mxu0 0
        %763 = vmatpush1.bf16.msra.mxu0 %v730
        %764 = vmatprep.subr.bf16.mxu0 0
        %765 = vmatpush1.bf16.msra.mxu0 %v729
        %766 = vmatprep.subr.bf16.mxu0 0
        %767 = vmatpush1.bf16.msra.mxu0 %v728
        %768 = vmatprep.subr.bf16.mxu0 0
        %769 = vmatpush1.bf16.msra.mxu0 %v727
        %770 = vmatprep.subr.bf16.mxu0 0
        %771 = vmatpush2.bf16.msra.mxu0 0
        %772 = vmatprep.subr.bf16.mxu0 0
        %773 = vmatpush2.bf16.msra.mxu0 0
        %774 = vmatprep.subr.bf16.mxu0 0
        %775 = vmatpush2.bf16.msra.mxu0 0
        %776 = vmatprep.subr.bf16.mxu0 0
        %777 = vmatpush2.bf16.msra.mxu0 0
        %778 = vmatprep.subr.bf16.mxu0 0
        %779 = vmatpush2.bf16.msra.mxu0 0
        %780 = vmatprep.subr.bf16.mxu0 0
        %781 = vmatpush2.bf16.msra.mxu0 0
        %782 = vmatprep.subr.bf16.mxu0 0
        %783 = vmatpush2.bf16.msra.mxu0 0
        %784 = vmatprep.subr.bf16.mxu0 0
        %785 = vmatpush2.bf16.msra.mxu0 0
        %786 = vmatprep.mubr.bf16.mxu0 0
        %787 = vmatmul.mubr.bf16.gmra.mxu0 %v737
        %v788 = vpop.f32.mrf.mxu0
        %v789 = vadd.f32 %v709, %v788
        %v790 = vpop.f32.mrf.mxu0
        %v791 = vpop.f32.mrf.mxu0
        %v792 = vadd.f32 %v709, %v791
        %v793 = vpop.f32.mrf.mxu0
        %794 = vmatprep.mubr.bf16.mxu0 0
        %795 = vmatmul.mubr.bf16.gmra.mxu0 %v740
        %v796 = vpop.f32.mrf.mxu0
        %v797 = vadd.f32 %v709, %v796
        %v798 = vpop.f32.mrf.mxu0
        %v799 = vpop.f32.mrf.mxu0
        %v800 = vadd.f32 %v709, %v799
        %v801 = vpop.f32.mrf.mxu0
        %802 = vmatprep.mubr.bf16.mxu0 0
        %803 = vmatmul.mubr.bf16.gmra.mxu0 %v743
        %v804 = vpop.f32.mrf.mxu0
        %v805 = vadd.f32 %v709, %v804
        %v806 = vpop.f32.mrf.mxu0
        %v807 = vpop.f32.mrf.mxu0
        %v808 = vadd.f32 %v709, %v807
        %v809 = vpop.f32.mrf.mxu0
        %810 = vmatprep.mubr.bf16.mxu0 0
        %811 = vmatmul.mubr.bf16.gmra.mxu0 %v746
        %v812 = vpop.f32.mrf.mxu0
        %v813 = vadd.f32 %v709, %v812
        %v814 = vpop.f32.mrf.mxu0
        %v815 = vpop.f32.mrf.mxu0
        %v816 = vadd.f32 %v709, %v815
        %v817 = vpop.f32.mrf.mxu0
        %818 = vmatprep.mubr.bf16.mxu0 0
        %819 = vmatmul.mubr.bf16.gmra.mxu0 %v749
        %v820 = vpop.f32.mrf.mxu0
        %v821 = vadd.f32 %v709, %v820
        %v822 = vpop.f32.mrf.mxu0
        %v823 = vpop.f32.mrf.mxu0
        %v824 = vadd.f32 %v709, %v823
        %v825 = vpop.f32.mrf.mxu0
        %826 = vmatprep.mubr.bf16.mxu0 0
        %827 = vmatmul.mubr.bf16.gmra.mxu0 %v752
        %v828 = vpop.f32.mrf.mxu0
        %v829 = vadd.f32 %v709, %v828
        %v830 = vpop.f32.mrf.mxu0
        %v831 = vpop.f32.mrf.mxu0
        %v832 = vadd.f32 %v709, %v831
        %v833 = vpop.f32.mrf.mxu0
        %834 = vdwg.mxu0
        %v835 = vmax.f32 %v789, 0.0
        %v836 = vmax.f32 %v792, 0.0
        %v837 = vmax.f32 %v797, 0.0
        %v838 = vmax.f32 %v800, 0.0
        %v839 = vmax.f32 %v805, 0.0
        %v840 = vmax.f32 %v808, 0.0
        %v841 = vmax.f32 %v813, 0.0
        %v842 = vmax.f32 %v816, 0.0
        %v843 = vmax.f32 %v821, 0.0
        %v844 = vmax.f32 %v824, 0.0
        %v845 = vmax.f32 %v829, 0.0
        %v846 = vmax.f32 %v832, 0.0
        %v847 = vpack.c.bf16 %v836, %v835
        %v848 = vpack.c.bf16 %v838, %v837
        %v849 = vpack.c.bf16 %v840, %v839
        %v850 = vpack.c.bf16 %v842, %v841
        %v851 = vpack.c.bf16 %v844, %v843
        %v852 = vpack.c.bf16 %v846, %v845
        %v853 = vld [vmem:[%s5] sm:$0xff]
        %v854 = vld [vmem:[%s5 + $0x8] sm:$0xff]
        %v855 = vld [vmem:[%s5 + $0x10] sm:$0xff]
        %v856 = vld [vmem:[%s5 + $0x18] sm:$0xff]
        %v857 = vld [vmem:[%s5 + $0x20] sm:$0xff]
        %v858 = vld [vmem:[%s5 + $0x28] sm:$0xff]
        %v859 = vld [vmem:[%s5 + $0x30] sm:$0xff]
        %v860 = vld [vmem:[%s5 + $0x38] sm:$0xff]
        %v861 = vld [vmem:[%s5 + $0x40] sm:$0xff]
        %v862 = vld [vmem:[%s5 + $0x48] sm:$0xff]
        %v863 = vld [vmem:[%s5 + $0x50] sm:$0xff]
        %v864 = vld [vmem:[%s5 + $0x58] sm:$0xff]
        %v865 = vld [vmem:[%s5 + $0x60] sm:$0xff]
        %v866 = vld [vmem:[%s5 + $0x68] sm:$0xff]
        %v867 = vld [vmem:[%s5 + $0x70] sm:$0xff]
        %v868 = vld [vmem:[%s5 + $0x78] sm:$0xff]
        %v869 = vld [vmem:[%s5 + $0x80] sm:$0xff]
        %v870 = vld [vmem:[%s5 + $0x88] sm:$0xff]
        %v871 = vld [vmem:[%s5 + $0x90] sm:$0xff]
        %v872 = vld [vmem:[%s5 + $0x98] sm:$0xff]
        %v873 = vld [vmem:[%s5 + $0xa0] sm:$0xff]
        %v874 = vld [vmem:[%s5 + $0xa8] sm:$0xff]
        %v875 = vld [vmem:[%s5 + $0xb0] sm:$0xff]
        %v876 = vld [vmem:[%s5 + $0xb8] sm:$0xff]
        %v877 = vld [vmem:[%s5 + $0xc0] sm:$0xff]
        %v878 = vld [vmem:[%s5 + $0xc8] sm:$0xff]
        %v879 = vld [vmem:[%s5 + $0xd0] sm:$0xff]
        %v880 = vld [vmem:[%s5 + $0xd8] sm:$0xff]
        %v881 = vld [vmem:[%s5 + $0xe0] sm:$0xff]
        %v882 = vld [vmem:[%s5 + $0xe8] sm:$0xff]
        %v883 = vld [vmem:[%s5 + $0xf0] sm:$0xff]
        %v884 = vld [vmem:[%s5 + $0xf8] sm:$0xff]
        %v885 = vld [vmem:[%s5 + $0x100] sm:$0xff]
        %v886 = vld [vmem:[%s5 + $0x108] sm:$0xff]
        %v887 = vld [vmem:[%s5 + $0x110] sm:$0xff]
        %v888 = vld [vmem:[%s5 + $0x118] sm:$0xff]
        %v889 = vld [vmem:[%s5 + $0x120] sm:$0xff]
        %v890 = vld [vmem:[%s5 + $0x128] sm:$0xff]
        %v891 = vld [vmem:[%s5 + $0x130] sm:$0xff]
        %v892 = vld [vmem:[%s5 + $0x138] sm:$0xff]
        %v893 = vld [vmem:[%s5 + $0x140] sm:$0xff]
        %v894 = vld [vmem:[%s5 + $0x148] sm:$0xff]
        %v895 = vld [vmem:[%s5 + $0x150] sm:$0xff]
        %v896 = vld [vmem:[%s5 + $0x158] sm:$0xff]
        %v897 = vld [vmem:[%s5 + $0x160] sm:$0xff]
        %v898 = vld [vmem:[%s5 + $0x168] sm:$0xff]
        %v899 = vld [vmem:[%s5 + $0x170] sm:$0xff]
        %v900 = vld [vmem:[%s5 + $0x178] sm:$0xff]
        %v901 = vld [vmem:[%s5 + $0x180] sm:$0xff]
        %v902 = vld [vmem:[%s5 + $0x188] sm:$0xff]
        %v903 = vld [vmem:[%s5 + $0x190] sm:$0xff]
        %v904 = vld [vmem:[%s5 + $0x198] sm:$0xff]
        %v905 = vld [vmem:[%s5 + $0x1a0] sm:$0xff]
        %v906 = vld [vmem:[%s5 + $0x1a8] sm:$0xff]
        %v907 = vld [vmem:[%s5 + $0x1b0] sm:$0xff]
        %v908 = vld [vmem:[%s5 + $0x1b8] sm:$0xff]
        %v909 = vld [vmem:[%s5 + $0x1c0] sm:$0xff]
        %v910 = vld [vmem:[%s5 + $0x1c8] sm:$0xff]
        %v911 = vld [vmem:[%s5 + $0x1d0] sm:$0xff]
        %v912 = vld [vmem:[%s5 + $0x1d8] sm:$0xff]
        %v913 = vld [vmem:[%s5 + $0x1e0] sm:$0xff]
        %v914 = vld [vmem:[%s5 + $0x1e8] sm:$0xff]
        %v915 = vld [vmem:[%s5 + $0x1f0] sm:$0xff]
        %v916 = vld [vmem:[%s5 + $0x1f8] sm:$0xff]
        %v981 = vunpack.c.l.b16 %v853
        %v982 = vunpack.c.h.b16 %v853
        %v983 = vunpack.c.l.b16 %v854
        %v984 = vunpack.c.h.b16 %v854
        %v985 = vunpack.c.l.b16 %v855
        %v986 = vunpack.c.h.b16 %v855
        %v987 = vunpack.c.l.b16 %v856
        %v988 = vunpack.c.h.b16 %v856
        %v989 = vunpack.c.l.b16 %v857
        %v990 = vunpack.c.h.b16 %v857
        %v991 = vunpack.c.l.b16 %v858
        %v992 = vunpack.c.h.b16 %v858
        %v993 = vunpack.c.l.b16 %v859
        %v994 = vunpack.c.h.b16 %v859
        %v995 = vunpack.c.l.b16 %v860
        %v996 = vunpack.c.h.b16 %v860
        %v997 = vunpack.c.l.b16 %v861
        %v998 = vunpack.c.h.b16 %v861
        %v999 = vunpack.c.l.b16 %v862
        %v1000 = vunpack.c.h.b16 %v862
        %v1001 = vunpack.c.l.b16 %v863
        %v1002 = vunpack.c.h.b16 %v863
        %v1003 = vunpack.c.l.b16 %v864
        %v1004 = vunpack.c.h.b16 %v864
        %v1005 = vunpack.c.l.b16 %v865
        %v1006 = vunpack.c.h.b16 %v865
        %v1007 = vunpack.c.l.b16 %v866
        %v1008 = vunpack.c.h.b16 %v866
        %v1009 = vunpack.c.l.b16 %v867
        %v1010 = vunpack.c.h.b16 %v867
        %v1011 = vunpack.c.l.b16 %v868
        %v1012 = vunpack.c.h.b16 %v868
        %v1013 = vunpack.c.l.b16 %v869
        %v1014 = vunpack.c.h.b16 %v869
        %v1015 = vunpack.c.l.b16 %v870
        %v1016 = vunpack.c.h.b16 %v870
        %v1017 = vunpack.c.l.b16 %v871
        %v1018 = vunpack.c.h.b16 %v871
        %v1019 = vunpack.c.l.b16 %v872
        %v1020 = vunpack.c.h.b16 %v872
        %v1021 = vunpack.c.l.b16 %v873
        %v1022 = vunpack.c.h.b16 %v873
        %v1023 = vunpack.c.l.b16 %v874
        %v1024 = vunpack.c.h.b16 %v874
        %v1025 = vunpack.c.l.b16 %v875
        %v1026 = vunpack.c.h.b16 %v875
        %v1027 = vunpack.c.l.b16 %v876
        %v1028 = vunpack.c.h.b16 %v876
        %v1029 = vunpack.c.l.b16 %v877
        %v1030 = vunpack.c.h.b16 %v877
        %v1031 = vunpack.c.l.b16 %v878
        %v1032 = vunpack.c.h.b16 %v878
        %v1033 = vunpack.c.l.b16 %v879
        %v1034 = vunpack.c.h.b16 %v879
        %v1035 = vunpack.c.l.b16 %v880
        %v1036 = vunpack.c.h.b16 %v880
        %v1037 = vunpack.c.l.b16 %v881
        %v1038 = vunpack.c.h.b16 %v881
        %v1039 = vunpack.c.l.b16 %v882
        %v1040 = vunpack.c.h.b16 %v882
        %v1041 = vunpack.c.l.b16 %v883
        %v1042 = vunpack.c.h.b16 %v883
        %v1043 = vunpack.c.l.b16 %v884
        %v1044 = vunpack.c.h.b16 %v884
        %v1045 = vunpack.c.l.b16 %v885
        %v1046 = vunpack.c.h.b16 %v885
        %v1047 = vunpack.c.l.b16 %v886
        %v1048 = vunpack.c.h.b16 %v886
        %v1049 = vunpack.c.l.b16 %v887
        %v1050 = vunpack.c.h.b16 %v887
        %v1051 = vunpack.c.l.b16 %v888
        %v1052 = vunpack.c.h.b16 %v888
        %v1053 = vunpack.c.l.b16 %v889
        %v1054 = vunpack.c.h.b16 %v889
        %v1055 = vunpack.c.l.b16 %v890
        %v1056 = vunpack.c.h.b16 %v890
        %v1057 = vunpack.c.l.b16 %v891
        %v1058 = vunpack.c.h.b16 %v891
        %v1059 = vunpack.c.l.b16 %v892
        %v1060 = vunpack.c.h.b16 %v892
        %v1061 = vunpack.c.l.b16 %v893
        %v1062 = vunpack.c.h.b16 %v893
        %v1063 = vunpack.c.l.b16 %v894
        %v1064 = vunpack.c.h.b16 %v894
        %v1065 = vunpack.c.l.b16 %v895
        %v1066 = vunpack.c.h.b16 %v895
        %v1067 = vunpack.c.l.b16 %v896
        %v1068 = vunpack.c.h.b16 %v896
        %v1069 = vunpack.c.l.b16 %v897
        %v1070 = vunpack.c.h.b16 %v897
        %v1071 = vunpack.c.l.b16 %v898
        %v1072 = vunpack.c.h.b16 %v898
        %v1073 = vunpack.c.l.b16 %v899
        %v1074 = vunpack.c.h.b16 %v899
        %v1075 = vunpack.c.l.b16 %v900
        %v1076 = vunpack.c.h.b16 %v900
        %v1077 = vunpack.c.l.b16 %v901
        %v1078 = vunpack.c.h.b16 %v901
        %v1079 = vunpack.c.l.b16 %v902
        %v1080 = vunpack.c.h.b16 %v902
        %v1081 = vunpack.c.l.b16 %v903
        %v1082 = vunpack.c.h.b16 %v903
        %v1083 = vunpack.c.l.b16 %v904
        %v1084 = vunpack.c.h.b16 %v904
        %v1085 = vunpack.c.l.b16 %v905
        %v1086 = vunpack.c.h.b16 %v905
        %v1087 = vunpack.c.l.b16 %v906
        %v1088 = vunpack.c.h.b16 %v906
        %v1089 = vunpack.c.l.b16 %v907
        %v1090 = vunpack.c.h.b16 %v907
        %v1091 = vunpack.c.l.b16 %v908
        %v1092 = vunpack.c.h.b16 %v908
        %v1093 = vunpack.c.l.b16 %v909
        %v1094 = vunpack.c.h.b16 %v909
        %v1095 = vunpack.c.l.b16 %v910
        %v1096 = vunpack.c.h.b16 %v910
        %v1097 = vunpack.c.l.b16 %v911
        %v1098 = vunpack.c.h.b16 %v911
        %v1099 = vunpack.c.l.b16 %v912
        %v1100 = vunpack.c.h.b16 %v912
        %v1101 = vunpack.c.l.b16 %v913
        %v1102 = vunpack.c.h.b16 %v913
        %v1103 = vunpack.c.l.b16 %v914
        %v1104 = vunpack.c.h.b16 %v914
        %v1105 = vunpack.c.l.b16 %v915
        %v1106 = vunpack.c.h.b16 %v915
        %v1107 = vunpack.c.l.b16 %v916
        %v1108 = vunpack.c.h.b16 %v916
        %v1109 = vpack.c.b16 %v989, %v981
        %v1110 = vpack.c.b16 %v990, %v982
        %v1111 = vpack.c.b16 %v991, %v983
        %v1112 = vpack.c.b16 %v992, %v984
        %v1113 = vpack.c.b16 %v993, %v985
        %v1114 = vpack.c.b16 %v994, %v986
        %v1115 = vpack.c.b16 %v995, %v987
        %v1116 = vpack.c.b16 %v996, %v988
        %v1117 = vpack.c.b16 %v1005, %v997
        %v1118 = vpack.c.b16 %v1006, %v998
        %v1119 = vpack.c.b16 %v1007, %v999
        %v1120 = vpack.c.b16 %v1008, %v1000
        %v1121 = vpack.c.b16 %v1009, %v1001
        %v1122 = vpack.c.b16 %v1010, %v1002
        %v1123 = vpack.c.b16 %v1011, %v1003
        %v1124 = vpack.c.b16 %v1012, %v1004
        %v1125 = vpack.c.b16 %v1021, %v1013
        %v1126 = vpack.c.b16 %v1022, %v1014
        %v1127 = vpack.c.b16 %v1023, %v1015
        %v1128 = vpack.c.b16 %v1024, %v1016
        %v1129 = vpack.c.b16 %v1025, %v1017
        %v1130 = vpack.c.b16 %v1026, %v1018
        %v1131 = vpack.c.b16 %v1027, %v1019
        %v1132 = vpack.c.b16 %v1028, %v1020
        %v1133 = vpack.c.b16 %v1037, %v1029
        %v1134 = vpack.c.b16 %v1038, %v1030
        %v1135 = vpack.c.b16 %v1039, %v1031
        %v1136 = vpack.c.b16 %v1040, %v1032
        %v1137 = vpack.c.b16 %v1041, %v1033
        %v1138 = vpack.c.b16 %v1042, %v1034
        %v1139 = vpack.c.b16 %v1043, %v1035
        %v1140 = vpack.c.b16 %v1044, %v1036
        %v1141 = vpack.c.b16 %v1053, %v1045
        %v1142 = vpack.c.b16 %v1054, %v1046
        %v1143 = vpack.c.b16 %v1055, %v1047
        %v1144 = vpack.c.b16 %v1056, %v1048
        %v1145 = vpack.c.b16 %v1057, %v1049
        %v1146 = vpack.c.b16 %v1058, %v1050
        %v1147 = vpack.c.b16 %v1059, %v1051
        %v1148 = vpack.c.b16 %v1060, %v1052
        %v1149 = vpack.c.b16 %v1069, %v1061
        %v1150 = vpack.c.b16 %v1070, %v1062
        %v1151 = vpack.c.b16 %v1071, %v1063
        %v1152 = vpack.c.b16 %v1072, %v1064
        %v1153 = vpack.c.b16 %v1073, %v1065
        %v1154 = vpack.c.b16 %v1074, %v1066
        %v1155 = vpack.c.b16 %v1075, %v1067
        %v1156 = vpack.c.b16 %v1076, %v1068
        %v1157 = vpack.c.b16 %v1085, %v1077
        %v1158 = vpack.c.b16 %v1086, %v1078
        %v1159 = vpack.c.b16 %v1087, %v1079
        %v1160 = vpack.c.b16 %v1088, %v1080
        %v1161 = vpack.c.b16 %v1089, %v1081
        %v1162 = vpack.c.b16 %v1090, %v1082
        %v1163 = vpack.c.b16 %v1091, %v1083
        %v1164 = vpack.c.b16 %v1092, %v1084
        %v1165 = vpack.c.b16 %v1101, %v1093
        %v1166 = vpack.c.b16 %v1102, %v1094
        %v1167 = vpack.c.b16 %v1103, %v1095
        %v1168 = vpack.c.b16 %v1104, %v1096
        %v1169 = vpack.c.b16 %v1105, %v1097
        %v1170 = vpack.c.b16 %v1106, %v1098
        %v1171 = vpack.c.b16 %v1107, %v1099
        %v1172 = vpack.c.b16 %v1108, %v1100
        %1237 = vmatprep.subr.bf16.mxu0 %v1166
        %1238 = vmatpush1.bf16.msra.mxu0 %v1165
        %1239 = vmatprep.subr.bf16.mxu0 %v1158
        %1240 = vmatpush1.bf16.msra.mxu0 %v1157
        %1241 = vmatprep.subr.bf16.mxu0 %v1150
        %1242 = vmatpush1.bf16.msra.mxu0 %v1149
        %1243 = vmatprep.subr.bf16.mxu0 %v1142
        %1244 = vmatpush1.bf16.msra.mxu0 %v1141
        %1245 = vmatprep.subr.bf16.mxu0 %v1134
        %1246 = vmatpush1.bf16.msra.mxu0 %v1133
        %1247 = vmatprep.subr.bf16.mxu0 %v1126
        %1248 = vmatpush1.bf16.msra.mxu0 %v1125
        %1249 = vmatprep.subr.bf16.mxu0 %v1118
        %1250 = vmatpush1.bf16.msra.mxu0 %v1117
        %1251 = vmatprep.subr.bf16.mxu0 %v1110
        %1252 = vmatpush1.bf16.msra.mxu0 %v1109
        %1253 = vmatprep.subr.bf16.mxu0 0
        %1254 = vmatpush2.bf16.msra.mxu0 0
        %1255 = vmatprep.subr.bf16.mxu0 0
        %1256 = vmatpush2.bf16.msra.mxu0 0
        %1257 = vmatprep.subr.bf16.mxu0 0
        %1258 = vmatpush2.bf16.msra.mxu0 0
        %1259 = vmatprep.subr.bf16.mxu0 0
        %1260 = vmatpush2.bf16.msra.mxu0 0
        %1261 = vmatprep.subr.bf16.mxu0 0
        %1262 = vmatpush2.bf16.msra.mxu0 0
        %1263 = vmatprep.subr.bf16.mxu0 0
        %1264 = vmatpush2.bf16.msra.mxu0 0
        %1265 = vmatprep.subr.bf16.mxu0 0
        %1266 = vmatpush2.bf16.msra.mxu0 0
        %1267 = vmatprep.subr.bf16.mxu0 0
        %1268 = vmatpush2.bf16.msra.mxu0 0
        %1269 = vmatprep.mubr.bf16.mxu0 0
        %1270 = vmatmul.mubr.bf16.gmra.mxu0 %v847
        %v1271 = vpop.f32.mrf.mxu0
        %v1272 = vadd.f32 0.0, %v1271
        %v1273 = vpop.f32.mrf.mxu0
        %v1274 = vadd.f32 0.0, %v1273
        %v1275 = vpop.f32.mrf.mxu0
        %v1276 = vadd.f32 0.0, %v1275
        %v1277 = vpop.f32.mrf.mxu0
        %v1278 = vadd.f32 0.0, %v1277
        %1279 = vmatprep.mubr.bf16.mxu0 0
        %1280 = vmatmul.mubr.bf16.gmra.mxu0 %v848
        %v1281 = vpop.f32.mrf.mxu0
        %v1282 = vadd.f32 0.0, %v1281
        %v1283 = vpop.f32.mrf.mxu0
        %v1284 = vadd.f32 0.0, %v1283
        %v1285 = vpop.f32.mrf.mxu0
        %v1286 = vadd.f32 0.0, %v1285
        %v1287 = vpop.f32.mrf.mxu0
        %v1288 = vadd.f32 0.0, %v1287
        %1289 = vmatprep.mubr.bf16.mxu0 0
        %1290 = vmatmul.mubr.bf16.gmra.mxu0 %v849
        %v1291 = vpop.f32.mrf.mxu0
        %v1292 = vadd.f32 0.0, %v1291
        %v1293 = vpop.f32.mrf.mxu0
        %v1294 = vadd.f32 0.0, %v1293
        %v1295 = vpop.f32.mrf.mxu0
        %v1296 = vadd.f32 0.0, %v1295
        %v1297 = vpop.f32.mrf.mxu0
        %v1298 = vadd.f32 0.0, %v1297
        %1299 = vmatprep.mubr.bf16.mxu0 0
        %1300 = vmatmul.mubr.bf16.gmra.mxu0 %v850
        %v1301 = vpop.f32.mrf.mxu0
        %v1302 = vadd.f32 0.0, %v1301
        %v1303 = vpop.f32.mrf.mxu0
        %v1304 = vadd.f32 0.0, %v1303
        %v1305 = vpop.f32.mrf.mxu0
        %v1306 = vadd.f32 0.0, %v1305
        %v1307 = vpop.f32.mrf.mxu0
        %v1308 = vadd.f32 0.0, %v1307
        %1309 = vmatprep.mubr.bf16.mxu0 0
        %1310 = vmatmul.mubr.bf16.gmra.mxu0 %v851
        %v1311 = vpop.f32.mrf.mxu0
        %v1312 = vadd.f32 0.0, %v1311
        %v1313 = vpop.f32.mrf.mxu0
        %v1314 = vadd.f32 0.0, %v1313
        %v1315 = vpop.f32.mrf.mxu0
        %v1316 = vadd.f32 0.0, %v1315
        %v1317 = vpop.f32.mrf.mxu0
        %v1318 = vadd.f32 0.0, %v1317
        %1319 = vmatprep.mubr.bf16.mxu0 0
        %1320 = vmatmul.mubr.bf16.gmra.mxu0 %v852
        %v1321 = vpop.f32.mrf.mxu0
        %v1322 = vadd.f32 0.0, %v1321
        %v1323 = vpop.f32.mrf.mxu0
        %v1324 = vadd.f32 0.0, %v1323
        %v1325 = vpop.f32.mrf.mxu0
        %v1326 = vadd.f32 0.0, %v1325
        %v1327 = vpop.f32.mrf.mxu0
        %v1328 = vadd.f32 0.0, %v1327
        %1329 = vdwg.mxu0
        %1330 = vmatprep.subr.bf16.mxu0 %v1168
        %1331 = vmatpush1.bf16.msra.mxu0 %v1167
        %1332 = vmatprep.subr.bf16.mxu0 %v1160
        %1333 = vmatpush1.bf16.msra.mxu0 %v1159
        %1334 = vmatprep.subr.bf16.mxu0 %v1152
        %1335 = vmatpush1.bf16.msra.mxu0 %v1151
        %1336 = vmatprep.subr.bf16.mxu0 %v1144
        %1337 = vmatpush1.bf16.msra.mxu0 %v1143
        %1338 = vmatprep.subr.bf16.mxu0 %v1136
        %1339 = vmatpush1.bf16.msra.mxu0 %v1135
        %1340 = vmatprep.subr.bf16.mxu0 %v1128
        %1341 = vmatpush1.bf16.msra.mxu0 %v1127
        %1342 = vmatprep.subr.bf16.mxu0 %v1120
        %1343 = vmatpush1.bf16.msra.mxu0 %v1119
        %1344 = vmatprep.subr.bf16.mxu0 %v1112
        %1345 = vmatpush1.bf16.msra.mxu0 %v1111
        %1346 = vmatprep.subr.bf16.mxu0 0
        %1347 = vmatpush2.bf16.msra.mxu0 0
        %1348 = vmatprep.subr.bf16.mxu0 0
        %1349 = vmatpush2.bf16.msra.mxu0 0
        %1350 = vmatprep.subr.bf16.mxu0 0
        %1351 = vmatpush2.bf16.msra.mxu0 0
        %1352 = vmatprep.subr.bf16.mxu0 0
        %1353 = vmatpush2.bf16.msra.mxu0 0
        %1354 = vmatprep.subr.bf16.mxu0 0
        %1355 = vmatpush2.bf16.msra.mxu0 0
        %1356 = vmatprep.subr.bf16.mxu0 0
        %1357 = vmatpush2.bf16.msra.mxu0 0
        %1358 = vmatprep.subr.bf16.mxu0 0
        %1359 = vmatpush2.bf16.msra.mxu0 0
        %1360 = vmatprep.subr.bf16.mxu0 0
        %1361 = vmatpush2.bf16.msra.mxu0 0
        %1362 = vmatprep.mubr.bf16.mxu0 0
        %1363 = vmatmul.mubr.bf16.gmra.mxu0 %v847
        %v1364 = vpop.f32.mrf.mxu0
        %v1365 = vadd.f32 0.0, %v1364
        %v1366 = vpop.f32.mrf.mxu0
        %v1367 = vadd.f32 0.0, %v1366
        %v1368 = vpop.f32.mrf.mxu0
        %v1369 = vadd.f32 0.0, %v1368
        %v1370 = vpop.f32.mrf.mxu0
        %v1371 = vadd.f32 0.0, %v1370
        %1372 = vmatprep.mubr.bf16.mxu0 0
        %1373 = vmatmul.mubr.bf16.gmra.mxu0 %v848
        %v1374 = vpop.f32.mrf.mxu0
        %v1375 = vadd.f32 0.0, %v1374
        %v1376 = vpop.f32.mrf.mxu0
        %v1377 = vadd.f32 0.0, %v1376
        %v1378 = vpop.f32.mrf.mxu0
        %v1379 = vadd.f32 0.0, %v1378
        %v1380 = vpop.f32.mrf.mxu0
        %v1381 = vadd.f32 0.0, %v1380
        %1382 = vmatprep.mubr.bf16.mxu0 0
        %1383 = vmatmul.mubr.bf16.gmra.mxu0 %v849
        %v1384 = vpop.f32.mrf.mxu0
        %v1385 = vadd.f32 0.0, %v1384
        %v1386 = vpop.f32.mrf.mxu0
        %v1387 = vadd.f32 0.0, %v1386
        %v1388 = vpop.f32.mrf.mxu0
        %v1389 = vadd.f32 0.0, %v1388
        %v1390 = vpop.f32.mrf.mxu0
        %v1391 = vadd.f32 0.0, %v1390
        %1392 = vmatprep.mubr.bf16.mxu0 0
        %1393 = vmatmul.mubr.bf16.gmra.mxu0 %v850
        %v1394 = vpop.f32.mrf.mxu0
        %v1395 = vadd.f32 0.0, %v1394
        %v1396 = vpop.f32.mrf.mxu0
        %v1397 = vadd.f32 0.0, %v1396
        %v1398 = vpop.f32.mrf.mxu0
        %v1399 = vadd.f32 0.0, %v1398
        %v1400 = vpop.f32.mrf.mxu0
        %v1401 = vadd.f32 0.0, %v1400
        %1402 = vmatprep.mubr.bf16.mxu0 0
        %1403 = vmatmul.mubr.bf16.gmra.mxu0 %v851
        %v1404 = vpop.f32.mrf.mxu0
        %v1405 = vadd.f32 0.0, %v1404
        %v1406 = vpop.f32.mrf.mxu0
        %v1407 = vadd.f32 0.0, %v1406
        %v1408 = vpop.f32.mrf.mxu0
        %v1409 = vadd.f32 0.0, %v1408
        %v1410 = vpop.f32.mrf.mxu0
        %v1411 = vadd.f32 0.0, %v1410
        %1412 = vmatprep.mubr.bf16.mxu0 0
        %1413 = vmatmul.mubr.bf16.gmra.mxu0 %v852
        %v1414 = vpop.f32.mrf.mxu0
        %v1415 = vadd.f32 0.0, %v1414
        %v1416 = vpop.f32.mrf.mxu0
        %v1417 = vadd.f32 0.0, %v1416
        %v1418 = vpop.f32.mrf.mxu0
        %v1419 = vadd.f32 0.0, %v1418
        %v1420 = vpop.f32.mrf.mxu0
        %v1421 = vadd.f32 0.0, %v1420
        %1422 = vdwg.mxu0
        %1423 = vmatprep.subr.bf16.mxu0 %v1170
        %1424 = vmatpush1.bf16.msra.mxu0 %v1169
        %1425 = vmatprep.subr.bf16.mxu0 %v1162
        %1426 = vmatpush1.bf16.msra.mxu0 %v1161
        %1427 = vmatprep.subr.bf16.mxu0 %v1154
        %1428 = vmatpush1.bf16.msra.mxu0 %v1153
        %1429 = vmatprep.subr.bf16.mxu0 %v1146
        %1430 = vmatpush1.bf16.msra.mxu0 %v1145
        %1431 = vmatprep.subr.bf16.mxu0 %v1138
        %1432 = vmatpush1.bf16.msra.mxu0 %v1137
        %1433 = vmatprep.subr.bf16.mxu0 %v1130
        %1434 = vmatpush1.bf16.msra.mxu0 %v1129
        %1435 = vmatprep.subr.bf16.mxu0 %v1122
        %1436 = vmatpush1.bf16.msra.mxu0 %v1121
        %1437 = vmatprep.subr.bf16.mxu0 %v1114
        %1438 = vmatpush1.bf16.msra.mxu0 %v1113
        %1439 = vmatprep.subr.bf16.mxu0 0
        %1440 = vmatpush2.bf16.msra.mxu0 0
        %1441 = vmatprep.subr.bf16.mxu0 0
        %1442 = vmatpush2.bf16.msra.mxu0 0
        %1443 = vmatprep.subr.bf16.mxu0 0
        %1444 = vmatpush2.bf16.msra.mxu0 0
        %1445 = vmatprep.subr.bf16.mxu0 0
        %1446 = vmatpush2.bf16.msra.mxu0 0
        %1447 = vmatprep.subr.bf16.mxu0 0
        %1448 = vmatpush2.bf16.msra.mxu0 0
        %1449 = vmatprep.subr.bf16.mxu0 0
        %1450 = vmatpush2.bf16.msra.mxu0 0
        %1451 = vmatprep.subr.bf16.mxu0 0
        %1452 = vmatpush2.bf16.msra.mxu0 0
        %1453 = vmatprep.subr.bf16.mxu0 0
        %1454 = vmatpush2.bf16.msra.mxu0 0
        %1455 = vmatprep.mubr.bf16.mxu0 0
        %1456 = vmatmul.mubr.bf16.gmra.mxu0 %v847
        %v1457 = vpop.f32.mrf.mxu0
        %v1458 = vadd.f32 0.0, %v1457
        %v1459 = vpop.f32.mrf.mxu0
        %v1460 = vadd.f32 0.0, %v1459
        %v1461 = vpop.f32.mrf.mxu0
        %v1462 = vadd.f32 0.0, %v1461
        %v1463 = vpop.f32.mrf.mxu0
        %v1464 = vadd.f32 0.0, %v1463
        %1465 = vmatprep.mubr.bf16.mxu0 0
        %1466 = vmatmul.mubr.bf16.gmra.mxu0 %v848
        %v1467 = vpop.f32.mrf.mxu0
        %v1468 = vadd.f32 0.0, %v1467
        %v1469 = vpop.f32.mrf.mxu0
        %v1470 = vadd.f32 0.0, %v1469
        %v1471 = vpop.f32.mrf.mxu0
        %v1472 = vadd.f32 0.0, %v1471
        %v1473 = vpop.f32.mrf.mxu0
        %v1474 = vadd.f32 0.0, %v1473
        %1475 = vmatprep.mubr.bf16.mxu0 0
        %1476 = vmatmul.mubr.bf16.gmra.mxu0 %v849
        %v1477 = vpop.f32.mrf.mxu0
        %v1478 = vadd.f32 0.0, %v1477
        %v1479 = vpop.f32.mrf.mxu0
        %v1480 = vadd.f32 0.0, %v1479
        %v1481 = vpop.f32.mrf.mxu0
        %v1482 = vadd.f32 0.0, %v1481
        %v1483 = vpop.f32.mrf.mxu0
        %v1484 = vadd.f32 0.0, %v1483
        %1485 = vmatprep.mubr.bf16.mxu0 0
        %1486 = vmatmul.mubr.bf16.gmra.mxu0 %v850
        %v1487 = vpop.f32.mrf.mxu0
        %v1488 = vadd.f32 0.0, %v1487
        %v1489 = vpop.f32.mrf.mxu0
        %v1490 = vadd.f32 0.0, %v1489
        %v1491 = vpop.f32.mrf.mxu0
        %v1492 = vadd.f32 0.0, %v1491
        %v1493 = vpop.f32.mrf.mxu0
        %v1494 = vadd.f32 0.0, %v1493
        %1495 = vmatprep.mubr.bf16.mxu0 0
        %1496 = vmatmul.mubr.bf16.gmra.mxu0 %v851
        %v1497 = vpop.f32.mrf.mxu0
        %v1498 = vadd.f32 0.0, %v1497
        %v1499 = vpop.f32.mrf.mxu0
        %v1500 = vadd.f32 0.0, %v1499
        %v1501 = vpop.f32.mrf.mxu0
        %v1502 = vadd.f32 0.0, %v1501
        %v1503 = vpop.f32.mrf.mxu0
        %v1504 = vadd.f32 0.0, %v1503
        %1505 = vmatprep.mubr.bf16.mxu0 0
        %1506 = vmatmul.mubr.bf16.gmra.mxu0 %v852
        %v1507 = vpop.f32.mrf.mxu0
        %v1508 = vadd.f32 0.0, %v1507
        %v1509 = vpop.f32.mrf.mxu0
        %v1510 = vadd.f32 0.0, %v1509
        %v1511 = vpop.f32.mrf.mxu0
        %v1512 = vadd.f32 0.0, %v1511
        %v1513 = vpop.f32.mrf.mxu0
        %v1514 = vadd.f32 0.0, %v1513
        %1515 = vdwg.mxu0
        %1516 = vmatprep.subr.bf16.mxu0 %v1172
        %1517 = vmatpush1.bf16.msra.mxu0 %v1171
        %1518 = vmatprep.subr.bf16.mxu0 %v1164
        %1519 = vmatpush1.bf16.msra.mxu0 %v1163
        %1520 = vmatprep.subr.bf16.mxu0 %v1156
        %1521 = vmatpush1.bf16.msra.mxu0 %v1155
        %1522 = vmatprep.subr.bf16.mxu0 %v1148
        %1523 = vmatpush1.bf16.msra.mxu0 %v1147
        %1524 = vmatprep.subr.bf16.mxu0 %v1140
        %1525 = vmatpush1.bf16.msra.mxu0 %v1139
        %1526 = vmatprep.subr.bf16.mxu0 %v1132
        %1527 = vmatpush1.bf16.msra.mxu0 %v1131
        %1528 = vmatprep.subr.bf16.mxu0 %v1124
        %1529 = vmatpush1.bf16.msra.mxu0 %v1123
        %1530 = vmatprep.subr.bf16.mxu0 %v1116
        %1531 = vmatpush1.bf16.msra.mxu0 %v1115
        %1532 = vmatprep.subr.bf16.mxu0 0
        %1533 = vmatpush2.bf16.msra.mxu0 0
        %1534 = vmatprep.subr.bf16.mxu0 0
        %1535 = vmatpush2.bf16.msra.mxu0 0
        %1536 = vmatprep.subr.bf16.mxu0 0
        %1537 = vmatpush2.bf16.msra.mxu0 0
        %1538 = vmatprep.subr.bf16.mxu0 0
        %1539 = vmatpush2.bf16.msra.mxu0 0
        %1540 = vmatprep.subr.bf16.mxu0 0
        %1541 = vmatpush2.bf16.msra.mxu0 0
        %1542 = vmatprep.subr.bf16.mxu0 0
        %1543 = vmatpush2.bf16.msra.mxu0 0
        %1544 = vmatprep.subr.bf16.mxu0 0
        %1545 = vmatpush2.bf16.msra.mxu0 0
        %1546 = vmatprep.subr.bf16.mxu0 0
        %1547 = vmatpush2.bf16.msra.mxu0 0
        %1548 = vmatprep.mubr.bf16.mxu0 0
        %1549 = vmatmul.mubr.bf16.gmra.mxu0 %v847
        %v1550 = vpop.f32.mrf.mxu0
        %v1551 = vadd.f32 0.0, %v1550
        %v1552 = vpop.f32.mrf.mxu0
        %v1553 = vadd.f32 0.0, %v1552
        %v1554 = vpop.f32.mrf.mxu0
        %v1555 = vadd.f32 0.0, %v1554
        %v1556 = vpop.f32.mrf.mxu0
        %v1557 = vadd.f32 0.0, %v1556
        %1558 = vmatprep.mubr.bf16.mxu0 0
        %1559 = vmatmul.mubr.bf16.gmra.mxu0 %v848
        %v1560 = vpop.f32.mrf.mxu0
        %v1561 = vadd.f32 0.0, %v1560
        %v1562 = vpop.f32.mrf.mxu0
        %v1563 = vadd.f32 0.0, %v1562
        %v1564 = vpop.f32.mrf.mxu0
        %v1565 = vadd.f32 0.0, %v1564
        %v1566 = vpop.f32.mrf.mxu0
        %v1567 = vadd.f32 0.0, %v1566
        %1568 = vmatprep.mubr.bf16.mxu0 0
        %1569 = vmatmul.mubr.bf16.gmra.mxu0 %v849
        %v1570 = vpop.f32.mrf.mxu0
        %v1571 = vadd.f32 0.0, %v1570
        %v1572 = vpop.f32.mrf.mxu0
        %v1573 = vadd.f32 0.0, %v1572
        %v1574 = vpop.f32.mrf.mxu0
        %v1575 = vadd.f32 0.0, %v1574
        %v1576 = vpop.f32.mrf.mxu0
        %v1577 = vadd.f32 0.0, %v1576
        %1578 = vmatprep.mubr.bf16.mxu0 0
        %1579 = vmatmul.mubr.bf16.gmra.mxu0 %v850
        %v1580 = vpop.f32.mrf.mxu0
        %v1581 = vadd.f32 0.0, %v1580
        %v1582 = vpop.f32.mrf.mxu0
        %v1583 = vadd.f32 0.0, %v1582
        %v1584 = vpop.f32.mrf.mxu0
        %v1585 = vadd.f32 0.0, %v1584
        %v1586 = vpop.f32.mrf.mxu0
        %v1587 = vadd.f32 0.0, %v1586
        %1588 = vmatprep.mubr.bf16.mxu0 0
        %1589 = vmatmul.mubr.bf16.gmra.mxu0 %v851
        %v1590 = vpop.f32.mrf.mxu0
        %v1591 = vadd.f32 0.0, %v1590
        %v1592 = vpop.f32.mrf.mxu0
        %v1593 = vadd.f32 0.0, %v1592
        %v1594 = vpop.f32.mrf.mxu0
        %v1595 = vadd.f32 0.0, %v1594
        %v1596 = vpop.f32.mrf.mxu0
        %v1597 = vadd.f32 0.0, %v1596
        %1598 = vmatprep.mubr.bf16.mxu0 0
        %1599 = vmatmul.mubr.bf16.gmra.mxu0 %v852
        %v1600 = vpop.f32.mrf.mxu0
        %v1601 = vadd.f32 0.0, %v1600
        %v1602 = vpop.f32.mrf.mxu0
        %v1603 = vadd.f32 0.0, %v1602
        %v1604 = vpop.f32.mrf.mxu0
        %v1605 = vadd.f32 0.0, %v1604
        %v1606 = vpop.f32.mrf.mxu0
        %v1607 = vadd.f32 0.0, %v1606
        %1608 = vdwg.mxu0
        %s1609 = smul.u32 %s31, 96
        %v1610 = vlaneseq
        %v1611 = vshrl.u32 %v1610, 7
        %v1612 = vadd.s32 %v1611, 8
        %v1613 = vadd.s32 %v1611, 16
        %v1614 = vadd.s32 %v1611, 24
        %v1615 = vadd.s32 %v1611, 32
        %v1616 = vadd.s32 %v1611, 40
        %v1617 = vadd.s32 %v1611, 48
        %v1618 = vadd.s32 %v1611, 56
        %v1619 = vadd.s32 %v1611, 64
        %v1620 = vadd.s32 %v1611, 72
        %v1621 = vadd.s32 %v1611, 80
        %v1622 = vadd.s32 %v1611, 88
        %v1623 = vstv %s1609
        %v1624 = vadd.s32 %v1623, %v1611
        %v1625 = vadd.s32 %v1623, %v1612
        %v1626 = vadd.s32 %v1623, %v1613
        %v1627 = vadd.s32 %v1623, %v1614
        %v1628 = vadd.s32 %v1623, %v1615
        %v1629 = vadd.s32 %v1623, %v1616
        %v1630 = vadd.s32 %v1623, %v1617
        %v1631 = vadd.s32 %v1623, %v1618
        %v1632 = vadd.s32 %v1623, %v1619
        %v1633 = vadd.s32 %v1623, %v1620
        %v1634 = vadd.s32 %v1623, %v1621
        %v1635 = vadd.s32 %v1623, %v1622
        %vm1636 = vcmp.lt.s32.totalorder %v1624, 256
        %vm1637 = vcmp.lt.s32.totalorder %v1625, 256
        %vm1638 = vcmp.lt.s32.totalorder %v1626, 256
        %vm1639 = vcmp.lt.s32.totalorder %v1627, 256
        %vm1640 = vcmp.lt.s32.totalorder %v1628, 256
        %vm1641 = vcmp.lt.s32.totalorder %v1629, 256
        %vm1642 = vcmp.lt.s32.totalorder %v1630, 256
        %vm1643 = vcmp.lt.s32.totalorder %v1631, 256
        %vm1644 = vcmp.lt.s32.totalorder %v1632, 256
        %vm1645 = vcmp.lt.s32.totalorder %v1633, 256
        %vm1646 = vcmp.lt.s32.totalorder %v1634, 256
        %vm1647 = vcmp.lt.s32.totalorder %v1635, 256
        %v1648 = vsel %vm1636, 1, 0
        %v1649 = vsel %vm1637, 1, 0
        %v1650 = vsel %vm1638, 1, 0
        %v1651 = vsel %vm1639, 1, 0
        %v1652 = vsel %vm1640, 1, 0
        %v1653 = vsel %vm1641, 1, 0
        %v1654 = vsel %vm1642, 1, 0
        %v1655 = vsel %vm1643, 1, 0
        %v1656 = vsel %vm1644, 1, 0
        %v1657 = vsel %vm1645, 1, 0
        %v1658 = vsel %vm1646, 1, 0
        %v1659 = vsel %vm1647, 1, 0
        %vm1660 = vcmp.eq.s32.totalorder %v1648, 1
        %vm1661 = vcmp.eq.s32.totalorder %v1649, 1
        %vm1662 = vcmp.eq.s32.totalorder %v1650, 1
        %vm1663 = vcmp.eq.s32.totalorder %v1651, 1
        %vm1664 = vcmp.eq.s32.totalorder %v1652, 1
        %vm1665 = vcmp.eq.s32.totalorder %v1653, 1
        %vm1666 = vcmp.eq.s32.totalorder %v1654, 1
        %vm1667 = vcmp.eq.s32.totalorder %v1655, 1
        %vm1668 = vcmp.eq.s32.totalorder %v1656, 1
        %vm1669 = vcmp.eq.s32.totalorder %v1657, 1
        %vm1670 = vcmp.eq.s32.totalorder %v1658, 1
        %vm1671 = vcmp.eq.s32.totalorder %v1659, 1
        %v1672 = vsel %vm1660, %v1272, -inf
        %v1673 = vsel %vm1660, %v1274, -inf
        %v1674 = vsel %vm1660, %v1365, -inf
        %v1675 = vsel %vm1660, %v1367, -inf
        %v1676 = vsel %vm1660, %v1458, -inf
        %v1677 = vsel %vm1660, %v1460, -inf
        %v1678 = vsel %vm1660, %v1551, -inf
        %v1679 = vsel %vm1660, %v1553, -inf
        %v1680 = vsel %vm1661, %v1276, -inf
        %v1681 = vsel %vm1661, %v1278, -inf
        %v1682 = vsel %vm1661, %v1369, -inf
        %v1683 = vsel %vm1661, %v1371, -inf
        %v1684 = vsel %vm1661, %v1462, -inf
        %v1685 = vsel %vm1661, %v1464, -inf
        %v1686 = vsel %vm1661, %v1555, -inf
        %v1687 = vsel %vm1661, %v1557, -inf
        %v1688 = vsel %vm1662, %v1282, -inf
        %v1689 = vsel %vm1662, %v1284, -inf
        %v1690 = vsel %vm1662, %v1375, -inf
        %v1691 = vsel %vm1662, %v1377, -inf
        %v1692 = vsel %vm1662, %v1468, -inf
        %v1693 = vsel %vm1662, %v1470, -inf
        %v1694 = vsel %vm1662, %v1561, -inf
        %v1695 = vsel %vm1662, %v1563, -inf
        %v1696 = vsel %vm1663, %v1286, -inf
        %v1697 = vsel %vm1663, %v1288, -inf
        %v1698 = vsel %vm1663, %v1379, -inf
        %v1699 = vsel %vm1663, %v1381, -inf
        %v1700 = vsel %vm1663, %v1472, -inf
        %v1701 = vsel %vm1663, %v1474, -inf
        %v1702 = vsel %vm1663, %v1565, -inf
        %v1703 = vsel %vm1663, %v1567, -inf
        %v1704 = vsel %vm1664, %v1292, -inf
        %v1705 = vsel %vm1664, %v1294, -inf
        %v1706 = vsel %vm1664, %v1385, -inf
        %v1707 = vsel %vm1664, %v1387, -inf
        %v1708 = vsel %vm1664, %v1478, -inf
        %v1709 = vsel %vm1664, %v1480, -inf
        %v1710 = vsel %vm1664, %v1571, -inf
        %v1711 = vsel %vm1664, %v1573, -inf
        %v1712 = vsel %vm1665, %v1296, -inf
        %v1713 = vsel %vm1665, %v1298, -inf
        %v1714 = vsel %vm1665, %v1389, -inf
        %v1715 = vsel %vm1665, %v1391, -inf
        %v1716 = vsel %vm1665, %v1482, -inf
        %v1717 = vsel %vm1665, %v1484, -inf
        %v1718 = vsel %vm1665, %v1575, -inf
        %v1719 = vsel %vm1665, %v1577, -inf
        %v1720 = vsel %vm1666, %v1302, -inf
        %v1721 = vsel %vm1666, %v1304, -inf
        %v1722 = vsel %vm1666, %v1395, -inf
        %v1723 = vsel %vm1666, %v1397, -inf
        %v1724 = vsel %vm1666, %v1488, -inf
        %v1725 = vsel %vm1666, %v1490, -inf
        %v1726 = vsel %vm1666, %v1581, -inf
        %v1727 = vsel %vm1666, %v1583, -inf
        %v1728 = vsel %vm1667, %v1306, -inf
        %v1729 = vsel %vm1667, %v1308, -inf
        %v1730 = vsel %vm1667, %v1399, -inf
        %v1731 = vsel %vm1667, %v1401, -inf
        %v1732 = vsel %vm1667, %v1492, -inf
        %v1733 = vsel %vm1667, %v1494, -inf
        %v1734 = vsel %vm1667, %v1585, -inf
        %v1735 = vsel %vm1667, %v1587, -inf
        %v1736 = vsel %vm1668, %v1312, -inf
        %v1737 = vsel %vm1668, %v1314, -inf
        %v1738 = vsel %vm1668, %v1405, -inf
        %v1739 = vsel %vm1668, %v1407, -inf
        %v1740 = vsel %vm1668, %v1498, -inf
        %v1741 = vsel %vm1668, %v1500, -inf
        %v1742 = vsel %vm1668, %v1591, -inf
        %v1743 = vsel %vm1668, %v1593, -inf
        %v1744 = vsel %vm1669, %v1316, -inf
        %v1745 = vsel %vm1669, %v1318, -inf
        %v1746 = vsel %vm1669, %v1409, -inf
        %v1747 = vsel %vm1669, %v1411, -inf
        %v1748 = vsel %vm1669, %v1502, -inf
        %v1749 = vsel %vm1669, %v1504, -inf
        %v1750 = vsel %vm1669, %v1595, -inf
        %v1751 = vsel %vm1669, %v1597, -inf
        %v1752 = vsel %vm1670, %v1322, -inf
        %v1753 = vsel %vm1670, %v1324, -inf
        %v1754 = vsel %vm1670, %v1415, -inf
        %v1755 = vsel %vm1670, %v1417, -inf
        %v1756 = vsel %vm1670, %v1508, -inf
        %v1757 = vsel %vm1670, %v1510, -inf
        %v1758 = vsel %vm1670, %v1601, -inf
        %v1759 = vsel %vm1670, %v1603, -inf
        %v1760 = vsel %vm1671, %v1326, -inf
        %v1761 = vsel %vm1671, %v1328, -inf
        %v1762 = vsel %vm1671, %v1419, -inf
        %v1763 = vsel %vm1671, %v1421, -inf
        %v1764 = vsel %vm1671, %v1512, -inf
        %v1765 = vsel %vm1671, %v1514, -inf
        %v1766 = vsel %vm1671, %v1605, -inf
        %v1767 = vsel %vm1671, %v1607, -inf
        %v1768 = vld [vmem:[#allocation2] sm:$0xff]
        %v1769 = vmax.f32 %v1672, %v1680
        %v1770 = vmax.f32 %v1769, %v1688
        %v1771 = vmax.f32 %v1770, %v1696
        %v1772 = vmax.f32 %v1771, %v1704
        %v1773 = vmax.f32 %v1772, %v1712
        %v1774 = vmax.f32 %v1773, %v1720
        %v1775 = vmax.f32 %v1774, %v1728
        %v1776 = vmax.f32 %v1775, %v1736
        %v1777 = vmax.f32 %v1776, %v1744
        %v1778 = vmax.f32 %v1777, %v1752
        %v1779 = vmax.f32 %v1778, %v1760
        %v1780 = vrot.slane %v1779, 4
        %v1781 = vmax.f32 %v1779, %v1780
        %v1782 = vrot.slane %v1781, 2
        %v1783 = vmax.f32 %v1781, %v1782
        %v1784 = vrot.slane %v1783, 1
        %v1785 = vmax.f32 %v1783, %v1784
        %v1786 = vmax.f32 %v1673, %v1681
        %v1787 = vmax.f32 %v1786, %v1689
        %v1788 = vmax.f32 %v1787, %v1697
        %v1789 = vmax.f32 %v1788, %v1705
        %v1790 = vmax.f32 %v1789, %v1713
        %v1791 = vmax.f32 %v1790, %v1721
        %v1792 = vmax.f32 %v1791, %v1729
        %v1793 = vmax.f32 %v1792, %v1737
        %v1794 = vmax.f32 %v1793, %v1745
        %v1795 = vmax.f32 %v1794, %v1753
        %v1796 = vmax.f32 %v1795, %v1761
        %v1797 = vrot.slane %v1796, 4
        %v1798 = vmax.f32 %v1796, %v1797
        %v1799 = vrot.slane %v1798, 2
        %v1800 = vmax.f32 %v1798, %v1799
        %v1801 = vrot.slane %v1800, 1
        %v1802 = vmax.f32 %v1800, %v1801
        %v1803 = vmax.f32 %v1674, %v1682
        %v1804 = vmax.f32 %v1803, %v1690
        %v1805 = vmax.f32 %v1804, %v1698
        %v1806 = vmax.f32 %v1805, %v1706
        %v1807 = vmax.f32 %v1806, %v1714
        %v1808 = vmax.f32 %v1807, %v1722
        %v1809 = vmax.f32 %v1808, %v1730
        %v1810 = vmax.f32 %v1809, %v1738
        %v1811 = vmax.f32 %v1810, %v1746
        %v1812 = vmax.f32 %v1811, %v1754
        %v1813 = vmax.f32 %v1812, %v1762
        %v1814 = vrot.slane %v1813, 4
        %v1815 = vmax.f32 %v1813, %v1814
        %v1816 = vrot.slane %v1815, 2
        %v1817 = vmax.f32 %v1815, %v1816
        %v1818 = vrot.slane %v1817, 1
        %v1819 = vmax.f32 %v1817, %v1818
        %v1820 = vmax.f32 %v1675, %v1683
        %v1821 = vmax.f32 %v1820, %v1691
        %v1822 = vmax.f32 %v1821, %v1699
        %v1823 = vmax.f32 %v1822, %v1707
        %v1824 = vmax.f32 %v1823, %v1715
        %v1825 = vmax.f32 %v1824, %v1723
        %v1826 = vmax.f32 %v1825, %v1731
        %v1827 = vmax.f32 %v1826, %v1739
        %v1828 = vmax.f32 %v1827, %v1747
        %v1829 = vmax.f32 %v1828, %v1755
        %v1830 = vmax.f32 %v1829, %v1763
        %v1831 = vrot.slane %v1830, 4
        %v1832 = vmax.f32 %v1830, %v1831
        %v1833 = vrot.slane %v1832, 2
        %v1834 = vmax.f32 %v1832, %v1833
        %v1835 = vrot.slane %v1834, 1
        %v1836 = vmax.f32 %v1834, %v1835
        %v1837 = vmax.f32 %v1676, %v1684
        %v1838 = vmax.f32 %v1837, %v1692
        %v1839 = vmax.f32 %v1838, %v1700
        %v1840 = vmax.f32 %v1839, %v1708
        %v1841 = vmax.f32 %v1840, %v1716
        %v1842 = vmax.f32 %v1841, %v1724
        %v1843 = vmax.f32 %v1842, %v1732
        %v1844 = vmax.f32 %v1843, %v1740
        %v1845 = vmax.f32 %v1844, %v1748
        %v1846 = vmax.f32 %v1845, %v1756
        %v1847 = vmax.f32 %v1846, %v1764
        %v1848 = vrot.slane %v1847, 4
        %v1849 = vmax.f32 %v1847, %v1848
        %v1850 = vrot.slane %v1849, 2
        %v1851 = vmax.f32 %v1849, %v1850
        %v1852 = vrot.slane %v1851, 1
        %v1853 = vmax.f32 %v1851, %v1852
        %v1854 = vmax.f32 %v1677, %v1685
        %v1855 = vmax.f32 %v1854, %v1693
        %v1856 = vmax.f32 %v1855, %v1701
        %v1857 = vmax.f32 %v1856, %v1709
        %v1858 = vmax.f32 %v1857, %v1717
        %v1859 = vmax.f32 %v1858, %v1725
        %v1860 = vmax.f32 %v1859, %v1733
        %v1861 = vmax.f32 %v1860, %v1741
        %v1862 = vmax.f32 %v1861, %v1749
        %v1863 = vmax.f32 %v1862, %v1757
        %v1864 = vmax.f32 %v1863, %v1765
        %v1865 = vrot.slane %v1864, 4
        %v1866 = vmax.f32 %v1864, %v1865
        %v1867 = vrot.slane %v1866, 2
        %v1868 = vmax.f32 %v1866, %v1867
        %v1869 = vrot.slane %v1868, 1
        %v1870 = vmax.f32 %v1868, %v1869
        %v1871 = vmax.f32 %v1678, %v1686
        %v1872 = vmax.f32 %v1871, %v1694
        %v1873 = vmax.f32 %v1872, %v1702
        %v1874 = vmax.f32 %v1873, %v1710
        %v1875 = vmax.f32 %v1874, %v1718
        %v1876 = vmax.f32 %v1875, %v1726
        %v1877 = vmax.f32 %v1876, %v1734
        %v1878 = vmax.f32 %v1877, %v1742
        %v1879 = vmax.f32 %v1878, %v1750
        %v1880 = vmax.f32 %v1879, %v1758
        %v1881 = vmax.f32 %v1880, %v1766
        %v1882 = vrot.slane %v1881, 4
        %v1883 = vmax.f32 %v1881, %v1882
        %v1884 = vrot.slane %v1883, 2
        %v1885 = vmax.f32 %v1883, %v1884
        %v1886 = vrot.slane %v1885, 1
        %v1887 = vmax.f32 %v1885, %v1886
        %v1888 = vmax.f32 %v1679, %v1687
        %v1889 = vmax.f32 %v1888, %v1695
        %v1890 = vmax.f32 %v1889, %v1703
        %v1891 = vmax.f32 %v1890, %v1711
        %v1892 = vmax.f32 %v1891, %v1719
        %v1893 = vmax.f32 %v1892, %v1727
        %v1894 = vmax.f32 %v1893, %v1735
        %v1895 = vmax.f32 %v1894, %v1743
        %v1896 = vmax.f32 %v1895, %v1751
        %v1897 = vmax.f32 %v1896, %v1759
        %v1898 = vmax.f32 %v1897, %v1767
        %v1899 = vrot.slane %v1898, 4
        %v1900 = vmax.f32 %v1898, %v1899
        %v1901 = vrot.slane %v1900, 2
        %v1902 = vmax.f32 %v1900, %v1901
        %v1903 = vrot.slane %v1902, 1
        %v1904 = vmax.f32 %v1902, %v1903
        %v1913 = vcombine.low %v1785, %v1802
        %v1914 = vcombine.low %v1819, %v1836
        %v1915 = vcombine.low %v1853, %v1870
        %v1916 = vcombine.low %v1887, %v1904
        %v1918 = vunpack.c.l.s4 1966171168
        %v1919 = vunpack.c.0.s8 %v1918
        %v1920 = vlaneseq
        %v1921 = vshrl.u32 %v1920, 7
        %v1922 = vsub.s32 %v1919, %v1921
        %v1923 = vrot.slane %v1913, %v1922
        %v1925 = vunpack.c.l.s4 1966171168
        %v1926 = vunpack.c.0.s8 %v1925
        %v1927 = vlaneseq
        %v1928 = vshrl.u32 %v1927, 7
        %v1929 = vsub.s32 %v1926, %v1928
        %v1930 = vrot.slane %v1914, %v1929
        %v1932 = vunpack.c.l.s4 1966171168
        %v1933 = vunpack.c.0.s8 %v1932
        %v1934 = vlaneseq
        %v1935 = vshrl.u32 %v1934, 7
        %v1936 = vsub.s32 %v1933, %v1935
        %v1937 = vrot.slane %v1915, %v1936
        %v1939 = vunpack.c.l.s4 1966171168
        %v1940 = vunpack.c.0.s8 %v1939
        %v1941 = vlaneseq
        %v1942 = vshrl.u32 %v1941, 7
        %v1943 = vsub.s32 %v1940, %v1942
        %v1944 = vrot.slane %v1916, %v1943
        %v1945 = vcombine.low %v1923, %v1930
        %v1946 = vcombine.low %v1937, %v1944
        %v1948 = vunpack.c.l.s4 1966171168
        %v1949 = vunpack.c.0.s8 %v1948
        %v1950 = vlaneseq
        %v1951 = vshrl.u32 %v1950, 7
        %v1952 = vsub.s32 %v1949, %v1951
        %v1953 = vrot.slane %v1945, %v1952
        %v1955 = vunpack.c.l.s4 1966171168
        %v1956 = vunpack.c.0.s8 %v1955
        %v1957 = vlaneseq
        %v1958 = vshrl.u32 %v1957, 7
        %v1959 = vsub.s32 %v1956, %v1958
        %v1960 = vrot.slane %v1946, %v1959
        %v1961 = vcombine.low %v1953, %v1960
        %v1963 = vmax.f32 %v1768, %v1961
        %1964 = vst [vmem:[#allocation2] sm:$0xff] %v1963
        %p1965 = scmp.eq.s32.totalorder %s31, 2
        // Predicated region
        $region85: #{siamese_pointnet_forward.3} parent=71 // pred_check
          %p1966 = pneg %p1965
        $region86: #{siamese_pointnet_forward.3} parent=71 // pred_check_branch
          %1968 = sbr.rel (%p1966) target = $region88
        $region87: #{siamese_pointnet_forward.3} parent=71 // pred_region
          %v1969 = vld [vmem:[#allocation2] sm:$0xff]
          %v1970 = vld [vmem:[%s6] sm:$0xff]
          %v1971 = vadd.f32 %v1969, %v1970
          %v1972 = vmax.f32 %v1971, 0.0
          %v1974 = vlaneseq
          %v1975 = vshrl.u32 %v1974, 7
          %v1976 = vsub.s32 0, %v1975
          %v1977 = vrot.slane %v1972, %v1976
          %v1978 = vlaneseq
          %v1979 = vshrl.u32 %v1978, 7
          %v1980 = vsub.s32 1, %v1979
          %v1981 = vrot.slane %v1972, %v1980
          %v1982 = vlaneseq
          %v1983 = vshrl.u32 %v1982, 7
          %v1984 = vsub.s32 2, %v1983
          %v1985 = vrot.slane %v1972, %v1984
          %v1986 = vlaneseq
          %v1987 = vshrl.u32 %v1986, 7
          %v1988 = vsub.s32 3, %v1987
          %v1989 = vrot.slane %v1972, %v1988
          %v1990 = vlaneseq
          %v1991 = vshrl.u32 %v1990, 7
          %v1992 = vsub.s32 4, %v1991
          %v1993 = vrot.slane %v1972, %v1992
          %v1994 = vlaneseq
          %v1995 = vshrl.u32 %v1994, 7
          %v1996 = vsub.s32 5, %v1995
          %v1997 = vrot.slane %v1972, %v1996
          %v1998 = vlaneseq
          %v1999 = vshrl.u32 %v1998, 7
          %v2000 = vsub.s32 6, %v1999
          %v2001 = vrot.slane %v1972, %v2000
          %v2002 = vlaneseq
          %v2003 = vshrl.u32 %v2002, 7
          %v2004 = vsub.s32 7, %v2003
          %v2005 = vrot.slane %v1972, %v2004
          %v2014 = vpack.c.bf16 %v1977, %v1977
          %v2015 = vpack.c.bf16 %v1981, %v1981
          %v2016 = vpack.c.bf16 %v1985, %v1985
          %v2017 = vpack.c.bf16 %v1989, %v1989
          %v2018 = vpack.c.bf16 %v1993, %v1993
          %v2019 = vpack.c.bf16 %v1997, %v1997
          %v2020 = vpack.c.bf16 %v2001, %v2001
          %v2021 = vpack.c.bf16 %v2005, %v2005
          %v2022 = vld [vmem:[#allocation3] sm:$0xff]
          %v2023 = vld [vmem:[#allocation3 + $0x8] sm:$0xff]
          %v2024 = vld [vmem:[#allocation3 + $0x10] sm:$0xff]
          %v2025 = vld [vmem:[#allocation3 + $0x18] sm:$0xff]
          %v2026 = vld [vmem:[#allocation3 + $0x20] sm:$0xff]
          %v2027 = vld [vmem:[#allocation3 + $0x28] sm:$0xff]
          %v2028 = vld [vmem:[#allocation3 + $0x30] sm:$0xff]
          %v2029 = vld [vmem:[#allocation3 + $0x38] sm:$0xff]
          %v2030 = vld [vmem:[#allocation3 + $0x40] sm:$0xff]
          %v2031 = vld [vmem:[#allocation3 + $0x48] sm:$0xff]
          %v2032 = vld [vmem:[#allocation3 + $0x50] sm:$0xff]
          %v2033 = vld [vmem:[#allocation3 + $0x58] sm:$0xff]
          %v2034 = vld [vmem:[#allocation3 + $0x60] sm:$0xff]
          %v2035 = vld [vmem:[#allocation3 + $0x68] sm:$0xff]
          %v2036 = vld [vmem:[#allocation3 + $0x70] sm:$0xff]
          %v2037 = vld [vmem:[#allocation3 + $0x78] sm:$0xff]
          %v2038 = vld [vmem:[#allocation3 + $0x80] sm:$0xff]
          %v2039 = vld [vmem:[#allocation3 + $0x88] sm:$0xff]
          %v2040 = vld [vmem:[#allocation3 + $0x90] sm:$0xff]
          %v2041 = vld [vmem:[#allocation3 + $0x98] sm:$0xff]
          %v2042 = vld [vmem:[#allocation3 + $0xa0] sm:$0xff]
          %v2043 = vld [vmem:[#allocation3 + $0xa8] sm:$0xff]
          %v2044 = vld [vmem:[#allocation3 + $0xb0] sm:$0xff]
          %v2045 = vld [vmem:[#allocation3 + $0xb8] sm:$0xff]
          %v2046 = vld [vmem:[#allocation3 + $0xc0] sm:$0xff]
          %v2047 = vld [vmem:[#allocation3 + $0xc8] sm:$0xff]
          %v2048 = vld [vmem:[#allocation3 + $0xd0] sm:$0xff]
          %v2049 = vld [vmem:[#allocation3 + $0xd8] sm:$0xff]
          %v2050 = vld [vmem:[#allocation3 + $0xe0] sm:$0xff]
          %v2051 = vld [vmem:[#allocation3 + $0xe8] sm:$0xff]
          %v2052 = vld [vmem:[#allocation3 + $0xf0] sm:$0xff]
          %v2053 = vld [vmem:[#allocation3 + $0xf8] sm:$0xff]
          %v2054 = vld [vmem:[#allocation3 + $0x100] sm:$0xff]
          %v2055 = vld [vmem:[#allocation3 + $0x108] sm:$0xff]
          %v2056 = vld [vmem:[#allocation3 + $0x110] sm:$0xff]
          %v2057 = vld [vmem:[#allocation3 + $0x118] sm:$0xff]
          %v2058 = vld [vmem:[#allocation3 + $0x120] sm:$0xff]
          %v2059 = vld [vmem:[#allocation3 + $0x128] sm:$0xff]
          %v2060 = vld [vmem:[#allocation3 + $0x130] sm:$0xff]
          %v2061 = vld [vmem:[#allocation3 + $0x138] sm:$0xff]
          %v2062 = vld [vmem:[#allocation3 + $0x140] sm:$0xff]
          %v2063 = vld [vmem:[#allocation3 + $0x148] sm:$0xff]
          %v2064 = vld [vmem:[#allocation3 + $0x150] sm:$0xff]
          %v2065 = vld [vmem:[#allocation3 + $0x158] sm:$0xff]
          %v2066 = vld [vmem:[#allocation3 + $0x160] sm:$0xff]
          %v2067 = vld [vmem:[#allocation3 + $0x168] sm:$0xff]
          %v2068 = vld [vmem:[#allocation3 + $0x170] sm:$0xff]
          %v2069 = vld [vmem:[#allocation3 + $0x178] sm:$0xff]
          %v2070 = vld [vmem:[#allocation3 + $0x180] sm:$0xff]
          %v2071 = vld [vmem:[#allocation3 + $0x188] sm:$0xff]
          %v2072 = vld [vmem:[#allocation3 + $0x190] sm:$0xff]
          %v2073 = vld [vmem:[#allocation3 + $0x198] sm:$0xff]
          %v2074 = vld [vmem:[#allocation3 + $0x1a0] sm:$0xff]
          %v2075 = vld [vmem:[#allocation3 + $0x1a8] sm:$0xff]
          %v2076 = vld [vmem:[#allocation3 + $0x1b0] sm:$0xff]
          %v2077 = vld [vmem:[#allocation3 + $0x1b8] sm:$0xff]
          %v2078 = vld [vmem:[#allocation3 + $0x1c0] sm:$0xff]
          %v2079 = vld [vmem:[#allocation3 + $0x1c8] sm:$0xff]
          %v2080 = vld [vmem:[#allocation3 + $0x1d0] sm:$0xff]
          %v2081 = vld [vmem:[#allocation3 + $0x1d8] sm:$0xff]
          %v2082 = vld [vmem:[#allocation3 + $0x1e0] sm:$0xff]
          %v2083 = vld [vmem:[#allocation3 + $0x1e8] sm:$0xff]
          %v2084 = vld [vmem:[#allocation3 + $0x1f0] sm:$0xff]
          %v2085 = vld [vmem:[#allocation3 + $0x1f8] sm:$0xff]
          %v2086 = vld [vmem:[#allocation3 + $0x200] sm:$0xff]
          %v2087 = vld [vmem:[#allocation3 + $0x208] sm:$0xff]
          %v2088 = vld [vmem:[#allocation3 + $0x210] sm:$0xff]
          %v2089 = vld [vmem:[#allocation3 + $0x218] sm:$0xff]
          %v2090 = vld [vmem:[#allocation3 + $0x220] sm:$0xff]
          %v2091 = vld [vmem:[#allocation3 + $0x228] sm:$0xff]
          %v2092 = vld [vmem:[#allocation3 + $0x230] sm:$0xff]
          %v2093 = vld [vmem:[#allocation3 + $0x238] sm:$0xff]
          %v2094 = vld [vmem:[#allocation3 + $0x240] sm:$0xff]
          %v2095 = vld [vmem:[#allocation3 + $0x248] sm:$0xff]
          %v2096 = vld [vmem:[#allocation3 + $0x250] sm:$0xff]
          %v2097 = vld [vmem:[#allocation3 + $0x258] sm:$0xff]
          %v2098 = vld [vmem:[#allocation3 + $0x260] sm:$0xff]
          %v2099 = vld [vmem:[#allocation3 + $0x268] sm:$0xff]
          %v2100 = vld [vmem:[#allocation3 + $0x270] sm:$0xff]
          %v2101 = vld [vmem:[#allocation3 + $0x278] sm:$0xff]
          %v2102 = vld [vmem:[#allocation3 + $0x280] sm:$0xff]
          %v2103 = vld [vmem:[#allocation3 + $0x288] sm:$0xff]
          %v2104 = vld [vmem:[#allocation3 + $0x290] sm:$0xff]
          %v2105 = vld [vmem:[#allocation3 + $0x298] sm:$0xff]
          %v2106 = vld [vmem:[#allocation3 + $0x2a0] sm:$0xff]
          %v2107 = vld [vmem:[#allocation3 + $0x2a8] sm:$0xff]
          %v2108 = vld [vmem:[#allocation3 + $0x2b0] sm:$0xff]
          %v2109 = vld [vmem:[#allocation3 + $0x2b8] sm:$0xff]
          %v2110 = vld [vmem:[#allocation3 + $0x2c0] sm:$0xff]
          %v2111 = vld [vmem:[#allocation3 + $0x2c8] sm:$0xff]
          %v2112 = vld [vmem:[#allocation3 + $0x2d0] sm:$0xff]
          %v2113 = vld [vmem:[#allocation3 + $0x2d8] sm:$0xff]
          %v2114 = vld [vmem:[#allocation3 + $0x2e0] sm:$0xff]
          %v2115 = vld [vmem:[#allocation3 + $0x2e8] sm:$0xff]
          %v2116 = vld [vmem:[#allocation3 + $0x2f0] sm:$0xff]
          %v2117 = vld [vmem:[#allocation3 + $0x2f8] sm:$0xff]
          %v2118 = vld [vmem:[#allocation3 + $0x300] sm:$0xff]
          %v2119 = vld [vmem:[#allocation3 + $0x308] sm:$0xff]
          %v2120 = vld [vmem:[#allocation3 + $0x310] sm:$0xff]
          %v2121 = vld [vmem:[#allocation3 + $0x318] sm:$0xff]
          %v2122 = vld [vmem:[#allocation3 + $0x320] sm:$0xff]
          %v2123 = vld [vmem:[#allocation3 + $0x328] sm:$0xff]
          %v2124 = vld [vmem:[#allocation3 + $0x330] sm:$0xff]
          %v2125 = vld [vmem:[#allocation3 + $0x338] sm:$0xff]
          %v2126 = vld [vmem:[#allocation3 + $0x340] sm:$0xff]
          %v2127 = vld [vmem:[#allocation3 + $0x348] sm:$0xff]
          %v2128 = vld [vmem:[#allocation3 + $0x350] sm:$0xff]
          %v2129 = vld [vmem:[#allocation3 + $0x358] sm:$0xff]
          %v2130 = vld [vmem:[#allocation3 + $0x360] sm:$0xff]
          %v2131 = vld [vmem:[#allocation3 + $0x368] sm:$0xff]
          %v2132 = vld [vmem:[#allocation3 + $0x370] sm:$0xff]
          %v2133 = vld [vmem:[#allocation3 + $0x378] sm:$0xff]
          %v2134 = vld [vmem:[#allocation3 + $0x380] sm:$0xff]
          %v2135 = vld [vmem:[#allocation3 + $0x388] sm:$0xff]
          %v2136 = vld [vmem:[#allocation3 + $0x390] sm:$0xff]
          %v2137 = vld [vmem:[#allocation3 + $0x398] sm:$0xff]
          %v2138 = vld [vmem:[#allocation3 + $0x3a0] sm:$0xff]
          %v2139 = vld [vmem:[#allocation3 + $0x3a8] sm:$0xff]
          %v2140 = vld [vmem:[#allocation3 + $0x3b0] sm:$0xff]
          %v2141 = vld [vmem:[#allocation3 + $0x3b8] sm:$0xff]
          %v2142 = vld [vmem:[#allocation3 + $0x3c0] sm:$0xff]
          %v2143 = vld [vmem:[#allocation3 + $0x3c8] sm:$0xff]
          %v2144 = vld [vmem:[#allocation3 + $0x3d0] sm:$0xff]
          %v2145 = vld [vmem:[#allocation3 + $0x3d8] sm:$0xff]
          %v2146 = vld [vmem:[#allocation3 + $0x3e0] sm:$0xff]
          %v2147 = vld [vmem:[#allocation3 + $0x3e8] sm:$0xff]
          %v2148 = vld [vmem:[#allocation3 + $0x3f0] sm:$0xff]
          %v2149 = vld [vmem:[#allocation3 + $0x3f8] sm:$0xff]
          %v2150 = vld [vmem:[#allocation3 + $0x400] sm:$0xff]
          %v2151 = vld [vmem:[#allocation3 + $0x408] sm:$0xff]
          %v2152 = vld [vmem:[#allocation3 + $0x410] sm:$0xff]
          %v2153 = vld [vmem:[#allocation3 + $0x418] sm:$0xff]
          %v2154 = vld [vmem:[#allocation3 + $0x420] sm:$0xff]
          %v2155 = vld [vmem:[#allocation3 + $0x428] sm:$0xff]
          %v2156 = vld [vmem:[#allocation3 + $0x430] sm:$0xff]
          %v2157 = vld [vmem:[#allocation3 + $0x438] sm:$0xff]
          %v2158 = vld [vmem:[#allocation3 + $0x440] sm:$0xff]
          %v2159 = vld [vmem:[#allocation3 + $0x448] sm:$0xff]
          %v2160 = vld [vmem:[#allocation3 + $0x450] sm:$0xff]
          %v2161 = vld [vmem:[#allocation3 + $0x458] sm:$0xff]
          %v2162 = vld [vmem:[#allocation3 + $0x460] sm:$0xff]
          %v2163 = vld [vmem:[#allocation3 + $0x468] sm:$0xff]
          %v2164 = vld [vmem:[#allocation3 + $0x470] sm:$0xff]
          %v2165 = vld [vmem:[#allocation3 + $0x478] sm:$0xff]
          %v2166 = vld [vmem:[#allocation3 + $0x480] sm:$0xff]
          %v2167 = vld [vmem:[#allocation3 + $0x488] sm:$0xff]
          %v2168 = vld [vmem:[#allocation3 + $0x490] sm:$0xff]
          %v2169 = vld [vmem:[#allocation3 + $0x498] sm:$0xff]
          %v2170 = vld [vmem:[#allocation3 + $0x4a0] sm:$0xff]
          %v2171 = vld [vmem:[#allocation3 + $0x4a8] sm:$0xff]
          %v2172 = vld [vmem:[#allocation3 + $0x4b0] sm:$0xff]
          %v2173 = vld [vmem:[#allocation3 + $0x4b8] sm:$0xff]
          %v2174 = vld [vmem:[#allocation3 + $0x4c0] sm:$0xff]
          %v2175 = vld [vmem:[#allocation3 + $0x4c8] sm:$0xff]
          %v2176 = vld [vmem:[#allocation3 + $0x4d0] sm:$0xff]
          %v2177 = vld [vmem:[#allocation3 + $0x4d8] sm:$0xff]
          %v2178 = vld [vmem:[#allocation3 + $0x4e0] sm:$0xff]
          %v2179 = vld [vmem:[#allocation3 + $0x4e8] sm:$0xff]
          %v2180 = vld [vmem:[#allocation3 + $0x4f0] sm:$0xff]
          %v2181 = vld [vmem:[#allocation3 + $0x4f8] sm:$0xff]
          %v2182 = vld [vmem:[#allocation3 + $0x500] sm:$0xff]
          %v2183 = vld [vmem:[#allocation3 + $0x508] sm:$0xff]
          %v2184 = vld [vmem:[#allocation3 + $0x510] sm:$0xff]
          %v2185 = vld [vmem:[#allocation3 + $0x518] sm:$0xff]
          %v2186 = vld [vmem:[#allocation3 + $0x520] sm:$0xff]
          %v2187 = vld [vmem:[#allocation3 + $0x528] sm:$0xff]
          %v2188 = vld [vmem:[#allocation3 + $0x530] sm:$0xff]
          %v2189 = vld [vmem:[#allocation3 + $0x538] sm:$0xff]
          %v2190 = vld [vmem:[#allocation3 + $0x540] sm:$0xff]
          %v2191 = vld [vmem:[#allocation3 + $0x548] sm:$0xff]
          %v2192 = vld [vmem:[#allocation3 + $0x550] sm:$0xff]
          %v2193 = vld [vmem:[#allocation3 + $0x558] sm:$0xff]
          %v2194 = vld [vmem:[#allocation3 + $0x560] sm:$0xff]
          %v2195 = vld [vmem:[#allocation3 + $0x568] sm:$0xff]
          %v2196 = vld [vmem:[#allocation3 + $0x570] sm:$0xff]
          %v2197 = vld [vmem:[#allocation3 + $0x578] sm:$0xff]
          %v2198 = vld [vmem:[#allocation3 + $0x580] sm:$0xff]
          %v2199 = vld [vmem:[#allocation3 + $0x588] sm:$0xff]
          %v2200 = vld [vmem:[#allocation3 + $0x590] sm:$0xff]
          %v2201 = vld [vmem:[#allocation3 + $0x598] sm:$0xff]
          %v2202 = vld [vmem:[#allocation3 + $0x5a0] sm:$0xff]
          %v2203 = vld [vmem:[#allocation3 + $0x5a8] sm:$0xff]
          %v2204 = vld [vmem:[#allocation3 + $0x5b0] sm:$0xff]
          %v2205 = vld [vmem:[#allocation3 + $0x5b8] sm:$0xff]
          %v2206 = vld [vmem:[#allocation3 + $0x5c0] sm:$0xff]
          %v2207 = vld [vmem:[#allocation3 + $0x5c8] sm:$0xff]
          %v2208 = vld [vmem:[#allocation3 + $0x5d0] sm:$0xff]
          %v2209 = vld [vmem:[#allocation3 + $0x5d8] sm:$0xff]
          %v2210 = vld [vmem:[#allocation3 + $0x5e0] sm:$0xff]
          %v2211 = vld [vmem:[#allocation3 + $0x5e8] sm:$0xff]
          %v2212 = vld [vmem:[#allocation3 + $0x5f0] sm:$0xff]
          %v2213 = vld [vmem:[#allocation3 + $0x5f8] sm:$0xff]
          %v2214 = vld [vmem:[#allocation3 + $0x600] sm:$0xff]
          %v2215 = vld [vmem:[#allocation3 + $0x608] sm:$0xff]
          %v2216 = vld [vmem:[#allocation3 + $0x610] sm:$0xff]
          %v2217 = vld [vmem:[#allocation3 + $0x618] sm:$0xff]
          %v2218 = vld [vmem:[#allocation3 + $0x620] sm:$0xff]
          %v2219 = vld [vmem:[#allocation3 + $0x628] sm:$0xff]
          %v2220 = vld [vmem:[#allocation3 + $0x630] sm:$0xff]
          %v2221 = vld [vmem:[#allocation3 + $0x638] sm:$0xff]
          %v2222 = vld [vmem:[#allocation3 + $0x640] sm:$0xff]
          %v2223 = vld [vmem:[#allocation3 + $0x648] sm:$0xff]
          %v2224 = vld [vmem:[#allocation3 + $0x650] sm:$0xff]
          %v2225 = vld [vmem:[#allocation3 + $0x658] sm:$0xff]
          %v2226 = vld [vmem:[#allocation3 + $0x660] sm:$0xff]
          %v2227 = vld [vmem:[#allocation3 + $0x668] sm:$0xff]
          %v2228 = vld [vmem:[#allocation3 + $0x670] sm:$0xff]
          %v2229 = vld [vmem:[#allocation3 + $0x678] sm:$0xff]
          %v2230 = vld [vmem:[#allocation3 + $0x680] sm:$0xff]
          %v2231 = vld [vmem:[#allocation3 + $0x688] sm:$0xff]
          %v2232 = vld [vmem:[#allocation3 + $0x690] sm:$0xff]
          %v2233 = vld [vmem:[#allocation3 + $0x698] sm:$0xff]
          %v2234 = vld [vmem:[#allocation3 + $0x6a0] sm:$0xff]
          %v2235 = vld [vmem:[#allocation3 + $0x6a8] sm:$0xff]
          %v2236 = vld [vmem:[#allocation3 + $0x6b0] sm:$0xff]
          %v2237 = vld [vmem:[#allocation3 + $0x6b8] sm:$0xff]
          %v2238 = vld [vmem:[#allocation3 + $0x6c0] sm:$0xff]
          %v2239 = vld [vmem:[#allocation3 + $0x6c8] sm:$0xff]
          %v2240 = vld [vmem:[#allocation3 + $0x6d0] sm:$0xff]
          %v2241 = vld [vmem:[#allocation3 + $0x6d8] sm:$0xff]
          %v2242 = vld [vmem:[#allocation3 + $0x6e0] sm:$0xff]
          %v2243 = vld [vmem:[#allocation3 + $0x6e8] sm:$0xff]
          %v2244 = vld [vmem:[#allocation3 + $0x6f0] sm:$0xff]
          %v2245 = vld [vmem:[#allocation3 + $0x6f8] sm:$0xff]
          %v2246 = vld [vmem:[#allocation3 + $0x700] sm:$0xff]
          %v2247 = vld [vmem:[#allocation3 + $0x708] sm:$0xff]
          %v2248 = vld [vmem:[#allocation3 + $0x710] sm:$0xff]
          %v2249 = vld [vmem:[#allocation3 + $0x718] sm:$0xff]
          %v2250 = vld [vmem:[#allocation3 + $0x720] sm:$0xff]
          %v2251 = vld [vmem:[#allocation3 + $0x728] sm:$0xff]
          %v2252 = vld [vmem:[#allocation3 + $0x730] sm:$0xff]
          %v2253 = vld [vmem:[#allocation3 + $0x738] sm:$0xff]
          %v2254 = vld [vmem:[#allocation3 + $0x740] sm:$0xff]
          %v2255 = vld [vmem:[#allocation3 + $0x748] sm:$0xff]
          %v2256 = vld [vmem:[#allocation3 + $0x750] sm:$0xff]
          %v2257 = vld [vmem:[#allocation3 + $0x758] sm:$0xff]
          %v2258 = vld [vmem:[#allocation3 + $0x760] sm:$0xff]
          %v2259 = vld [vmem:[#allocation3 + $0x768] sm:$0xff]
          %v2260 = vld [vmem:[#allocation3 + $0x770] sm:$0xff]
          %v2261 = vld [vmem:[#allocation3 + $0x778] sm:$0xff]
          %v2262 = vld [vmem:[#allocation3 + $0x780] sm:$0xff]
          %v2263 = vld [vmem:[#allocation3 + $0x788] sm:$0xff]
          %v2264 = vld [vmem:[#allocation3 + $0x790] sm:$0xff]
          %v2265 = vld [vmem:[#allocation3 + $0x798] sm:$0xff]
          %v2266 = vld [vmem:[#allocation3 + $0x7a0] sm:$0xff]
          %v2267 = vld [vmem:[#allocation3 + $0x7a8] sm:$0xff]
          %v2268 = vld [vmem:[#allocation3 + $0x7b0] sm:$0xff]
          %v2269 = vld [vmem:[#allocation3 + $0x7b8] sm:$0xff]
          %v2270 = vld [vmem:[#allocation3 + $0x7c0] sm:$0xff]
          %v2271 = vld [vmem:[#allocation3 + $0x7c8] sm:$0xff]
          %v2272 = vld [vmem:[#allocation3 + $0x7d0] sm:$0xff]
          %v2273 = vld [vmem:[#allocation3 + $0x7d8] sm:$0xff]
          %v2274 = vld [vmem:[#allocation3 + $0x7e0] sm:$0xff]
          %v2275 = vld [vmem:[#allocation3 + $0x7e8] sm:$0xff]
          %v2276 = vld [vmem:[#allocation3 + $0x7f0] sm:$0xff]
          %v2277 = vld [vmem:[#allocation3 + $0x7f8] sm:$0xff]
          %v2278 = vld [vmem:[%s8] sm:$0xf]
          %v2535 = vunpack.c.l.b16 %v2022
          %v2536 = vunpack.c.h.b16 %v2022
          %v2537 = vunpack.c.l.b16 %v2023
          %v2538 = vunpack.c.h.b16 %v2023
          %v2539 = vunpack.c.l.b16 %v2024
          %v2540 = vunpack.c.h.b16 %v2024
          %v2541 = vunpack.c.l.b16 %v2025
          %v2542 = vunpack.c.h.b16 %v2025
          %v2543 = vunpack.c.l.b16 %v2026
          %v2544 = vunpack.c.h.b16 %v2026
          %v2545 = vunpack.c.l.b16 %v2027
          %v2546 = vunpack.c.h.b16 %v2027
          %v2547 = vunpack.c.l.b16 %v2028
          %v2548 = vunpack.c.h.b16 %v2028
          %v2549 = vunpack.c.l.b16 %v2029
          %v2550 = vunpack.c.h.b16 %v2029
          %v2551 = vunpack.c.l.b16 %v2030
          %v2552 = vunpack.c.h.b16 %v2030
          %v2553 = vunpack.c.l.b16 %v2031
          %v2554 = vunpack.c.h.b16 %v2031
          %v2555 = vunpack.c.l.b16 %v2032
          %v2556 = vunpack.c.h.b16 %v2032
          %v2557 = vunpack.c.l.b16 %v2033
          %v2558 = vunpack.c.h.b16 %v2033
          %v2559 = vunpack.c.l.b16 %v2034
          %v2560 = vunpack.c.h.b16 %v2034
          %v2561 = vunpack.c.l.b16 %v2035
          %v2562 = vunpack.c.h.b16 %v2035
          %v2563 = vunpack.c.l.b16 %v2036
          %v2564 = vunpack.c.h.b16 %v2036
          %v2565 = vunpack.c.l.b16 %v2037
          %v2566 = vunpack.c.h.b16 %v2037
          %v2567 = vunpack.c.l.b16 %v2038
          %v2568 = vunpack.c.h.b16 %v2038
          %v2569 = vunpack.c.l.b16 %v2039
          %v2570 = vunpack.c.h.b16 %v2039
          %v2571 = vunpack.c.l.b16 %v2040
          %v2572 = vunpack.c.h.b16 %v2040
          %v2573 = vunpack.c.l.b16 %v2041
          %v2574 = vunpack.c.h.b16 %v2041
          %v2575 = vunpack.c.l.b16 %v2042
          %v2576 = vunpack.c.h.b16 %v2042
          %v2577 = vunpack.c.l.b16 %v2043
          %v2578 = vunpack.c.h.b16 %v2043
          %v2579 = vunpack.c.l.b16 %v2044
          %v2580 = vunpack.c.h.b16 %v2044
          %v2581 = vunpack.c.l.b16 %v2045
          %v2582 = vunpack.c.h.b16 %v2045
          %v2583 = vunpack.c.l.b16 %v2046
          %v2584 = vunpack.c.h.b16 %v2046
          %v2585 = vunpack.c.l.b16 %v2047
          %v2586 = vunpack.c.h.b16 %v2047
          %v2587 = vunpack.c.l.b16 %v2048
          %v2588 = vunpack.c.h.b16 %v2048
          %v2589 = vunpack.c.l.b16 %v2049
          %v2590 = vunpack.c.h.b16 %v2049
          %v2591 = vunpack.c.l.b16 %v2050
          %v2592 = vunpack.c.h.b16 %v2050
          %v2593 = vunpack.c.l.b16 %v2051
          %v2594 = vunpack.c.h.b16 %v2051
          %v2595 = vunpack.c.l.b16 %v2052
          %v2596 = vunpack.c.h.b16 %v2052
          %v2597 = vunpack.c.l.b16 %v2053
          %v2598 = vunpack.c.h.b16 %v2053
          %v2599 = vunpack.c.l.b16 %v2054
          %v2600 = vunpack.c.h.b16 %v2054
          %v2601 = vunpack.c.l.b16 %v2055
          %v2602 = vunpack.c.h.b16 %v2055
          %v2603 = vunpack.c.l.b16 %v2056
          %v2604 = vunpack.c.h.b16 %v2056
          %v2605 = vunpack.c.l.b16 %v2057
          %v2606 = vunpack.c.h.b16 %v2057
          %v2607 = vunpack.c.l.b16 %v2058
          %v2608 = vunpack.c.h.b16 %v2058
          %v2609 = vunpack.c.l.b16 %v2059
          %v2610 = vunpack.c.h.b16 %v2059
          %v2611 = vunpack.c.l.b16 %v2060
          %v2612 = vunpack.c.h.b16 %v2060
          %v2613 = vunpack.c.l.b16 %v2061
          %v2614 = vunpack.c.h.b16 %v2061
          %v2615 = vunpack.c.l.b16 %v2062
          %v2616 = vunpack.c.h.b16 %v2062
          %v2617 = vunpack.c.l.b16 %v2063
          %v2618 = vunpack.c.h.b16 %v2063
          %v2619 = vunpack.c.l.b16 %v2064
          %v2620 = vunpack.c.h.b16 %v2064
          %v2621 = vunpack.c.l.b16 %v2065
          %v2622 = vunpack.c.h.b16 %v2065
          %v2623 = vunpack.c.l.b16 %v2066
          %v2624 = vunpack.c.h.b16 %v2066
          %v2625 = vunpack.c.l.b16 %v2067
          %v2626 = vunpack.c.h.b16 %v2067
          %v2627 = vunpack.c.l.b16 %v2068
          %v2628 = vunpack.c.h.b16 %v2068
          %v2629 = vunpack.c.l.b16 %v2069
          %v2630 = vunpack.c.h.b16 %v2069
          %v2631 = vunpack.c.l.b16 %v2070
          %v2632 = vunpack.c.h.b16 %v2070
          %v2633 = vunpack.c.l.b16 %v2071
          %v2634 = vunpack.c.h.b16 %v2071
          %v2635 = vunpack.c.l.b16 %v2072
          %v2636 = vunpack.c.h.b16 %v2072
          %v2637 = vunpack.c.l.b16 %v2073
          %v2638 = vunpack.c.h.b16 %v2073
          %v2639 = vunpack.c.l.b16 %v2074
          %v2640 = vunpack.c.h.b16 %v2074
          %v2641 = vunpack.c.l.b16 %v2075
          %v2642 = vunpack.c.h.b16 %v2075
          %v2643 = vunpack.c.l.b16 %v2076
          %v2644 = vunpack.c.h.b16 %v2076
          %v2645 = vunpack.c.l.b16 %v2077
          %v2646 = vunpack.c.h.b16 %v2077
          %v2647 = vunpack.c.l.b16 %v2078
          %v2648 = vunpack.c.h.b16 %v2078
          %v2649 = vunpack.c.l.b16 %v2079
          %v2650 = vunpack.c.h.b16 %v2079
          %v2651 = vunpack.c.l.b16 %v2080
          %v2652 = vunpack.c.h.b16 %v2080
          %v2653 = vunpack.c.l.b16 %v2081
          %v2654 = vunpack.c.h.b16 %v2081
          %v2655 = vunpack.c.l.b16 %v2082
          %v2656 = vunpack.c.h.b16 %v2082
          %v2657 = vunpack.c.l.b16 %v2083
          %v2658 = vunpack.c.h.b16 %v2083
          %v2659 = vunpack.c.l.b16 %v2084
          %v2660 = vunpack.c.h.b16 %v2084
          %v2661 = vunpack.c.l.b16 %v2085
          %v2662 = vunpack.c.h.b16 %v2085
          %v2663 = vunpack.c.l.b16 %v2086
          %v2664 = vunpack.c.h.b16 %v2086
          %v2665 = vunpack.c.l.b16 %v2087
          %v2666 = vunpack.c.h.b16 %v2087
          %v2667 = vunpack.c.l.b16 %v2088
          %v2668 = vunpack.c.h.b16 %v2088
          %v2669 = vunpack.c.l.b16 %v2089
          %v2670 = vunpack.c.h.b16 %v2089
          %v2671 = vunpack.c.l.b16 %v2090
          %v2672 = vunpack.c.h.b16 %v2090
          %v2673 = vunpack.c.l.b16 %v2091
          %v2674 = vunpack.c.h.b16 %v2091
          %v2675 = vunpack.c.l.b16 %v2092
          %v2676 = vunpack.c.h.b16 %v2092
          %v2677 = vunpack.c.l.b16 %v2093
          %v2678 = vunpack.c.h.b16 %v2093
          %v2679 = vunpack.c.l.b16 %v2094
          %v2680 = vunpack.c.h.b16 %v2094
          %v2681 = vunpack.c.l.b16 %v2095
          %v2682 = vunpack.c.h.b16 %v2095
          %v2683 = vunpack.c.l.b16 %v2096
          %v2684 = vunpack.c.h.b16 %v2096
          %v2685 = vunpack.c.l.b16 %v2097
          %v2686 = vunpack.c.h.b16 %v2097
          %v2687 = vunpack.c.l.b16 %v2098
          %v2688 = vunpack.c.h.b16 %v2098
          %v2689 = vunpack.c.l.b16 %v2099
          %v2690 = vunpack.c.h.b16 %v2099
          %v2691 = vunpack.c.l.b16 %v2100
          %v2692 = vunpack.c.h.b16 %v2100
          %v2693 = vunpack.c.l.b16 %v2101
          %v2694 = vunpack.c.h.b16 %v2101
          %v2695 = vunpack.c.l.b16 %v2102
          %v2696 = vunpack.c.h.b16 %v2102
          %v2697 = vunpack.c.l.b16 %v2103
          %v2698 = vunpack.c.h.b16 %v2103
          %v2699 = vunpack.c.l.b16 %v2104
          %v2700 = vunpack.c.h.b16 %v2104
          %v2701 = vunpack.c.l.b16 %v2105
          %v2702 = vunpack.c.h.b16 %v2105
          %v2703 = vunpack.c.l.b16 %v2106
          %v2704 = vunpack.c.h.b16 %v2106
          %v2705 = vunpack.c.l.b16 %v2107
          %v2706 = vunpack.c.h.b16 %v2107
          %v2707 = vunpack.c.l.b16 %v2108
          %v2708 = vunpack.c.h.b16 %v2108
          %v2709 = vunpack.c.l.b16 %v2109
          %v2710 = vunpack.c.h.b16 %v2109
          %v2711 = vunpack.c.l.b16 %v2110
          %v2712 = vunpack.c.h.b16 %v2110
          %v2713 = vunpack.c.l.b16 %v2111
          %v2714 = vunpack.c.h.b16 %v2111
          %v2715 = vunpack.c.l.b16 %v2112
          %v2716 = vunpack.c.h.b16 %v2112
          %v2717 = vunpack.c.l.b16 %v2113
          %v2718 = vunpack.c.h.b16 %v2113
          %v2719 = vunpack.c.l.b16 %v2114
          %v2720 = vunpack.c.h.b16 %v2114
          %v2721 = vunpack.c.l.b16 %v2115
          %v2722 = vunpack.c.h.b16 %v2115
          %v2723 = vunpack.c.l.b16 %v2116
          %v2724 = vunpack.c.h.b16 %v2116
          %v2725 = vunpack.c.l.b16 %v2117
          %v2726 = vunpack.c.h.b16 %v2117
          %v2727 = vunpack.c.l.b16 %v2118
          %v2728 = vunpack.c.h.b16 %v2118
          %v2729 = vunpack.c.l.b16 %v2119
          %v2730 = vunpack.c.h.b16 %v2119
          %v2731 = vunpack.c.l.b16 %v2120
          %v2732 = vunpack.c.h.b16 %v2120
          %v2733 = vunpack.c.l.b16 %v2121
          %v2734 = vunpack.c.h.b16 %v2121
          %v2735 = vunpack.c.l.b16 %v2122
          %v2736 = vunpack.c.h.b16 %v2122
          %v2737 = vunpack.c.l.b16 %v2123
          %v2738 = vunpack.c.h.b16 %v2123
          %v2739 = vunpack.c.l.b16 %v2124
          %v2740 = vunpack.c.h.b16 %v2124
          %v2741 = vunpack.c.l.b16 %v2125
          %v2742 = vunpack.c.h.b16 %v2125
          %v2743 = vunpack.c.l.b16 %v2126
          %v2744 = vunpack.c.h.b16 %v2126
          %v2745 = vunpack.c.l.b16 %v2127
          %v2746 = vunpack.c.h.b16 %v2127
          %v2747 = vunpack.c.l.b16 %v2128
          %v2748 = vunpack.c.h.b16 %v2128
          %v2749 = vunpack.c.l.b16 %v2129
          %v2750 = vunpack.c.h.b16 %v2129
          %v2751 = vunpack.c.l.b16 %v2130
          %v2752 = vunpack.c.h.b16 %v2130
          %v2753 = vunpack.c.l.b16 %v2131
          %v2754 = vunpack.c.h.b16 %v2131
          %v2755 = vunpack.c.l.b16 %v2132
          %v2756 = vunpack.c.h.b16 %v2132
          %v2757 = vunpack.c.l.b16 %v2133
          %v2758 = vunpack.c.h.b16 %v2133
          %v2759 = vunpack.c.l.b16 %v2134
          %v2760 = vunpack.c.h.b16 %v2134
          %v2761 = vunpack.c.l.b16 %v2135
          %v2762 = vunpack.c.h.b16 %v2135
          %v2763 = vunpack.c.l.b16 %v2136
          %v2764 = vunpack.c.h.b16 %v2136
          %v2765 = vunpack.c.l.b16 %v2137
          %v2766 = vunpack.c.h.b16 %v2137
          %v2767 = vunpack.c.l.b16 %v2138
          %v2768 = vunpack.c.h.b16 %v2138
          %v2769 = vunpack.c.l.b16 %v2139
          %v2770 = vunpack.c.h.b16 %v2139
          %v2771 = vunpack.c.l.b16 %v2140
          %v2772 = vunpack.c.h.b16 %v2140
          %v2773 = vunpack.c.l.b16 %v2141
          %v2774 = vunpack.c.h.b16 %v2141
          %v2775 = vunpack.c.l.b16 %v2142
          %v2776 = vunpack.c.h.b16 %v2142
          %v2777 = vunpack.c.l.b16 %v2143
          %v2778 = vunpack.c.h.b16 %v2143
          %v2779 = vunpack.c.l.b16 %v2144
          %v2780 = vunpack.c.h.b16 %v2144
          %v2781 = vunpack.c.l.b16 %v2145
          %v2782 = vunpack.c.h.b16 %v2145
          %v2783 = vunpack.c.l.b16 %v2146
          %v2784 = vunpack.c.h.b16 %v2146
          %v2785 = vunpack.c.l.b16 %v2147
          %v2786 = vunpack.c.h.b16 %v2147
          %v2787 = vunpack.c.l.b16 %v2148
          %v2788 = vunpack.c.h.b16 %v2148
          %v2789 = vunpack.c.l.b16 %v2149
          %v2790 = vunpack.c.h.b16 %v2149
          %v2791 = vunpack.c.l.b16 %v2150
          %v2792 = vunpack.c.h.b16 %v2150
          %v2793 = vunpack.c.l.b16 %v2151
          %v2794 = vunpack.c.h.b16 %v2151
          %v2795 = vunpack.c.l.b16 %v2152
          %v2796 = vunpack.c.h.b16 %v2152
          %v2797 = vunpack.c.l.b16 %v2153
          %v2798 = vunpack.c.h.b16 %v2153
          %v2799 = vunpack.c.l.b16 %v2154
          %v2800 = vunpack.c.h.b16 %v2154
          %v2801 = vunpack.c.l.b16 %v2155
          %v2802 = vunpack.c.h.b16 %v2155
          %v2803 = vunpack.c.l.b16 %v2156
          %v2804 = vunpack.c.h.b16 %v2156
          %v2805 = vunpack.c.l.b16 %v2157
          %v2806 = vunpack.c.h.b16 %v2157
          %v2807 = vunpack.c.l.b16 %v2158
          %v2808 = vunpack.c.h.b16 %v2158
          %v2809 = vunpack.c.l.b16 %v2159
          %v2810 = vunpack.c.h.b16 %v2159
          %v2811 = vunpack.c.l.b16 %v2160
          %v2812 = vunpack.c.h.b16 %v2160
          %v2813 = vunpack.c.l.b16 %v2161
          %v2814 = vunpack.c.h.b16 %v2161
          %v2815 = vunpack.c.l.b16 %v2162
          %v2816 = vunpack.c.h.b16 %v2162
          %v2817 = vunpack.c.l.b16 %v2163
          %v2818 = vunpack.c.h.b16 %v2163
          %v2819 = vunpack.c.l.b16 %v2164
          %v2820 = vunpack.c.h.b16 %v2164
          %v2821 = vunpack.c.l.b16 %v2165
          %v2822 = vunpack.c.h.b16 %v2165
          %v2823 = vunpack.c.l.b16 %v2166
          %v2824 = vunpack.c.h.b16 %v2166
          %v2825 = vunpack.c.l.b16 %v2167
          %v2826 = vunpack.c.h.b16 %v2167
          %v2827 = vunpack.c.l.b16 %v2168
          %v2828 = vunpack.c.h.b16 %v2168
          %v2829 = vunpack.c.l.b16 %v2169
          %v2830 = vunpack.c.h.b16 %v2169
          %v2831 = vunpack.c.l.b16 %v2170
          %v2832 = vunpack.c.h.b16 %v2170
          %v2833 = vunpack.c.l.b16 %v2171
          %v2834 = vunpack.c.h.b16 %v2171
          %v2835 = vunpack.c.l.b16 %v2172
          %v2836 = vunpack.c.h.b16 %v2172
          %v2837 = vunpack.c.l.b16 %v2173
          %v2838 = vunpack.c.h.b16 %v2173
          %v2839 = vunpack.c.l.b16 %v2174
          %v2840 = vunpack.c.h.b16 %v2174
          %v2841 = vunpack.c.l.b16 %v2175
          %v2842 = vunpack.c.h.b16 %v2175
          %v2843 = vunpack.c.l.b16 %v2176
          %v2844 = vunpack.c.h.b16 %v2176
          %v2845 = vunpack.c.l.b16 %v2177
          %v2846 = vunpack.c.h.b16 %v2177
          %v2847 = vunpack.c.l.b16 %v2178
          %v2848 = vunpack.c.h.b16 %v2178
          %v2849 = vunpack.c.l.b16 %v2179
          %v2850 = vunpack.c.h.b16 %v2179
          %v2851 = vunpack.c.l.b16 %v2180
          %v2852 = vunpack.c.h.b16 %v2180
          %v2853 = vunpack.c.l.b16 %v2181
          %v2854 = vunpack.c.h.b16 %v2181
          %v2855 = vunpack.c.l.b16 %v2182
          %v2856 = vunpack.c.h.b16 %v2182
          %v2857 = vunpack.c.l.b16 %v2183
          %v2858 = vunpack.c.h.b16 %v2183
          %v2859 = vunpack.c.l.b16 %v2184
          %v2860 = vunpack.c.h.b16 %v2184
          %v2861 = vunpack.c.l.b16 %v2185
          %v2862 = vunpack.c.h.b16 %v2185
          %v2863 = vunpack.c.l.b16 %v2186
          %v2864 = vunpack.c.h.b16 %v2186
          %v2865 = vunpack.c.l.b16 %v2187
          %v2866 = vunpack.c.h.b16 %v2187
          %v2867 = vunpack.c.l.b16 %v2188
          %v2868 = vunpack.c.h.b16 %v2188
          %v2869 = vunpack.c.l.b16 %v2189
          %v2870 = vunpack.c.h.b16 %v2189
          %v2871 = vunpack.c.l.b16 %v2190
          %v2872 = vunpack.c.h.b16 %v2190
          %v2873 = vunpack.c.l.b16 %v2191
          %v2874 = vunpack.c.h.b16 %v2191
          %v2875 = vunpack.c.l.b16 %v2192
          %v2876 = vunpack.c.h.b16 %v2192
          %v2877 = vunpack.c.l.b16 %v2193
          %v2878 = vunpack.c.h.b16 %v2193
          %v2879 = vunpack.c.l.b16 %v2194
          %v2880 = vunpack.c.h.b16 %v2194
          %v2881 = vunpack.c.l.b16 %v2195
          %v2882 = vunpack.c.h.b16 %v2195
          %v2883 = vunpack.c.l.b16 %v2196
          %v2884 = vunpack.c.h.b16 %v2196
          %v2885 = vunpack.c.l.b16 %v2197
          %v2886 = vunpack.c.h.b16 %v2197
          %v2887 = vunpack.c.l.b16 %v2198
          %v2888 = vunpack.c.h.b16 %v2198
          %v2889 = vunpack.c.l.b16 %v2199
          %v2890 = vunpack.c.h.b16 %v2199
          %v2891 = vunpack.c.l.b16 %v2200
          %v2892 = vunpack.c.h.b16 %v2200
          %v2893 = vunpack.c.l.b16 %v2201
          %v2894 = vunpack.c.h.b16 %v2201
          %v2895 = vunpack.c.l.b16 %v2202
          %v2896 = vunpack.c.h.b16 %v2202
          %v2897 = vunpack.c.l.b16 %v2203
          %v2898 = vunpack.c.h.b16 %v2203
          %v2899 = vunpack.c.l.b16 %v2204
          %v2900 = vunpack.c.h.b16 %v2204
          %v2901 = vunpack.c.l.b16 %v2205
          %v2902 = vunpack.c.h.b16 %v2205
          %v2903 = vunpack.c.l.b16 %v2206
          %v2904 = vunpack.c.h.b16 %v2206
          %v2905 = vunpack.c.l.b16 %v2207
          %v2906 = vunpack.c.h.b16 %v2207
          %v2907 = vunpack.c.l.b16 %v2208
          %v2908 = vunpack.c.h.b16 %v2208
          %v2909 = vunpack.c.l.b16 %v2209
          %v2910 = vunpack.c.h.b16 %v2209
          %v2911 = vunpack.c.l.b16 %v2210
          %v2912 = vunpack.c.h.b16 %v2210
          %v2913 = vunpack.c.l.b16 %v2211
          %v2914 = vunpack.c.h.b16 %v2211
          %v2915 = vunpack.c.l.b16 %v2212
          %v2916 = vunpack.c.h.b16 %v2212
          %v2917 = vunpack.c.l.b16 %v2213
          %v2918 = vunpack.c.h.b16 %v2213
          %v2919 = vunpack.c.l.b16 %v2214
          %v2920 = vunpack.c.h.b16 %v2214
          %v2921 = vunpack.c.l.b16 %v2215
          %v2922 = vunpack.c.h.b16 %v2215
          %v2923 = vunpack.c.l.b16 %v2216
          %v2924 = vunpack.c.h.b16 %v2216
          %v2925 = vunpack.c.l.b16 %v2217
          %v2926 = vunpack.c.h.b16 %v2217
          %v2927 = vunpack.c.l.b16 %v2218
          %v2928 = vunpack.c.h.b16 %v2218
          %v2929 = vunpack.c.l.b16 %v2219
          %v2930 = vunpack.c.h.b16 %v2219
          %v2931 = vunpack.c.l.b16 %v2220
          %v2932 = vunpack.c.h.b16 %v2220
          %v2933 = vunpack.c.l.b16 %v2221
          %v2934 = vunpack.c.h.b16 %v2221
          %v2935 = vunpack.c.l.b16 %v2222
          %v2936 = vunpack.c.h.b16 %v2222
          %v2937 = vunpack.c.l.b16 %v2223
          %v2938 = vunpack.c.h.b16 %v2223
          %v2939 = vunpack.c.l.b16 %v2224
          %v2940 = vunpack.c.h.b16 %v2224
          %v2941 = vunpack.c.l.b16 %v2225
          %v2942 = vunpack.c.h.b16 %v2225
          %v2943 = vunpack.c.l.b16 %v2226
          %v2944 = vunpack.c.h.b16 %v2226
          %v2945 = vunpack.c.l.b16 %v2227
          %v2946 = vunpack.c.h.b16 %v2227
          %v2947 = vunpack.c.l.b16 %v2228
          %v2948 = vunpack.c.h.b16 %v2228
          %v2949 = vunpack.c.l.b16 %v2229
          %v2950 = vunpack.c.h.b16 %v2229
          %v2951 = vunpack.c.l.b16 %v2230
          %v2952 = vunpack.c.h.b16 %v2230
          %v2953 = vunpack.c.l.b16 %v2231
          %v2954 = vunpack.c.h.b16 %v2231
          %v2955 = vunpack.c.l.b16 %v2232
          %v2956 = vunpack.c.h.b16 %v2232
          %v2957 = vunpack.c.l.b16 %v2233
          %v2958 = vunpack.c.h.b16 %v2233
          %v2959 = vunpack.c.l.b16 %v2234
          %v2960 = vunpack.c.h.b16 %v2234
          %v2961 = vunpack.c.l.b16 %v2235
          %v2962 = vunpack.c.h.b16 %v2235
          %v2963 = vunpack.c.l.b16 %v2236
          %v2964 = vunpack.c.h.b16 %v2236
          %v2965 = vunpack.c.l.b16 %v2237
          %v2966 = vunpack.c.h.b16 %v2237
          %v2967 = vunpack.c.l.b16 %v2238
          %v2968 = vunpack.c.h.b16 %v2238
          %v2969 = vunpack.c.l.b16 %v2239
          %v2970 = vunpack.c.h.b16 %v2239
          %v2971 = vunpack.c.l.b16 %v2240
          %v2972 = vunpack.c.h.b16 %v2240
          %v2973 = vunpack.c.l.b16 %v2241
          %v2974 = vunpack.c.h.b16 %v2241
          %v2975 = vunpack.c.l.b16 %v2242
          %v2976 = vunpack.c.h.b16 %v2242
          %v2977 = vunpack.c.l.b16 %v2243
          %v2978 = vunpack.c.h.b16 %v2243
          %v2979 = vunpack.c.l.b16 %v2244
          %v2980 = vunpack.c.h.b16 %v2244
          %v2981 = vunpack.c.l.b16 %v2245
          %v2982 = vunpack.c.h.b16 %v2245
          %v2983 = vunpack.c.l.b16 %v2246
          %v2984 = vunpack.c.h.b16 %v2246
          %v2985 = vunpack.c.l.b16 %v2247
          %v2986 = vunpack.c.h.b16 %v2247
          %v2987 = vunpack.c.l.b16 %v2248
          %v2988 = vunpack.c.h.b16 %v2248
          %v2989 = vunpack.c.l.b16 %v2249
          %v2990 = vunpack.c.h.b16 %v2249
          %v2991 = vunpack.c.l.b16 %v2250
          %v2992 = vunpack.c.h.b16 %v2250
          %v2993 = vunpack.c.l.b16 %v2251
          %v2994 = vunpack.c.h.b16 %v2251
          %v2995 = vunpack.c.l.b16 %v2252
          %v2996 = vunpack.c.h.b16 %v2252
          %v2997 = vunpack.c.l.b16 %v2253
          %v2998 = vunpack.c.h.b16 %v2253
          %v2999 = vunpack.c.l.b16 %v2254
          %v3000 = vunpack.c.h.b16 %v2254
          %v3001 = vunpack.c.l.b16 %v2255
          %v3002 = vunpack.c.h.b16 %v2255
          %v3003 = vunpack.c.l.b16 %v2256
          %v3004 = vunpack.c.h.b16 %v2256
          %v3005 = vunpack.c.l.b16 %v2257
          %v3006 = vunpack.c.h.b16 %v2257
          %v3007 = vunpack.c.l.b16 %v2258
          %v3008 = vunpack.c.h.b16 %v2258
          %v3009 = vunpack.c.l.b16 %v2259
          %v3010 = vunpack.c.h.b16 %v2259
          %v3011 = vunpack.c.l.b16 %v2260
          %v3012 = vunpack.c.h.b16 %v2260
          %v3013 = vunpack.c.l.b16 %v2261
          %v3014 = vunpack.c.h.b16 %v2261
          %v3015 = vunpack.c.l.b16 %v2262
          %v3016 = vunpack.c.h.b16 %v2262
          %v3017 = vunpack.c.l.b16 %v2263
          %v3018 = vunpack.c.h.b16 %v2263
          %v3019 = vunpack.c.l.b16 %v2264
          %v3020 = vunpack.c.h.b16 %v2264
          %v3021 = vunpack.c.l.b16 %v2265
          %v3022 = vunpack.c.h.b16 %v2265
          %v3023 = vunpack.c.l.b16 %v2266
          %v3024 = vunpack.c.h.b16 %v2266
          %v3025 = vunpack.c.l.b16 %v2267
          %v3026 = vunpack.c.h.b16 %v2267
          %v3027 = vunpack.c.l.b16 %v2268
          %v3028 = vunpack.c.h.b16 %v2268
          %v3029 = vunpack.c.l.b16 %v2269
          %v3030 = vunpack.c.h.b16 %v2269
          %v3031 = vunpack.c.l.b16 %v2270
          %v3032 = vunpack.c.h.b16 %v2270
          %v3033 = vunpack.c.l.b16 %v2271
          %v3034 = vunpack.c.h.b16 %v2271
          %v3035 = vunpack.c.l.b16 %v2272
          %v3036 = vunpack.c.h.b16 %v2272
          %v3037 = vunpack.c.l.b16 %v2273
          %v3038 = vunpack.c.h.b16 %v2273
          %v3039 = vunpack.c.l.b16 %v2274
          %v3040 = vunpack.c.h.b16 %v2274
          %v3041 = vunpack.c.l.b16 %v2275
          %v3042 = vunpack.c.h.b16 %v2275
          %v3043 = vunpack.c.l.b16 %v2276
          %v3044 = vunpack.c.h.b16 %v2276
          %v3045 = vunpack.c.l.b16 %v2277
          %v3046 = vunpack.c.h.b16 %v2277
          %v3047 = vpack.c.b16 %v2539, %v2535
          %v3048 = vpack.c.b16 %v2540, %v2536
          %v3049 = vpack.c.b16 %v2541, %v2537
          %v3050 = vpack.c.b16 %v2542, %v2538
          %v3051 = vpack.c.b16 %v2547, %v2543
          %v3052 = vpack.c.b16 %v2548, %v2544
          %v3053 = vpack.c.b16 %v2549, %v2545
          %v3054 = vpack.c.b16 %v2550, %v2546
          %v3055 = vpack.c.b16 %v2555, %v2551
          %v3056 = vpack.c.b16 %v2556, %v2552
          %v3057 = vpack.c.b16 %v2557, %v2553
          %v3058 = vpack.c.b16 %v2558, %v2554
          %v3059 = vpack.c.b16 %v2563, %v2559
          %v3060 = vpack.c.b16 %v2564, %v2560
          %v3061 = vpack.c.b16 %v2565, %v2561
          %v3062 = vpack.c.b16 %v2566, %v2562
          %v3063 = vpack.c.b16 %v2571, %v2567
          %v3064 = vpack.c.b16 %v2572, %v2568
          %v3065 = vpack.c.b16 %v2573, %v2569
          %v3066 = vpack.c.b16 %v2574, %v2570
          %v3067 = vpack.c.b16 %v2579, %v2575
          %v3068 = vpack.c.b16 %v2580, %v2576
          %v3069 = vpack.c.b16 %v2581, %v2577
          %v3070 = vpack.c.b16 %v2582, %v2578
          %v3071 = vpack.c.b16 %v2587, %v2583
          %v3072 = vpack.c.b16 %v2588, %v2584
          %v3073 = vpack.c.b16 %v2589, %v2585
          %v3074 = vpack.c.b16 %v2590, %v2586
          %v3075 = vpack.c.b16 %v2595, %v2591
          %v3076 = vpack.c.b16 %v2596, %v2592
          %v3077 = vpack.c.b16 %v2597, %v2593
          %v3078 = vpack.c.b16 %v2598, %v2594
          %v3079 = vpack.c.b16 %v2603, %v2599
          %v3080 = vpack.c.b16 %v2604, %v2600
          %v3081 = vpack.c.b16 %v2605, %v2601
          %v3082 = vpack.c.b16 %v2606, %v2602
          %v3083 = vpack.c.b16 %v2611, %v2607
          %v3084 = vpack.c.b16 %v2612, %v2608
          %v3085 = vpack.c.b16 %v2613, %v2609
          %v3086 = vpack.c.b16 %v2614, %v2610
          %v3087 = vpack.c.b16 %v2619, %v2615
          %v3088 = vpack.c.b16 %v2620, %v2616
          %v3089 = vpack.c.b16 %v2621, %v2617
          %v3090 = vpack.c.b16 %v2622, %v2618
          %v3091 = vpack.c.b16 %v2627, %v2623
          %v3092 = vpack.c.b16 %v2628, %v2624
          %v3093 = vpack.c.b16 %v2629, %v2625
          %v3094 = vpack.c.b16 %v2630, %v2626
          %v3095 = vpack.c.b16 %v2635, %v2631
          %v3096 = vpack.c.b16 %v2636, %v2632
          %v3097 = vpack.c.b16 %v2637, %v2633
          %v3098 = vpack.c.b16 %v2638, %v2634
          %v3099 = vpack.c.b16 %v2643, %v2639
          %v3100 = vpack.c.b16 %v2644, %v2640
          %v3101 = vpack.c.b16 %v2645, %v2641
          %v3102 = vpack.c.b16 %v2646, %v2642
          %v3103 = vpack.c.b16 %v2651, %v2647
          %v3104 = vpack.c.b16 %v2652, %v2648
          %v3105 = vpack.c.b16 %v2653, %v2649
          %v3106 = vpack.c.b16 %v2654, %v2650
          %v3107 = vpack.c.b16 %v2659, %v2655
          %v3108 = vpack.c.b16 %v2660, %v2656
          %v3109 = vpack.c.b16 %v2661, %v2657
          %v3110 = vpack.c.b16 %v2662, %v2658
          %v3111 = vpack.c.b16 %v2667, %v2663
          %v3112 = vpack.c.b16 %v2668, %v2664
          %v3113 = vpack.c.b16 %v2669, %v2665
          %v3114 = vpack.c.b16 %v2670, %v2666
          %v3115 = vpack.c.b16 %v2675, %v2671
          %v3116 = vpack.c.b16 %v2676, %v2672
          %v3117 = vpack.c.b16 %v2677, %v2673
          %v3118 = vpack.c.b16 %v2678, %v2674
          %v3119 = vpack.c.b16 %v2683, %v2679
          %v3120 = vpack.c.b16 %v2684, %v2680
          %v3121 = vpack.c.b16 %v2685, %v2681
          %v3122 = vpack.c.b16 %v2686, %v2682
          %v3123 = vpack.c.b16 %v2691, %v2687
          %v3124 = vpack.c.b16 %v2692, %v2688
          %v3125 = vpack.c.b16 %v2693, %v2689
          %v3126 = vpack.c.b16 %v2694, %v2690
          %v3127 = vpack.c.b16 %v2699, %v2695
          %v3128 = vpack.c.b16 %v2700, %v2696
          %v3129 = vpack.c.b16 %v2701, %v2697
          %v3130 = vpack.c.b16 %v2702, %v2698
          %v3131 = vpack.c.b16 %v2707, %v2703
          %v3132 = vpack.c.b16 %v2708, %v2704
          %v3133 = vpack.c.b16 %v2709, %v2705
          %v3134 = vpack.c.b16 %v2710, %v2706
          %v3135 = vpack.c.b16 %v2715, %v2711
          %v3136 = vpack.c.b16 %v2716, %v2712
          %v3137 = vpack.c.b16 %v2717, %v2713
          %v3138 = vpack.c.b16 %v2718, %v2714
          %v3139 = vpack.c.b16 %v2723, %v2719
          %v3140 = vpack.c.b16 %v2724, %v2720
          %v3141 = vpack.c.b16 %v2725, %v2721
          %v3142 = vpack.c.b16 %v2726, %v2722
          %v3143 = vpack.c.b16 %v2731, %v2727
          %v3144 = vpack.c.b16 %v2732, %v2728
          %v3145 = vpack.c.b16 %v2733, %v2729
          %v3146 = vpack.c.b16 %v2734, %v2730
          %v3147 = vpack.c.b16 %v2739, %v2735
          %v3148 = vpack.c.b16 %v2740, %v2736
          %v3149 = vpack.c.b16 %v2741, %v2737
          %v3150 = vpack.c.b16 %v2742, %v2738
          %v3151 = vpack.c.b16 %v2747, %v2743
          %v3152 = vpack.c.b16 %v2748, %v2744
          %v3153 = vpack.c.b16 %v2749, %v2745
          %v3154 = vpack.c.b16 %v2750, %v2746
          %v3155 = vpack.c.b16 %v2755, %v2751
          %v3156 = vpack.c.b16 %v2756, %v2752
          %v3157 = vpack.c.b16 %v2757, %v2753
          %v3158 = vpack.c.b16 %v2758, %v2754
          %v3159 = vpack.c.b16 %v2763, %v2759
          %v3160 = vpack.c.b16 %v2764, %v2760
          %v3161 = vpack.c.b16 %v2765, %v2761
          %v3162 = vpack.c.b16 %v2766, %v2762
          %v3163 = vpack.c.b16 %v2771, %v2767
          %v3164 = vpack.c.b16 %v2772, %v2768
          %v3165 = vpack.c.b16 %v2773, %v2769
          %v3166 = vpack.c.b16 %v2774, %v2770
          %v3167 = vpack.c.b16 %v2779, %v2775
          %v3168 = vpack.c.b16 %v2780, %v2776
          %v3169 = vpack.c.b16 %v2781, %v2777
          %v3170 = vpack.c.b16 %v2782, %v2778
          %v3171 = vpack.c.b16 %v2787, %v2783
          %v3172 = vpack.c.b16 %v2788, %v2784
          %v3173 = vpack.c.b16 %v2789, %v2785
          %v3174 = vpack.c.b16 %v2790, %v2786
          %v3175 = vpack.c.b16 %v2795, %v2791
          %v3176 = vpack.c.b16 %v2796, %v2792
          %v3177 = vpack.c.b16 %v2797, %v2793
          %v3178 = vpack.c.b16 %v2798, %v2794
          %v3179 = vpack.c.b16 %v2803, %v2799
          %v3180 = vpack.c.b16 %v2804, %v2800
          %v3181 = vpack.c.b16 %v2805, %v2801
          %v3182 = vpack.c.b16 %v2806, %v2802
          %v3183 = vpack.c.b16 %v2811, %v2807
          %v3184 = vpack.c.b16 %v2812, %v2808
          %v3185 = vpack.c.b16 %v2813, %v2809
          %v3186 = vpack.c.b16 %v2814, %v2810
          %v3187 = vpack.c.b16 %v2819, %v2815
          %v3188 = vpack.c.b16 %v2820, %v2816
          %v3189 = vpack.c.b16 %v2821, %v2817
          %v3190 = vpack.c.b16 %v2822, %v2818
          %v3191 = vpack.c.b16 %v2827, %v2823
          %v3192 = vpack.c.b16 %v2828, %v2824
          %v3193 = vpack.c.b16 %v2829, %v2825
          %v3194 = vpack.c.b16 %v2830, %v2826
          %v3195 = vpack.c.b16 %v2835, %v2831
          %v3196 = vpack.c.b16 %v2836, %v2832
          %v3197 = vpack.c.b16 %v2837, %v2833
          %v3198 = vpack.c.b16 %v2838, %v2834
          %v3199 = vpack.c.b16 %v2843, %v2839
          %v3200 = vpack.c.b16 %v2844, %v2840
          %v3201 = vpack.c.b16 %v2845, %v2841
          %v3202 = vpack.c.b16 %v2846, %v2842
          %v3203 = vpack.c.b16 %v2851, %v2847
          %v3204 = vpack.c.b16 %v2852, %v2848
          %v3205 = vpack.c.b16 %v2853, %v2849
          %v3206 = vpack.c.b16 %v2854, %v2850
          %v3207 = vpack.c.b16 %v2859, %v2855
          %v3208 = vpack.c.b16 %v2860, %v2856
          %v3209 = vpack.c.b16 %v2861, %v2857
          %v3210 = vpack.c.b16 %v2862, %v2858
          %v3211 = vpack.c.b16 %v2867, %v2863
          %v3212 = vpack.c.b16 %v2868, %v2864
          %v3213 = vpack.c.b16 %v2869, %v2865
          %v3214 = vpack.c.b16 %v2870, %v2866
          %v3215 = vpack.c.b16 %v2875, %v2871
          %v3216 = vpack.c.b16 %v2876, %v2872
          %v3217 = vpack.c.b16 %v2877, %v2873
          %v3218 = vpack.c.b16 %v2878, %v2874
          %v3219 = vpack.c.b16 %v2883, %v2879
          %v3220 = vpack.c.b16 %v2884, %v2880
          %v3221 = vpack.c.b16 %v2885, %v2881
          %v3222 = vpack.c.b16 %v2886, %v2882
          %v3223 = vpack.c.b16 %v2891, %v2887
          %v3224 = vpack.c.b16 %v2892, %v2888
          %v3225 = vpack.c.b16 %v2893, %v2889
          %v3226 = vpack.c.b16 %v2894, %v2890
          %v3227 = vpack.c.b16 %v2899, %v2895
          %v3228 = vpack.c.b16 %v2900, %v2896
          %v3229 = vpack.c.b16 %v2901, %v2897
          %v3230 = vpack.c.b16 %v2902, %v2898
          %v3231 = vpack.c.b16 %v2907, %v2903
          %v3232 = vpack.c.b16 %v2908, %v2904
          %v3233 = vpack.c.b16 %v2909, %v2905
          %v3234 = vpack.c.b16 %v2910, %v2906
          %v3235 = vpack.c.b16 %v2915, %v2911
          %v3236 = vpack.c.b16 %v2916, %v2912
          %v3237 = vpack.c.b16 %v2917, %v2913
          %v3238 = vpack.c.b16 %v2918, %v2914
          %v3239 = vpack.c.b16 %v2923, %v2919
          %v3240 = vpack.c.b16 %v2924, %v2920
          %v3241 = vpack.c.b16 %v2925, %v2921
          %v3242 = vpack.c.b16 %v2926, %v2922
          %v3243 = vpack.c.b16 %v2931, %v2927
          %v3244 = vpack.c.b16 %v2932, %v2928
          %v3245 = vpack.c.b16 %v2933, %v2929
          %v3246 = vpack.c.b16 %v2934, %v2930
          %v3247 = vpack.c.b16 %v2939, %v2935
          %v3248 = vpack.c.b16 %v2940, %v2936
          %v3249 = vpack.c.b16 %v2941, %v2937
          %v3250 = vpack.c.b16 %v2942, %v2938
          %v3251 = vpack.c.b16 %v2947, %v2943
          %v3252 = vpack.c.b16 %v2948, %v2944
          %v3253 = vpack.c.b16 %v2949, %v2945
          %v3254 = vpack.c.b16 %v2950, %v2946
          %v3255 = vpack.c.b16 %v2955, %v2951
          %v3256 = vpack.c.b16 %v2956, %v2952
          %v3257 = vpack.c.b16 %v2957, %v2953
          %v3258 = vpack.c.b16 %v2958, %v2954
          %v3259 = vpack.c.b16 %v2963, %v2959
          %v3260 = vpack.c.b16 %v2964, %v2960
          %v3261 = vpack.c.b16 %v2965, %v2961
          %v3262 = vpack.c.b16 %v2966, %v2962
          %v3263 = vpack.c.b16 %v2971, %v2967
          %v3264 = vpack.c.b16 %v2972, %v2968
          %v3265 = vpack.c.b16 %v2973, %v2969
          %v3266 = vpack.c.b16 %v2974, %v2970
          %v3267 = vpack.c.b16 %v2979, %v2975
          %v3268 = vpack.c.b16 %v2980, %v2976
          %v3269 = vpack.c.b16 %v2981, %v2977
          %v3270 = vpack.c.b16 %v2982, %v2978
          %v3271 = vpack.c.b16 %v2987, %v2983
          %v3272 = vpack.c.b16 %v2988, %v2984
          %v3273 = vpack.c.b16 %v2989, %v2985
          %v3274 = vpack.c.b16 %v2990, %v2986
          %v3275 = vpack.c.b16 %v2995, %v2991
          %v3276 = vpack.c.b16 %v2996, %v2992
          %v3277 = vpack.c.b16 %v2997, %v2993
          %v3278 = vpack.c.b16 %v2998, %v2994
          %v3279 = vpack.c.b16 %v3003, %v2999
          %v3280 = vpack.c.b16 %v3004, %v3000
          %v3281 = vpack.c.b16 %v3005, %v3001
          %v3282 = vpack.c.b16 %v3006, %v3002
          %v3283 = vpack.c.b16 %v3011, %v3007
          %v3284 = vpack.c.b16 %v3012, %v3008
          %v3285 = vpack.c.b16 %v3013, %v3009
          %v3286 = vpack.c.b16 %v3014, %v3010
          %v3287 = vpack.c.b16 %v3019, %v3015
          %v3288 = vpack.c.b16 %v3020, %v3016
          %v3289 = vpack.c.b16 %v3021, %v3017
          %v3290 = vpack.c.b16 %v3022, %v3018
          %v3291 = vpack.c.b16 %v3027, %v3023
          %v3292 = vpack.c.b16 %v3028, %v3024
          %v3293 = vpack.c.b16 %v3029, %v3025
          %v3294 = vpack.c.b16 %v3030, %v3026
          %v3295 = vpack.c.b16 %v3035, %v3031
          %v3296 = vpack.c.b16 %v3036, %v3032
          %v3297 = vpack.c.b16 %v3037, %v3033
          %v3298 = vpack.c.b16 %v3038, %v3034
          %v3299 = vpack.c.b16 %v3043, %v3039
          %v3300 = vpack.c.b16 %v3044, %v3040
          %v3301 = vpack.c.b16 %v3045, %v3041
          %v3302 = vpack.c.b16 %v3046, %v3042
          %v3560 = vlaneseq
          %v3561 = vshrl.u32 %v3560, 7
          %v3562 = vsub.s32 0, %v3561
          %v3563 = vrot.slane %v2278, %v3562
          %v3564 = vlaneseq
          %v3565 = vshrl.u32 %v3564, 7
          %v3566 = vsub.s32 1, %v3565
          %v3567 = vrot.slane %v2278, %v3566
          %v3568 = vlaneseq
          %v3569 = vshrl.u32 %v3568, 7
          %v3570 = vsub.s32 2, %v3569
          %v3571 = vrot.slane %v2278, %v3570
          %v3572 = vlaneseq
          %v3573 = vshrl.u32 %v3572, 7
          %v3574 = vsub.s32 3, %v3573
          %v3575 = vrot.slane %v2278, %v3574
          %3580 = vmatprep.subr.bf16.mxu0 %v3076
          %3581 = vmatpush1.bf16.msra.mxu0 %v3075
          %3582 = vmatprep.subr.bf16.mxu0 %v3072
          %3583 = vmatpush1.bf16.msra.mxu0 %v3071
          %3584 = vmatprep.subr.bf16.mxu0 %v3068
          %3585 = vmatpush1.bf16.msra.mxu0 %v3067
          %3586 = vmatprep.subr.bf16.mxu0 %v3064
          %3587 = vmatpush1.bf16.msra.mxu0 %v3063
          %3588 = vmatprep.subr.bf16.mxu0 %v3060
          %3589 = vmatpush1.bf16.msra.mxu0 %v3059
          %3590 = vmatprep.subr.bf16.mxu0 %v3056
          %3591 = vmatpush1.bf16.msra.mxu0 %v3055
          %3592 = vmatprep.subr.bf16.mxu0 %v3052
          %3593 = vmatpush1.bf16.msra.mxu0 %v3051
          %3594 = vmatprep.subr.bf16.mxu0 %v3048
          %3595 = vmatpush1.bf16.msra.mxu0 %v3047
          %3596 = vmatprep.subr.bf16.mxu0 %v3108
          %3597 = vmatpush2.bf16.msra.mxu0 %v3107
          %3598 = vmatprep.subr.bf16.mxu0 %v3104
          %3599 = vmatpush2.bf16.msra.mxu0 %v3103
          %3600 = vmatprep.subr.bf16.mxu0 %v3100
          %3601 = vmatpush2.bf16.msra.mxu0 %v3099
          %3602 = vmatprep.subr.bf16.mxu0 %v3096
          %3603 = vmatpush2.bf16.msra.mxu0 %v3095
          %3604 = vmatprep.subr.bf16.mxu0 %v3092
          %3605 = vmatpush2.bf16.msra.mxu0 %v3091
          %3606 = vmatprep.subr.bf16.mxu0 %v3088
          %3607 = vmatpush2.bf16.msra.mxu0 %v3087
          %3608 = vmatprep.subr.bf16.mxu0 %v3084
          %3609 = vmatpush2.bf16.msra.mxu0 %v3083
          %3610 = vmatprep.subr.bf16.mxu0 %v3080
          %3611 = vmatpush2.bf16.msra.mxu0 %v3079
          %3612 = vmatprep.mubr.bf16.mxu0 %v2015
          %3613 = vmatmul.mubr.bf16.gmra.mxu0 %v2014
          %v3614 = vpop.f32.mrf.mxu0
          %v3615 = vadd.f32 %v3563, %v3614
          %v3616 = vpop.f32.mrf.mxu0
          %v3617 = vadd.f32 %v3567, %v3616
          %v3618 = vpop.f32.mrf.mxu0
          %v3619 = vpop.f32.mrf.mxu0
          %3620 = vdwg.mxu0
          %3621 = vmatprep.subr.bf16.mxu0 %v3140
          %3622 = vmatpush1.bf16.msra.mxu0 %v3139
          %3623 = vmatprep.subr.bf16.mxu0 %v3136
          %3624 = vmatpush1.bf16.msra.mxu0 %v3135
          %3625 = vmatprep.subr.bf16.mxu0 %v3132
          %3626 = vmatpush1.bf16.msra.mxu0 %v3131
          %3627 = vmatprep.subr.bf16.mxu0 %v3128
          %3628 = vmatpush1.bf16.msra.mxu0 %v3127
          %3629 = vmatprep.subr.bf16.mxu0 %v3124
          %3630 = vmatpush1.bf16.msra.mxu0 %v3123
          %3631 = vmatprep.subr.bf16.mxu0 %v3120
          %3632 = vmatpush1.bf16.msra.mxu0 %v3119
          %3633 = vmatprep.subr.bf16.mxu0 %v3116
          %3634 = vmatpush1.bf16.msra.mxu0 %v3115
          %3635 = vmatprep.subr.bf16.mxu0 %v3112
          %3636 = vmatpush1.bf16.msra.mxu0 %v3111
          %3637 = vmatprep.subr.bf16.mxu0 %v3172
          %3638 = vmatpush2.bf16.msra.mxu0 %v3171
          %3639 = vmatprep.subr.bf16.mxu0 %v3168
          %3640 = vmatpush2.bf16.msra.mxu0 %v3167
          %3641 = vmatprep.subr.bf16.mxu0 %v3164
          %3642 = vmatpush2.bf16.msra.mxu0 %v3163
          %3643 = vmatprep.subr.bf16.mxu0 %v3160
          %3644 = vmatpush2.bf16.msra.mxu0 %v3159
          %3645 = vmatprep.subr.bf16.mxu0 %v3156
          %3646 = vmatpush2.bf16.msra.mxu0 %v3155
          %3647 = vmatprep.subr.bf16.mxu0 %v3152
          %3648 = vmatpush2.bf16.msra.mxu0 %v3151
          %3649 = vmatprep.subr.bf16.mxu0 %v3148
          %3650 = vmatpush2.bf16.msra.mxu0 %v3147
          %3651 = vmatprep.subr.bf16.mxu0 %v3144
          %3652 = vmatpush2.bf16.msra.mxu0 %v3143
          %3653 = vmatprep.mubr.bf16.mxu0 %v2017
          %3654 = vmatmul.mubr.bf16.gmra.mxu0 %v2016
          %v3655 = vpop.f32.mrf.mxu0
          %v3656 = vadd.f32 %v3615, %v3655
          %v3657 = vpop.f32.mrf.mxu0
          %v3658 = vadd.f32 %v3617, %v3657
          %v3659 = vpop.f32.mrf.mxu0
          %v3660 = vpop.f32.mrf.mxu0
          %3661 = vdwg.mxu0
          %3662 = vmatprep.subr.bf16.mxu0 %v3204
          %3663 = vmatpush1.bf16.msra.mxu0 %v3203
          %3664 = vmatprep.subr.bf16.mxu0 %v3200
          %3665 = vmatpush1.bf16.msra.mxu0 %v3199
          %3666 = vmatprep.subr.bf16.mxu0 %v3196
          %3667 = vmatpush1.bf16.msra.mxu0 %v3195
          %3668 = vmatprep.subr.bf16.mxu0 %v3192
          %3669 = vmatpush1.bf16.msra.mxu0 %v3191
          %3670 = vmatprep.subr.bf16.mxu0 %v3188
          %3671 = vmatpush1.bf16.msra.mxu0 %v3187
          %3672 = vmatprep.subr.bf16.mxu0 %v3184
          %3673 = vmatpush1.bf16.msra.mxu0 %v3183
          %3674 = vmatprep.subr.bf16.mxu0 %v3180
          %3675 = vmatpush1.bf16.msra.mxu0 %v3179
          %3676 = vmatprep.subr.bf16.mxu0 %v3176
          %3677 = vmatpush1.bf16.msra.mxu0 %v3175
          %3678 = vmatprep.subr.bf16.mxu0 %v3236
          %3679 = vmatpush2.bf16.msra.mxu0 %v3235
          %3680 = vmatprep.subr.bf16.mxu0 %v3232
          %3681 = vmatpush2.bf16.msra.mxu0 %v3231
          %3682 = vmatprep.subr.bf16.mxu0 %v3228
          %3683 = vmatpush2.bf16.msra.mxu0 %v3227
          %3684 = vmatprep.subr.bf16.mxu0 %v3224
          %3685 = vmatpush2.bf16.msra.mxu0 %v3223
          %3686 = vmatprep.subr.bf16.mxu0 %v3220
          %3687 = vmatpush2.bf16.msra.mxu0 %v3219
          %3688 = vmatprep.subr.bf16.mxu0 %v3216
          %3689 = vmatpush2.bf16.msra.mxu0 %v3215
          %3690 = vmatprep.subr.bf16.mxu0 %v3212
          %3691 = vmatpush2.bf16.msra.mxu0 %v3211
          %3692 = vmatprep.subr.bf16.mxu0 %v3208
          %3693 = vmatpush2.bf16.msra.mxu0 %v3207
          %3694 = vmatprep.mubr.bf16.mxu0 %v2019
          %3695 = vmatmul.mubr.bf16.gmra.mxu0 %v2018
          %v3696 = vpop.f32.mrf.mxu0
          %v3697 = vadd.f32 %v3656, %v3696
          %v3698 = vpop.f32.mrf.mxu0
          %v3699 = vadd.f32 %v3658, %v3698
          %v3700 = vpop.f32.mrf.mxu0
          %v3701 = vpop.f32.mrf.mxu0
          %3702 = vdwg.mxu0
          %3703 = vmatprep.subr.bf16.mxu0 %v3268
          %3704 = vmatpush1.bf16.msra.mxu0 %v3267
          %3705 = vmatprep.subr.bf16.mxu0 %v3264
          %3706 = vmatpush1.bf16.msra.mxu0 %v3263
          %3707 = vmatprep.subr.bf16.mxu0 %v3260
          %3708 = vmatpush1.bf16.msra.mxu0 %v3259
          %3709 = vmatprep.subr.bf16.mxu0 %v3256
          %3710 = vmatpush1.bf16.msra.mxu0 %v3255
          %3711 = vmatprep.subr.bf16.mxu0 %v3252
          %3712 = vmatpush1.bf16.msra.mxu0 %v3251
          %3713 = vmatprep.subr.bf16.mxu0 %v3248
          %3714 = vmatpush1.bf16.msra.mxu0 %v3247
          %3715 = vmatprep.subr.bf16.mxu0 %v3244
          %3716 = vmatpush1.bf16.msra.mxu0 %v3243
          %3717 = vmatprep.subr.bf16.mxu0 %v3240
          %3718 = vmatpush1.bf16.msra.mxu0 %v3239
          %3719 = vmatprep.subr.bf16.mxu0 %v3300
          %3720 = vmatpush2.bf16.msra.mxu0 %v3299
          %3721 = vmatprep.subr.bf16.mxu0 %v3296
          %3722 = vmatpush2.bf16.msra.mxu0 %v3295
          %3723 = vmatprep.subr.bf16.mxu0 %v3292
          %3724 = vmatpush2.bf16.msra.mxu0 %v3291
          %3725 = vmatprep.subr.bf16.mxu0 %v3288
          %3726 = vmatpush2.bf16.msra.mxu0 %v3287
          %3727 = vmatprep.subr.bf16.mxu0 %v3284
          %3728 = vmatpush2.bf16.msra.mxu0 %v3283
          %3729 = vmatprep.subr.bf16.mxu0 %v3280
          %3730 = vmatpush2.bf16.msra.mxu0 %v3279
          %3731 = vmatprep.subr.bf16.mxu0 %v3276
          %3732 = vmatpush2.bf16.msra.mxu0 %v3275
          %3733 = vmatprep.subr.bf16.mxu0 %v3272
          %3734 = vmatpush2.bf16.msra.mxu0 %v3271
          %3735 = vmatprep.mubr.bf16.mxu0 %v2021
          %3736 = vmatmul.mubr.bf16.gmra.mxu0 %v2020
          %v3737 = vpop.f32.mrf.mxu0
          %v3738 = vadd.f32 %v3697, %v3737
          %v3739 = vpop.f32.mrf.mxu0
          %v3740 = vadd.f32 %v3699, %v3739
          %v3741 = vpop.f32.mrf.mxu0
          %v3742 = vpop.f32.mrf.mxu0
          %3743 = vdwg.mxu0
          %3744 = vmatprep.subr.bf16.mxu0 %v3078
          %3745 = vmatpush1.bf16.msra.mxu0 %v3077
          %3746 = vmatprep.subr.bf16.mxu0 %v3074
          %3747 = vmatpush1.bf16.msra.mxu0 %v3073
          %3748 = vmatprep.subr.bf16.mxu0 %v3070
          %3749 = vmatpush1.bf16.msra.mxu0 %v3069
          %3750 = vmatprep.subr.bf16.mxu0 %v3066
          %3751 = vmatpush1.bf16.msra.mxu0 %v3065
          %3752 = vmatprep.subr.bf16.mxu0 %v3062
          %3753 = vmatpush1.bf16.msra.mxu0 %v3061
          %3754 = vmatprep.subr.bf16.mxu0 %v3058
          %3755 = vmatpush1.bf16.msra.mxu0 %v3057
          %3756 = vmatprep.subr.bf16.mxu0 %v3054
          %3757 = vmatpush1.bf16.msra.mxu0 %v3053
          %3758 = vmatprep.subr.bf16.mxu0 %v3050
          %3759 = vmatpush1.bf16.msra.mxu0 %v3049
          %3760 = vmatprep.subr.bf16.mxu0 %v3110
          %3761 = vmatpush2.bf16.msra.mxu0 %v3109
          %3762 = vmatprep.subr.bf16.mxu0 %v3106
          %3763 = vmatpush2.bf16.msra.mxu0 %v3105
          %3764 = vmatprep.subr.bf16.mxu0 %v3102
          %3765 = vmatpush2.bf16.msra.mxu0 %v3101
          %3766 = vmatprep.subr.bf16.mxu0 %v3098
          %3767 = vmatpush2.bf16.msra.mxu0 %v3097
          %3768 = vmatprep.subr.bf16.mxu0 %v3094
          %3769 = vmatpush2.bf16.msra.mxu0 %v3093
          %3770 = vmatprep.subr.bf16.mxu0 %v3090
          %3771 = vmatpush2.bf16.msra.mxu0 %v3089
          %3772 = vmatprep.subr.bf16.mxu0 %v3086
          %3773 = vmatpush2.bf16.msra.mxu0 %v3085
          %3774 = vmatprep.subr.bf16.mxu0 %v3082
          %3775 = vmatpush2.bf16.msra.mxu0 %v3081
          %3776 = vmatprep.mubr.bf16.mxu0 %v2015
          %3777 = vmatmul.mubr.bf16.gmra.mxu0 %v2014
          %v3778 = vpop.f32.mrf.mxu0
          %v3779 = vadd.f32 %v3571, %v3778
          %v3780 = vpop.f32.mrf.mxu0
          %v3781 = vadd.f32 %v3575, %v3780
          %v3782 = vpop.f32.mrf.mxu0
          %v3783 = vpop.f32.mrf.mxu0
          %3784 = vdwg.mxu0
          %3785 = vmatprep.subr.bf16.mxu0 %v3142
          %3786 = vmatpush1.bf16.msra.mxu0 %v3141
          %3787 = vmatprep.subr.bf16.mxu0 %v3138
          %3788 = vmatpush1.bf16.msra.mxu0 %v3137
          %3789 = vmatprep.subr.bf16.mxu0 %v3134
          %3790 = vmatpush1.bf16.msra.mxu0 %v3133
          %3791 = vmatprep.subr.bf16.mxu0 %v3130
          %3792 = vmatpush1.bf16.msra.mxu0 %v3129
          %3793 = vmatprep.subr.bf16.mxu0 %v3126
          %3794 = vmatpush1.bf16.msra.mxu0 %v3125
          %3795 = vmatprep.subr.bf16.mxu0 %v3122
          %3796 = vmatpush1.bf16.msra.mxu0 %v3121
          %3797 = vmatprep.subr.bf16.mxu0 %v3118
          %3798 = vmatpush1.bf16.msra.mxu0 %v3117
          %3799 = vmatprep.subr.bf16.mxu0 %v3114
          %3800 = vmatpush1.bf16.msra.mxu0 %v3113
          %3801 = vmatprep.subr.bf16.mxu0 %v3174
          %3802 = vmatpush2.bf16.msra.mxu0 %v3173
          %3803 = vmatprep.subr.bf16.mxu0 %v3170
          %3804 = vmatpush2.bf16.msra.mxu0 %v3169
          %3805 = vmatprep.subr.bf16.mxu0 %v3166
          %3806 = vmatpush2.bf16.msra.mxu0 %v3165
          %3807 = vmatprep.subr.bf16.mxu0 %v3162
          %3808 = vmatpush2.bf16.msra.mxu0 %v3161
          %3809 = vmatprep.subr.bf16.mxu0 %v3158
          %3810 = vmatpush2.bf16.msra.mxu0 %v3157
          %3811 = vmatprep.subr.bf16.mxu0 %v3154
          %3812 = vmatpush2.bf16.msra.mxu0 %v3153
          %3813 = vmatprep.subr.bf16.mxu0 %v3150
          %3814 = vmatpush2.bf16.msra.mxu0 %v3149
          %3815 = vmatprep.subr.bf16.mxu0 %v3146
          %3816 = vmatpush2.bf16.msra.mxu0 %v3145
          %3817 = vmatprep.mubr.bf16.mxu0 %v2017
          %3818 = vmatmul.mubr.bf16.gmra.mxu0 %v2016
          %v3819 = vpop.f32.mrf.mxu0
          %v3820 = vadd.f32 %v3779, %v3819
          %v3821 = vpop.f32.mrf.mxu0
          %v3822 = vadd.f32 %v3781, %v3821
          %v3823 = vpop.f32.mrf.mxu0
          %v3824 = vpop.f32.mrf.mxu0
          %3825 = vdwg.mxu0
          %3826 = vmatprep.subr.bf16.mxu0 %v3206
          %3827 = vmatpush1.bf16.msra.mxu0 %v3205
          %3828 = vmatprep.subr.bf16.mxu0 %v3202
          %3829 = vmatpush1.bf16.msra.mxu0 %v3201
          %3830 = vmatprep.subr.bf16.mxu0 %v3198
          %3831 = vmatpush1.bf16.msra.mxu0 %v3197
          %3832 = vmatprep.subr.bf16.mxu0 %v3194
          %3833 = vmatpush1.bf16.msra.mxu0 %v3193
          %3834 = vmatprep.subr.bf16.mxu0 %v3190
          %3835 = vmatpush1.bf16.msra.mxu0 %v3189
          %3836 = vmatprep.subr.bf16.mxu0 %v3186
          %3837 = vmatpush1.bf16.msra.mxu0 %v3185
          %3838 = vmatprep.subr.bf16.mxu0 %v3182
          %3839 = vmatpush1.bf16.msra.mxu0 %v3181
          %3840 = vmatprep.subr.bf16.mxu0 %v3178
          %3841 = vmatpush1.bf16.msra.mxu0 %v3177
          %3842 = vmatprep.subr.bf16.mxu0 %v3238
          %3843 = vmatpush2.bf16.msra.mxu0 %v3237
          %3844 = vmatprep.subr.bf16.mxu0 %v3234
          %3845 = vmatpush2.bf16.msra.mxu0 %v3233
          %3846 = vmatprep.subr.bf16.mxu0 %v3230
          %3847 = vmatpush2.bf16.msra.mxu0 %v3229
          %3848 = vmatprep.subr.bf16.mxu0 %v3226
          %3849 = vmatpush2.bf16.msra.mxu0 %v3225
          %3850 = vmatprep.subr.bf16.mxu0 %v3222
          %3851 = vmatpush2.bf16.msra.mxu0 %v3221
          %3852 = vmatprep.subr.bf16.mxu0 %v3218
          %3853 = vmatpush2.bf16.msra.mxu0 %v3217
          %3854 = vmatprep.subr.bf16.mxu0 %v3214
          %3855 = vmatpush2.bf16.msra.mxu0 %v3213
          %3856 = vmatprep.subr.bf16.mxu0 %v3210
          %3857 = vmatpush2.bf16.msra.mxu0 %v3209
          %3858 = vmatprep.mubr.bf16.mxu0 %v2019
          %3859 = vmatmul.mubr.bf16.gmra.mxu0 %v2018
          %v3860 = vpop.f32.mrf.mxu0
          %v3861 = vadd.f32 %v3820, %v3860
          %v3862 = vpop.f32.mrf.mxu0
          %v3863 = vadd.f32 %v3822, %v3862
          %v3864 = vpop.f32.mrf.mxu0
          %v3865 = vpop.f32.mrf.mxu0
          %3866 = vdwg.mxu0
          %3867 = vmatprep.subr.bf16.mxu0 %v3270
          %3868 = vmatpush1.bf16.msra.mxu0 %v3269
          %3869 = vmatprep.subr.bf16.mxu0 %v3266
          %3870 = vmatpush1.bf16.msra.mxu0 %v3265
          %3871 = vmatprep.subr.bf16.mxu0 %v3262
          %3872 = vmatpush1.bf16.msra.mxu0 %v3261
          %3873 = vmatprep.subr.bf16.mxu0 %v3258
          %3874 = vmatpush1.bf16.msra.mxu0 %v3257
          %3875 = vmatprep.subr.bf16.mxu0 %v3254
          %3876 = vmatpush1.bf16.msra.mxu0 %v3253
          %3877 = vmatprep.subr.bf16.mxu0 %v3250
          %3878 = vmatpush1.bf16.msra.mxu0 %v3249
          %3879 = vmatprep.subr.bf16.mxu0 %v3246
          %3880 = vmatpush1.bf16.msra.mxu0 %v3245
          %3881 = vmatprep.subr.bf16.mxu0 %v3242
          %3882 = vmatpush1.bf16.msra.mxu0 %v3241
          %3883 = vmatprep.subr.bf16.mxu0 %v3302
          %3884 = vmatpush2.bf16.msra.mxu0 %v3301
          %3885 = vmatprep.subr.bf16.mxu0 %v3298
          %3886 = vmatpush2.bf16.msra.mxu0 %v3297
          %3887 = vmatprep.subr.bf16.mxu0 %v3294
          %3888 = vmatpush2.bf16.msra.mxu0 %v3293
          %3889 = vmatprep.subr.bf16.mxu0 %v3290
          %3890 = vmatpush2.bf16.msra.mxu0 %v3289
          %3891 = vmatprep.subr.bf16.mxu0 %v3286
          %3892 = vmatpush2.bf16.msra.mxu0 %v3285
          %3893 = vmatprep.subr.bf16.mxu0 %v3282
          %3894 = vmatpush2.bf16.msra.mxu0 %v3281
          %3895 = vmatprep.subr.bf16.mxu0 %v3278
          %3896 = vmatpush2.bf16.msra.mxu0 %v3277
          %3897 = vmatprep.subr.bf16.mxu0 %v3274
          %3898 = vmatpush2.bf16.msra.mxu0 %v3273
          %3899 = vmatprep.mubr.bf16.mxu0 %v2021
          %3900 = vmatmul.mubr.bf16.gmra.mxu0 %v2020
          %v3901 = vpop.f32.mrf.mxu0
          %v3902 = vadd.f32 %v3861, %v3901
          %v3903 = vpop.f32.mrf.mxu0
          %v3904 = vadd.f32 %v3863, %v3903
          %v3905 = vpop.f32.mrf.mxu0
          %v3906 = vpop.f32.mrf.mxu0
          %3907 = vdwg.mxu0
          %v3908 = vmax.f32 %v3738, 0.0
          %v3909 = vmax.f32 %v3740, 0.0
          %v3910 = vmax.f32 %v3902, 0.0
          %v3911 = vmax.f32 %v3904, 0.0
          %v3912 = vpack.c.bf16 %v3908, %v3908
          %v3913 = vpack.c.bf16 %v3909, %v3909
          %v3914 = vpack.c.bf16 %v3910, %v3910
          %v3915 = vpack.c.bf16 %v3911, %v3911
          %v3916 = vld [vmem:[#allocation5] sm:$0xff]
          %v3917 = vld [vmem:[#allocation5 + $0x8] sm:$0xff]
          %v3918 = vld [vmem:[#allocation5 + $0x10] sm:$0xff]
          %v3919 = vld [vmem:[#allocation5 + $0x18] sm:$0xff]
          %v3920 = vld [vmem:[#allocation5 + $0x20] sm:$0xff]
          %v3921 = vld [vmem:[#allocation5 + $0x28] sm:$0xff]
          %v3922 = vld [vmem:[#allocation5 + $0x30] sm:$0xff]
          %v3923 = vld [vmem:[#allocation5 + $0x38] sm:$0xff]
          %v3924 = vld [vmem:[#allocation5 + $0x40] sm:$0xff]
          %v3925 = vld [vmem:[#allocation5 + $0x48] sm:$0xff]
          %v3926 = vld [vmem:[#allocation5 + $0x50] sm:$0xff]
          %v3927 = vld [vmem:[#allocation5 + $0x58] sm:$0xff]
          %v3928 = vld [vmem:[#allocation5 + $0x60] sm:$0xff]
          %v3929 = vld [vmem:[#allocation5 + $0x68] sm:$0xff]
          %v3930 = vld [vmem:[#allocation5 + $0x70] sm:$0xff]
          %v3931 = vld [vmem:[#allocation5 + $0x78] sm:$0xff]
          %v3932 = vld [vmem:[#allocation5 + $0x80] sm:$0xff]
          %v3933 = vld [vmem:[#allocation5 + $0x88] sm:$0xff]
          %v3934 = vld [vmem:[#allocation5 + $0x90] sm:$0xff]
          %v3935 = vld [vmem:[#allocation5 + $0x98] sm:$0xff]
          %v3936 = vld [vmem:[#allocation5 + $0xa0] sm:$0xff]
          %v3937 = vld [vmem:[#allocation5 + $0xa8] sm:$0xff]
          %v3938 = vld [vmem:[#allocation5 + $0xb0] sm:$0xff]
          %v3939 = vld [vmem:[#allocation5 + $0xb8] sm:$0xff]
          %v3940 = vld [vmem:[#allocation5 + $0xc0] sm:$0xff]
          %v3941 = vld [vmem:[#allocation5 + $0xc8] sm:$0xff]
          %v3942 = vld [vmem:[#allocation5 + $0xd0] sm:$0xff]
          %v3943 = vld [vmem:[#allocation5 + $0xd8] sm:$0xff]
          %v3944 = vld [vmem:[#allocation5 + $0xe0] sm:$0xff]
          %v3945 = vld [vmem:[#allocation5 + $0xe8] sm:$0xff]
          %v3946 = vld [vmem:[#allocation5 + $0xf0] sm:$0xff]
          %v3947 = vld [vmem:[#allocation5 + $0xf8] sm:$0xff]
          %v3948 = vld [vmem:[#allocation5 + $0x100] sm:$0xff]
          %v3949 = vld [vmem:[#allocation5 + $0x108] sm:$0xff]
          %v3950 = vld [vmem:[#allocation5 + $0x110] sm:$0xff]
          %v3951 = vld [vmem:[#allocation5 + $0x118] sm:$0xff]
          %v3952 = vld [vmem:[#allocation5 + $0x120] sm:$0xff]
          %v3953 = vld [vmem:[#allocation5 + $0x128] sm:$0xff]
          %v3954 = vld [vmem:[#allocation5 + $0x130] sm:$0xff]
          %v3955 = vld [vmem:[#allocation5 + $0x138] sm:$0xff]
          %v3956 = vld [vmem:[#allocation5 + $0x140] sm:$0xff]
          %v3957 = vld [vmem:[#allocation5 + $0x148] sm:$0xff]
          %v3958 = vld [vmem:[#allocation5 + $0x150] sm:$0xff]
          %v3959 = vld [vmem:[#allocation5 + $0x158] sm:$0xff]
          %v3960 = vld [vmem:[#allocation5 + $0x160] sm:$0xff]
          %v3961 = vld [vmem:[#allocation5 + $0x168] sm:$0xff]
          %v3962 = vld [vmem:[#allocation5 + $0x170] sm:$0xff]
          %v3963 = vld [vmem:[#allocation5 + $0x178] sm:$0xff]
          %v3964 = vld [vmem:[#allocation5 + $0x180] sm:$0xff]
          %v3965 = vld [vmem:[#allocation5 + $0x188] sm:$0xff]
          %v3966 = vld [vmem:[#allocation5 + $0x190] sm:$0xff]
          %v3967 = vld [vmem:[#allocation5 + $0x198] sm:$0xff]
          %v3968 = vld [vmem:[#allocation5 + $0x1a0] sm:$0xff]
          %v3969 = vld [vmem:[#allocation5 + $0x1a8] sm:$0xff]
          %v3970 = vld [vmem:[#allocation5 + $0x1b0] sm:$0xff]
          %v3971 = vld [vmem:[#allocation5 + $0x1b8] sm:$0xff]
          %v3972 = vld [vmem:[#allocation5 + $0x1c0] sm:$0xff]
          %v3973 = vld [vmem:[#allocation5 + $0x1c8] sm:$0xff]
          %v3974 = vld [vmem:[#allocation5 + $0x1d0] sm:$0xff]
          %v3975 = vld [vmem:[#allocation5 + $0x1d8] sm:$0xff]
          %v3976 = vld [vmem:[#allocation5 + $0x1e0] sm:$0xff]
          %v3977 = vld [vmem:[#allocation5 + $0x1e8] sm:$0xff]
          %v3978 = vld [vmem:[#allocation5 + $0x1f0] sm:$0xff]
          %v3979 = vld [vmem:[#allocation5 + $0x1f8] sm:$0xff]
          %v3980 = vld [vmem:[%s10] sm:$0x3]
          %v4045 = vunpack.c.l.b16 %v3916
          %v4046 = vunpack.c.h.b16 %v3916
          %v4047 = vunpack.c.l.b16 %v3917
          %v4048 = vunpack.c.h.b16 %v3917
          %v4049 = vunpack.c.l.b16 %v3918
          %v4050 = vunpack.c.h.b16 %v3918
          %v4051 = vunpack.c.l.b16 %v3919
          %v4052 = vunpack.c.h.b16 %v3919
          %v4053 = vunpack.c.l.b16 %v3920
          %v4054 = vunpack.c.h.b16 %v3920
          %v4055 = vunpack.c.l.b16 %v3921
          %v4056 = vunpack.c.h.b16 %v3921
          %v4057 = vunpack.c.l.b16 %v3922
          %v4058 = vunpack.c.h.b16 %v3922
          %v4059 = vunpack.c.l.b16 %v3923
          %v4060 = vunpack.c.h.b16 %v3923
          %v4061 = vunpack.c.l.b16 %v3924
          %v4062 = vunpack.c.h.b16 %v3924
          %v4063 = vunpack.c.l.b16 %v3925
          %v4064 = vunpack.c.h.b16 %v3925
          %v4065 = vunpack.c.l.b16 %v3926
          %v4066 = vunpack.c.h.b16 %v3926
          %v4067 = vunpack.c.l.b16 %v3927
          %v4068 = vunpack.c.h.b16 %v3927
          %v4069 = vunpack.c.l.b16 %v3928
          %v4070 = vunpack.c.h.b16 %v3928
          %v4071 = vunpack.c.l.b16 %v3929
          %v4072 = vunpack.c.h.b16 %v3929
          %v4073 = vunpack.c.l.b16 %v3930
          %v4074 = vunpack.c.h.b16 %v3930
          %v4075 = vunpack.c.l.b16 %v3931
          %v4076 = vunpack.c.h.b16 %v3931
          %v4077 = vunpack.c.l.b16 %v3932
          %v4078 = vunpack.c.h.b16 %v3932
          %v4079 = vunpack.c.l.b16 %v3933
          %v4080 = vunpack.c.h.b16 %v3933
          %v4081 = vunpack.c.l.b16 %v3934
          %v4082 = vunpack.c.h.b16 %v3934
          %v4083 = vunpack.c.l.b16 %v3935
          %v4084 = vunpack.c.h.b16 %v3935
          %v4085 = vunpack.c.l.b16 %v3936
          %v4086 = vunpack.c.h.b16 %v3936
          %v4087 = vunpack.c.l.b16 %v3937
          %v4088 = vunpack.c.h.b16 %v3937
          %v4089 = vunpack.c.l.b16 %v3938
          %v4090 = vunpack.c.h.b16 %v3938
          %v4091 = vunpack.c.l.b16 %v3939
          %v4092 = vunpack.c.h.b16 %v3939
          %v4093 = vunpack.c.l.b16 %v3940
          %v4094 = vunpack.c.h.b16 %v3940
          %v4095 = vunpack.c.l.b16 %v3941
          %v4096 = vunpack.c.h.b16 %v3941
          %v4097 = vunpack.c.l.b16 %v3942
          %v4098 = vunpack.c.h.b16 %v3942
          %v4099 = vunpack.c.l.b16 %v3943
          %v4100 = vunpack.c.h.b16 %v3943
          %v4101 = vunpack.c.l.b16 %v3944
          %v4102 = vunpack.c.h.b16 %v3944
          %v4103 = vunpack.c.l.b16 %v3945
          %v4104 = vunpack.c.h.b16 %v3945
          %v4105 = vunpack.c.l.b16 %v3946
          %v4106 = vunpack.c.h.b16 %v3946
          %v4107 = vunpack.c.l.b16 %v3947
          %v4108 = vunpack.c.h.b16 %v3947
          %v4109 = vunpack.c.l.b16 %v3948
          %v4110 = vunpack.c.h.b16 %v3948
          %v4111 = vunpack.c.l.b16 %v3949
          %v4112 = vunpack.c.h.b16 %v3949
          %v4113 = vunpack.c.l.b16 %v3950
          %v4114 = vunpack.c.h.b16 %v3950
          %v4115 = vunpack.c.l.b16 %v3951
          %v4116 = vunpack.c.h.b16 %v3951
          %v4117 = vunpack.c.l.b16 %v3952
          %v4118 = vunpack.c.h.b16 %v3952
          %v4119 = vunpack.c.l.b16 %v3953
          %v4120 = vunpack.c.h.b16 %v3953
          %v4121 = vunpack.c.l.b16 %v3954
          %v4122 = vunpack.c.h.b16 %v3954
          %v4123 = vunpack.c.l.b16 %v3955
          %v4124 = vunpack.c.h.b16 %v3955
          %v4125 = vunpack.c.l.b16 %v3956
          %v4126 = vunpack.c.h.b16 %v3956
          %v4127 = vunpack.c.l.b16 %v3957
          %v4128 = vunpack.c.h.b16 %v3957
          %v4129 = vunpack.c.l.b16 %v3958
          %v4130 = vunpack.c.h.b16 %v3958
          %v4131 = vunpack.c.l.b16 %v3959
          %v4132 = vunpack.c.h.b16 %v3959
          %v4133 = vunpack.c.l.b16 %v3960
          %v4134 = vunpack.c.h.b16 %v3960
          %v4135 = vunpack.c.l.b16 %v3961
          %v4136 = vunpack.c.h.b16 %v3961
          %v4137 = vunpack.c.l.b16 %v3962
          %v4138 = vunpack.c.h.b16 %v3962
          %v4139 = vunpack.c.l.b16 %v3963
          %v4140 = vunpack.c.h.b16 %v3963
          %v4141 = vunpack.c.l.b16 %v3964
          %v4142 = vunpack.c.h.b16 %v3964
          %v4143 = vunpack.c.l.b16 %v3965
          %v4144 = vunpack.c.h.b16 %v3965
          %v4145 = vunpack.c.l.b16 %v3966
          %v4146 = vunpack.c.h.b16 %v3966
          %v4147 = vunpack.c.l.b16 %v3967
          %v4148 = vunpack.c.h.b16 %v3967
          %v4149 = vunpack.c.l.b16 %v3968
          %v4150 = vunpack.c.h.b16 %v3968
          %v4151 = vunpack.c.l.b16 %v3969
          %v4152 = vunpack.c.h.b16 %v3969
          %v4153 = vunpack.c.l.b16 %v3970
          %v4154 = vunpack.c.h.b16 %v3970
          %v4155 = vunpack.c.l.b16 %v3971
          %v4156 = vunpack.c.h.b16 %v3971
          %v4157 = vunpack.c.l.b16 %v3972
          %v4158 = vunpack.c.h.b16 %v3972
          %v4159 = vunpack.c.l.b16 %v3973
          %v4160 = vunpack.c.h.b16 %v3973
          %v4161 = vunpack.c.l.b16 %v3974
          %v4162 = vunpack.c.h.b16 %v3974
          %v4163 = vunpack.c.l.b16 %v3975
          %v4164 = vunpack.c.h.b16 %v3975
          %v4165 = vunpack.c.l.b16 %v3976
          %v4166 = vunpack.c.h.b16 %v3976
          %v4167 = vunpack.c.l.b16 %v3977
          %v4168 = vunpack.c.h.b16 %v3977
          %v4169 = vunpack.c.l.b16 %v3978
          %v4170 = vunpack.c.h.b16 %v3978
          %v4171 = vunpack.c.l.b16 %v3979
          %v4172 = vunpack.c.h.b16 %v3979
          %v4173 = vpack.c.b16 %v4047, %v4045
          %v4174 = vpack.c.b16 %v4048, %v4046
          %v4175 = vpack.c.b16 %v4051, %v4049
          %v4176 = vpack.c.b16 %v4052, %v4050
          %v4177 = vpack.c.b16 %v4055, %v4053
          %v4178 = vpack.c.b16 %v4056, %v4054
          %v4179 = vpack.c.b16 %v4059, %v4057
          %v4180 = vpack.c.b16 %v4060, %v4058
          %v4181 = vpack.c.b16 %v4063, %v4061
          %v4182 = vpack.c.b16 %v4064, %v4062
          %v4183 = vpack.c.b16 %v4067, %v4065
          %v4184 = vpack.c.b16 %v4068, %v4066
          %v4185 = vpack.c.b16 %v4071, %v4069
          %v4186 = vpack.c.b16 %v4072, %v4070
          %v4187 = vpack.c.b16 %v4075, %v4073
          %v4188 = vpack.c.b16 %v4076, %v4074
          %v4189 = vpack.c.b16 %v4079, %v4077
          %v4190 = vpack.c.b16 %v4080, %v4078
          %v4191 = vpack.c.b16 %v4083, %v4081
          %v4192 = vpack.c.b16 %v4084, %v4082
          %v4193 = vpack.c.b16 %v4087, %v4085
          %v4194 = vpack.c.b16 %v4088, %v4086
          %v4195 = vpack.c.b16 %v4091, %v4089
          %v4196 = vpack.c.b16 %v4092, %v4090
          %v4197 = vpack.c.b16 %v4095, %v4093
          %v4198 = vpack.c.b16 %v4096, %v4094
          %v4199 = vpack.c.b16 %v4099, %v4097
          %v4200 = vpack.c.b16 %v4100, %v4098
          %v4201 = vpack.c.b16 %v4103, %v4101
          %v4202 = vpack.c.b16 %v4104, %v4102
          %v4203 = vpack.c.b16 %v4107, %v4105
          %v4204 = vpack.c.b16 %v4108, %v4106
          %v4205 = vpack.c.b16 %v4111, %v4109
          %v4206 = vpack.c.b16 %v4112, %v4110
          %v4207 = vpack.c.b16 %v4115, %v4113
          %v4208 = vpack.c.b16 %v4116, %v4114
          %v4209 = vpack.c.b16 %v4119, %v4117
          %v4210 = vpack.c.b16 %v4120, %v4118
          %v4211 = vpack.c.b16 %v4123, %v4121
          %v4212 = vpack.c.b16 %v4124, %v4122
          %v4213 = vpack.c.b16 %v4127, %v4125
          %v4214 = vpack.c.b16 %v4128, %v4126
          %v4215 = vpack.c.b16 %v4131, %v4129
          %v4216 = vpack.c.b16 %v4132, %v4130
          %v4217 = vpack.c.b16 %v4135, %v4133
          %v4218 = vpack.c.b16 %v4136, %v4134
          %v4219 = vpack.c.b16 %v4139, %v4137
          %v4220 = vpack.c.b16 %v4140, %v4138
          %v4221 = vpack.c.b16 %v4143, %v4141
          %v4222 = vpack.c.b16 %v4144, %v4142
          %v4223 = vpack.c.b16 %v4147, %v4145
          %v4224 = vpack.c.b16 %v4148, %v4146
          %v4225 = vpack.c.b16 %v4151, %v4149
          %v4226 = vpack.c.b16 %v4152, %v4150
          %v4227 = vpack.c.b16 %v4155, %v4153
          %v4228 = vpack.c.b16 %v4156, %v4154
          %v4229 = vpack.c.b16 %v4159, %v4157
          %v4230 = vpack.c.b16 %v4160, %v4158
          %v4231 = vpack.c.b16 %v4163, %v4161
          %v4232 = vpack.c.b16 %v4164, %v4162
          %v4233 = vpack.c.b16 %v4167, %v4165
          %v4234 = vpack.c.b16 %v4168, %v4166
          %v4235 = vpack.c.b16 %v4171, %v4169
          %v4236 = vpack.c.b16 %v4172, %v4170
          %v4302 = vlaneseq
          %v4303 = vshrl.u32 %v4302, 7
          %v4304 = vsub.s32 0, %v4303
          %v4305 = vrot.slane %v3980, %v4304
          %v4306 = vlaneseq
          %v4307 = vshrl.u32 %v4306, 7
          %v4308 = vsub.s32 1, %v4307
          %v4309 = vrot.slane %v3980, %v4308
          %4312 = vmatprep.subr.bf16.mxu0 %v4188
          %4313 = vmatpush1.bf16.msra.mxu0 %v4187
          %4314 = vmatprep.subr.bf16.mxu0 %v4186
          %4315 = vmatpush1.bf16.msra.mxu0 %v4185
          %4316 = vmatprep.subr.bf16.mxu0 %v4184
          %4317 = vmatpush1.bf16.msra.mxu0 %v4183
          %4318 = vmatprep.subr.bf16.mxu0 %v4182
          %4319 = vmatpush1.bf16.msra.mxu0 %v4181
          %4320 = vmatprep.subr.bf16.mxu0 %v4180
          %4321 = vmatpush1.bf16.msra.mxu0 %v4179
          %4322 = vmatprep.subr.bf16.mxu0 %v4178
          %4323 = vmatpush1.bf16.msra.mxu0 %v4177
          %4324 = vmatprep.subr.bf16.mxu0 %v4176
          %4325 = vmatpush1.bf16.msra.mxu0 %v4175
          %4326 = vmatprep.subr.bf16.mxu0 %v4174
          %4327 = vmatpush1.bf16.msra.mxu0 %v4173
          %4328 = vmatprep.subr.bf16.mxu0 %v4204
          %4329 = vmatpush2.bf16.msra.mxu0 %v4203
          %4330 = vmatprep.subr.bf16.mxu0 %v4202
          %4331 = vmatpush2.bf16.msra.mxu0 %v4201
          %4332 = vmatprep.subr.bf16.mxu0 %v4200
          %4333 = vmatpush2.bf16.msra.mxu0 %v4199
          %4334 = vmatprep.subr.bf16.mxu0 %v4198
          %4335 = vmatpush2.bf16.msra.mxu0 %v4197
          %4336 = vmatprep.subr.bf16.mxu0 %v4196
          %4337 = vmatpush2.bf16.msra.mxu0 %v4195
          %4338 = vmatprep.subr.bf16.mxu0 %v4194
          %4339 = vmatpush2.bf16.msra.mxu0 %v4193
          %4340 = vmatprep.subr.bf16.mxu0 %v4192
          %4341 = vmatpush2.bf16.msra.mxu0 %v4191
          %4342 = vmatprep.subr.bf16.mxu0 %v4190
          %4343 = vmatpush2.bf16.msra.mxu0 %v4189
          %4344 = vmatprep.mubr.bf16.mxu0 %v3913
          %4345 = vmatmul.mubr.bf16.gmra.mxu0 %v3912
          %v4346 = vpop.f32.mrf.mxu0
          %v4347 = vadd.f32 %v4305, %v4346
          %v4348 = vpop.f32.mrf.mxu0
          %v4349 = vadd.f32 %v4309, %v4348
          %v4350 = vpop.f32.mrf.mxu0
          %v4351 = vpop.f32.mrf.mxu0
          %4352 = vdwg.mxu0
          %4353 = vmatprep.subr.bf16.mxu0 %v4220
          %4354 = vmatpush1.bf16.msra.mxu0 %v4219
          %4355 = vmatprep.subr.bf16.mxu0 %v4218
          %4356 = vmatpush1.bf16.msra.mxu0 %v4217
          %4357 = vmatprep.subr.bf16.mxu0 %v4216
          %4358 = vmatpush1.bf16.msra.mxu0 %v4215
          %4359 = vmatprep.subr.bf16.mxu0 %v4214
          %4360 = vmatpush1.bf16.msra.mxu0 %v4213
          %4361 = vmatprep.subr.bf16.mxu0 %v4212
          %4362 = vmatpush1.bf16.msra.mxu0 %v4211
          %4363 = vmatprep.subr.bf16.mxu0 %v4210
          %4364 = vmatpush1.bf16.msra.mxu0 %v4209
          %4365 = vmatprep.subr.bf16.mxu0 %v4208
          %4366 = vmatpush1.bf16.msra.mxu0 %v4207
          %4367 = vmatprep.subr.bf16.mxu0 %v4206
          %4368 = vmatpush1.bf16.msra.mxu0 %v4205
          %4369 = vmatprep.subr.bf16.mxu0 %v4236
          %4370 = vmatpush2.bf16.msra.mxu0 %v4235
          %4371 = vmatprep.subr.bf16.mxu0 %v4234
          %4372 = vmatpush2.bf16.msra.mxu0 %v4233
          %4373 = vmatprep.subr.bf16.mxu0 %v4232
          %4374 = vmatpush2.bf16.msra.mxu0 %v4231
          %4375 = vmatprep.subr.bf16.mxu0 %v4230
          %4376 = vmatpush2.bf16.msra.mxu0 %v4229
          %4377 = vmatprep.subr.bf16.mxu0 %v4228
          %4378 = vmatpush2.bf16.msra.mxu0 %v4227
          %4379 = vmatprep.subr.bf16.mxu0 %v4226
          %4380 = vmatpush2.bf16.msra.mxu0 %v4225
          %4381 = vmatprep.subr.bf16.mxu0 %v4224
          %4382 = vmatpush2.bf16.msra.mxu0 %v4223
          %4383 = vmatprep.subr.bf16.mxu0 %v4222
          %4384 = vmatpush2.bf16.msra.mxu0 %v4221
          %4385 = vmatprep.mubr.bf16.mxu0 %v3915
          %4386 = vmatmul.mubr.bf16.gmra.mxu0 %v3914
          %v4387 = vpop.f32.mrf.mxu0
          %v4388 = vadd.f32 %v4347, %v4387
          %v4389 = vpop.f32.mrf.mxu0
          %v4390 = vadd.f32 %v4349, %v4389
          %v4391 = vpop.f32.mrf.mxu0
          %v4392 = vpop.f32.mrf.mxu0
          %4393 = vdwg.mxu0
          %v4394 = vmax.f32 %v4388, 0.0
          %v4395 = vmax.f32 %v4390, 0.0
          %v4396 = vpack.c.bf16 %v4394, %v4394
          %v4397 = vpack.c.bf16 %v4395, %v4395
          %v4398 = vld [vmem:[%s11] sm:$0xf]
          %v4399 = vld [vmem:[%s11 + $0x4] sm:$0xf]
          %v4400 = vld [vmem:[%s11 + $0x8] sm:$0xf]
          %v4401 = vld [vmem:[%s11 + $0xc] sm:$0xf]
          %v4402 = vld [vmem:[%s11 + $0x10] sm:$0xf]
          %v4403 = vld [vmem:[%s11 + $0x14] sm:$0xf]
          %v4404 = vld [vmem:[%s11 + $0x18] sm:$0xf]
          %v4405 = vld [vmem:[%s11 + $0x1c] sm:$0xf]
          %v4406 = vld [vmem:[%s11 + $0x20] sm:$0xf]
          %v4407 = vld [vmem:[%s11 + $0x24] sm:$0xf]
          %v4408 = vld [vmem:[%s11 + $0x28] sm:$0xf]
          %v4409 = vld [vmem:[%s11 + $0x2c] sm:$0xf]
          %v4410 = vld [vmem:[%s11 + $0x30] sm:$0xf]
          %v4411 = vld [vmem:[%s11 + $0x34] sm:$0xf]
          %v4412 = vld [vmem:[%s11 + $0x38] sm:$0xf]
          %v4413 = vld [vmem:[%s11 + $0x3c] sm:$0xf]
          %v4414 = vld [vmem:[%s11 + $0x40] sm:$0xf]
          %v4415 = vld [vmem:[%s11 + $0x44] sm:$0xf]
          %v4416 = vld [vmem:[%s11 + $0x48] sm:$0xf]
          %v4417 = vld [vmem:[%s11 + $0x4c] sm:$0xf]
          %v4418 = vld [vmem:[%s11 + $0x50] sm:$0xf]
          %v4419 = vld [vmem:[%s11 + $0x54] sm:$0xf]
          %v4420 = vld [vmem:[%s11 + $0x58] sm:$0xf]
          %v4421 = vld [vmem:[%s11 + $0x5c] sm:$0xf]
          %v4422 = vld [vmem:[%s11 + $0x60] sm:$0xf]
          %v4423 = vld [vmem:[%s11 + $0x64] sm:$0xf]
          %v4424 = vld [vmem:[%s11 + $0x68] sm:$0xf]
          %v4425 = vld [vmem:[%s11 + $0x6c] sm:$0xf]
          %v4426 = vld [vmem:[%s11 + $0x70] sm:$0xf]
          %v4427 = vld [vmem:[%s11 + $0x74] sm:$0xf]
          %v4428 = vld [vmem:[%s11 + $0x78] sm:$0xf]
          %v4429 = vld [vmem:[%s11 + $0x7c] sm:$0xf]
          %v4430 = vld [vmem:[%s12] sm:$0x1]
          %v4463 = vunpack.c.l.b16 %v4398
          %v4464 = vunpack.c.l.b16 %v4399
          %v4465 = vunpack.c.l.b16 %v4400
          %v4466 = vunpack.c.l.b16 %v4401
          %v4467 = vunpack.c.l.b16 %v4402
          %v4468 = vunpack.c.l.b16 %v4403
          %v4469 = vunpack.c.l.b16 %v4404
          %v4470 = vunpack.c.l.b16 %v4405
          %v4471 = vunpack.c.l.b16 %v4406
          %v4472 = vunpack.c.l.b16 %v4407
          %v4473 = vunpack.c.l.b16 %v4408
          %v4474 = vunpack.c.l.b16 %v4409
          %v4475 = vunpack.c.l.b16 %v4410
          %v4476 = vunpack.c.l.b16 %v4411
          %v4477 = vunpack.c.l.b16 %v4412
          %v4478 = vunpack.c.l.b16 %v4413
          %v4479 = vunpack.c.l.b16 %v4414
          %v4480 = vunpack.c.l.b16 %v4415
          %v4481 = vunpack.c.l.b16 %v4416
          %v4482 = vunpack.c.l.b16 %v4417
          %v4483 = vunpack.c.l.b16 %v4418
          %v4484 = vunpack.c.l.b16 %v4419
          %v4485 = vunpack.c.l.b16 %v4420
          %v4486 = vunpack.c.l.b16 %v4421
          %v4487 = vunpack.c.l.b16 %v4422
          %v4488 = vunpack.c.l.b16 %v4423
          %v4489 = vunpack.c.l.b16 %v4424
          %v4490 = vunpack.c.l.b16 %v4425
          %v4491 = vunpack.c.l.b16 %v4426
          %v4492 = vunpack.c.l.b16 %v4427
          %v4493 = vunpack.c.l.b16 %v4428
          %v4494 = vunpack.c.l.b16 %v4429
          %v4495 = vpack.c.b16 %v4464, %v4463
          %v4496 = vpack.c.b16 %v4466, %v4465
          %v4497 = vpack.c.b16 %v4468, %v4467
          %v4498 = vpack.c.b16 %v4470, %v4469
          %v4499 = vpack.c.b16 %v4472, %v4471
          %v4500 = vpack.c.b16 %v4474, %v4473
          %v4501 = vpack.c.b16 %v4476, %v4475
          %v4502 = vpack.c.b16 %v4478, %v4477
          %v4503 = vpack.c.b16 %v4480, %v4479
          %v4504 = vpack.c.b16 %v4482, %v4481
          %v4505 = vpack.c.b16 %v4484, %v4483
          %v4506 = vpack.c.b16 %v4486, %v4485
          %v4507 = vpack.c.b16 %v4488, %v4487
          %v4508 = vpack.c.b16 %v4490, %v4489
          %v4509 = vpack.c.b16 %v4492, %v4491
          %v4510 = vpack.c.b16 %v4494, %v4493
          %4527 = vmatprep.subr.bf16.mxu0 0
          %4528 = vmatpush1.bf16.msra.mxu0 %v4502
          %4529 = vmatprep.subr.bf16.mxu0 0
          %4530 = vmatpush1.bf16.msra.mxu0 %v4501
          %4531 = vmatprep.subr.bf16.mxu0 0
          %4532 = vmatpush1.bf16.msra.mxu0 %v4500
          %4533 = vmatprep.subr.bf16.mxu0 0
          %4534 = vmatpush1.bf16.msra.mxu0 %v4499
          %4535 = vmatprep.subr.bf16.mxu0 0
          %4536 = vmatpush1.bf16.msra.mxu0 %v4498
          %4537 = vmatprep.subr.bf16.mxu0 0
          %4538 = vmatpush1.bf16.msra.mxu0 %v4497
          %4539 = vmatprep.subr.bf16.mxu0 0
          %4540 = vmatpush1.bf16.msra.mxu0 %v4496
          %4541 = vmatprep.subr.bf16.mxu0 0
          %4542 = vmatpush1.bf16.msra.mxu0 %v4495
          %4543 = vmatprep.subr.bf16.mxu0 0
          %4544 = vmatpush2.bf16.msra.mxu0 %v4510
          %4545 = vmatprep.subr.bf16.mxu0 0
          %4546 = vmatpush2.bf16.msra.mxu0 %v4509
          %4547 = vmatprep.subr.bf16.mxu0 0
          %4548 = vmatpush2.bf16.msra.mxu0 %v4508
          %4549 = vmatprep.subr.bf16.mxu0 0
          %4550 = vmatpush2.bf16.msra.mxu0 %v4507
          %4551 = vmatprep.subr.bf16.mxu0 0
          %4552 = vmatpush2.bf16.msra.mxu0 %v4506
          %4553 = vmatprep.subr.bf16.mxu0 0
          %4554 = vmatpush2.bf16.msra.mxu0 %v4505
          %4555 = vmatprep.subr.bf16.mxu0 0
          %4556 = vmatpush2.bf16.msra.mxu0 %v4504
          %4557 = vmatprep.subr.bf16.mxu0 0
          %4558 = vmatpush2.bf16.msra.mxu0 %v4503
          %4559 = vmatprep.mubr.bf16.mxu0 %v4397
          %4560 = vmatmul.mubr.bf16.gmra.mxu0 %v4396
          %v4561 = vpop.f32.mrf.mxu0
          %v4562 = vadd.f32 %v4430, %v4561
          %v4563 = vpop.f32.mrf.mxu0
          %v4564 = vpop.f32.mrf.mxu0
          %v4565 = vpop.f32.mrf.mxu0
          %4566 = vdwg.mxu0
          %vm4567 = vcmask 65536
          %4568 = vst.msk [vmem:[%s514] sm:$0x1] %vm4567, %v4562
        $region88: #{siamese_pointnet_forward.3} parent=71 // pred_fallthru
          _
        %p4569 = scmp.lt.s32.totalorder %s30, 3
        %s4570 = scalar_select %p4569, %s30, 3
        %s4571 = scalar_lea.vmem %s13, %s4570
        // Predicated region
        $region89: #{siamese_pointnet_forward.3} parent=71 // pred_check
          %p4572 = pneg %p336
        $region90: #{siamese_pointnet_forward.3} parent=71 // pred_check_branch
          %4574 = sbr.rel (%p4572) target = $region92
        $region91: #{siamese_pointnet_forward.3} parent=71 // pred_region
          _
        $region92: #{siamese_pointnet_forward.3} parent=71 // pred_fallthru
          _
      $region72: #{siamese_pointnet_forward.3} parent=5 // pred_fallthru
        _
      %p4575 = scmp.le.s32.totalorder 2, %s21
      // Predicated region
      $region93: #{siamese_pointnet_forward.3} parent=5 // pred_check
        %p4576 = pneg %p4575
      $region94: #{siamese_pointnet_forward.3} parent=5 // pred_check_branch
        %4578 = sbr.rel (%p4576) target = $region96
      $region95: #{siamese_pointnet_forward.3} parent=5 // pred_region
        %s4579 = ssub.s32 %s21, 2
        // Predicated region
        $region97: #{siamese_pointnet_forward.3} parent=95 // pred_check
          %p4580 = pneg %p342
        $region98: #{siamese_pointnet_forward.3} parent=95 // pred_check_branch
          %4582 = sbr.rel (%p4580) target = $region100
        $region99: #{siamese_pointnet_forward.3} parent=95 // pred_region
          %p4583 = scmp.lt.s32.totalorder %s32, 3
          %s4584 = scalar_select %p4583, %s32, 3
          %s4585 = scalar_lea.vmem %s13, %s4584
        $region100: #{siamese_pointnet_forward.3} parent=95 // pred_fallthru
          _
      $region96: #{siamese_pointnet_forward.3} parent=5 // pred_fallthru
        _
    $region6: #{siamese_pointnet_forward.3} parent=1 // loop_footer
      %s25 = sadd.s32 1, %s21
    $region7: #{siamese_pointnet_forward.3} parent=1 // loop_footer_branch
      %20 = sbr.rel target = $region3
    $region8: #{siamese_pointnet_forward.3} parent=1 // loop_exit
      _
    %4586 = vsyncpa [#allocation4], 1
    %s4587 = scalar_lea.sflag [#allocation4], 1
    %4588 = vsyncpa %s4587, 1
    %4589 = vsyncpa [#allocation6], 1

// kernel: siamese_pointnet_forward.4
$region0: #{siamese_pointnet_forward.4}
  #allocation0 [shape = 'u32[]', space=smem, size = 0x4, offset = 0x4, fixed_abs, tag = 'smem constant byte address 0x4 - core index']
  #allocation1 [shape = 'u32[144,128]{1,0:T(1,128)}', space=vmem, size = 0x12000, scoped, tag = 'internal scratch']
  #allocation2 [shape = 'f32[1,1024]{1,0:T(1,128)}', space=vmem, size = 0x1000, scoped, tag = 'scratch operand']
  #allocation3 [shape = 'f32[1,512]{1,0:T(1,128)}', space=vmem, size = 0x800, scoped, tag = 'scratch operand']
  #allocation4 [shape = 'f32[1,256]{1,0:T(1,128)}', space=vmem, size = 0x400, scoped, tag = 'scratch operand']
  %s0 = inlined_call_operand.vmem [shape: bf16[4,256,3], index: 0, kind: input, shape index: {}]
  %s1 = inlined_call_operand.vmem [shape: bf16[4,3,64], index: 1, kind: input, shape index: {}]
  %s2 = inlined_call_operand.vmem [shape: f32[1,64], index: 2, kind: input, shape index: {}]
  %s3 = inlined_call_operand.vmem [shape: bf16[64,128], index: 3, kind: input, shape index: {}]
  %s4 = inlined_call_operand.vmem [shape: f32[1,128], index: 4, kind: input, shape index: {}]
  %s5 = inlined_call_operand.vmem [shape: bf16[128,1024], index: 5, kind: input, shape index: {}]
  %s6 = inlined_call_operand.vmem [shape: f32[1,1024], index: 6, kind: input, shape index: {}]
  %s7 = inlined_call_operand.vmem [shape: bf16[1024,512], index: 7, kind: input, shape index: {}]
  %s8 = inlined_call_operand.vmem [shape: bf16[64,512], index: 8, kind: input, shape index: {}]
  %s9 = inlined_call_operand.vmem [shape: f32[1,512], index: 9, kind: input, shape index: {}]
  %s10 = inlined_call_operand.vmem [shape: bf16[512,256], index: 10, kind: input, shape index: {}]
  %s11 = inlined_call_operand.vmem [shape: f32[1,256], index: 11, kind: input, shape index: {}]
  %s12 = inlined_call_operand.vmem [shape: f32[4,1,256], index: 12, kind: output, shape index: {}]
  %s13 = sld [smem:[#allocation0]]
  $region101: #{siamese_pointnet_forward.4} parent=0
    _
  %s15 = ssub.s32 1, %s13
  %s16 = scalar_select 0, %s15, %s13
  loop: start=0, step=1, limit=26
  $region2: #{siamese_pointnet_forward.4} parent=0 // loop_pre_header
    _
  $region3: #{siamese_pointnet_forward.4} parent=0 // loop_header
    %s18 = sphi 0, %s22
    %p19 = scmp.ge.s32.totalorder %s18, 26
    %s25 = sphi 0, %s37
    %s26 = sphi 0, %s33
    %s27 = sphi 0, %s25
    %s28 = sphi 0, %s26
    %s29 = sphi 0, %s27
    %s30 = sphi 0, %s28
    %s68 = sphi 0, %s70
    %s71 = sphi 0, %s68
    %s72 = sphi 0, %s71
    %s88 = sphi 0, %s72
    %s94 = sphi 0, %s96
    %s97 = sphi 0, %s94
    %s98 = sphi 0, %s97
    %s114 = sphi 0, %s98
    %s118 = sphi 0, %s118
    %s120 = sphi 0, %s118
    %s121 = sphi 0, %s120
    %s135 = sphi 0, %s121
    %s139 = sphi 0, %s139
    %s141 = sphi 0, %s139
    %s142 = sphi 0, %s141
    %s156 = sphi 0, %s142
    %s160 = sphi 0, %s160
    %s162 = sphi 0, %s160
    %s163 = sphi 0, %s162
    %s177 = sphi 0, %s163
    %s181 = sphi 0, %s181
    %s183 = sphi 0, %s181
    %s184 = sphi 0, %s183
    %s198 = sphi 0, %s184
    %s202 = sphi 0, %s202
    %s204 = sphi 0, %s202
    %s205 = sphi 0, %s204
    %s219 = sphi 0, %s205
    %s223 = sphi 0, %s223
    %s225 = sphi 0, %s223
    %s226 = sphi 0, %s225
    %s240 = sphi 0, %s226
    %s244 = sphi 0, %s244
    %s246 = sphi 0, %s244
    %s247 = sphi 0, %s246
    %s261 = sphi 0, %s247
    %s265 = sphi 0, %s265
    %s267 = sphi 0, %s265
    %s268 = sphi 0, %s267
    %s282 = sphi 0, %s268
    %s286 = sphi 0, %s286
    %s288 = sphi 0, %s286
    %s289 = sphi 0, %s288
    %s303 = sphi 0, %s289
    %s307 = sphi 0, %s307
    %s309 = sphi 0, %s307
    %s310 = sphi 0, %s309
    %s324 = sphi 0, %s310
    %s330 = sphi 0, %s332
    %s333 = sphi 0, %s330
    %s334 = sphi 0, %s333
    %s350 = sphi 0, %s334
  $region4: #{siamese_pointnet_forward.4} parent=0 // loop_header_branch
    %21 = sbr.rel (%p19) target = $region8
  $region5: #{siamese_pointnet_forward.4} parent=0 // loop_body
    %s23 = ssub.s32 %s18, 1
    %s24 = ssub.s32 %s18, 2
    %s31 = sadd.s32 1, %s26
    %p32 = scmp.ge.s32.totalorder %s31, 6
    %s33 = scalar_select %p32, 0, %s31
    %s34 = sadd.s32 1, %s25
    %s35 = scalar_select %p32, %s34, %s25
    %p36 = scmp.ge.s32.totalorder %s35, 4
    %s37 = scalar_select %p36, 0, %s35
    %p38 = scmp.lt.s32.totalorder %s26, 0
    %s39 = ssub.s32 0, %s26
    %s40 = scalar_select %p38, %s39, %s26
    %s41 = sdiv.u32.pop %s40, 3
    %s42 = srem.u32.pop %s40, 3
    %s43 = ssub.s32 0, %s42
    %s44 = scalar_select %p38, %s43, %s42
    %p45 = scmp.ne.s32.totalorder %s44, 0
    %p46 = scmp.lt.s32.totalorder %s44, 0
    %p47 = pnand %p46, %p45
    %p48 = pneg %p47
    %s49 = sadd.s32 %s44, 3
    %s50 = scalar_select %p48, %s49, %s44
    %p51 = scmp.lt.s32.totalorder %s33, 0
    %s52 = ssub.s32 0, %s33
    %s53 = scalar_select %p51, %s52, %s33
    %s54 = sdiv.u32.pop %s53, 3
    %s55 = srem.u32.pop %s53, 3
    %s56 = ssub.s32 0, %s55
    %s57 = scalar_select %p51, %s56, %s55
    %p58 = scmp.ne.s32.totalorder %s57, 0
    %p59 = scmp.lt.s32.totalorder %s57, 0
    %p60 = pnand %p59, %p58
    %p61 = pneg %p60
    %s62 = sadd.s32 %s57, 3
    %s63 = scalar_select %p61, %s62, %s57
    %s64 = ssub.s32 %s25, %s37
    %s65 = ssub.s32 %s50, %s63
    %s66 = sor.u32 %s64, %s65
    %p67 = scmp.eq.s32.totalorder %s66, 0
    %s69 = sadd.s32 %s68, 1
    %s70 = scalar_select %p67, %s68, %s69
    %p73 = pneg %p67
    %p74 = scmp.eq.s32.totalorder %s18, 23
    %p75 = por %p73, %p74
    %p76 = scmp.ne.s32.totalorder %s68, %s71
    %p77 = scmp.eq.s32.totalorder %s18, 0
    %p78 = por %p76, %p77
    %p79 = scmp.ne.s32.totalorder %s68, %s71
    %p80 = scmp.eq.s32.totalorder %s23, 23
    %p81 = por %p79, %p80
    %p82 = scmp.ne.s32.totalorder %s71, %s72
    %p83 = scmp.eq.s32.totalorder %s23, 0
    %p84 = por %p82, %p83
    %p85 = scmp.ne.s32.totalorder %s71, %s72
    %p86 = scmp.eq.s32.totalorder %s24, 23
    %p87 = por %p85, %p86
    %p89 = scmp.ne.s32.totalorder %s72, %s88
    %p90 = scmp.eq.s32.totalorder %s24, 0
    %p91 = por %p89, %p90
    %s92 = ssub.s32 %s25, %s37
    %p93 = scmp.eq.s32.totalorder %s92, 0
    %s95 = sadd.s32 %s94, 1
    %s96 = scalar_select %p93, %s94, %s95
    %p99 = pneg %p93
    %p100 = scmp.eq.s32.totalorder %s18, 23
    %p101 = por %p99, %p100
    %p102 = scmp.ne.s32.totalorder %s94, %s97
    %p103 = scmp.eq.s32.totalorder %s18, 0
    %p104 = por %p102, %p103
    %p105 = scmp.ne.s32.totalorder %s94, %s97
    %p106 = scmp.eq.s32.totalorder %s23, 23
    %p107 = por %p105, %p106
    %p108 = scmp.ne.s32.totalorder %s97, %s98
    %p109 = scmp.eq.s32.totalorder %s23, 0
    %p110 = por %p108, %p109
    %p111 = scmp.ne.s32.totalorder %s97, %s98
    %p112 = scmp.eq.s32.totalorder %s24, 23
    %p113 = por %p111, %p112
    %p115 = scmp.ne.s32.totalorder %s98, %s114
    %p116 = scmp.eq.s32.totalorder %s24, 0
    %p117 = por %p115, %p116
    %s119 = sadd.s32 %s118, 1
    %p122 = scmp.eq.s32.totalorder %s18, 23
    %p123 = scmp.ne.s32.totalorder %s118, %s120
    %p124 = scmp.eq.s32.totalorder %s18, 0
    %p125 = por %p123, %p124
    %p126 = scmp.ne.s32.totalorder %s118, %s120
    %p127 = scmp.eq.s32.totalorder %s23, 23
    %p128 = por %p126, %p127
    %p129 = scmp.ne.s32.totalorder %s120, %s121
    %p130 = scmp.eq.s32.totalorder %s23, 0
    %p131 = por %p129, %p130
    %p132 = scmp.ne.s32.totalorder %s120, %s121
    %p133 = scmp.eq.s32.totalorder %s24, 23
    %p134 = por %p132, %p133
    %p136 = scmp.ne.s32.totalorder %s121, %s135
    %p137 = scmp.eq.s32.totalorder %s24, 0
    %p138 = por %p136, %p137
    %s140 = sadd.s32 %s139, 1
    %p143 = scmp.eq.s32.totalorder %s18, 23
    %p144 = scmp.ne.s32.totalorder %s139, %s141
    %p145 = scmp.eq.s32.totalorder %s18, 0
    %p146 = por %p144, %p145
    %p147 = scmp.ne.s32.totalorder %s139, %s141
    %p148 = scmp.eq.s32.totalorder %s23, 23
    %p149 = por %p147, %p148
    %p150 = scmp.ne.s32.totalorder %s141, %s142
    %p151 = scmp.eq.s32.totalorder %s23, 0
    %p152 = por %p150, %p151
    %p153 = scmp.ne.s32.totalorder %s141, %s142
    %p154 = scmp.eq.s32.totalorder %s24, 23
    %p155 = por %p153, %p154
    %p157 = scmp.ne.s32.totalorder %s142, %s156
    %p158 = scmp.eq.s32.totalorder %s24, 0
    %p159 = por %p157, %p158
    %s161 = sadd.s32 %s160, 1
    %p164 = scmp.eq.s32.totalorder %s18, 23
    %p165 = scmp.ne.s32.totalorder %s160, %s162
    %p166 = scmp.eq.s32.totalorder %s18, 0
    %p167 = por %p165, %p166
    %p168 = scmp.ne.s32.totalorder %s160, %s162
    %p169 = scmp.eq.s32.totalorder %s23, 23
    %p170 = por %p168, %p169
    %p171 = scmp.ne.s32.totalorder %s162, %s163
    %p172 = scmp.eq.s32.totalorder %s23, 0
    %p173 = por %p171, %p172
    %p174 = scmp.ne.s32.totalorder %s162, %s163
    %p175 = scmp.eq.s32.totalorder %s24, 23
    %p176 = por %p174, %p175
    %p178 = scmp.ne.s32.totalorder %s163, %s177
    %p179 = scmp.eq.s32.totalorder %s24, 0
    %p180 = por %p178, %p179
    %s182 = sadd.s32 %s181, 1
    %p185 = scmp.eq.s32.totalorder %s18, 23
    %p186 = scmp.ne.s32.totalorder %s181, %s183
    %p187 = scmp.eq.s32.totalorder %s18, 0
    %p188 = por %p186, %p187
    %p189 = scmp.ne.s32.totalorder %s181, %s183
    %p190 = scmp.eq.s32.totalorder %s23, 23
    %p191 = por %p189, %p190
    %p192 = scmp.ne.s32.totalorder %s183, %s184
    %p193 = scmp.eq.s32.totalorder %s23, 0
    %p194 = por %p192, %p193
    %p195 = scmp.ne.s32.totalorder %s183, %s184
    %p196 = scmp.eq.s32.totalorder %s24, 23
    %p197 = por %p195, %p196
    %p199 = scmp.ne.s32.totalorder %s184, %s198
    %p200 = scmp.eq.s32.totalorder %s24, 0
    %p201 = por %p199, %p200
    %s203 = sadd.s32 %s202, 1
    %p206 = scmp.eq.s32.totalorder %s18, 23
    %p207 = scmp.ne.s32.totalorder %s202, %s204
    %p208 = scmp.eq.s32.totalorder %s18, 0
    %p209 = por %p207, %p208
    %p210 = scmp.ne.s32.totalorder %s202, %s204
    %p211 = scmp.eq.s32.totalorder %s23, 23
    %p212 = por %p210, %p211
    %p213 = scmp.ne.s32.totalorder %s204, %s205
    %p214 = scmp.eq.s32.totalorder %s23, 0
    %p215 = por %p213, %p214
    %p216 = scmp.ne.s32.totalorder %s204, %s205
    %p217 = scmp.eq.s32.totalorder %s24, 23
    %p218 = por %p216, %p217
    %p220 = scmp.ne.s32.totalorder %s205, %s219
    %p221 = scmp.eq.s32.totalorder %s24, 0
    %p222 = por %p220, %p221
    %s224 = sadd.s32 %s223, 1
    %p227 = scmp.eq.s32.totalorder %s18, 23
    %p228 = scmp.ne.s32.totalorder %s223, %s225
    %p229 = scmp.eq.s32.totalorder %s18, 0
    %p230 = por %p228, %p229
    %p231 = scmp.ne.s32.totalorder %s223, %s225
    %p232 = scmp.eq.s32.totalorder %s23, 23
    %p233 = por %p231, %p232
    %p234 = scmp.ne.s32.totalorder %s225, %s226
    %p235 = scmp.eq.s32.totalorder %s23, 0
    %p236 = por %p234, %p235
    %p237 = scmp.ne.s32.totalorder %s225, %s226
    %p238 = scmp.eq.s32.totalorder %s24, 23
    %p239 = por %p237, %p238
    %p241 = scmp.ne.s32.totalorder %s226, %s240
    %p242 = scmp.eq.s32.totalorder %s24, 0
    %p243 = por %p241, %p242
    %s245 = sadd.s32 %s244, 1
    %p248 = scmp.eq.s32.totalorder %s18, 23
    %p249 = scmp.ne.s32.totalorder %s244, %s246
    %p250 = scmp.eq.s32.totalorder %s18, 0
    %p251 = por %p249, %p250
    %p252 = scmp.ne.s32.totalorder %s244, %s246
    %p253 = scmp.eq.s32.totalorder %s23, 23
    %p254 = por %p252, %p253
    %p255 = scmp.ne.s32.totalorder %s246, %s247
    %p256 = scmp.eq.s32.totalorder %s23, 0
    %p257 = por %p255, %p256
    %p258 = scmp.ne.s32.totalorder %s246, %s247
    %p259 = scmp.eq.s32.totalorder %s24, 23
    %p260 = por %p258, %p259
    %p262 = scmp.ne.s32.totalorder %s247, %s261
    %p263 = scmp.eq.s32.totalorder %s24, 0
    %p264 = por %p262, %p263
    %s266 = sadd.s32 %s265, 1
    %p269 = scmp.eq.s32.totalorder %s18, 23
    %p270 = scmp.ne.s32.totalorder %s265, %s267
    %p271 = scmp.eq.s32.totalorder %s18, 0
    %p272 = por %p270, %p271
    %p273 = scmp.ne.s32.totalorder %s265, %s267
    %p274 = scmp.eq.s32.totalorder %s23, 23
    %p275 = por %p273, %p274
    %p276 = scmp.ne.s32.totalorder %s267, %s268
    %p277 = scmp.eq.s32.totalorder %s23, 0
    %p278 = por %p276, %p277
    %p279 = scmp.ne.s32.totalorder %s267, %s268
    %p280 = scmp.eq.s32.totalorder %s24, 23
    %p281 = por %p279, %p280
    %p283 = scmp.ne.s32.totalorder %s268, %s282
    %p284 = scmp.eq.s32.totalorder %s24, 0
    %p285 = por %p283, %p284
    %s287 = sadd.s32 %s286, 1
    %p290 = scmp.eq.s32.totalorder %s18, 23
    %p291 = scmp.ne.s32.totalorder %s286, %s288
    %p292 = scmp.eq.s32.totalorder %s18, 0
    %p293 = por %p291, %p292
    %p294 = scmp.ne.s32.totalorder %s286, %s288
    %p295 = scmp.eq.s32.totalorder %s23, 23
    %p296 = por %p294, %p295
    %p297 = scmp.ne.s32.totalorder %s288, %s289
    %p298 = scmp.eq.s32.totalorder %s23, 0
    %p299 = por %p297, %p298
    %p300 = scmp.ne.s32.totalorder %s288, %s289
    %p301 = scmp.eq.s32.totalorder %s24, 23
    %p302 = por %p300, %p301
    %p304 = scmp.ne.s32.totalorder %s289, %s303
    %p305 = scmp.eq.s32.totalorder %s24, 0
    %p306 = por %p304, %p305
    %s308 = sadd.s32 %s307, 1
    %p311 = scmp.eq.s32.totalorder %s18, 23
    %p312 = scmp.ne.s32.totalorder %s307, %s309
    %p313 = scmp.eq.s32.totalorder %s18, 0
    %p314 = por %p312, %p313
    %p315 = scmp.ne.s32.totalorder %s307, %s309
    %p316 = scmp.eq.s32.totalorder %s23, 23
    %p317 = por %p315, %p316
    %p318 = scmp.ne.s32.totalorder %s309, %s310
    %p319 = scmp.eq.s32.totalorder %s23, 0
    %p320 = por %p318, %p319
    %p321 = scmp.ne.s32.totalorder %s309, %s310
    %p322 = scmp.eq.s32.totalorder %s24, 23
    %p323 = por %p321, %p322
    %p325 = scmp.ne.s32.totalorder %s310, %s324
    %p326 = scmp.eq.s32.totalorder %s24, 0
    %p327 = por %p325, %p326
    %s328 = ssub.s32 %s25, %s37
    %p329 = scmp.eq.s32.totalorder %s328, 0
    %s331 = sadd.s32 %s330, 1
    %s332 = scalar_select %p329, %s330, %s331
    %p335 = pneg %p329
    %p336 = scmp.eq.s32.totalorder %s18, 23
    %p337 = por %p335, %p336
    %p338 = scmp.ne.s32.totalorder %s330, %s333
    %p339 = scmp.eq.s32.totalorder %s18, 0
    %p340 = por %p338, %p339
    %p341 = scmp.ne.s32.totalorder %s330, %s333
    %p342 = scmp.eq.s32.totalorder %s23, 23
    %p343 = por %p341, %p342
    %p344 = scmp.ne.s32.totalorder %s333, %s334
    %p345 = scmp.eq.s32.totalorder %s23, 0
    %p346 = por %p344, %p345
    %p347 = scmp.ne.s32.totalorder %s333, %s334
    %p348 = scmp.eq.s32.totalorder %s24, 23
    %p349 = por %p347, %p348
    %p351 = scmp.ne.s32.totalorder %s334, %s350
    %p352 = scmp.eq.s32.totalorder %s24, 0
    %p353 = por %p351, %p352
    %p354 = scmp.le.s32.totalorder 1, %s18
    %p355 = scmp.lt.s32.totalorder %s18, 25
    %p356 = pnand %p354, %p355
    %p357 = pneg %p356
    // Predicated region
    $region9: #{siamese_pointnet_forward.4} parent=5 // pred_check
      _
    $region10: #{siamese_pointnet_forward.4} parent=5 // pred_check_branch
      %359 = sbr.rel (%p356) target = $region12
    $region11: #{siamese_pointnet_forward.4} parent=5 // pred_region
      %s360 = ssub.s32 %s18, 1
      // Predicated region
      $region13: #{siamese_pointnet_forward.4} parent=11 // pred_check
        %p361 = pneg %p131
      $region14: #{siamese_pointnet_forward.4} parent=11 // pred_check_branch
        %363 = sbr.rel (%p361) target = $region16
      $region15: #{siamese_pointnet_forward.4} parent=11 // pred_region
        _
      $region16: #{siamese_pointnet_forward.4} parent=11 // pred_fallthru
        _
      // Predicated region
      $region17: #{siamese_pointnet_forward.4} parent=11 // pred_check
        %p364 = pneg %p152
      $region18: #{siamese_pointnet_forward.4} parent=11 // pred_check_branch
        %366 = sbr.rel (%p364) target = $region20
      $region19: #{siamese_pointnet_forward.4} parent=11 // pred_region
        _
      $region20: #{siamese_pointnet_forward.4} parent=11 // pred_fallthru
        _
      // Predicated region
      $region21: #{siamese_pointnet_forward.4} parent=11 // pred_check
        %p367 = pneg %p173
      $region22: #{siamese_pointnet_forward.4} parent=11 // pred_check_branch
        %369 = sbr.rel (%p367) target = $region24
      $region23: #{siamese_pointnet_forward.4} parent=11 // pred_region
        _
      $region24: #{siamese_pointnet_forward.4} parent=11 // pred_fallthru
        _
      // Predicated region
      $region25: #{siamese_pointnet_forward.4} parent=11 // pred_check
        %p370 = pneg %p194
      $region26: #{siamese_pointnet_forward.4} parent=11 // pred_check_branch
        %372 = sbr.rel (%p370) target = $region28
      $region27: #{siamese_pointnet_forward.4} parent=11 // pred_region
        _
      $region28: #{siamese_pointnet_forward.4} parent=11 // pred_fallthru
        _
      // Predicated region
      $region29: #{siamese_pointnet_forward.4} parent=11 // pred_check
        %p373 = pneg %p215
      $region30: #{siamese_pointnet_forward.4} parent=11 // pred_check_branch
        %375 = sbr.rel (%p373) target = $region32
      $region31: #{siamese_pointnet_forward.4} parent=11 // pred_region
        _
      $region32: #{siamese_pointnet_forward.4} parent=11 // pred_fallthru
        _
      // Predicated region
      $region33: #{siamese_pointnet_forward.4} parent=11 // pred_check
        %p376 = pneg %p236
      $region34: #{siamese_pointnet_forward.4} parent=11 // pred_check_branch
        %378 = sbr.rel (%p376) target = $region36
      $region35: #{siamese_pointnet_forward.4} parent=11 // pred_region
        _
      $region36: #{siamese_pointnet_forward.4} parent=11 // pred_fallthru
        _
      // Predicated region
      $region37: #{siamese_pointnet_forward.4} parent=11 // pred_check
        %p379 = pneg %p257
      $region38: #{siamese_pointnet_forward.4} parent=11 // pred_check_branch
        %381 = sbr.rel (%p379) target = $region40
      $region39: #{siamese_pointnet_forward.4} parent=11 // pred_region
        _
      $region40: #{siamese_pointnet_forward.4} parent=11 // pred_fallthru
        _
      // Predicated region
      $region41: #{siamese_pointnet_forward.4} parent=11 // pred_check
        %p382 = pneg %p278
      $region42: #{siamese_pointnet_forward.4} parent=11 // pred_check_branch
        %384 = sbr.rel (%p382) target = $region44
      $region43: #{siamese_pointnet_forward.4} parent=11 // pred_region
        _
      $region44: #{siamese_pointnet_forward.4} parent=11 // pred_fallthru
        _
      // Predicated region
      $region45: #{siamese_pointnet_forward.4} parent=11 // pred_check
        %p385 = pneg %p299
      $region46: #{siamese_pointnet_forward.4} parent=11 // pred_check_branch
        %387 = sbr.rel (%p385) target = $region48
      $region47: #{siamese_pointnet_forward.4} parent=11 // pred_region
        _
      $region48: #{siamese_pointnet_forward.4} parent=11 // pred_fallthru
        _
      // Predicated region
      $region49: #{siamese_pointnet_forward.4} parent=11 // pred_check
        %p388 = pneg %p320
      $region50: #{siamese_pointnet_forward.4} parent=11 // pred_check_branch
        %390 = sbr.rel (%p388) target = $region52
      $region51: #{siamese_pointnet_forward.4} parent=11 // pred_region
        _
      $region52: #{siamese_pointnet_forward.4} parent=11 // pred_fallthru
        _
    $region12: #{siamese_pointnet_forward.4} parent=5 // pred_fallthru
      _
    %p391 = scmp.lt.s32.totalorder %s18, 24
    // Predicated region
    $region53: #{siamese_pointnet_forward.4} parent=5 // pred_check
      %p392 = pneg %p391
    $region54: #{siamese_pointnet_forward.4} parent=5 // pred_check_branch
      %394 = sbr.rel (%p392) target = $region56
    $region55: #{siamese_pointnet_forward.4} parent=5 // pred_region
      // Predicated region
      $region57: #{siamese_pointnet_forward.4} parent=55 // pred_check
        %p395 = pneg %p78
      $region58: #{siamese_pointnet_forward.4} parent=55 // pred_check_branch
        %397 = sbr.rel (%p395) target = $region60
      $region59: #{siamese_pointnet_forward.4} parent=55 // pred_region
        %p398 = scmp.lt.s32.totalorder %s26, 0
        %s399 = ssub.s32 0, %s26
        %s400 = scalar_select %p398, %s399, %s26
        %s401 = sdiv.u32.pop %s400, 3
        %s402 = srem.u32.pop %s400, 3
        %s403 = ssub.s32 0, %s402
        %s404 = scalar_select %p398, %s403, %s402
        %p405 = scmp.ne.s32.totalorder %s404, 0
        %p406 = scmp.lt.s32.totalorder %s404, 0
        %p407 = pnand %p406, %p405
        %p408 = pneg %p407
        %s409 = sadd.s32 %s404, 3
        %s410 = scalar_select %p408, %s409, %s404
        %s411 = smul.u32 12, %s410
        %s412 = ssub.s32 32, %s411
        %p413 = scmp.lt.s32.totalorder %s412, 12
        %s414 = scalar_select %p413, %s412, 12
        %s415 = smul.u32 64, %s414
        %p416 = scmp.lt.s32.totalorder %s25, 3
        %s417 = scalar_select %p416, %s25, 3
        %p418 = scmp.lt.s32.totalorder %s411, 31
        %s419 = scalar_select %p418, %s411, 31
        %s420 = smul.addr %s417, 32
        %s421 = sadd.s32 %s419, %s420
        %s422 = smul.addr %s421, 4
        %s423 = scalar_lea.vmem %s0, %s422
        %p424 = scmp.lt.s32.totalorder %s26, 0
        %s425 = ssub.s32 0, %s26
        %s426 = scalar_select %p424, %s425, %s26
        %s427 = sdiv.u32.pop %s426, 3
        %s428 = srem.u32.pop %s426, 3
        %s429 = ssub.s32 0, %s428
        %s430 = scalar_select %p424, %s429, %s428
        %p431 = scmp.ne.s32.totalorder %s430, 0
        %p432 = scmp.lt.s32.totalorder %s430, 0
        %p433 = pnand %p432, %p431
        %p434 = pneg %p433
        %s435 = sadd.s32 %s430, 3
        %s436 = scalar_select %p434, %s435, %s430
        %s437 = smul.u32 12, %s436
        %s438 = ssub.s32 32, %s437
        %p439 = scmp.lt.s32.totalorder %s438, 12
        %s440 = scalar_select %p439, %s438, 12
        %s441 = smul.u32 64, %s440
      $region60: #{siamese_pointnet_forward.4} parent=55 // pred_fallthru
        _
      // Predicated region
      $region61: #{siamese_pointnet_forward.4} parent=55 // pred_check
        %p442 = pneg %p104
      $region62: #{siamese_pointnet_forward.4} parent=55 // pred_check_branch
        %444 = sbr.rel (%p442) target = $region64
      $region63: #{siamese_pointnet_forward.4} parent=55 // pred_region
        %p445 = scmp.lt.s32.totalorder %s25, 3
        %s446 = scalar_select %p445, %s25, 3
        %s447 = smul.addr %s446, 2
        %s448 = scalar_lea.vmem %s1, %s447
      $region64: #{siamese_pointnet_forward.4} parent=55 // pred_fallthru
        _
    $region56: #{siamese_pointnet_forward.4} parent=5 // pred_fallthru
      _
    %p449 = scmp.le.s32.totalorder 1, %s18
    %p450 = scmp.lt.s32.totalorder %s18, 25
    %p451 = pnand %p449, %p450
    %p452 = pneg %p451
    // Predicated region
    $region65: #{siamese_pointnet_forward.4} parent=5 // pred_check
      _
    $region66: #{siamese_pointnet_forward.4} parent=5 // pred_check_branch
      %454 = sbr.rel (%p451) target = $region68
    $region67: #{siamese_pointnet_forward.4} parent=5 // pred_region
      %s455 = ssub.s32 %s18, 1
      %p456 = scmp.lt.s32.totalorder %s28, 0
      %s457 = ssub.s32 0, %s28
      %s458 = scalar_select %p456, %s457, %s28
      %s459 = sdiv.u32.pop %s458, 3
      %s460 = srem.u32.pop %s458, 3
      %s461 = ssub.s32 0, %s460
      %s462 = scalar_select %p456, %s461, %s460
      %p463 = scmp.ne.s32.totalorder %s462, 0
      %p464 = scmp.lt.s32.totalorder %s462, 0
      %p465 = pnand %p464, %p463
      %p466 = pneg %p465
      %s467 = sadd.s32 %s462, 3
      %s468 = scalar_select %p466, %s467, %s462
      %s469 = smul.u32 12, %s468
      %s470 = ssub.s32 32, %s469
      %p471 = scmp.lt.s32.totalorder %s470, 12
      %s472 = scalar_select %p471, %s470, 12
      %s473 = smul.u32 64, %s472
      %p474 = scmp.lt.s32.totalorder %s27, 3
      %s475 = scalar_select %p474, %s27, 3
      %p476 = scmp.lt.s32.totalorder %s469, 31
      %s477 = scalar_select %p476, %s469, 31
      %s478 = smul.addr %s475, 32
      %s479 = sadd.s32 %s477, %s478
      %s480 = smul.addr %s479, 4
      %s481 = scalar_lea.vmem %s0, %s480
      %p482 = pneg %p84
      %p483 = pneg %p81
      %p484 = scmp.lt.s32.totalorder %s27, 3
      %s485 = scalar_select %p484, %s27, 3
      %s486 = smul.addr %s485, 2
      %s487 = scalar_lea.vmem %s1, %s486
      %p488 = pneg %p110
      %p489 = pneg %p107
      %p490 = pneg %p131
      %p491 = pneg %p128
      %p492 = pneg %p152
      %p493 = pneg %p149
      %p494 = pneg %p173
      %p495 = pneg %p170
      %p496 = pneg %p194
      %p497 = pneg %p191
      %p498 = pneg %p215
      %p499 = pneg %p212
      %p500 = pneg %p236
      %p501 = pneg %p233
      %p502 = pneg %p257
      %p503 = pneg %p254
      %p504 = pneg %p278
      %p505 = pneg %p275
      %p506 = pneg %p299
      %p507 = pneg %p296
      %p508 = pneg %p320
      %p509 = pneg %p317
      %p510 = pneg %p346
      %p511 = pneg %p343
      %p512 = scmp.lt.s32.totalorder %s27, 3
      %s513 = scalar_select %p512, %s27, 3
      %s514 = smul.addr %s513, 2
      %s515 = scalar_lea.vmem %s12, %s514
      %p516 = scmp.lt.s32.totalorder %s28, 0
      %s517 = ssub.s32 0, %s28
      %s518 = scalar_select %p516, %s517, %s28
      %s519 = sdiv.u32.pop %s518, 3
      %s520 = srem.u32.pop %s518, 3
      %s521 = ssub.s32 0, %s520
      %s522 = scalar_select %p516, %s521, %s520
      %p523 = scmp.ne.s32.totalorder %s522, 0
      %p524 = scmp.lt.s32.totalorder %s522, 0
      %p525 = pnand %p524, %p523
      %p526 = pneg %p525
      %s527 = sadd.s32 %s522, 3
      %s528 = scalar_select %p526, %s527, %s522
      %s529 = smul.u32 12, %s528
      %s530 = ssub.s32 32, %s529
      %p531 = scmp.lt.s32.totalorder %s530, 12
      %s532 = scalar_select %p531, %s530, 12
      %s533 = smul.u32 64, %s532
      %p534 = scmp.lt.s32.totalorder %s27, 3
      %s535 = scalar_select %p534, %s27, 3
      %p536 = scmp.lt.s32.totalorder %s529, 31
      %s537 = scalar_select %p536, %s529, 31
      %s538 = smul.addr %s535, 32
      %s539 = sadd.s32 %s537, %s538
      %s540 = smul.addr %s539, 4
      %s541 = scalar_lea.vmem %s0, %s540
      %p542 = scmp.lt.s32.totalorder %s28, 0
      %s543 = ssub.s32 0, %s28
      %s544 = scalar_select %p542, %s543, %s28
      %s545 = sdiv.u32.pop %s544, 3
      %s546 = srem.u32.pop %s544, 3
      %s547 = ssub.s32 0, %s546
      %s548 = scalar_select %p542, %s547, %s546
      %p549 = scmp.ne.s32.totalorder %s548, 0
      %p550 = scmp.lt.s32.totalorder %s548, 0
      %p551 = pnand %p550, %p549
      %p552 = pneg %p551
      %s553 = sadd.s32 %s548, 3
      %s554 = scalar_select %p552, %s553, %s548
      %s555 = smul.u32 12, %s554
      %s556 = ssub.s32 32, %s555
      %p557 = scmp.lt.s32.totalorder %s556, 12
      %s558 = scalar_select %p557, %s556, 12
      %s559 = smul.u32 64, %s558
      %p560 = scmp.lt.s32.totalorder %s27, 3
      %s561 = scalar_select %p560, %s27, 3
      %s562 = smul.addr %s561, 2
      %s563 = scalar_lea.vmem %s1, %s562
      %p564 = scmp.lt.s32.totalorder %s27, 3
      %s565 = scalar_select %p564, %s27, 3
      %s566 = smul.addr %s565, 2
      %s567 = scalar_lea.vmem %s12, %s566
      %p569 = scmp.eq.s32.totalorder %s28, 0
      // Predicated region
      $region69: #{siamese_pointnet_forward.4} parent=67 // pred_check
        %p570 = pneg %p569
      $region70: #{siamese_pointnet_forward.4} parent=67 // pred_check_branch
        %572 = sbr.rel (%p570) target = $region72
      $region71: #{siamese_pointnet_forward.4} parent=67 // pred_region
        %573 = vst [vmem:[#allocation2] sm:$0xff] -inf
        %v574 = vlaneseq
        %vm575 = vcmp.ge.s32.totalorder %v574, 0
        %vm576 = vcmp.lt.s32.totalorder %v574, 256
        %vm577 = vmand %vm575, %vm576
        %578 = vst.msk [vmem:[#allocation4] sm:$0x3] %vm577, -inf
      $region72: #{siamese_pointnet_forward.4} parent=67 // pred_fallthru
        _
      %v579 = vld [vmem:[%s541] sm:$0xf]
      %v580 = vld [vmem:[%s541 + $0x4] sm:$0xf]
      %v581 = vld [vmem:[%s541 + $0x8] sm:$0xf]
      %v582 = vld [vmem:[%s541 + $0xc] sm:$0xf]
      %v583 = vld [vmem:[%s541 + $0x10] sm:$0xf]
      %v584 = vld [vmem:[%s541 + $0x14] sm:$0xf]
      %v585 = vld [vmem:[%s541 + $0x18] sm:$0xf]
      %v586 = vld [vmem:[%s541 + $0x1c] sm:$0xf]
      %v587 = vld [vmem:[%s541 + $0x20] sm:$0xf]
      %v588 = vld [vmem:[%s541 + $0x24] sm:$0xf]
      %v589 = vld [vmem:[%s541 + $0x28] sm:$0xf]
      %v590 = vld [vmem:[%s541 + $0x2c] sm:$0xf]
      %v591 = vld [vmem:[%s563] sm:$0x3]
      %v592 = vld [vmem:[%s2] sm:$0x1]
      %v594 = vlaneseq
      %v595 = vshrl.u32 %v594, 7
      %v596 = vsub.s32 0, %v595
      %v597 = vrot.slane %v592, %v596
      %v611 = vunpack.c.l.b16 %v579
      %v612 = vunpack.c.l.b16 %v580
      %v613 = vunpack.c.l.b16 %v581
      %v614 = vunpack.c.l.b16 %v582
      %v615 = vunpack.c.l.b16 %v583
      %v616 = vunpack.c.l.b16 %v584
      %v617 = vunpack.c.l.b16 %v585
      %v618 = vunpack.c.l.b16 %v586
      %v619 = vunpack.c.l.b16 %v587
      %v620 = vunpack.c.l.b16 %v588
      %v621 = vunpack.c.l.b16 %v589
      %v622 = vunpack.c.l.b16 %v590
      %v623 = vpack.c.b16 %v612, %v611
      %v624 = vpack.c.b16 %v614, %v613
      %v625 = vpack.c.b16 %v616, %v615
      %v626 = vpack.c.b16 %v618, %v617
      %v627 = vpack.c.b16 %v620, %v619
      %v628 = vpack.c.b16 %v622, %v621
      %vm629 = vcmask 23552
      %v631 = vsel %vm629, %v623, 0
      %v634 = vsel %vm629, %v624, 0
      %v637 = vsel %vm629, %v625, 0
      %v640 = vsel %vm629, %v626, 0
      %v643 = vsel %vm629, %v627, 0
      %v646 = vsel %vm629, %v628, 0
      %vm648 = vcmask 1040384
      %vm649 = vcmask 1041408
      %v650 = vsel %vm648, 4294967295, 65535
      %v651 = vsel %vm649, %v650, 0
      %v653 = vand.u32 %v591, %v651
      %655 = vmatprep.subr.bf16.mxu0 0
      %656 = vmatpush1.bf16.msra.mxu0 0
      %657 = vmatprep.subr.bf16.mxu0 0
      %658 = vmatpush1.bf16.msra.mxu0 0
      %659 = vmatprep.subr.bf16.mxu0 0
      %660 = vmatpush1.bf16.msra.mxu0 0
      %661 = vmatprep.subr.bf16.mxu0 0
      %662 = vmatpush1.bf16.msra.mxu0 0
      %663 = vmatprep.subr.bf16.mxu0 0
      %664 = vmatpush1.bf16.msra.mxu0 0
      %665 = vmatprep.subr.bf16.mxu0 0
      %666 = vmatpush1.bf16.msra.mxu0 0
      %667 = vmatprep.subr.bf16.mxu0 0
      %668 = vmatpush1.bf16.msra.mxu0 0
      %669 = vmatprep.subr.bf16.mxu0 0
      %670 = vmatpush1.bf16.msra.mxu0 %v653
      %671 = vmatprep.subr.bf16.mxu0 0
      %672 = vmatpush2.bf16.msra.mxu0 0
      %673 = vmatprep.subr.bf16.mxu0 0
      %674 = vmatpush2.bf16.msra.mxu0 0
      %675 = vmatprep.subr.bf16.mxu0 0
      %676 = vmatpush2.bf16.msra.mxu0 0
      %677 = vmatprep.subr.bf16.mxu0 0
      %678 = vmatpush2.bf16.msra.mxu0 0
      %679 = vmatprep.subr.bf16.mxu0 0
      %680 = vmatpush2.bf16.msra.mxu0 0
      %681 = vmatprep.subr.bf16.mxu0 0
      %682 = vmatpush2.bf16.msra.mxu0 0
      %683 = vmatprep.subr.bf16.mxu0 0
      %684 = vmatpush2.bf16.msra.mxu0 0
      %685 = vmatprep.subr.bf16.mxu0 0
      %686 = vmatpush2.bf16.msra.mxu0 0
      %687 = vmatprep.mubr.bf16.mxu0 0
      %688 = vmatmul.mubr.bf16.gmra.mxu0 %v631
      %v689 = vpop.f32.mrf.mxu0
      %v690 = vadd.f32 %v597, %v689
      %v691 = vpop.f32.mrf.mxu0
      %v692 = vpop.f32.mrf.mxu0
      %v693 = vadd.f32 %v597, %v692
      %v694 = vpop.f32.mrf.mxu0
      %695 = vmatprep.mubr.bf16.mxu0 0
      %696 = vmatmul.mubr.bf16.gmra.mxu0 %v634
      %v697 = vpop.f32.mrf.mxu0
      %v698 = vadd.f32 %v597, %v697
      %v699 = vpop.f32.mrf.mxu0
      %v700 = vpop.f32.mrf.mxu0
      %v701 = vadd.f32 %v597, %v700
      %v702 = vpop.f32.mrf.mxu0
      %703 = vmatprep.mubr.bf16.mxu0 0
      %704 = vmatmul.mubr.bf16.gmra.mxu0 %v637
      %v705 = vpop.f32.mrf.mxu0
      %v706 = vadd.f32 %v597, %v705
      %v707 = vpop.f32.mrf.mxu0
      %v708 = vpop.f32.mrf.mxu0
      %v709 = vadd.f32 %v597, %v708
      %v710 = vpop.f32.mrf.mxu0
      %711 = vmatprep.mubr.bf16.mxu0 0
      %712 = vmatmul.mubr.bf16.gmra.mxu0 %v640
      %v713 = vpop.f32.mrf.mxu0
      %v714 = vadd.f32 %v597, %v713
      %v715 = vpop.f32.mrf.mxu0
      %v716 = vpop.f32.mrf.mxu0
      %v717 = vadd.f32 %v597, %v716
      %v718 = vpop.f32.mrf.mxu0
      %719 = vmatprep.mubr.bf16.mxu0 0
      %720 = vmatmul.mubr.bf16.gmra.mxu0 %v643
      %v721 = vpop.f32.mrf.mxu0
      %v722 = vadd.f32 %v597, %v721
      %v723 = vpop.f32.mrf.mxu0
      %v724 = vpop.f32.mrf.mxu0
      %v725 = vadd.f32 %v597, %v724
      %v726 = vpop.f32.mrf.mxu0
      %727 = vmatprep.mubr.bf16.mxu0 0
      %728 = vmatmul.mubr.bf16.gmra.mxu0 %v646
      %v729 = vpop.f32.mrf.mxu0
      %v730 = vadd.f32 %v597, %v729
      %v731 = vpop.f32.mrf.mxu0
      %v732 = vpop.f32.mrf.mxu0
      %v733 = vadd.f32 %v597, %v732
      %v734 = vpop.f32.mrf.mxu0
      %735 = vdwg.mxu0
      %v736 = vmax.f32 %v690, 0.0
      %v737 = vmax.f32 %v693, 0.0
      %v738 = vmax.f32 %v698, 0.0
      %v739 = vmax.f32 %v701, 0.0
      %v740 = vmax.f32 %v706, 0.0
      %v741 = vmax.f32 %v709, 0.0
      %v742 = vmax.f32 %v714, 0.0
      %v743 = vmax.f32 %v717, 0.0
      %v744 = vmax.f32 %v722, 0.0
      %v745 = vmax.f32 %v725, 0.0
      %v746 = vmax.f32 %v730, 0.0
      %v747 = vmax.f32 %v733, 0.0
      %v748 = vpack.c.bf16 %v737, %v736
      %v749 = vpack.c.bf16 %v739, %v738
      %v750 = vpack.c.bf16 %v741, %v740
      %v751 = vpack.c.bf16 %v743, %v742
      %v752 = vpack.c.bf16 %v745, %v744
      %v753 = vpack.c.bf16 %v747, %v746
      %p754 = scmp.lt.s32.totalorder %s28, 0
      %s755 = ssub.s32 0, %s28
      %s756 = scalar_select %p754, %s755, %s28
      %s757 = sdiv.u32.pop %s756, 3
      %s758 = srem.u32.pop %s756, 3
      %s759 = ssub.s32 0, %s758
      %s760 = scalar_select %p754, %s759, %s758
      %p761 = scmp.ne.s32.totalorder %s760, 0
      %p762 = scmp.lt.s32.totalorder %s760, 0
      %p763 = pnand %p762, %p761
      %p764 = pneg %p763
      %s765 = sadd.s32 %s760, 3
      %s766 = scalar_select %p764, %s765, %s760
      %s767 = smul.u32 %s766, 96
      %v768 = vlaneseq
      %v769 = vshrl.u32 %v768, 7
      %v770 = vadd.s32 %v769, 8
      %v771 = vadd.s32 %v769, 16
      %v772 = vadd.s32 %v769, 24
      %v773 = vadd.s32 %v769, 32
      %v774 = vadd.s32 %v769, 40
      %v775 = vadd.s32 %v769, 48
      %v776 = vadd.s32 %v769, 56
      %v777 = vadd.s32 %v769, 64
      %v778 = vadd.s32 %v769, 72
      %v779 = vadd.s32 %v769, 80
      %v780 = vadd.s32 %v769, 88
      %v781 = vstv %s767
      %v782 = vadd.s32 %v781, %v769
      %v783 = vadd.s32 %v781, %v770
      %v784 = vadd.s32 %v781, %v771
      %v785 = vadd.s32 %v781, %v772
      %v786 = vadd.s32 %v781, %v773
      %v787 = vadd.s32 %v781, %v774
      %v788 = vadd.s32 %v781, %v775
      %v789 = vadd.s32 %v781, %v776
      %v790 = vadd.s32 %v781, %v777
      %v791 = vadd.s32 %v781, %v778
      %v792 = vadd.s32 %v781, %v779
      %v793 = vadd.s32 %v781, %v780
      %vm794 = vcmp.lt.s32.totalorder %v782, 256
      %vm795 = vcmp.lt.s32.totalorder %v783, 256
      %vm796 = vcmp.lt.s32.totalorder %v784, 256
      %vm797 = vcmp.lt.s32.totalorder %v785, 256
      %vm798 = vcmp.lt.s32.totalorder %v786, 256
      %vm799 = vcmp.lt.s32.totalorder %v787, 256
      %vm800 = vcmp.lt.s32.totalorder %v788, 256
      %vm801 = vcmp.lt.s32.totalorder %v789, 256
      %vm802 = vcmp.lt.s32.totalorder %v790, 256
      %vm803 = vcmp.lt.s32.totalorder %v791, 256
      %vm804 = vcmp.lt.s32.totalorder %v792, 256
      %vm805 = vcmp.lt.s32.totalorder %v793, 256
      %p806 = scmp.lt.s32.totalorder %s28, 3
      // Predicated region
      $region73: #{siamese_pointnet_forward.4} parent=67 // pred_check
        %p807 = pneg %p806
      $region74: #{siamese_pointnet_forward.4} parent=67 // pred_check_branch
        %809 = sbr.rel (%p807) target = $region76
      $region75: #{siamese_pointnet_forward.4} parent=67 // pred_region
        %v810 = vld [vmem:[%s3] sm:$0xf]
        %v811 = vld [vmem:[%s3 + $0x4] sm:$0xf]
        %v812 = vld [vmem:[%s3 + $0x8] sm:$0xf]
        %v813 = vld [vmem:[%s3 + $0xc] sm:$0xf]
        %v814 = vld [vmem:[%s3 + $0x10] sm:$0xf]
        %v815 = vld [vmem:[%s3 + $0x14] sm:$0xf]
        %v816 = vld [vmem:[%s3 + $0x18] sm:$0xf]
        %v817 = vld [vmem:[%s3 + $0x1c] sm:$0xf]
        %v818 = vld [vmem:[%s4] sm:$0x1]
        %v820 = vlaneseq
        %v821 = vshrl.u32 %v820, 7
        %v822 = vsub.s32 0, %v821
        %v823 = vrot.slane %v818, %v822
        %v833 = vunpack.c.l.b16 %v810
        %v834 = vunpack.c.l.b16 %v811
        %v835 = vunpack.c.l.b16 %v812
        %v836 = vunpack.c.l.b16 %v813
        %v837 = vunpack.c.l.b16 %v814
        %v838 = vunpack.c.l.b16 %v815
        %v839 = vunpack.c.l.b16 %v816
        %v840 = vunpack.c.l.b16 %v817
        %v841 = vpack.c.b16 %v834, %v833
        %v842 = vpack.c.b16 %v836, %v835
        %v843 = vpack.c.b16 %v838, %v837
        %v844 = vpack.c.b16 %v840, %v839
        %vm849 = vcmask 523264
        %v851 = vsel %vm849, %v748, 0
        %v854 = vsel %vm849, %v749, 0
        %v857 = vsel %vm849, %v750, 0
        %v860 = vsel %vm849, %v751, 0
        %v863 = vsel %vm849, %v752, 0
        %v866 = vsel %vm849, %v753, 0
        %868 = vmatprep.subr.bf16.mxu0 0
        %869 = vmatpush1.bf16.msra.mxu0 0
        %870 = vmatprep.subr.bf16.mxu0 0
        %871 = vmatpush1.bf16.msra.mxu0 0
        %872 = vmatprep.subr.bf16.mxu0 0
        %873 = vmatpush1.bf16.msra.mxu0 0
        %874 = vmatprep.subr.bf16.mxu0 0
        %875 = vmatpush1.bf16.msra.mxu0 0
        %876 = vmatprep.subr.bf16.mxu0 0
        %877 = vmatpush1.bf16.msra.mxu0 %v844
        %878 = vmatprep.subr.bf16.mxu0 0
        %879 = vmatpush1.bf16.msra.mxu0 %v843
        %880 = vmatprep.subr.bf16.mxu0 0
        %881 = vmatpush1.bf16.msra.mxu0 %v842
        %882 = vmatprep.subr.bf16.mxu0 0
        %883 = vmatpush1.bf16.msra.mxu0 %v841
        %884 = vmatprep.subr.bf16.mxu0 0
        %885 = vmatpush2.bf16.msra.mxu0 0
        %886 = vmatprep.subr.bf16.mxu0 0
        %887 = vmatpush2.bf16.msra.mxu0 0
        %888 = vmatprep.subr.bf16.mxu0 0
        %889 = vmatpush2.bf16.msra.mxu0 0
        %890 = vmatprep.subr.bf16.mxu0 0
        %891 = vmatpush2.bf16.msra.mxu0 0
        %892 = vmatprep.subr.bf16.mxu0 0
        %893 = vmatpush2.bf16.msra.mxu0 0
        %894 = vmatprep.subr.bf16.mxu0 0
        %895 = vmatpush2.bf16.msra.mxu0 0
        %896 = vmatprep.subr.bf16.mxu0 0
        %897 = vmatpush2.bf16.msra.mxu0 0
        %898 = vmatprep.subr.bf16.mxu0 0
        %899 = vmatpush2.bf16.msra.mxu0 0
        %900 = vmatprep.mubr.bf16.mxu0 0
        %901 = vmatmul.mubr.bf16.gmra.mxu0 %v851
        %v902 = vpop.f32.mrf.mxu0
        %v903 = vadd.f32 %v823, %v902
        %v904 = vpop.f32.mrf.mxu0
        %v905 = vpop.f32.mrf.mxu0
        %v906 = vadd.f32 %v823, %v905
        %v907 = vpop.f32.mrf.mxu0
        %908 = vmatprep.mubr.bf16.mxu0 0
        %909 = vmatmul.mubr.bf16.gmra.mxu0 %v854
        %v910 = vpop.f32.mrf.mxu0
        %v911 = vadd.f32 %v823, %v910
        %v912 = vpop.f32.mrf.mxu0
        %v913 = vpop.f32.mrf.mxu0
        %v914 = vadd.f32 %v823, %v913
        %v915 = vpop.f32.mrf.mxu0
        %916 = vmatprep.mubr.bf16.mxu0 0
        %917 = vmatmul.mubr.bf16.gmra.mxu0 %v857
        %v918 = vpop.f32.mrf.mxu0
        %v919 = vadd.f32 %v823, %v918
        %v920 = vpop.f32.mrf.mxu0
        %v921 = vpop.f32.mrf.mxu0
        %v922 = vadd.f32 %v823, %v921
        %v923 = vpop.f32.mrf.mxu0
        %924 = vmatprep.mubr.bf16.mxu0 0
        %925 = vmatmul.mubr.bf16.gmra.mxu0 %v860
        %v926 = vpop.f32.mrf.mxu0
        %v927 = vadd.f32 %v823, %v926
        %v928 = vpop.f32.mrf.mxu0
        %v929 = vpop.f32.mrf.mxu0
        %v930 = vadd.f32 %v823, %v929
        %v931 = vpop.f32.mrf.mxu0
        %932 = vmatprep.mubr.bf16.mxu0 0
        %933 = vmatmul.mubr.bf16.gmra.mxu0 %v863
        %v934 = vpop.f32.mrf.mxu0
        %v935 = vadd.f32 %v823, %v934
        %v936 = vpop.f32.mrf.mxu0
        %v937 = vpop.f32.mrf.mxu0
        %v938 = vadd.f32 %v823, %v937
        %v939 = vpop.f32.mrf.mxu0
        %940 = vmatprep.mubr.bf16.mxu0 0
        %941 = vmatmul.mubr.bf16.gmra.mxu0 %v866
        %v942 = vpop.f32.mrf.mxu0
        %v943 = vadd.f32 %v823, %v942
        %v944 = vpop.f32.mrf.mxu0
        %v945 = vpop.f32.mrf.mxu0
        %v946 = vadd.f32 %v823, %v945
        %v947 = vpop.f32.mrf.mxu0
        %948 = vdwg.mxu0
        %v949 = vmax.f32 %v903, 0.0
        %v950 = vmax.f32 %v906, 0.0
        %v951 = vmax.f32 %v911, 0.0
        %v952 = vmax.f32 %v914, 0.0
        %v953 = vmax.f32 %v919, 0.0
        %v954 = vmax.f32 %v922, 0.0
        %v955 = vmax.f32 %v927, 0.0
        %v956 = vmax.f32 %v930, 0.0
        %v957 = vmax.f32 %v935, 0.0
        %v958 = vmax.f32 %v938, 0.0
        %v959 = vmax.f32 %v943, 0.0
        %v960 = vmax.f32 %v946, 0.0
        %v961 = vpack.c.bf16 %v950, %v949
        %v962 = vpack.c.bf16 %v952, %v951
        %v963 = vpack.c.bf16 %v954, %v953
        %v964 = vpack.c.bf16 %v956, %v955
        %v965 = vpack.c.bf16 %v958, %v957
        %v966 = vpack.c.bf16 %v960, %v959
        %v967 = vld [vmem:[%s5] sm:$0xff]
        %v968 = vld [vmem:[%s5 + $0x8] sm:$0xff]
        %v969 = vld [vmem:[%s5 + $0x10] sm:$0xff]
        %v970 = vld [vmem:[%s5 + $0x18] sm:$0xff]
        %v971 = vld [vmem:[%s5 + $0x20] sm:$0xff]
        %v972 = vld [vmem:[%s5 + $0x28] sm:$0xff]
        %v973 = vld [vmem:[%s5 + $0x30] sm:$0xff]
        %v974 = vld [vmem:[%s5 + $0x38] sm:$0xff]
        %v975 = vld [vmem:[%s5 + $0x40] sm:$0xff]
        %v976 = vld [vmem:[%s5 + $0x48] sm:$0xff]
        %v977 = vld [vmem:[%s5 + $0x50] sm:$0xff]
        %v978 = vld [vmem:[%s5 + $0x58] sm:$0xff]
        %v979 = vld [vmem:[%s5 + $0x60] sm:$0xff]
        %v980 = vld [vmem:[%s5 + $0x68] sm:$0xff]
        %v981 = vld [vmem:[%s5 + $0x70] sm:$0xff]
        %v982 = vld [vmem:[%s5 + $0x78] sm:$0xff]
        %v983 = vld [vmem:[%s5 + $0x80] sm:$0xff]
        %v984 = vld [vmem:[%s5 + $0x88] sm:$0xff]
        %v985 = vld [vmem:[%s5 + $0x90] sm:$0xff]
        %v986 = vld [vmem:[%s5 + $0x98] sm:$0xff]
        %v987 = vld [vmem:[%s5 + $0xa0] sm:$0xff]
        %v988 = vld [vmem:[%s5 + $0xa8] sm:$0xff]
        %v989 = vld [vmem:[%s5 + $0xb0] sm:$0xff]
        %v990 = vld [vmem:[%s5 + $0xb8] sm:$0xff]
        %v991 = vld [vmem:[%s5 + $0xc0] sm:$0xff]
        %v992 = vld [vmem:[%s5 + $0xc8] sm:$0xff]
        %v993 = vld [vmem:[%s5 + $0xd0] sm:$0xff]
        %v994 = vld [vmem:[%s5 + $0xd8] sm:$0xff]
        %v995 = vld [vmem:[%s5 + $0xe0] sm:$0xff]
        %v996 = vld [vmem:[%s5 + $0xe8] sm:$0xff]
        %v997 = vld [vmem:[%s5 + $0xf0] sm:$0xff]
        %v998 = vld [vmem:[%s5 + $0xf8] sm:$0xff]
        %v999 = vld [vmem:[%s5 + $0x100] sm:$0xff]
        %v1000 = vld [vmem:[%s5 + $0x108] sm:$0xff]
        %v1001 = vld [vmem:[%s5 + $0x110] sm:$0xff]
        %v1002 = vld [vmem:[%s5 + $0x118] sm:$0xff]
        %v1003 = vld [vmem:[%s5 + $0x120] sm:$0xff]
        %v1004 = vld [vmem:[%s5 + $0x128] sm:$0xff]
        %v1005 = vld [vmem:[%s5 + $0x130] sm:$0xff]
        %v1006 = vld [vmem:[%s5 + $0x138] sm:$0xff]
        %v1007 = vld [vmem:[%s5 + $0x140] sm:$0xff]
        %v1008 = vld [vmem:[%s5 + $0x148] sm:$0xff]
        %v1009 = vld [vmem:[%s5 + $0x150] sm:$0xff]
        %v1010 = vld [vmem:[%s5 + $0x158] sm:$0xff]
        %v1011 = vld [vmem:[%s5 + $0x160] sm:$0xff]
        %v1012 = vld [vmem:[%s5 + $0x168] sm:$0xff]
        %v1013 = vld [vmem:[%s5 + $0x170] sm:$0xff]
        %v1014 = vld [vmem:[%s5 + $0x178] sm:$0xff]
        %v1015 = vld [vmem:[%s5 + $0x180] sm:$0xff]
        %v1016 = vld [vmem:[%s5 + $0x188] sm:$0xff]
        %v1017 = vld [vmem:[%s5 + $0x190] sm:$0xff]
        %v1018 = vld [vmem:[%s5 + $0x198] sm:$0xff]
        %v1019 = vld [vmem:[%s5 + $0x1a0] sm:$0xff]
        %v1020 = vld [vmem:[%s5 + $0x1a8] sm:$0xff]
        %v1021 = vld [vmem:[%s5 + $0x1b0] sm:$0xff]
        %v1022 = vld [vmem:[%s5 + $0x1b8] sm:$0xff]
        %v1023 = vld [vmem:[%s5 + $0x1c0] sm:$0xff]
        %v1024 = vld [vmem:[%s5 + $0x1c8] sm:$0xff]
        %v1025 = vld [vmem:[%s5 + $0x1d0] sm:$0xff]
        %v1026 = vld [vmem:[%s5 + $0x1d8] sm:$0xff]
        %v1027 = vld [vmem:[%s5 + $0x1e0] sm:$0xff]
        %v1028 = vld [vmem:[%s5 + $0x1e8] sm:$0xff]
        %v1029 = vld [vmem:[%s5 + $0x1f0] sm:$0xff]
        %v1030 = vld [vmem:[%s5 + $0x1f8] sm:$0xff]
        %v1095 = vunpack.c.l.b16 %v967
        %v1096 = vunpack.c.h.b16 %v967
        %v1097 = vunpack.c.l.b16 %v968
        %v1098 = vunpack.c.h.b16 %v968
        %v1099 = vunpack.c.l.b16 %v969
        %v1100 = vunpack.c.h.b16 %v969
        %v1101 = vunpack.c.l.b16 %v970
        %v1102 = vunpack.c.h.b16 %v970
        %v1103 = vunpack.c.l.b16 %v971
        %v1104 = vunpack.c.h.b16 %v971
        %v1105 = vunpack.c.l.b16 %v972
        %v1106 = vunpack.c.h.b16 %v972
        %v1107 = vunpack.c.l.b16 %v973
        %v1108 = vunpack.c.h.b16 %v973
        %v1109 = vunpack.c.l.b16 %v974
        %v1110 = vunpack.c.h.b16 %v974
        %v1111 = vunpack.c.l.b16 %v975
        %v1112 = vunpack.c.h.b16 %v975
        %v1113 = vunpack.c.l.b16 %v976
        %v1114 = vunpack.c.h.b16 %v976
        %v1115 = vunpack.c.l.b16 %v977
        %v1116 = vunpack.c.h.b16 %v977
        %v1117 = vunpack.c.l.b16 %v978
        %v1118 = vunpack.c.h.b16 %v978
        %v1119 = vunpack.c.l.b16 %v979
        %v1120 = vunpack.c.h.b16 %v979
        %v1121 = vunpack.c.l.b16 %v980
        %v1122 = vunpack.c.h.b16 %v980
        %v1123 = vunpack.c.l.b16 %v981
        %v1124 = vunpack.c.h.b16 %v981
        %v1125 = vunpack.c.l.b16 %v982
        %v1126 = vunpack.c.h.b16 %v982
        %v1127 = vunpack.c.l.b16 %v983
        %v1128 = vunpack.c.h.b16 %v983
        %v1129 = vunpack.c.l.b16 %v984
        %v1130 = vunpack.c.h.b16 %v984
        %v1131 = vunpack.c.l.b16 %v985
        %v1132 = vunpack.c.h.b16 %v985
        %v1133 = vunpack.c.l.b16 %v986
        %v1134 = vunpack.c.h.b16 %v986
        %v1135 = vunpack.c.l.b16 %v987
        %v1136 = vunpack.c.h.b16 %v987
        %v1137 = vunpack.c.l.b16 %v988
        %v1138 = vunpack.c.h.b16 %v988
        %v1139 = vunpack.c.l.b16 %v989
        %v1140 = vunpack.c.h.b16 %v989
        %v1141 = vunpack.c.l.b16 %v990
        %v1142 = vunpack.c.h.b16 %v990
        %v1143 = vunpack.c.l.b16 %v991
        %v1144 = vunpack.c.h.b16 %v991
        %v1145 = vunpack.c.l.b16 %v992
        %v1146 = vunpack.c.h.b16 %v992
        %v1147 = vunpack.c.l.b16 %v993
        %v1148 = vunpack.c.h.b16 %v993
        %v1149 = vunpack.c.l.b16 %v994
        %v1150 = vunpack.c.h.b16 %v994
        %v1151 = vunpack.c.l.b16 %v995
        %v1152 = vunpack.c.h.b16 %v995
        %v1153 = vunpack.c.l.b16 %v996
        %v1154 = vunpack.c.h.b16 %v996
        %v1155 = vunpack.c.l.b16 %v997
        %v1156 = vunpack.c.h.b16 %v997
        %v1157 = vunpack.c.l.b16 %v998
        %v1158 = vunpack.c.h.b16 %v998
        %v1159 = vunpack.c.l.b16 %v999
        %v1160 = vunpack.c.h.b16 %v999
        %v1161 = vunpack.c.l.b16 %v1000
        %v1162 = vunpack.c.h.b16 %v1000
        %v1163 = vunpack.c.l.b16 %v1001
        %v1164 = vunpack.c.h.b16 %v1001
        %v1165 = vunpack.c.l.b16 %v1002
        %v1166 = vunpack.c.h.b16 %v1002
        %v1167 = vunpack.c.l.b16 %v1003
        %v1168 = vunpack.c.h.b16 %v1003
        %v1169 = vunpack.c.l.b16 %v1004
        %v1170 = vunpack.c.h.b16 %v1004
        %v1171 = vunpack.c.l.b16 %v1005
        %v1172 = vunpack.c.h.b16 %v1005
        %v1173 = vunpack.c.l.b16 %v1006
        %v1174 = vunpack.c.h.b16 %v1006
        %v1175 = vunpack.c.l.b16 %v1007
        %v1176 = vunpack.c.h.b16 %v1007
        %v1177 = vunpack.c.l.b16 %v1008
        %v1178 = vunpack.c.h.b16 %v1008
        %v1179 = vunpack.c.l.b16 %v1009
        %v1180 = vunpack.c.h.b16 %v1009
        %v1181 = vunpack.c.l.b16 %v1010
        %v1182 = vunpack.c.h.b16 %v1010
        %v1183 = vunpack.c.l.b16 %v1011
        %v1184 = vunpack.c.h.b16 %v1011
        %v1185 = vunpack.c.l.b16 %v1012
        %v1186 = vunpack.c.h.b16 %v1012
        %v1187 = vunpack.c.l.b16 %v1013
        %v1188 = vunpack.c.h.b16 %v1013
        %v1189 = vunpack.c.l.b16 %v1014
        %v1190 = vunpack.c.h.b16 %v1014
        %v1191 = vunpack.c.l.b16 %v1015
        %v1192 = vunpack.c.h.b16 %v1015
        %v1193 = vunpack.c.l.b16 %v1016
        %v1194 = vunpack.c.h.b16 %v1016
        %v1195 = vunpack.c.l.b16 %v1017
        %v1196 = vunpack.c.h.b16 %v1017
        %v1197 = vunpack.c.l.b16 %v1018
        %v1198 = vunpack.c.h.b16 %v1018
        %v1199 = vunpack.c.l.b16 %v1019
        %v1200 = vunpack.c.h.b16 %v1019
        %v1201 = vunpack.c.l.b16 %v1020
        %v1202 = vunpack.c.h.b16 %v1020
        %v1203 = vunpack.c.l.b16 %v1021
        %v1204 = vunpack.c.h.b16 %v1021
        %v1205 = vunpack.c.l.b16 %v1022
        %v1206 = vunpack.c.h.b16 %v1022
        %v1207 = vunpack.c.l.b16 %v1023
        %v1208 = vunpack.c.h.b16 %v1023
        %v1209 = vunpack.c.l.b16 %v1024
        %v1210 = vunpack.c.h.b16 %v1024
        %v1211 = vunpack.c.l.b16 %v1025
        %v1212 = vunpack.c.h.b16 %v1025
        %v1213 = vunpack.c.l.b16 %v1026
        %v1214 = vunpack.c.h.b16 %v1026
        %v1215 = vunpack.c.l.b16 %v1027
        %v1216 = vunpack.c.h.b16 %v1027
        %v1217 = vunpack.c.l.b16 %v1028
        %v1218 = vunpack.c.h.b16 %v1028
        %v1219 = vunpack.c.l.b16 %v1029
        %v1220 = vunpack.c.h.b16 %v1029
        %v1221 = vunpack.c.l.b16 %v1030
        %v1222 = vunpack.c.h.b16 %v1030
        %v1223 = vpack.c.b16 %v1103, %v1095
        %v1224 = vpack.c.b16 %v1104, %v1096
        %v1225 = vpack.c.b16 %v1105, %v1097
        %v1226 = vpack.c.b16 %v1106, %v1098
        %v1227 = vpack.c.b16 %v1107, %v1099
        %v1228 = vpack.c.b16 %v1108, %v1100
        %v1229 = vpack.c.b16 %v1109, %v1101
        %v1230 = vpack.c.b16 %v1110, %v1102
        %v1231 = vpack.c.b16 %v1119, %v1111
        %v1232 = vpack.c.b16 %v1120, %v1112
        %v1233 = vpack.c.b16 %v1121, %v1113
        %v1234 = vpack.c.b16 %v1122, %v1114
        %v1235 = vpack.c.b16 %v1123, %v1115
        %v1236 = vpack.c.b16 %v1124, %v1116
        %v1237 = vpack.c.b16 %v1125, %v1117
        %v1238 = vpack.c.b16 %v1126, %v1118
        %v1239 = vpack.c.b16 %v1135, %v1127
        %v1240 = vpack.c.b16 %v1136, %v1128
        %v1241 = vpack.c.b16 %v1137, %v1129
        %v1242 = vpack.c.b16 %v1138, %v1130
        %v1243 = vpack.c.b16 %v1139, %v1131
        %v1244 = vpack.c.b16 %v1140, %v1132
        %v1245 = vpack.c.b16 %v1141, %v1133
        %v1246 = vpack.c.b16 %v1142, %v1134
        %v1247 = vpack.c.b16 %v1151, %v1143
        %v1248 = vpack.c.b16 %v1152, %v1144
        %v1249 = vpack.c.b16 %v1153, %v1145
        %v1250 = vpack.c.b16 %v1154, %v1146
        %v1251 = vpack.c.b16 %v1155, %v1147
        %v1252 = vpack.c.b16 %v1156, %v1148
        %v1253 = vpack.c.b16 %v1157, %v1149
        %v1254 = vpack.c.b16 %v1158, %v1150
        %v1255 = vpack.c.b16 %v1167, %v1159
        %v1256 = vpack.c.b16 %v1168, %v1160
        %v1257 = vpack.c.b16 %v1169, %v1161
        %v1258 = vpack.c.b16 %v1170, %v1162
        %v1259 = vpack.c.b16 %v1171, %v1163
        %v1260 = vpack.c.b16 %v1172, %v1164
        %v1261 = vpack.c.b16 %v1173, %v1165
        %v1262 = vpack.c.b16 %v1174, %v1166
        %v1263 = vpack.c.b16 %v1183, %v1175
        %v1264 = vpack.c.b16 %v1184, %v1176
        %v1265 = vpack.c.b16 %v1185, %v1177
        %v1266 = vpack.c.b16 %v1186, %v1178
        %v1267 = vpack.c.b16 %v1187, %v1179
        %v1268 = vpack.c.b16 %v1188, %v1180
        %v1269 = vpack.c.b16 %v1189, %v1181
        %v1270 = vpack.c.b16 %v1190, %v1182
        %v1271 = vpack.c.b16 %v1199, %v1191
        %v1272 = vpack.c.b16 %v1200, %v1192
        %v1273 = vpack.c.b16 %v1201, %v1193
        %v1274 = vpack.c.b16 %v1202, %v1194
        %v1275 = vpack.c.b16 %v1203, %v1195
        %v1276 = vpack.c.b16 %v1204, %v1196
        %v1277 = vpack.c.b16 %v1205, %v1197
        %v1278 = vpack.c.b16 %v1206, %v1198
        %v1279 = vpack.c.b16 %v1215, %v1207
        %v1280 = vpack.c.b16 %v1216, %v1208
        %v1281 = vpack.c.b16 %v1217, %v1209
        %v1282 = vpack.c.b16 %v1218, %v1210
        %v1283 = vpack.c.b16 %v1219, %v1211
        %v1284 = vpack.c.b16 %v1220, %v1212
        %v1285 = vpack.c.b16 %v1221, %v1213
        %v1286 = vpack.c.b16 %v1222, %v1214
        %1351 = vmatprep.subr.bf16.mxu0 %v1280
        %1352 = vmatpush1.bf16.msra.mxu0 %v1279
        %1353 = vmatprep.subr.bf16.mxu0 %v1272
        %1354 = vmatpush1.bf16.msra.mxu0 %v1271
        %1355 = vmatprep.subr.bf16.mxu0 %v1264
        %1356 = vmatpush1.bf16.msra.mxu0 %v1263
        %1357 = vmatprep.subr.bf16.mxu0 %v1256
        %1358 = vmatpush1.bf16.msra.mxu0 %v1255
        %1359 = vmatprep.subr.bf16.mxu0 %v1248
        %1360 = vmatpush1.bf16.msra.mxu0 %v1247
        %1361 = vmatprep.subr.bf16.mxu0 %v1240
        %1362 = vmatpush1.bf16.msra.mxu0 %v1239
        %1363 = vmatprep.subr.bf16.mxu0 %v1232
        %1364 = vmatpush1.bf16.msra.mxu0 %v1231
        %1365 = vmatprep.subr.bf16.mxu0 %v1224
        %1366 = vmatpush1.bf16.msra.mxu0 %v1223
        %1367 = vmatprep.subr.bf16.mxu0 0
        %1368 = vmatpush2.bf16.msra.mxu0 0
        %1369 = vmatprep.subr.bf16.mxu0 0
        %1370 = vmatpush2.bf16.msra.mxu0 0
        %1371 = vmatprep.subr.bf16.mxu0 0
        %1372 = vmatpush2.bf16.msra.mxu0 0
        %1373 = vmatprep.subr.bf16.mxu0 0
        %1374 = vmatpush2.bf16.msra.mxu0 0
        %1375 = vmatprep.subr.bf16.mxu0 0
        %1376 = vmatpush2.bf16.msra.mxu0 0
        %1377 = vmatprep.subr.bf16.mxu0 0
        %1378 = vmatpush2.bf16.msra.mxu0 0
        %1379 = vmatprep.subr.bf16.mxu0 0
        %1380 = vmatpush2.bf16.msra.mxu0 0
        %1381 = vmatprep.subr.bf16.mxu0 0
        %1382 = vmatpush2.bf16.msra.mxu0 0
        %1383 = vmatprep.mubr.bf16.mxu0 0
        %1384 = vmatmul.mubr.bf16.gmra.mxu0 %v961
        %v1385 = vpop.f32.mrf.mxu0
        %v1386 = vadd.f32 0.0, %v1385
        %v1387 = vpop.f32.mrf.mxu0
        %v1388 = vadd.f32 0.0, %v1387
        %v1389 = vpop.f32.mrf.mxu0
        %v1390 = vadd.f32 0.0, %v1389
        %v1391 = vpop.f32.mrf.mxu0
        %v1392 = vadd.f32 0.0, %v1391
        %1393 = vmatprep.mubr.bf16.mxu0 0
        %1394 = vmatmul.mubr.bf16.gmra.mxu0 %v962
        %v1395 = vpop.f32.mrf.mxu0
        %v1396 = vadd.f32 0.0, %v1395
        %v1397 = vpop.f32.mrf.mxu0
        %v1398 = vadd.f32 0.0, %v1397
        %v1399 = vpop.f32.mrf.mxu0
        %v1400 = vadd.f32 0.0, %v1399
        %v1401 = vpop.f32.mrf.mxu0
        %v1402 = vadd.f32 0.0, %v1401
        %1403 = vmatprep.mubr.bf16.mxu0 0
        %1404 = vmatmul.mubr.bf16.gmra.mxu0 %v963
        %v1405 = vpop.f32.mrf.mxu0
        %v1406 = vadd.f32 0.0, %v1405
        %v1407 = vpop.f32.mrf.mxu0
        %v1408 = vadd.f32 0.0, %v1407
        %v1409 = vpop.f32.mrf.mxu0
        %v1410 = vadd.f32 0.0, %v1409
        %v1411 = vpop.f32.mrf.mxu0
        %v1412 = vadd.f32 0.0, %v1411
        %1413 = vmatprep.mubr.bf16.mxu0 0
        %1414 = vmatmul.mubr.bf16.gmra.mxu0 %v964
        %v1415 = vpop.f32.mrf.mxu0
        %v1416 = vadd.f32 0.0, %v1415
        %v1417 = vpop.f32.mrf.mxu0
        %v1418 = vadd.f32 0.0, %v1417
        %v1419 = vpop.f32.mrf.mxu0
        %v1420 = vadd.f32 0.0, %v1419
        %v1421 = vpop.f32.mrf.mxu0
        %v1422 = vadd.f32 0.0, %v1421
        %1423 = vmatprep.mubr.bf16.mxu0 0
        %1424 = vmatmul.mubr.bf16.gmra.mxu0 %v965
        %v1425 = vpop.f32.mrf.mxu0
        %v1426 = vadd.f32 0.0, %v1425
        %v1427 = vpop.f32.mrf.mxu0
        %v1428 = vadd.f32 0.0, %v1427
        %v1429 = vpop.f32.mrf.mxu0
        %v1430 = vadd.f32 0.0, %v1429
        %v1431 = vpop.f32.mrf.mxu0
        %v1432 = vadd.f32 0.0, %v1431
        %1433 = vmatprep.mubr.bf16.mxu0 0
        %1434 = vmatmul.mubr.bf16.gmra.mxu0 %v966
        %v1435 = vpop.f32.mrf.mxu0
        %v1436 = vadd.f32 0.0, %v1435
        %v1437 = vpop.f32.mrf.mxu0
        %v1438 = vadd.f32 0.0, %v1437
        %v1439 = vpop.f32.mrf.mxu0
        %v1440 = vadd.f32 0.0, %v1439
        %v1441 = vpop.f32.mrf.mxu0
        %v1442 = vadd.f32 0.0, %v1441
        %1443 = vdwg.mxu0
        %1444 = vmatprep.subr.bf16.mxu0 %v1282
        %1445 = vmatpush1.bf16.msra.mxu0 %v1281
        %1446 = vmatprep.subr.bf16.mxu0 %v1274
        %1447 = vmatpush1.bf16.msra.mxu0 %v1273
        %1448 = vmatprep.subr.bf16.mxu0 %v1266
        %1449 = vmatpush1.bf16.msra.mxu0 %v1265
        %1450 = vmatprep.subr.bf16.mxu0 %v1258
        %1451 = vmatpush1.bf16.msra.mxu0 %v1257
        %1452 = vmatprep.subr.bf16.mxu0 %v1250
        %1453 = vmatpush1.bf16.msra.mxu0 %v1249
        %1454 = vmatprep.subr.bf16.mxu0 %v1242
        %1455 = vmatpush1.bf16.msra.mxu0 %v1241
        %1456 = vmatprep.subr.bf16.mxu0 %v1234
        %1457 = vmatpush1.bf16.msra.mxu0 %v1233
        %1458 = vmatprep.subr.bf16.mxu0 %v1226
        %1459 = vmatpush1.bf16.msra.mxu0 %v1225
        %1460 = vmatprep.subr.bf16.mxu0 0
        %1461 = vmatpush2.bf16.msra.mxu0 0
        %1462 = vmatprep.subr.bf16.mxu0 0
        %1463 = vmatpush2.bf16.msra.mxu0 0
        %1464 = vmatprep.subr.bf16.mxu0 0
        %1465 = vmatpush2.bf16.msra.mxu0 0
        %1466 = vmatprep.subr.bf16.mxu0 0
        %1467 = vmatpush2.bf16.msra.mxu0 0
        %1468 = vmatprep.subr.bf16.mxu0 0
        %1469 = vmatpush2.bf16.msra.mxu0 0
        %1470 = vmatprep.subr.bf16.mxu0 0
        %1471 = vmatpush2.bf16.msra.mxu0 0
        %1472 = vmatprep.subr.bf16.mxu0 0
        %1473 = vmatpush2.bf16.msra.mxu0 0
        %1474 = vmatprep.subr.bf16.mxu0 0
        %1475 = vmatpush2.bf16.msra.mxu0 0
        %1476 = vmatprep.mubr.bf16.mxu0 0
        %1477 = vmatmul.mubr.bf16.gmra.mxu0 %v961
        %v1478 = vpop.f32.mrf.mxu0
        %v1479 = vadd.f32 0.0, %v1478
        %v1480 = vpop.f32.mrf.mxu0
        %v1481 = vadd.f32 0.0, %v1480
        %v1482 = vpop.f32.mrf.mxu0
        %v1483 = vadd.f32 0.0, %v1482
        %v1484 = vpop.f32.mrf.mxu0
        %v1485 = vadd.f32 0.0, %v1484
        %1486 = vmatprep.mubr.bf16.mxu0 0
        %1487 = vmatmul.mubr.bf16.gmra.mxu0 %v962
        %v1488 = vpop.f32.mrf.mxu0
        %v1489 = vadd.f32 0.0, %v1488
        %v1490 = vpop.f32.mrf.mxu0
        %v1491 = vadd.f32 0.0, %v1490
        %v1492 = vpop.f32.mrf.mxu0
        %v1493 = vadd.f32 0.0, %v1492
        %v1494 = vpop.f32.mrf.mxu0
        %v1495 = vadd.f32 0.0, %v1494
        %1496 = vmatprep.mubr.bf16.mxu0 0
        %1497 = vmatmul.mubr.bf16.gmra.mxu0 %v963
        %v1498 = vpop.f32.mrf.mxu0
        %v1499 = vadd.f32 0.0, %v1498
        %v1500 = vpop.f32.mrf.mxu0
        %v1501 = vadd.f32 0.0, %v1500
        %v1502 = vpop.f32.mrf.mxu0
        %v1503 = vadd.f32 0.0, %v1502
        %v1504 = vpop.f32.mrf.mxu0
        %v1505 = vadd.f32 0.0, %v1504
        %1506 = vmatprep.mubr.bf16.mxu0 0
        %1507 = vmatmul.mubr.bf16.gmra.mxu0 %v964
        %v1508 = vpop.f32.mrf.mxu0
        %v1509 = vadd.f32 0.0, %v1508
        %v1510 = vpop.f32.mrf.mxu0
        %v1511 = vadd.f32 0.0, %v1510
        %v1512 = vpop.f32.mrf.mxu0
        %v1513 = vadd.f32 0.0, %v1512
        %v1514 = vpop.f32.mrf.mxu0
        %v1515 = vadd.f32 0.0, %v1514
        %1516 = vmatprep.mubr.bf16.mxu0 0
        %1517 = vmatmul.mubr.bf16.gmra.mxu0 %v965
        %v1518 = vpop.f32.mrf.mxu0
        %v1519 = vadd.f32 0.0, %v1518
        %v1520 = vpop.f32.mrf.mxu0
        %v1521 = vadd.f32 0.0, %v1520
        %v1522 = vpop.f32.mrf.mxu0
        %v1523 = vadd.f32 0.0, %v1522
        %v1524 = vpop.f32.mrf.mxu0
        %v1525 = vadd.f32 0.0, %v1524
        %1526 = vmatprep.mubr.bf16.mxu0 0
        %1527 = vmatmul.mubr.bf16.gmra.mxu0 %v966
        %v1528 = vpop.f32.mrf.mxu0
        %v1529 = vadd.f32 0.0, %v1528
        %v1530 = vpop.f32.mrf.mxu0
        %v1531 = vadd.f32 0.0, %v1530
        %v1532 = vpop.f32.mrf.mxu0
        %v1533 = vadd.f32 0.0, %v1532
        %v1534 = vpop.f32.mrf.mxu0
        %v1535 = vadd.f32 0.0, %v1534
        %1536 = vdwg.mxu0
        %1537 = vmatprep.subr.bf16.mxu0 %v1284
        %1538 = vmatpush1.bf16.msra.mxu0 %v1283
        %1539 = vmatprep.subr.bf16.mxu0 %v1276
        %1540 = vmatpush1.bf16.msra.mxu0 %v1275
        %1541 = vmatprep.subr.bf16.mxu0 %v1268
        %1542 = vmatpush1.bf16.msra.mxu0 %v1267
        %1543 = vmatprep.subr.bf16.mxu0 %v1260
        %1544 = vmatpush1.bf16.msra.mxu0 %v1259
        %1545 = vmatprep.subr.bf16.mxu0 %v1252
        %1546 = vmatpush1.bf16.msra.mxu0 %v1251
        %1547 = vmatprep.subr.bf16.mxu0 %v1244
        %1548 = vmatpush1.bf16.msra.mxu0 %v1243
        %1549 = vmatprep.subr.bf16.mxu0 %v1236
        %1550 = vmatpush1.bf16.msra.mxu0 %v1235
        %1551 = vmatprep.subr.bf16.mxu0 %v1228
        %1552 = vmatpush1.bf16.msra.mxu0 %v1227
        %1553 = vmatprep.subr.bf16.mxu0 0
        %1554 = vmatpush2.bf16.msra.mxu0 0
        %1555 = vmatprep.subr.bf16.mxu0 0
        %1556 = vmatpush2.bf16.msra.mxu0 0
        %1557 = vmatprep.subr.bf16.mxu0 0
        %1558 = vmatpush2.bf16.msra.mxu0 0
        %1559 = vmatprep.subr.bf16.mxu0 0
        %1560 = vmatpush2.bf16.msra.mxu0 0
        %1561 = vmatprep.subr.bf16.mxu0 0
        %1562 = vmatpush2.bf16.msra.mxu0 0
        %1563 = vmatprep.subr.bf16.mxu0 0
        %1564 = vmatpush2.bf16.msra.mxu0 0
        %1565 = vmatprep.subr.bf16.mxu0 0
        %1566 = vmatpush2.bf16.msra.mxu0 0
        %1567 = vmatprep.subr.bf16.mxu0 0
        %1568 = vmatpush2.bf16.msra.mxu0 0
        %1569 = vmatprep.mubr.bf16.mxu0 0
        %1570 = vmatmul.mubr.bf16.gmra.mxu0 %v961
        %v1571 = vpop.f32.mrf.mxu0
        %v1572 = vadd.f32 0.0, %v1571
        %v1573 = vpop.f32.mrf.mxu0
        %v1574 = vadd.f32 0.0, %v1573
        %v1575 = vpop.f32.mrf.mxu0
        %v1576 = vadd.f32 0.0, %v1575
        %v1577 = vpop.f32.mrf.mxu0
        %v1578 = vadd.f32 0.0, %v1577
        %1579 = vmatprep.mubr.bf16.mxu0 0
        %1580 = vmatmul.mubr.bf16.gmra.mxu0 %v962
        %v1581 = vpop.f32.mrf.mxu0
        %v1582 = vadd.f32 0.0, %v1581
        %v1583 = vpop.f32.mrf.mxu0
        %v1584 = vadd.f32 0.0, %v1583
        %v1585 = vpop.f32.mrf.mxu0
        %v1586 = vadd.f32 0.0, %v1585
        %v1587 = vpop.f32.mrf.mxu0
        %v1588 = vadd.f32 0.0, %v1587
        %1589 = vmatprep.mubr.bf16.mxu0 0
        %1590 = vmatmul.mubr.bf16.gmra.mxu0 %v963
        %v1591 = vpop.f32.mrf.mxu0
        %v1592 = vadd.f32 0.0, %v1591
        %v1593 = vpop.f32.mrf.mxu0
        %v1594 = vadd.f32 0.0, %v1593
        %v1595 = vpop.f32.mrf.mxu0
        %v1596 = vadd.f32 0.0, %v1595
        %v1597 = vpop.f32.mrf.mxu0
        %v1598 = vadd.f32 0.0, %v1597
        %1599 = vmatprep.mubr.bf16.mxu0 0
        %1600 = vmatmul.mubr.bf16.gmra.mxu0 %v964
        %v1601 = vpop.f32.mrf.mxu0
        %v1602 = vadd.f32 0.0, %v1601
        %v1603 = vpop.f32.mrf.mxu0
        %v1604 = vadd.f32 0.0, %v1603
        %v1605 = vpop.f32.mrf.mxu0
        %v1606 = vadd.f32 0.0, %v1605
        %v1607 = vpop.f32.mrf.mxu0
        %v1608 = vadd.f32 0.0, %v1607
        %1609 = vmatprep.mubr.bf16.mxu0 0
        %1610 = vmatmul.mubr.bf16.gmra.mxu0 %v965
        %v1611 = vpop.f32.mrf.mxu0
        %v1612 = vadd.f32 0.0, %v1611
        %v1613 = vpop.f32.mrf.mxu0
        %v1614 = vadd.f32 0.0, %v1613
        %v1615 = vpop.f32.mrf.mxu0
        %v1616 = vadd.f32 0.0, %v1615
        %v1617 = vpop.f32.mrf.mxu0
        %v1618 = vadd.f32 0.0, %v1617
        %1619 = vmatprep.mubr.bf16.mxu0 0
        %1620 = vmatmul.mubr.bf16.gmra.mxu0 %v966
        %v1621 = vpop.f32.mrf.mxu0
        %v1622 = vadd.f32 0.0, %v1621
        %v1623 = vpop.f32.mrf.mxu0
        %v1624 = vadd.f32 0.0, %v1623
        %v1625 = vpop.f32.mrf.mxu0
        %v1626 = vadd.f32 0.0, %v1625
        %v1627 = vpop.f32.mrf.mxu0
        %v1628 = vadd.f32 0.0, %v1627
        %1629 = vdwg.mxu0
        %1630 = vmatprep.subr.bf16.mxu0 %v1286
        %1631 = vmatpush1.bf16.msra.mxu0 %v1285
        %1632 = vmatprep.subr.bf16.mxu0 %v1278
        %1633 = vmatpush1.bf16.msra.mxu0 %v1277
        %1634 = vmatprep.subr.bf16.mxu0 %v1270
        %1635 = vmatpush1.bf16.msra.mxu0 %v1269
        %1636 = vmatprep.subr.bf16.mxu0 %v1262
        %1637 = vmatpush1.bf16.msra.mxu0 %v1261
        %1638 = vmatprep.subr.bf16.mxu0 %v1254
        %1639 = vmatpush1.bf16.msra.mxu0 %v1253
        %1640 = vmatprep.subr.bf16.mxu0 %v1246
        %1641 = vmatpush1.bf16.msra.mxu0 %v1245
        %1642 = vmatprep.subr.bf16.mxu0 %v1238
        %1643 = vmatpush1.bf16.msra.mxu0 %v1237
        %1644 = vmatprep.subr.bf16.mxu0 %v1230
        %1645 = vmatpush1.bf16.msra.mxu0 %v1229
        %1646 = vmatprep.subr.bf16.mxu0 0
        %1647 = vmatpush2.bf16.msra.mxu0 0
        %1648 = vmatprep.subr.bf16.mxu0 0
        %1649 = vmatpush2.bf16.msra.mxu0 0
        %1650 = vmatprep.subr.bf16.mxu0 0
        %1651 = vmatpush2.bf16.msra.mxu0 0
        %1652 = vmatprep.subr.bf16.mxu0 0
        %1653 = vmatpush2.bf16.msra.mxu0 0
        %1654 = vmatprep.subr.bf16.mxu0 0
        %1655 = vmatpush2.bf16.msra.mxu0 0
        %1656 = vmatprep.subr.bf16.mxu0 0
        %1657 = vmatpush2.bf16.msra.mxu0 0
        %1658 = vmatprep.subr.bf16.mxu0 0
        %1659 = vmatpush2.bf16.msra.mxu0 0
        %1660 = vmatprep.subr.bf16.mxu0 0
        %1661 = vmatpush2.bf16.msra.mxu0 0
        %1662 = vmatprep.mubr.bf16.mxu0 0
        %1663 = vmatmul.mubr.bf16.gmra.mxu0 %v961
        %v1664 = vpop.f32.mrf.mxu0
        %v1665 = vadd.f32 0.0, %v1664
        %v1666 = vpop.f32.mrf.mxu0
        %v1667 = vadd.f32 0.0, %v1666
        %v1668 = vpop.f32.mrf.mxu0
        %v1669 = vadd.f32 0.0, %v1668
        %v1670 = vpop.f32.mrf.mxu0
        %v1671 = vadd.f32 0.0, %v1670
        %1672 = vmatprep.mubr.bf16.mxu0 0
        %1673 = vmatmul.mubr.bf16.gmra.mxu0 %v962
        %v1674 = vpop.f32.mrf.mxu0
        %v1675 = vadd.f32 0.0, %v1674
        %v1676 = vpop.f32.mrf.mxu0
        %v1677 = vadd.f32 0.0, %v1676
        %v1678 = vpop.f32.mrf.mxu0
        %v1679 = vadd.f32 0.0, %v1678
        %v1680 = vpop.f32.mrf.mxu0
        %v1681 = vadd.f32 0.0, %v1680
        %1682 = vmatprep.mubr.bf16.mxu0 0
        %1683 = vmatmul.mubr.bf16.gmra.mxu0 %v963
        %v1684 = vpop.f32.mrf.mxu0
        %v1685 = vadd.f32 0.0, %v1684
        %v1686 = vpop.f32.mrf.mxu0
        %v1687 = vadd.f32 0.0, %v1686
        %v1688 = vpop.f32.mrf.mxu0
        %v1689 = vadd.f32 0.0, %v1688
        %v1690 = vpop.f32.mrf.mxu0
        %v1691 = vadd.f32 0.0, %v1690
        %1692 = vmatprep.mubr.bf16.mxu0 0
        %1693 = vmatmul.mubr.bf16.gmra.mxu0 %v964
        %v1694 = vpop.f32.mrf.mxu0
        %v1695 = vadd.f32 0.0, %v1694
        %v1696 = vpop.f32.mrf.mxu0
        %v1697 = vadd.f32 0.0, %v1696
        %v1698 = vpop.f32.mrf.mxu0
        %v1699 = vadd.f32 0.0, %v1698
        %v1700 = vpop.f32.mrf.mxu0
        %v1701 = vadd.f32 0.0, %v1700
        %1702 = vmatprep.mubr.bf16.mxu0 0
        %1703 = vmatmul.mubr.bf16.gmra.mxu0 %v965
        %v1704 = vpop.f32.mrf.mxu0
        %v1705 = vadd.f32 0.0, %v1704
        %v1706 = vpop.f32.mrf.mxu0
        %v1707 = vadd.f32 0.0, %v1706
        %v1708 = vpop.f32.mrf.mxu0
        %v1709 = vadd.f32 0.0, %v1708
        %v1710 = vpop.f32.mrf.mxu0
        %v1711 = vadd.f32 0.0, %v1710
        %1712 = vmatprep.mubr.bf16.mxu0 0
        %1713 = vmatmul.mubr.bf16.gmra.mxu0 %v966
        %v1714 = vpop.f32.mrf.mxu0
        %v1715 = vadd.f32 0.0, %v1714
        %v1716 = vpop.f32.mrf.mxu0
        %v1717 = vadd.f32 0.0, %v1716
        %v1718 = vpop.f32.mrf.mxu0
        %v1719 = vadd.f32 0.0, %v1718
        %v1720 = vpop.f32.mrf.mxu0
        %v1721 = vadd.f32 0.0, %v1720
        %1722 = vdwg.mxu0
        %v1723 = vsel %vm794, 1, 0
        %v1724 = vsel %vm795, 1, 0
        %v1725 = vsel %vm796, 1, 0
        %v1726 = vsel %vm797, 1, 0
        %v1727 = vsel %vm798, 1, 0
        %v1728 = vsel %vm799, 1, 0
        %v1729 = vsel %vm800, 1, 0
        %v1730 = vsel %vm801, 1, 0
        %v1731 = vsel %vm802, 1, 0
        %v1732 = vsel %vm803, 1, 0
        %v1733 = vsel %vm804, 1, 0
        %v1734 = vsel %vm805, 1, 0
        %vm1735 = vcmp.eq.s32.totalorder %v1723, 1
        %vm1736 = vcmp.eq.s32.totalorder %v1724, 1
        %vm1737 = vcmp.eq.s32.totalorder %v1725, 1
        %vm1738 = vcmp.eq.s32.totalorder %v1726, 1
        %vm1739 = vcmp.eq.s32.totalorder %v1727, 1
        %vm1740 = vcmp.eq.s32.totalorder %v1728, 1
        %vm1741 = vcmp.eq.s32.totalorder %v1729, 1
        %vm1742 = vcmp.eq.s32.totalorder %v1730, 1
        %vm1743 = vcmp.eq.s32.totalorder %v1731, 1
        %vm1744 = vcmp.eq.s32.totalorder %v1732, 1
        %vm1745 = vcmp.eq.s32.totalorder %v1733, 1
        %vm1746 = vcmp.eq.s32.totalorder %v1734, 1
        %v1747 = vsel %vm1735, %v1386, -inf
        %v1748 = vsel %vm1735, %v1388, -inf
        %v1749 = vsel %vm1735, %v1479, -inf
        %v1750 = vsel %vm1735, %v1481, -inf
        %v1751 = vsel %vm1735, %v1572, -inf
        %v1752 = vsel %vm1735, %v1574, -inf
        %v1753 = vsel %vm1735, %v1665, -inf
        %v1754 = vsel %vm1735, %v1667, -inf
        %v1755 = vsel %vm1736, %v1390, -inf
        %v1756 = vsel %vm1736, %v1392, -inf
        %v1757 = vsel %vm1736, %v1483, -inf
        %v1758 = vsel %vm1736, %v1485, -inf
        %v1759 = vsel %vm1736, %v1576, -inf
        %v1760 = vsel %vm1736, %v1578, -inf
        %v1761 = vsel %vm1736, %v1669, -inf
        %v1762 = vsel %vm1736, %v1671, -inf
        %v1763 = vsel %vm1737, %v1396, -inf
        %v1764 = vsel %vm1737, %v1398, -inf
        %v1765 = vsel %vm1737, %v1489, -inf
        %v1766 = vsel %vm1737, %v1491, -inf
        %v1767 = vsel %vm1737, %v1582, -inf
        %v1768 = vsel %vm1737, %v1584, -inf
        %v1769 = vsel %vm1737, %v1675, -inf
        %v1770 = vsel %vm1737, %v1677, -inf
        %v1771 = vsel %vm1738, %v1400, -inf
        %v1772 = vsel %vm1738, %v1402, -inf
        %v1773 = vsel %vm1738, %v1493, -inf
        %v1774 = vsel %vm1738, %v1495, -inf
        %v1775 = vsel %vm1738, %v1586, -inf
        %v1776 = vsel %vm1738, %v1588, -inf
        %v1777 = vsel %vm1738, %v1679, -inf
        %v1778 = vsel %vm1738, %v1681, -inf
        %v1779 = vsel %vm1739, %v1406, -inf
        %v1780 = vsel %vm1739, %v1408, -inf
        %v1781 = vsel %vm1739, %v1499, -inf
        %v1782 = vsel %vm1739, %v1501, -inf
        %v1783 = vsel %vm1739, %v1592, -inf
        %v1784 = vsel %vm1739, %v1594, -inf
        %v1785 = vsel %vm1739, %v1685, -inf
        %v1786 = vsel %vm1739, %v1687, -inf
        %v1787 = vsel %vm1740, %v1410, -inf
        %v1788 = vsel %vm1740, %v1412, -inf
        %v1789 = vsel %vm1740, %v1503, -inf
        %v1790 = vsel %vm1740, %v1505, -inf
        %v1791 = vsel %vm1740, %v1596, -inf
        %v1792 = vsel %vm1740, %v1598, -inf
        %v1793 = vsel %vm1740, %v1689, -inf
        %v1794 = vsel %vm1740, %v1691, -inf
        %v1795 = vsel %vm1741, %v1416, -inf
        %v1796 = vsel %vm1741, %v1418, -inf
        %v1797 = vsel %vm1741, %v1509, -inf
        %v1798 = vsel %vm1741, %v1511, -inf
        %v1799 = vsel %vm1741, %v1602, -inf
        %v1800 = vsel %vm1741, %v1604, -inf
        %v1801 = vsel %vm1741, %v1695, -inf
        %v1802 = vsel %vm1741, %v1697, -inf
        %v1803 = vsel %vm1742, %v1420, -inf
        %v1804 = vsel %vm1742, %v1422, -inf
        %v1805 = vsel %vm1742, %v1513, -inf
        %v1806 = vsel %vm1742, %v1515, -inf
        %v1807 = vsel %vm1742, %v1606, -inf
        %v1808 = vsel %vm1742, %v1608, -inf
        %v1809 = vsel %vm1742, %v1699, -inf
        %v1810 = vsel %vm1742, %v1701, -inf
        %v1811 = vsel %vm1743, %v1426, -inf
        %v1812 = vsel %vm1743, %v1428, -inf
        %v1813 = vsel %vm1743, %v1519, -inf
        %v1814 = vsel %vm1743, %v1521, -inf
        %v1815 = vsel %vm1743, %v1612, -inf
        %v1816 = vsel %vm1743, %v1614, -inf
        %v1817 = vsel %vm1743, %v1705, -inf
        %v1818 = vsel %vm1743, %v1707, -inf
        %v1819 = vsel %vm1744, %v1430, -inf
        %v1820 = vsel %vm1744, %v1432, -inf
        %v1821 = vsel %vm1744, %v1523, -inf
        %v1822 = vsel %vm1744, %v1525, -inf
        %v1823 = vsel %vm1744, %v1616, -inf
        %v1824 = vsel %vm1744, %v1618, -inf
        %v1825 = vsel %vm1744, %v1709, -inf
        %v1826 = vsel %vm1744, %v1711, -inf
        %v1827 = vsel %vm1745, %v1436, -inf
        %v1828 = vsel %vm1745, %v1438, -inf
        %v1829 = vsel %vm1745, %v1529, -inf
        %v1830 = vsel %vm1745, %v1531, -inf
        %v1831 = vsel %vm1745, %v1622, -inf
        %v1832 = vsel %vm1745, %v1624, -inf
        %v1833 = vsel %vm1745, %v1715, -inf
        %v1834 = vsel %vm1745, %v1717, -inf
        %v1835 = vsel %vm1746, %v1440, -inf
        %v1836 = vsel %vm1746, %v1442, -inf
        %v1837 = vsel %vm1746, %v1533, -inf
        %v1838 = vsel %vm1746, %v1535, -inf
        %v1839 = vsel %vm1746, %v1626, -inf
        %v1840 = vsel %vm1746, %v1628, -inf
        %v1841 = vsel %vm1746, %v1719, -inf
        %v1842 = vsel %vm1746, %v1721, -inf
        %v1843 = vld [vmem:[#allocation2] sm:$0xff]
        %v1844 = vmax.f32 %v1747, %v1755
        %v1845 = vmax.f32 %v1844, %v1763
        %v1846 = vmax.f32 %v1845, %v1771
        %v1847 = vmax.f32 %v1846, %v1779
        %v1848 = vmax.f32 %v1847, %v1787
        %v1849 = vmax.f32 %v1848, %v1795
        %v1850 = vmax.f32 %v1849, %v1803
        %v1851 = vmax.f32 %v1850, %v1811
        %v1852 = vmax.f32 %v1851, %v1819
        %v1853 = vmax.f32 %v1852, %v1827
        %v1854 = vmax.f32 %v1853, %v1835
        %v1855 = vrot.slane %v1854, 4
        %v1856 = vmax.f32 %v1854, %v1855
        %v1857 = vrot.slane %v1856, 2
        %v1858 = vmax.f32 %v1856, %v1857
        %v1859 = vrot.slane %v1858, 1
        %v1860 = vmax.f32 %v1858, %v1859
        %v1861 = vmax.f32 %v1748, %v1756
        %v1862 = vmax.f32 %v1861, %v1764
        %v1863 = vmax.f32 %v1862, %v1772
        %v1864 = vmax.f32 %v1863, %v1780
        %v1865 = vmax.f32 %v1864, %v1788
        %v1866 = vmax.f32 %v1865, %v1796
        %v1867 = vmax.f32 %v1866, %v1804
        %v1868 = vmax.f32 %v1867, %v1812
        %v1869 = vmax.f32 %v1868, %v1820
        %v1870 = vmax.f32 %v1869, %v1828
        %v1871 = vmax.f32 %v1870, %v1836
        %v1872 = vrot.slane %v1871, 4
        %v1873 = vmax.f32 %v1871, %v1872
        %v1874 = vrot.slane %v1873, 2
        %v1875 = vmax.f32 %v1873, %v1874
        %v1876 = vrot.slane %v1875, 1
        %v1877 = vmax.f32 %v1875, %v1876
        %v1878 = vmax.f32 %v1749, %v1757
        %v1879 = vmax.f32 %v1878, %v1765
        %v1880 = vmax.f32 %v1879, %v1773
        %v1881 = vmax.f32 %v1880, %v1781
        %v1882 = vmax.f32 %v1881, %v1789
        %v1883 = vmax.f32 %v1882, %v1797
        %v1884 = vmax.f32 %v1883, %v1805
        %v1885 = vmax.f32 %v1884, %v1813
        %v1886 = vmax.f32 %v1885, %v1821
        %v1887 = vmax.f32 %v1886, %v1829
        %v1888 = vmax.f32 %v1887, %v1837
        %v1889 = vrot.slane %v1888, 4
        %v1890 = vmax.f32 %v1888, %v1889
        %v1891 = vrot.slane %v1890, 2
        %v1892 = vmax.f32 %v1890, %v1891
        %v1893 = vrot.slane %v1892, 1
        %v1894 = vmax.f32 %v1892, %v1893
        %v1895 = vmax.f32 %v1750, %v1758
        %v1896 = vmax.f32 %v1895, %v1766
        %v1897 = vmax.f32 %v1896, %v1774
        %v1898 = vmax.f32 %v1897, %v1782
        %v1899 = vmax.f32 %v1898, %v1790
        %v1900 = vmax.f32 %v1899, %v1798
        %v1901 = vmax.f32 %v1900, %v1806
        %v1902 = vmax.f32 %v1901, %v1814
        %v1903 = vmax.f32 %v1902, %v1822
        %v1904 = vmax.f32 %v1903, %v1830
        %v1905 = vmax.f32 %v1904, %v1838
        %v1906 = vrot.slane %v1905, 4
        %v1907 = vmax.f32 %v1905, %v1906
        %v1908 = vrot.slane %v1907, 2
        %v1909 = vmax.f32 %v1907, %v1908
        %v1910 = vrot.slane %v1909, 1
        %v1911 = vmax.f32 %v1909, %v1910
        %v1912 = vmax.f32 %v1751, %v1759
        %v1913 = vmax.f32 %v1912, %v1767
        %v1914 = vmax.f32 %v1913, %v1775
        %v1915 = vmax.f32 %v1914, %v1783
        %v1916 = vmax.f32 %v1915, %v1791
        %v1917 = vmax.f32 %v1916, %v1799
        %v1918 = vmax.f32 %v1917, %v1807
        %v1919 = vmax.f32 %v1918, %v1815
        %v1920 = vmax.f32 %v1919, %v1823
        %v1921 = vmax.f32 %v1920, %v1831
        %v1922 = vmax.f32 %v1921, %v1839
        %v1923 = vrot.slane %v1922, 4
        %v1924 = vmax.f32 %v1922, %v1923
        %v1925 = vrot.slane %v1924, 2
        %v1926 = vmax.f32 %v1924, %v1925
        %v1927 = vrot.slane %v1926, 1
        %v1928 = vmax.f32 %v1926, %v1927
        %v1929 = vmax.f32 %v1752, %v1760
        %v1930 = vmax.f32 %v1929, %v1768
        %v1931 = vmax.f32 %v1930, %v1776
        %v1932 = vmax.f32 %v1931, %v1784
        %v1933 = vmax.f32 %v1932, %v1792
        %v1934 = vmax.f32 %v1933, %v1800
        %v1935 = vmax.f32 %v1934, %v1808
        %v1936 = vmax.f32 %v1935, %v1816
        %v1937 = vmax.f32 %v1936, %v1824
        %v1938 = vmax.f32 %v1937, %v1832
        %v1939 = vmax.f32 %v1938, %v1840
        %v1940 = vrot.slane %v1939, 4
        %v1941 = vmax.f32 %v1939, %v1940
        %v1942 = vrot.slane %v1941, 2
        %v1943 = vmax.f32 %v1941, %v1942
        %v1944 = vrot.slane %v1943, 1
        %v1945 = vmax.f32 %v1943, %v1944
        %v1946 = vmax.f32 %v1753, %v1761
        %v1947 = vmax.f32 %v1946, %v1769
        %v1948 = vmax.f32 %v1947, %v1777
        %v1949 = vmax.f32 %v1948, %v1785
        %v1950 = vmax.f32 %v1949, %v1793
        %v1951 = vmax.f32 %v1950, %v1801
        %v1952 = vmax.f32 %v1951, %v1809
        %v1953 = vmax.f32 %v1952, %v1817
        %v1954 = vmax.f32 %v1953, %v1825
        %v1955 = vmax.f32 %v1954, %v1833
        %v1956 = vmax.f32 %v1955, %v1841
        %v1957 = vrot.slane %v1956, 4
        %v1958 = vmax.f32 %v1956, %v1957
        %v1959 = vrot.slane %v1958, 2
        %v1960 = vmax.f32 %v1958, %v1959
        %v1961 = vrot.slane %v1960, 1
        %v1962 = vmax.f32 %v1960, %v1961
        %v1963 = vmax.f32 %v1754, %v1762
        %v1964 = vmax.f32 %v1963, %v1770
        %v1965 = vmax.f32 %v1964, %v1778
        %v1966 = vmax.f32 %v1965, %v1786
        %v1967 = vmax.f32 %v1966, %v1794
        %v1968 = vmax.f32 %v1967, %v1802
        %v1969 = vmax.f32 %v1968, %v1810
        %v1970 = vmax.f32 %v1969, %v1818
        %v1971 = vmax.f32 %v1970, %v1826
        %v1972 = vmax.f32 %v1971, %v1834
        %v1973 = vmax.f32 %v1972, %v1842
        %v1974 = vrot.slane %v1973, 4
        %v1975 = vmax.f32 %v1973, %v1974
        %v1976 = vrot.slane %v1975, 2
        %v1977 = vmax.f32 %v1975, %v1976
        %v1978 = vrot.slane %v1977, 1
        %v1979 = vmax.f32 %v1977, %v1978
        %v1988 = vcombine.low %v1860, %v1877
        %v1989 = vcombine.low %v1894, %v1911
        %v1990 = vcombine.low %v1928, %v1945
        %v1991 = vcombine.low %v1962, %v1979
        %v1993 = vunpack.c.l.s4 1966171168
        %v1994 = vunpack.c.0.s8 %v1993
        %v1995 = vlaneseq
        %v1996 = vshrl.u32 %v1995, 7
        %v1997 = vsub.s32 %v1994, %v1996
        %v1998 = vrot.slane %v1988, %v1997
        %v2000 = vunpack.c.l.s4 1966171168
        %v2001 = vunpack.c.0.s8 %v2000
        %v2002 = vlaneseq
        %v2003 = vshrl.u32 %v2002, 7
        %v2004 = vsub.s32 %v2001, %v2003
        %v2005 = vrot.slane %v1989, %v2004
        %v2007 = vunpack.c.l.s4 1966171168
        %v2008 = vunpack.c.0.s8 %v2007
        %v2009 = vlaneseq
        %v2010 = vshrl.u32 %v2009, 7
        %v2011 = vsub.s32 %v2008, %v2010
        %v2012 = vrot.slane %v1990, %v2011
        %v2014 = vunpack.c.l.s4 1966171168
        %v2015 = vunpack.c.0.s8 %v2014
        %v2016 = vlaneseq
        %v2017 = vshrl.u32 %v2016, 7
        %v2018 = vsub.s32 %v2015, %v2017
        %v2019 = vrot.slane %v1991, %v2018
        %v2020 = vcombine.low %v1998, %v2005
        %v2021 = vcombine.low %v2012, %v2019
        %v2023 = vunpack.c.l.s4 1966171168
        %v2024 = vunpack.c.0.s8 %v2023
        %v2025 = vlaneseq
        %v2026 = vshrl.u32 %v2025, 7
        %v2027 = vsub.s32 %v2024, %v2026
        %v2028 = vrot.slane %v2020, %v2027
        %v2030 = vunpack.c.l.s4 1966171168
        %v2031 = vunpack.c.0.s8 %v2030
        %v2032 = vlaneseq
        %v2033 = vshrl.u32 %v2032, 7
        %v2034 = vsub.s32 %v2031, %v2033
        %v2035 = vrot.slane %v2021, %v2034
        %v2036 = vcombine.low %v2028, %v2035
        %v2038 = vmax.f32 %v1843, %v2036
        %2039 = vst [vmem:[#allocation2] sm:$0xff] %v2038
      $region76: #{siamese_pointnet_forward.4} parent=67 // pred_fallthru
        _
      %p2040 = scmp.eq.s32.totalorder %s28, 3
      // Predicated region
      $region77: #{siamese_pointnet_forward.4} parent=67 // pred_check
        %p2041 = pneg %p2040
      $region78: #{siamese_pointnet_forward.4} parent=67 // pred_check_branch
        %2043 = sbr.rel (%p2041) target = $region80
      $region79: #{siamese_pointnet_forward.4} parent=67 // pred_region
        %v2044 = vld [vmem:[#allocation2] sm:$0xff]
        %v2045 = vld [vmem:[%s6] sm:$0xff]
        %v2046 = vadd.f32 %v2044, %v2045
        %v2048 = vlaneseq
        %v2049 = vshrl.u32 %v2048, 7
        %v2050 = vsub.s32 0, %v2049
        %v2051 = vrot.slane %v2046, %v2050
        %v2052 = vlaneseq
        %v2053 = vshrl.u32 %v2052, 7
        %v2054 = vsub.s32 1, %v2053
        %v2055 = vrot.slane %v2046, %v2054
        %v2056 = vlaneseq
        %v2057 = vshrl.u32 %v2056, 7
        %v2058 = vsub.s32 2, %v2057
        %v2059 = vrot.slane %v2046, %v2058
        %v2060 = vlaneseq
        %v2061 = vshrl.u32 %v2060, 7
        %v2062 = vsub.s32 3, %v2061
        %v2063 = vrot.slane %v2046, %v2062
        %v2064 = vlaneseq
        %v2065 = vshrl.u32 %v2064, 7
        %v2066 = vsub.s32 4, %v2065
        %v2067 = vrot.slane %v2046, %v2066
        %v2068 = vlaneseq
        %v2069 = vshrl.u32 %v2068, 7
        %v2070 = vsub.s32 5, %v2069
        %v2071 = vrot.slane %v2046, %v2070
        %v2072 = vlaneseq
        %v2073 = vshrl.u32 %v2072, 7
        %v2074 = vsub.s32 6, %v2073
        %v2075 = vrot.slane %v2046, %v2074
        %v2076 = vlaneseq
        %v2077 = vshrl.u32 %v2076, 7
        %v2078 = vsub.s32 7, %v2077
        %v2079 = vrot.slane %v2046, %v2078
        %v2088 = vpack.c.bf16 %v2051, %v2051
        %v2089 = vpack.c.bf16 %v2055, %v2055
        %v2090 = vpack.c.bf16 %v2059, %v2059
        %v2091 = vpack.c.bf16 %v2063, %v2063
        %v2092 = vpack.c.bf16 %v2067, %v2067
        %v2093 = vpack.c.bf16 %v2071, %v2071
        %v2094 = vpack.c.bf16 %v2075, %v2075
        %v2095 = vpack.c.bf16 %v2079, %v2079
        %v2096 = vld [vmem:[%s7] sm:$0xff]
        %v2097 = vld [vmem:[%s7 + $0x8] sm:$0xff]
        %v2098 = vld [vmem:[%s7 + $0x10] sm:$0xff]
        %v2099 = vld [vmem:[%s7 + $0x18] sm:$0xff]
        %v2100 = vld [vmem:[%s7 + $0x20] sm:$0xff]
        %v2101 = vld [vmem:[%s7 + $0x28] sm:$0xff]
        %v2102 = vld [vmem:[%s7 + $0x30] sm:$0xff]
        %v2103 = vld [vmem:[%s7 + $0x38] sm:$0xff]
        %v2104 = vld [vmem:[%s7 + $0x40] sm:$0xff]
        %v2105 = vld [vmem:[%s7 + $0x48] sm:$0xff]
        %v2106 = vld [vmem:[%s7 + $0x50] sm:$0xff]
        %v2107 = vld [vmem:[%s7 + $0x58] sm:$0xff]
        %v2108 = vld [vmem:[%s7 + $0x60] sm:$0xff]
        %v2109 = vld [vmem:[%s7 + $0x68] sm:$0xff]
        %v2110 = vld [vmem:[%s7 + $0x70] sm:$0xff]
        %v2111 = vld [vmem:[%s7 + $0x78] sm:$0xff]
        %v2112 = vld [vmem:[%s7 + $0x80] sm:$0xff]
        %v2113 = vld [vmem:[%s7 + $0x88] sm:$0xff]
        %v2114 = vld [vmem:[%s7 + $0x90] sm:$0xff]
        %v2115 = vld [vmem:[%s7 + $0x98] sm:$0xff]
        %v2116 = vld [vmem:[%s7 + $0xa0] sm:$0xff]
        %v2117 = vld [vmem:[%s7 + $0xa8] sm:$0xff]
        %v2118 = vld [vmem:[%s7 + $0xb0] sm:$0xff]
        %v2119 = vld [vmem:[%s7 + $0xb8] sm:$0xff]
        %v2120 = vld [vmem:[%s7 + $0xc0] sm:$0xff]
        %v2121 = vld [vmem:[%s7 + $0xc8] sm:$0xff]
        %v2122 = vld [vmem:[%s7 + $0xd0] sm:$0xff]
        %v2123 = vld [vmem:[%s7 + $0xd8] sm:$0xff]
        %v2124 = vld [vmem:[%s7 + $0xe0] sm:$0xff]
        %v2125 = vld [vmem:[%s7 + $0xe8] sm:$0xff]
        %v2126 = vld [vmem:[%s7 + $0xf0] sm:$0xff]
        %v2127 = vld [vmem:[%s7 + $0xf8] sm:$0xff]
        %v2128 = vld [vmem:[%s7 + $0x100] sm:$0xff]
        %v2129 = vld [vmem:[%s7 + $0x108] sm:$0xff]
        %v2130 = vld [vmem:[%s7 + $0x110] sm:$0xff]
        %v2131 = vld [vmem:[%s7 + $0x118] sm:$0xff]
        %v2132 = vld [vmem:[%s7 + $0x120] sm:$0xff]
        %v2133 = vld [vmem:[%s7 + $0x128] sm:$0xff]
        %v2134 = vld [vmem:[%s7 + $0x130] sm:$0xff]
        %v2135 = vld [vmem:[%s7 + $0x138] sm:$0xff]
        %v2136 = vld [vmem:[%s7 + $0x140] sm:$0xff]
        %v2137 = vld [vmem:[%s7 + $0x148] sm:$0xff]
        %v2138 = vld [vmem:[%s7 + $0x150] sm:$0xff]
        %v2139 = vld [vmem:[%s7 + $0x158] sm:$0xff]
        %v2140 = vld [vmem:[%s7 + $0x160] sm:$0xff]
        %v2141 = vld [vmem:[%s7 + $0x168] sm:$0xff]
        %v2142 = vld [vmem:[%s7 + $0x170] sm:$0xff]
        %v2143 = vld [vmem:[%s7 + $0x178] sm:$0xff]
        %v2144 = vld [vmem:[%s7 + $0x180] sm:$0xff]
        %v2145 = vld [vmem:[%s7 + $0x188] sm:$0xff]
        %v2146 = vld [vmem:[%s7 + $0x190] sm:$0xff]
        %v2147 = vld [vmem:[%s7 + $0x198] sm:$0xff]
        %v2148 = vld [vmem:[%s7 + $0x1a0] sm:$0xff]
        %v2149 = vld [vmem:[%s7 + $0x1a8] sm:$0xff]
        %v2150 = vld [vmem:[%s7 + $0x1b0] sm:$0xff]
        %v2151 = vld [vmem:[%s7 + $0x1b8] sm:$0xff]
        %v2152 = vld [vmem:[%s7 + $0x1c0] sm:$0xff]
        %v2153 = vld [vmem:[%s7 + $0x1c8] sm:$0xff]
        %v2154 = vld [vmem:[%s7 + $0x1d0] sm:$0xff]
        %v2155 = vld [vmem:[%s7 + $0x1d8] sm:$0xff]
        %v2156 = vld [vmem:[%s7 + $0x1e0] sm:$0xff]
        %v2157 = vld [vmem:[%s7 + $0x1e8] sm:$0xff]
        %v2158 = vld [vmem:[%s7 + $0x1f0] sm:$0xff]
        %v2159 = vld [vmem:[%s7 + $0x1f8] sm:$0xff]
        %v2160 = vld [vmem:[%s7 + $0x200] sm:$0xff]
        %v2161 = vld [vmem:[%s7 + $0x208] sm:$0xff]
        %v2162 = vld [vmem:[%s7 + $0x210] sm:$0xff]
        %v2163 = vld [vmem:[%s7 + $0x218] sm:$0xff]
        %v2164 = vld [vmem:[%s7 + $0x220] sm:$0xff]
        %v2165 = vld [vmem:[%s7 + $0x228] sm:$0xff]
        %v2166 = vld [vmem:[%s7 + $0x230] sm:$0xff]
        %v2167 = vld [vmem:[%s7 + $0x238] sm:$0xff]
        %v2168 = vld [vmem:[%s7 + $0x240] sm:$0xff]
        %v2169 = vld [vmem:[%s7 + $0x248] sm:$0xff]
        %v2170 = vld [vmem:[%s7 + $0x250] sm:$0xff]
        %v2171 = vld [vmem:[%s7 + $0x258] sm:$0xff]
        %v2172 = vld [vmem:[%s7 + $0x260] sm:$0xff]
        %v2173 = vld [vmem:[%s7 + $0x268] sm:$0xff]
        %v2174 = vld [vmem:[%s7 + $0x270] sm:$0xff]
        %v2175 = vld [vmem:[%s7 + $0x278] sm:$0xff]
        %v2176 = vld [vmem:[%s7 + $0x280] sm:$0xff]
        %v2177 = vld [vmem:[%s7 + $0x288] sm:$0xff]
        %v2178 = vld [vmem:[%s7 + $0x290] sm:$0xff]
        %v2179 = vld [vmem:[%s7 + $0x298] sm:$0xff]
        %v2180 = vld [vmem:[%s7 + $0x2a0] sm:$0xff]
        %v2181 = vld [vmem:[%s7 + $0x2a8] sm:$0xff]
        %v2182 = vld [vmem:[%s7 + $0x2b0] sm:$0xff]
        %v2183 = vld [vmem:[%s7 + $0x2b8] sm:$0xff]
        %v2184 = vld [vmem:[%s7 + $0x2c0] sm:$0xff]
        %v2185 = vld [vmem:[%s7 + $0x2c8] sm:$0xff]
        %v2186 = vld [vmem:[%s7 + $0x2d0] sm:$0xff]
        %v2187 = vld [vmem:[%s7 + $0x2d8] sm:$0xff]
        %v2188 = vld [vmem:[%s7 + $0x2e0] sm:$0xff]
        %v2189 = vld [vmem:[%s7 + $0x2e8] sm:$0xff]
        %v2190 = vld [vmem:[%s7 + $0x2f0] sm:$0xff]
        %v2191 = vld [vmem:[%s7 + $0x2f8] sm:$0xff]
        %v2192 = vld [vmem:[%s7 + $0x300] sm:$0xff]
        %v2193 = vld [vmem:[%s7 + $0x308] sm:$0xff]
        %v2194 = vld [vmem:[%s7 + $0x310] sm:$0xff]
        %v2195 = vld [vmem:[%s7 + $0x318] sm:$0xff]
        %v2196 = vld [vmem:[%s7 + $0x320] sm:$0xff]
        %v2197 = vld [vmem:[%s7 + $0x328] sm:$0xff]
        %v2198 = vld [vmem:[%s7 + $0x330] sm:$0xff]
        %v2199 = vld [vmem:[%s7 + $0x338] sm:$0xff]
        %v2200 = vld [vmem:[%s7 + $0x340] sm:$0xff]
        %v2201 = vld [vmem:[%s7 + $0x348] sm:$0xff]
        %v2202 = vld [vmem:[%s7 + $0x350] sm:$0xff]
        %v2203 = vld [vmem:[%s7 + $0x358] sm:$0xff]
        %v2204 = vld [vmem:[%s7 + $0x360] sm:$0xff]
        %v2205 = vld [vmem:[%s7 + $0x368] sm:$0xff]
        %v2206 = vld [vmem:[%s7 + $0x370] sm:$0xff]
        %v2207 = vld [vmem:[%s7 + $0x378] sm:$0xff]
        %v2208 = vld [vmem:[%s7 + $0x380] sm:$0xff]
        %v2209 = vld [vmem:[%s7 + $0x388] sm:$0xff]
        %v2210 = vld [vmem:[%s7 + $0x390] sm:$0xff]
        %v2211 = vld [vmem:[%s7 + $0x398] sm:$0xff]
        %v2212 = vld [vmem:[%s7 + $0x3a0] sm:$0xff]
        %v2213 = vld [vmem:[%s7 + $0x3a8] sm:$0xff]
        %v2214 = vld [vmem:[%s7 + $0x3b0] sm:$0xff]
        %v2215 = vld [vmem:[%s7 + $0x3b8] sm:$0xff]
        %v2216 = vld [vmem:[%s7 + $0x3c0] sm:$0xff]
        %v2217 = vld [vmem:[%s7 + $0x3c8] sm:$0xff]
        %v2218 = vld [vmem:[%s7 + $0x3d0] sm:$0xff]
        %v2219 = vld [vmem:[%s7 + $0x3d8] sm:$0xff]
        %v2220 = vld [vmem:[%s7 + $0x3e0] sm:$0xff]
        %v2221 = vld [vmem:[%s7 + $0x3e8] sm:$0xff]
        %v2222 = vld [vmem:[%s7 + $0x3f0] sm:$0xff]
        %v2223 = vld [vmem:[%s7 + $0x3f8] sm:$0xff]
        %v2224 = vld [vmem:[%s7 + $0x400] sm:$0xff]
        %v2225 = vld [vmem:[%s7 + $0x408] sm:$0xff]
        %v2226 = vld [vmem:[%s7 + $0x410] sm:$0xff]
        %v2227 = vld [vmem:[%s7 + $0x418] sm:$0xff]
        %v2228 = vld [vmem:[%s7 + $0x420] sm:$0xff]
        %v2229 = vld [vmem:[%s7 + $0x428] sm:$0xff]
        %v2230 = vld [vmem:[%s7 + $0x430] sm:$0xff]
        %v2231 = vld [vmem:[%s7 + $0x438] sm:$0xff]
        %v2232 = vld [vmem:[%s7 + $0x440] sm:$0xff]
        %v2233 = vld [vmem:[%s7 + $0x448] sm:$0xff]
        %v2234 = vld [vmem:[%s7 + $0x450] sm:$0xff]
        %v2235 = vld [vmem:[%s7 + $0x458] sm:$0xff]
        %v2236 = vld [vmem:[%s7 + $0x460] sm:$0xff]
        %v2237 = vld [vmem:[%s7 + $0x468] sm:$0xff]
        %v2238 = vld [vmem:[%s7 + $0x470] sm:$0xff]
        %v2239 = vld [vmem:[%s7 + $0x478] sm:$0xff]
        %v2240 = vld [vmem:[%s7 + $0x480] sm:$0xff]
        %v2241 = vld [vmem:[%s7 + $0x488] sm:$0xff]
        %v2242 = vld [vmem:[%s7 + $0x490] sm:$0xff]
        %v2243 = vld [vmem:[%s7 + $0x498] sm:$0xff]
        %v2244 = vld [vmem:[%s7 + $0x4a0] sm:$0xff]
        %v2245 = vld [vmem:[%s7 + $0x4a8] sm:$0xff]
        %v2246 = vld [vmem:[%s7 + $0x4b0] sm:$0xff]
        %v2247 = vld [vmem:[%s7 + $0x4b8] sm:$0xff]
        %v2248 = vld [vmem:[%s7 + $0x4c0] sm:$0xff]
        %v2249 = vld [vmem:[%s7 + $0x4c8] sm:$0xff]
        %v2250 = vld [vmem:[%s7 + $0x4d0] sm:$0xff]
        %v2251 = vld [vmem:[%s7 + $0x4d8] sm:$0xff]
        %v2252 = vld [vmem:[%s7 + $0x4e0] sm:$0xff]
        %v2253 = vld [vmem:[%s7 + $0x4e8] sm:$0xff]
        %v2254 = vld [vmem:[%s7 + $0x4f0] sm:$0xff]
        %v2255 = vld [vmem:[%s7 + $0x4f8] sm:$0xff]
        %v2256 = vld [vmem:[%s7 + $0x500] sm:$0xff]
        %v2257 = vld [vmem:[%s7 + $0x508] sm:$0xff]
        %v2258 = vld [vmem:[%s7 + $0x510] sm:$0xff]
        %v2259 = vld [vmem:[%s7 + $0x518] sm:$0xff]
        %v2260 = vld [vmem:[%s7 + $0x520] sm:$0xff]
        %v2261 = vld [vmem:[%s7 + $0x528] sm:$0xff]
        %v2262 = vld [vmem:[%s7 + $0x530] sm:$0xff]
        %v2263 = vld [vmem:[%s7 + $0x538] sm:$0xff]
        %v2264 = vld [vmem:[%s7 + $0x540] sm:$0xff]
        %v2265 = vld [vmem:[%s7 + $0x548] sm:$0xff]
        %v2266 = vld [vmem:[%s7 + $0x550] sm:$0xff]
        %v2267 = vld [vmem:[%s7 + $0x558] sm:$0xff]
        %v2268 = vld [vmem:[%s7 + $0x560] sm:$0xff]
        %v2269 = vld [vmem:[%s7 + $0x568] sm:$0xff]
        %v2270 = vld [vmem:[%s7 + $0x570] sm:$0xff]
        %v2271 = vld [vmem:[%s7 + $0x578] sm:$0xff]
        %v2272 = vld [vmem:[%s7 + $0x580] sm:$0xff]
        %v2273 = vld [vmem:[%s7 + $0x588] sm:$0xff]
        %v2274 = vld [vmem:[%s7 + $0x590] sm:$0xff]
        %v2275 = vld [vmem:[%s7 + $0x598] sm:$0xff]
        %v2276 = vld [vmem:[%s7 + $0x5a0] sm:$0xff]
        %v2277 = vld [vmem:[%s7 + $0x5a8] sm:$0xff]
        %v2278 = vld [vmem:[%s7 + $0x5b0] sm:$0xff]
        %v2279 = vld [vmem:[%s7 + $0x5b8] sm:$0xff]
        %v2280 = vld [vmem:[%s7 + $0x5c0] sm:$0xff]
        %v2281 = vld [vmem:[%s7 + $0x5c8] sm:$0xff]
        %v2282 = vld [vmem:[%s7 + $0x5d0] sm:$0xff]
        %v2283 = vld [vmem:[%s7 + $0x5d8] sm:$0xff]
        %v2284 = vld [vmem:[%s7 + $0x5e0] sm:$0xff]
        %v2285 = vld [vmem:[%s7 + $0x5e8] sm:$0xff]
        %v2286 = vld [vmem:[%s7 + $0x5f0] sm:$0xff]
        %v2287 = vld [vmem:[%s7 + $0x5f8] sm:$0xff]
        %v2288 = vld [vmem:[%s7 + $0x600] sm:$0xff]
        %v2289 = vld [vmem:[%s7 + $0x608] sm:$0xff]
        %v2290 = vld [vmem:[%s7 + $0x610] sm:$0xff]
        %v2291 = vld [vmem:[%s7 + $0x618] sm:$0xff]
        %v2292 = vld [vmem:[%s7 + $0x620] sm:$0xff]
        %v2293 = vld [vmem:[%s7 + $0x628] sm:$0xff]
        %v2294 = vld [vmem:[%s7 + $0x630] sm:$0xff]
        %v2295 = vld [vmem:[%s7 + $0x638] sm:$0xff]
        %v2296 = vld [vmem:[%s7 + $0x640] sm:$0xff]
        %v2297 = vld [vmem:[%s7 + $0x648] sm:$0xff]
        %v2298 = vld [vmem:[%s7 + $0x650] sm:$0xff]
        %v2299 = vld [vmem:[%s7 + $0x658] sm:$0xff]
        %v2300 = vld [vmem:[%s7 + $0x660] sm:$0xff]
        %v2301 = vld [vmem:[%s7 + $0x668] sm:$0xff]
        %v2302 = vld [vmem:[%s7 + $0x670] sm:$0xff]
        %v2303 = vld [vmem:[%s7 + $0x678] sm:$0xff]
        %v2304 = vld [vmem:[%s7 + $0x680] sm:$0xff]
        %v2305 = vld [vmem:[%s7 + $0x688] sm:$0xff]
        %v2306 = vld [vmem:[%s7 + $0x690] sm:$0xff]
        %v2307 = vld [vmem:[%s7 + $0x698] sm:$0xff]
        %v2308 = vld [vmem:[%s7 + $0x6a0] sm:$0xff]
        %v2309 = vld [vmem:[%s7 + $0x6a8] sm:$0xff]
        %v2310 = vld [vmem:[%s7 + $0x6b0] sm:$0xff]
        %v2311 = vld [vmem:[%s7 + $0x6b8] sm:$0xff]
        %v2312 = vld [vmem:[%s7 + $0x6c0] sm:$0xff]
        %v2313 = vld [vmem:[%s7 + $0x6c8] sm:$0xff]
        %v2314 = vld [vmem:[%s7 + $0x6d0] sm:$0xff]
        %v2315 = vld [vmem:[%s7 + $0x6d8] sm:$0xff]
        %v2316 = vld [vmem:[%s7 + $0x6e0] sm:$0xff]
        %v2317 = vld [vmem:[%s7 + $0x6e8] sm:$0xff]
        %v2318 = vld [vmem:[%s7 + $0x6f0] sm:$0xff]
        %v2319 = vld [vmem:[%s7 + $0x6f8] sm:$0xff]
        %v2320 = vld [vmem:[%s7 + $0x700] sm:$0xff]
        %v2321 = vld [vmem:[%s7 + $0x708] sm:$0xff]
        %v2322 = vld [vmem:[%s7 + $0x710] sm:$0xff]
        %v2323 = vld [vmem:[%s7 + $0x718] sm:$0xff]
        %v2324 = vld [vmem:[%s7 + $0x720] sm:$0xff]
        %v2325 = vld [vmem:[%s7 + $0x728] sm:$0xff]
        %v2326 = vld [vmem:[%s7 + $0x730] sm:$0xff]
        %v2327 = vld [vmem:[%s7 + $0x738] sm:$0xff]
        %v2328 = vld [vmem:[%s7 + $0x740] sm:$0xff]
        %v2329 = vld [vmem:[%s7 + $0x748] sm:$0xff]
        %v2330 = vld [vmem:[%s7 + $0x750] sm:$0xff]
        %v2331 = vld [vmem:[%s7 + $0x758] sm:$0xff]
        %v2332 = vld [vmem:[%s7 + $0x760] sm:$0xff]
        %v2333 = vld [vmem:[%s7 + $0x768] sm:$0xff]
        %v2334 = vld [vmem:[%s7 + $0x770] sm:$0xff]
        %v2335 = vld [vmem:[%s7 + $0x778] sm:$0xff]
        %v2336 = vld [vmem:[%s7 + $0x780] sm:$0xff]
        %v2337 = vld [vmem:[%s7 + $0x788] sm:$0xff]
        %v2338 = vld [vmem:[%s7 + $0x790] sm:$0xff]
        %v2339 = vld [vmem:[%s7 + $0x798] sm:$0xff]
        %v2340 = vld [vmem:[%s7 + $0x7a0] sm:$0xff]
        %v2341 = vld [vmem:[%s7 + $0x7a8] sm:$0xff]
        %v2342 = vld [vmem:[%s7 + $0x7b0] sm:$0xff]
        %v2343 = vld [vmem:[%s7 + $0x7b8] sm:$0xff]
        %v2344 = vld [vmem:[%s7 + $0x7c0] sm:$0xff]
        %v2345 = vld [vmem:[%s7 + $0x7c8] sm:$0xff]
        %v2346 = vld [vmem:[%s7 + $0x7d0] sm:$0xff]
        %v2347 = vld [vmem:[%s7 + $0x7d8] sm:$0xff]
        %v2348 = vld [vmem:[%s7 + $0x7e0] sm:$0xff]
        %v2349 = vld [vmem:[%s7 + $0x7e8] sm:$0xff]
        %v2350 = vld [vmem:[%s7 + $0x7f0] sm:$0xff]
        %v2351 = vld [vmem:[%s7 + $0x7f8] sm:$0xff]
        %v2352 = vld [vmem:[%s9] sm:$0xf]
        %v2609 = vunpack.c.l.b16 %v2096
        %v2610 = vunpack.c.h.b16 %v2096
        %v2611 = vunpack.c.l.b16 %v2097
        %v2612 = vunpack.c.h.b16 %v2097
        %v2613 = vunpack.c.l.b16 %v2098
        %v2614 = vunpack.c.h.b16 %v2098
        %v2615 = vunpack.c.l.b16 %v2099
        %v2616 = vunpack.c.h.b16 %v2099
        %v2617 = vunpack.c.l.b16 %v2100
        %v2618 = vunpack.c.h.b16 %v2100
        %v2619 = vunpack.c.l.b16 %v2101
        %v2620 = vunpack.c.h.b16 %v2101
        %v2621 = vunpack.c.l.b16 %v2102
        %v2622 = vunpack.c.h.b16 %v2102
        %v2623 = vunpack.c.l.b16 %v2103
        %v2624 = vunpack.c.h.b16 %v2103
        %v2625 = vunpack.c.l.b16 %v2104
        %v2626 = vunpack.c.h.b16 %v2104
        %v2627 = vunpack.c.l.b16 %v2105
        %v2628 = vunpack.c.h.b16 %v2105
        %v2629 = vunpack.c.l.b16 %v2106
        %v2630 = vunpack.c.h.b16 %v2106
        %v2631 = vunpack.c.l.b16 %v2107
        %v2632 = vunpack.c.h.b16 %v2107
        %v2633 = vunpack.c.l.b16 %v2108
        %v2634 = vunpack.c.h.b16 %v2108
        %v2635 = vunpack.c.l.b16 %v2109
        %v2636 = vunpack.c.h.b16 %v2109
        %v2637 = vunpack.c.l.b16 %v2110
        %v2638 = vunpack.c.h.b16 %v2110
        %v2639 = vunpack.c.l.b16 %v2111
        %v2640 = vunpack.c.h.b16 %v2111
        %v2641 = vunpack.c.l.b16 %v2112
        %v2642 = vunpack.c.h.b16 %v2112
        %v2643 = vunpack.c.l.b16 %v2113
        %v2644 = vunpack.c.h.b16 %v2113
        %v2645 = vunpack.c.l.b16 %v2114
        %v2646 = vunpack.c.h.b16 %v2114
        %v2647 = vunpack.c.l.b16 %v2115
        %v2648 = vunpack.c.h.b16 %v2115
        %v2649 = vunpack.c.l.b16 %v2116
        %v2650 = vunpack.c.h.b16 %v2116
        %v2651 = vunpack.c.l.b16 %v2117
        %v2652 = vunpack.c.h.b16 %v2117
        %v2653 = vunpack.c.l.b16 %v2118
        %v2654 = vunpack.c.h.b16 %v2118
        %v2655 = vunpack.c.l.b16 %v2119
        %v2656 = vunpack.c.h.b16 %v2119
        %v2657 = vunpack.c.l.b16 %v2120
        %v2658 = vunpack.c.h.b16 %v2120
        %v2659 = vunpack.c.l.b16 %v2121
        %v2660 = vunpack.c.h.b16 %v2121
        %v2661 = vunpack.c.l.b16 %v2122
        %v2662 = vunpack.c.h.b16 %v2122
        %v2663 = vunpack.c.l.b16 %v2123
        %v2664 = vunpack.c.h.b16 %v2123
        %v2665 = vunpack.c.l.b16 %v2124
        %v2666 = vunpack.c.h.b16 %v2124
        %v2667 = vunpack.c.l.b16 %v2125
        %v2668 = vunpack.c.h.b16 %v2125
        %v2669 = vunpack.c.l.b16 %v2126
        %v2670 = vunpack.c.h.b16 %v2126
        %v2671 = vunpack.c.l.b16 %v2127
        %v2672 = vunpack.c.h.b16 %v2127
        %v2673 = vunpack.c.l.b16 %v2128
        %v2674 = vunpack.c.h.b16 %v2128
        %v2675 = vunpack.c.l.b16 %v2129
        %v2676 = vunpack.c.h.b16 %v2129
        %v2677 = vunpack.c.l.b16 %v2130
        %v2678 = vunpack.c.h.b16 %v2130
        %v2679 = vunpack.c.l.b16 %v2131
        %v2680 = vunpack.c.h.b16 %v2131
        %v2681 = vunpack.c.l.b16 %v2132
        %v2682 = vunpack.c.h.b16 %v2132
        %v2683 = vunpack.c.l.b16 %v2133
        %v2684 = vunpack.c.h.b16 %v2133
        %v2685 = vunpack.c.l.b16 %v2134
        %v2686 = vunpack.c.h.b16 %v2134
        %v2687 = vunpack.c.l.b16 %v2135
        %v2688 = vunpack.c.h.b16 %v2135
        %v2689 = vunpack.c.l.b16 %v2136
        %v2690 = vunpack.c.h.b16 %v2136
        %v2691 = vunpack.c.l.b16 %v2137
        %v2692 = vunpack.c.h.b16 %v2137
        %v2693 = vunpack.c.l.b16 %v2138
        %v2694 = vunpack.c.h.b16 %v2138
        %v2695 = vunpack.c.l.b16 %v2139
        %v2696 = vunpack.c.h.b16 %v2139
        %v2697 = vunpack.c.l.b16 %v2140
        %v2698 = vunpack.c.h.b16 %v2140
        %v2699 = vunpack.c.l.b16 %v2141
        %v2700 = vunpack.c.h.b16 %v2141
        %v2701 = vunpack.c.l.b16 %v2142
        %v2702 = vunpack.c.h.b16 %v2142
        %v2703 = vunpack.c.l.b16 %v2143
        %v2704 = vunpack.c.h.b16 %v2143
        %v2705 = vunpack.c.l.b16 %v2144
        %v2706 = vunpack.c.h.b16 %v2144
        %v2707 = vunpack.c.l.b16 %v2145
        %v2708 = vunpack.c.h.b16 %v2145
        %v2709 = vunpack.c.l.b16 %v2146
        %v2710 = vunpack.c.h.b16 %v2146
        %v2711 = vunpack.c.l.b16 %v2147
        %v2712 = vunpack.c.h.b16 %v2147
        %v2713 = vunpack.c.l.b16 %v2148
        %v2714 = vunpack.c.h.b16 %v2148
        %v2715 = vunpack.c.l.b16 %v2149
        %v2716 = vunpack.c.h.b16 %v2149
        %v2717 = vunpack.c.l.b16 %v2150
        %v2718 = vunpack.c.h.b16 %v2150
        %v2719 = vunpack.c.l.b16 %v2151
        %v2720 = vunpack.c.h.b16 %v2151
        %v2721 = vunpack.c.l.b16 %v2152
        %v2722 = vunpack.c.h.b16 %v2152
        %v2723 = vunpack.c.l.b16 %v2153
        %v2724 = vunpack.c.h.b16 %v2153
        %v2725 = vunpack.c.l.b16 %v2154
        %v2726 = vunpack.c.h.b16 %v2154
        %v2727 = vunpack.c.l.b16 %v2155
        %v2728 = vunpack.c.h.b16 %v2155
        %v2729 = vunpack.c.l.b16 %v2156
        %v2730 = vunpack.c.h.b16 %v2156
        %v2731 = vunpack.c.l.b16 %v2157
        %v2732 = vunpack.c.h.b16 %v2157
        %v2733 = vunpack.c.l.b16 %v2158
        %v2734 = vunpack.c.h.b16 %v2158
        %v2735 = vunpack.c.l.b16 %v2159
        %v2736 = vunpack.c.h.b16 %v2159
        %v2737 = vunpack.c.l.b16 %v2160
        %v2738 = vunpack.c.h.b16 %v2160
        %v2739 = vunpack.c.l.b16 %v2161
        %v2740 = vunpack.c.h.b16 %v2161
        %v2741 = vunpack.c.l.b16 %v2162
        %v2742 = vunpack.c.h.b16 %v2162
        %v2743 = vunpack.c.l.b16 %v2163
        %v2744 = vunpack.c.h.b16 %v2163
        %v2745 = vunpack.c.l.b16 %v2164
        %v2746 = vunpack.c.h.b16 %v2164
        %v2747 = vunpack.c.l.b16 %v2165
        %v2748 = vunpack.c.h.b16 %v2165
        %v2749 = vunpack.c.l.b16 %v2166
        %v2750 = vunpack.c.h.b16 %v2166
        %v2751 = vunpack.c.l.b16 %v2167
        %v2752 = vunpack.c.h.b16 %v2167
        %v2753 = vunpack.c.l.b16 %v2168
        %v2754 = vunpack.c.h.b16 %v2168
        %v2755 = vunpack.c.l.b16 %v2169
        %v2756 = vunpack.c.h.b16 %v2169
        %v2757 = vunpack.c.l.b16 %v2170
        %v2758 = vunpack.c.h.b16 %v2170
        %v2759 = vunpack.c.l.b16 %v2171
        %v2760 = vunpack.c.h.b16 %v2171
        %v2761 = vunpack.c.l.b16 %v2172
        %v2762 = vunpack.c.h.b16 %v2172
        %v2763 = vunpack.c.l.b16 %v2173
        %v2764 = vunpack.c.h.b16 %v2173
        %v2765 = vunpack.c.l.b16 %v2174
        %v2766 = vunpack.c.h.b16 %v2174
        %v2767 = vunpack.c.l.b16 %v2175
        %v2768 = vunpack.c.h.b16 %v2175
        %v2769 = vunpack.c.l.b16 %v2176
        %v2770 = vunpack.c.h.b16 %v2176
        %v2771 = vunpack.c.l.b16 %v2177
        %v2772 = vunpack.c.h.b16 %v2177
        %v2773 = vunpack.c.l.b16 %v2178
        %v2774 = vunpack.c.h.b16 %v2178
        %v2775 = vunpack.c.l.b16 %v2179
        %v2776 = vunpack.c.h.b16 %v2179
        %v2777 = vunpack.c.l.b16 %v2180
        %v2778 = vunpack.c.h.b16 %v2180
        %v2779 = vunpack.c.l.b16 %v2181
        %v2780 = vunpack.c.h.b16 %v2181
        %v2781 = vunpack.c.l.b16 %v2182
        %v2782 = vunpack.c.h.b16 %v2182
        %v2783 = vunpack.c.l.b16 %v2183
        %v2784 = vunpack.c.h.b16 %v2183
        %v2785 = vunpack.c.l.b16 %v2184
        %v2786 = vunpack.c.h.b16 %v2184
        %v2787 = vunpack.c.l.b16 %v2185
        %v2788 = vunpack.c.h.b16 %v2185
        %v2789 = vunpack.c.l.b16 %v2186
        %v2790 = vunpack.c.h.b16 %v2186
        %v2791 = vunpack.c.l.b16 %v2187
        %v2792 = vunpack.c.h.b16 %v2187
        %v2793 = vunpack.c.l.b16 %v2188
        %v2794 = vunpack.c.h.b16 %v2188
        %v2795 = vunpack.c.l.b16 %v2189
        %v2796 = vunpack.c.h.b16 %v2189
        %v2797 = vunpack.c.l.b16 %v2190
        %v2798 = vunpack.c.h.b16 %v2190
        %v2799 = vunpack.c.l.b16 %v2191
        %v2800 = vunpack.c.h.b16 %v2191
        %v2801 = vunpack.c.l.b16 %v2192
        %v2802 = vunpack.c.h.b16 %v2192
        %v2803 = vunpack.c.l.b16 %v2193
        %v2804 = vunpack.c.h.b16 %v2193
        %v2805 = vunpack.c.l.b16 %v2194
        %v2806 = vunpack.c.h.b16 %v2194
        %v2807 = vunpack.c.l.b16 %v2195
        %v2808 = vunpack.c.h.b16 %v2195
        %v2809 = vunpack.c.l.b16 %v2196
        %v2810 = vunpack.c.h.b16 %v2196
        %v2811 = vunpack.c.l.b16 %v2197
        %v2812 = vunpack.c.h.b16 %v2197
        %v2813 = vunpack.c.l.b16 %v2198
        %v2814 = vunpack.c.h.b16 %v2198
        %v2815 = vunpack.c.l.b16 %v2199
        %v2816 = vunpack.c.h.b16 %v2199
        %v2817 = vunpack.c.l.b16 %v2200
        %v2818 = vunpack.c.h.b16 %v2200
        %v2819 = vunpack.c.l.b16 %v2201
        %v2820 = vunpack.c.h.b16 %v2201
        %v2821 = vunpack.c.l.b16 %v2202
        %v2822 = vunpack.c.h.b16 %v2202
        %v2823 = vunpack.c.l.b16 %v2203
        %v2824 = vunpack.c.h.b16 %v2203
        %v2825 = vunpack.c.l.b16 %v2204
        %v2826 = vunpack.c.h.b16 %v2204
        %v2827 = vunpack.c.l.b16 %v2205
        %v2828 = vunpack.c.h.b16 %v2205
        %v2829 = vunpack.c.l.b16 %v2206
        %v2830 = vunpack.c.h.b16 %v2206
        %v2831 = vunpack.c.l.b16 %v2207
        %v2832 = vunpack.c.h.b16 %v2207
        %v2833 = vunpack.c.l.b16 %v2208
        %v2834 = vunpack.c.h.b16 %v2208
        %v2835 = vunpack.c.l.b16 %v2209
        %v2836 = vunpack.c.h.b16 %v2209
        %v2837 = vunpack.c.l.b16 %v2210
        %v2838 = vunpack.c.h.b16 %v2210
        %v2839 = vunpack.c.l.b16 %v2211
        %v2840 = vunpack.c.h.b16 %v2211
        %v2841 = vunpack.c.l.b16 %v2212
        %v2842 = vunpack.c.h.b16 %v2212
        %v2843 = vunpack.c.l.b16 %v2213
        %v2844 = vunpack.c.h.b16 %v2213
        %v2845 = vunpack.c.l.b16 %v2214
        %v2846 = vunpack.c.h.b16 %v2214
        %v2847 = vunpack.c.l.b16 %v2215
        %v2848 = vunpack.c.h.b16 %v2215
        %v2849 = vunpack.c.l.b16 %v2216
        %v2850 = vunpack.c.h.b16 %v2216
        %v2851 = vunpack.c.l.b16 %v2217
        %v2852 = vunpack.c.h.b16 %v2217
        %v2853 = vunpack.c.l.b16 %v2218
        %v2854 = vunpack.c.h.b16 %v2218
        %v2855 = vunpack.c.l.b16 %v2219
        %v2856 = vunpack.c.h.b16 %v2219
        %v2857 = vunpack.c.l.b16 %v2220
        %v2858 = vunpack.c.h.b16 %v2220
        %v2859 = vunpack.c.l.b16 %v2221
        %v2860 = vunpack.c.h.b16 %v2221
        %v2861 = vunpack.c.l.b16 %v2222
        %v2862 = vunpack.c.h.b16 %v2222
        %v2863 = vunpack.c.l.b16 %v2223
        %v2864 = vunpack.c.h.b16 %v2223
        %v2865 = vunpack.c.l.b16 %v2224
        %v2866 = vunpack.c.h.b16 %v2224
        %v2867 = vunpack.c.l.b16 %v2225
        %v2868 = vunpack.c.h.b16 %v2225
        %v2869 = vunpack.c.l.b16 %v2226
        %v2870 = vunpack.c.h.b16 %v2226
        %v2871 = vunpack.c.l.b16 %v2227
        %v2872 = vunpack.c.h.b16 %v2227
        %v2873 = vunpack.c.l.b16 %v2228
        %v2874 = vunpack.c.h.b16 %v2228
        %v2875 = vunpack.c.l.b16 %v2229
        %v2876 = vunpack.c.h.b16 %v2229
        %v2877 = vunpack.c.l.b16 %v2230
        %v2878 = vunpack.c.h.b16 %v2230
        %v2879 = vunpack.c.l.b16 %v2231
        %v2880 = vunpack.c.h.b16 %v2231
        %v2881 = vunpack.c.l.b16 %v2232
        %v2882 = vunpack.c.h.b16 %v2232
        %v2883 = vunpack.c.l.b16 %v2233
        %v2884 = vunpack.c.h.b16 %v2233
        %v2885 = vunpack.c.l.b16 %v2234
        %v2886 = vunpack.c.h.b16 %v2234
        %v2887 = vunpack.c.l.b16 %v2235
        %v2888 = vunpack.c.h.b16 %v2235
        %v2889 = vunpack.c.l.b16 %v2236
        %v2890 = vunpack.c.h.b16 %v2236
        %v2891 = vunpack.c.l.b16 %v2237
        %v2892 = vunpack.c.h.b16 %v2237
        %v2893 = vunpack.c.l.b16 %v2238
        %v2894 = vunpack.c.h.b16 %v2238
        %v2895 = vunpack.c.l.b16 %v2239
        %v2896 = vunpack.c.h.b16 %v2239
        %v2897 = vunpack.c.l.b16 %v2240
        %v2898 = vunpack.c.h.b16 %v2240
        %v2899 = vunpack.c.l.b16 %v2241
        %v2900 = vunpack.c.h.b16 %v2241
        %v2901 = vunpack.c.l.b16 %v2242
        %v2902 = vunpack.c.h.b16 %v2242
        %v2903 = vunpack.c.l.b16 %v2243
        %v2904 = vunpack.c.h.b16 %v2243
        %v2905 = vunpack.c.l.b16 %v2244
        %v2906 = vunpack.c.h.b16 %v2244
        %v2907 = vunpack.c.l.b16 %v2245
        %v2908 = vunpack.c.h.b16 %v2245
        %v2909 = vunpack.c.l.b16 %v2246
        %v2910 = vunpack.c.h.b16 %v2246
        %v2911 = vunpack.c.l.b16 %v2247
        %v2912 = vunpack.c.h.b16 %v2247
        %v2913 = vunpack.c.l.b16 %v2248
        %v2914 = vunpack.c.h.b16 %v2248
        %v2915 = vunpack.c.l.b16 %v2249
        %v2916 = vunpack.c.h.b16 %v2249
        %v2917 = vunpack.c.l.b16 %v2250
        %v2918 = vunpack.c.h.b16 %v2250
        %v2919 = vunpack.c.l.b16 %v2251
        %v2920 = vunpack.c.h.b16 %v2251
        %v2921 = vunpack.c.l.b16 %v2252
        %v2922 = vunpack.c.h.b16 %v2252
        %v2923 = vunpack.c.l.b16 %v2253
        %v2924 = vunpack.c.h.b16 %v2253
        %v2925 = vunpack.c.l.b16 %v2254
        %v2926 = vunpack.c.h.b16 %v2254
        %v2927 = vunpack.c.l.b16 %v2255
        %v2928 = vunpack.c.h.b16 %v2255
        %v2929 = vunpack.c.l.b16 %v2256
        %v2930 = vunpack.c.h.b16 %v2256
        %v2931 = vunpack.c.l.b16 %v2257
        %v2932 = vunpack.c.h.b16 %v2257
        %v2933 = vunpack.c.l.b16 %v2258
        %v2934 = vunpack.c.h.b16 %v2258
        %v2935 = vunpack.c.l.b16 %v2259
        %v2936 = vunpack.c.h.b16 %v2259
        %v2937 = vunpack.c.l.b16 %v2260
        %v2938 = vunpack.c.h.b16 %v2260
        %v2939 = vunpack.c.l.b16 %v2261
        %v2940 = vunpack.c.h.b16 %v2261
        %v2941 = vunpack.c.l.b16 %v2262
        %v2942 = vunpack.c.h.b16 %v2262
        %v2943 = vunpack.c.l.b16 %v2263
        %v2944 = vunpack.c.h.b16 %v2263
        %v2945 = vunpack.c.l.b16 %v2264
        %v2946 = vunpack.c.h.b16 %v2264
        %v2947 = vunpack.c.l.b16 %v2265
        %v2948 = vunpack.c.h.b16 %v2265
        %v2949 = vunpack.c.l.b16 %v2266
        %v2950 = vunpack.c.h.b16 %v2266
        %v2951 = vunpack.c.l.b16 %v2267
        %v2952 = vunpack.c.h.b16 %v2267
        %v2953 = vunpack.c.l.b16 %v2268
        %v2954 = vunpack.c.h.b16 %v2268
        %v2955 = vunpack.c.l.b16 %v2269
        %v2956 = vunpack.c.h.b16 %v2269
        %v2957 = vunpack.c.l.b16 %v2270
        %v2958 = vunpack.c.h.b16 %v2270
        %v2959 = vunpack.c.l.b16 %v2271
        %v2960 = vunpack.c.h.b16 %v2271
        %v2961 = vunpack.c.l.b16 %v2272
        %v2962 = vunpack.c.h.b16 %v2272
        %v2963 = vunpack.c.l.b16 %v2273
        %v2964 = vunpack.c.h.b16 %v2273
        %v2965 = vunpack.c.l.b16 %v2274
        %v2966 = vunpack.c.h.b16 %v2274
        %v2967 = vunpack.c.l.b16 %v2275
        %v2968 = vunpack.c.h.b16 %v2275
        %v2969 = vunpack.c.l.b16 %v2276
        %v2970 = vunpack.c.h.b16 %v2276
        %v2971 = vunpack.c.l.b16 %v2277
        %v2972 = vunpack.c.h.b16 %v2277
        %v2973 = vunpack.c.l.b16 %v2278
        %v2974 = vunpack.c.h.b16 %v2278
        %v2975 = vunpack.c.l.b16 %v2279
        %v2976 = vunpack.c.h.b16 %v2279
        %v2977 = vunpack.c.l.b16 %v2280
        %v2978 = vunpack.c.h.b16 %v2280
        %v2979 = vunpack.c.l.b16 %v2281
        %v2980 = vunpack.c.h.b16 %v2281
        %v2981 = vunpack.c.l.b16 %v2282
        %v2982 = vunpack.c.h.b16 %v2282
        %v2983 = vunpack.c.l.b16 %v2283
        %v2984 = vunpack.c.h.b16 %v2283
        %v2985 = vunpack.c.l.b16 %v2284
        %v2986 = vunpack.c.h.b16 %v2284
        %v2987 = vunpack.c.l.b16 %v2285
        %v2988 = vunpack.c.h.b16 %v2285
        %v2989 = vunpack.c.l.b16 %v2286
        %v2990 = vunpack.c.h.b16 %v2286
        %v2991 = vunpack.c.l.b16 %v2287
        %v2992 = vunpack.c.h.b16 %v2287
        %v2993 = vunpack.c.l.b16 %v2288
        %v2994 = vunpack.c.h.b16 %v2288
        %v2995 = vunpack.c.l.b16 %v2289
        %v2996 = vunpack.c.h.b16 %v2289
        %v2997 = vunpack.c.l.b16 %v2290
        %v2998 = vunpack.c.h.b16 %v2290
        %v2999 = vunpack.c.l.b16 %v2291
        %v3000 = vunpack.c.h.b16 %v2291
        %v3001 = vunpack.c.l.b16 %v2292
        %v3002 = vunpack.c.h.b16 %v2292
        %v3003 = vunpack.c.l.b16 %v2293
        %v3004 = vunpack.c.h.b16 %v2293
        %v3005 = vunpack.c.l.b16 %v2294
        %v3006 = vunpack.c.h.b16 %v2294
        %v3007 = vunpack.c.l.b16 %v2295
        %v3008 = vunpack.c.h.b16 %v2295
        %v3009 = vunpack.c.l.b16 %v2296
        %v3010 = vunpack.c.h.b16 %v2296
        %v3011 = vunpack.c.l.b16 %v2297
        %v3012 = vunpack.c.h.b16 %v2297
        %v3013 = vunpack.c.l.b16 %v2298
        %v3014 = vunpack.c.h.b16 %v2298
        %v3015 = vunpack.c.l.b16 %v2299
        %v3016 = vunpack.c.h.b16 %v2299
        %v3017 = vunpack.c.l.b16 %v2300
        %v3018 = vunpack.c.h.b16 %v2300
        %v3019 = vunpack.c.l.b16 %v2301
        %v3020 = vunpack.c.h.b16 %v2301
        %v3021 = vunpack.c.l.b16 %v2302
        %v3022 = vunpack.c.h.b16 %v2302
        %v3023 = vunpack.c.l.b16 %v2303
        %v3024 = vunpack.c.h.b16 %v2303
        %v3025 = vunpack.c.l.b16 %v2304
        %v3026 = vunpack.c.h.b16 %v2304
        %v3027 = vunpack.c.l.b16 %v2305
        %v3028 = vunpack.c.h.b16 %v2305
        %v3029 = vunpack.c.l.b16 %v2306
        %v3030 = vunpack.c.h.b16 %v2306
        %v3031 = vunpack.c.l.b16 %v2307
        %v3032 = vunpack.c.h.b16 %v2307
        %v3033 = vunpack.c.l.b16 %v2308
        %v3034 = vunpack.c.h.b16 %v2308
        %v3035 = vunpack.c.l.b16 %v2309
        %v3036 = vunpack.c.h.b16 %v2309
        %v3037 = vunpack.c.l.b16 %v2310
        %v3038 = vunpack.c.h.b16 %v2310
        %v3039 = vunpack.c.l.b16 %v2311
        %v3040 = vunpack.c.h.b16 %v2311
        %v3041 = vunpack.c.l.b16 %v2312
        %v3042 = vunpack.c.h.b16 %v2312
        %v3043 = vunpack.c.l.b16 %v2313
        %v3044 = vunpack.c.h.b16 %v2313
        %v3045 = vunpack.c.l.b16 %v2314
        %v3046 = vunpack.c.h.b16 %v2314
        %v3047 = vunpack.c.l.b16 %v2315
        %v3048 = vunpack.c.h.b16 %v2315
        %v3049 = vunpack.c.l.b16 %v2316
        %v3050 = vunpack.c.h.b16 %v2316
        %v3051 = vunpack.c.l.b16 %v2317
        %v3052 = vunpack.c.h.b16 %v2317
        %v3053 = vunpack.c.l.b16 %v2318
        %v3054 = vunpack.c.h.b16 %v2318
        %v3055 = vunpack.c.l.b16 %v2319
        %v3056 = vunpack.c.h.b16 %v2319
        %v3057 = vunpack.c.l.b16 %v2320
        %v3058 = vunpack.c.h.b16 %v2320
        %v3059 = vunpack.c.l.b16 %v2321
        %v3060 = vunpack.c.h.b16 %v2321
        %v3061 = vunpack.c.l.b16 %v2322
        %v3062 = vunpack.c.h.b16 %v2322
        %v3063 = vunpack.c.l.b16 %v2323
        %v3064 = vunpack.c.h.b16 %v2323
        %v3065 = vunpack.c.l.b16 %v2324
        %v3066 = vunpack.c.h.b16 %v2324
        %v3067 = vunpack.c.l.b16 %v2325
        %v3068 = vunpack.c.h.b16 %v2325
        %v3069 = vunpack.c.l.b16 %v2326
        %v3070 = vunpack.c.h.b16 %v2326
        %v3071 = vunpack.c.l.b16 %v2327
        %v3072 = vunpack.c.h.b16 %v2327
        %v3073 = vunpack.c.l.b16 %v2328
        %v3074 = vunpack.c.h.b16 %v2328
        %v3075 = vunpack.c.l.b16 %v2329
        %v3076 = vunpack.c.h.b16 %v2329
        %v3077 = vunpack.c.l.b16 %v2330
        %v3078 = vunpack.c.h.b16 %v2330
        %v3079 = vunpack.c.l.b16 %v2331
        %v3080 = vunpack.c.h.b16 %v2331
        %v3081 = vunpack.c.l.b16 %v2332
        %v3082 = vunpack.c.h.b16 %v2332
        %v3083 = vunpack.c.l.b16 %v2333
        %v3084 = vunpack.c.h.b16 %v2333
        %v3085 = vunpack.c.l.b16 %v2334
        %v3086 = vunpack.c.h.b16 %v2334
        %v3087 = vunpack.c.l.b16 %v2335
        %v3088 = vunpack.c.h.b16 %v2335
        %v3089 = vunpack.c.l.b16 %v2336
        %v3090 = vunpack.c.h.b16 %v2336
        %v3091 = vunpack.c.l.b16 %v2337
        %v3092 = vunpack.c.h.b16 %v2337
        %v3093 = vunpack.c.l.b16 %v2338
        %v3094 = vunpack.c.h.b16 %v2338
        %v3095 = vunpack.c.l.b16 %v2339
        %v3096 = vunpack.c.h.b16 %v2339
        %v3097 = vunpack.c.l.b16 %v2340
        %v3098 = vunpack.c.h.b16 %v2340
        %v3099 = vunpack.c.l.b16 %v2341
        %v3100 = vunpack.c.h.b16 %v2341
        %v3101 = vunpack.c.l.b16 %v2342
        %v3102 = vunpack.c.h.b16 %v2342
        %v3103 = vunpack.c.l.b16 %v2343
        %v3104 = vunpack.c.h.b16 %v2343
        %v3105 = vunpack.c.l.b16 %v2344
        %v3106 = vunpack.c.h.b16 %v2344
        %v3107 = vunpack.c.l.b16 %v2345
        %v3108 = vunpack.c.h.b16 %v2345
        %v3109 = vunpack.c.l.b16 %v2346
        %v3110 = vunpack.c.h.b16 %v2346
        %v3111 = vunpack.c.l.b16 %v2347
        %v3112 = vunpack.c.h.b16 %v2347
        %v3113 = vunpack.c.l.b16 %v2348
        %v3114 = vunpack.c.h.b16 %v2348
        %v3115 = vunpack.c.l.b16 %v2349
        %v3116 = vunpack.c.h.b16 %v2349
        %v3117 = vunpack.c.l.b16 %v2350
        %v3118 = vunpack.c.h.b16 %v2350
        %v3119 = vunpack.c.l.b16 %v2351
        %v3120 = vunpack.c.h.b16 %v2351
        %v3121 = vpack.c.b16 %v2613, %v2609
        %v3122 = vpack.c.b16 %v2614, %v2610
        %v3123 = vpack.c.b16 %v2615, %v2611
        %v3124 = vpack.c.b16 %v2616, %v2612
        %v3125 = vpack.c.b16 %v2621, %v2617
        %v3126 = vpack.c.b16 %v2622, %v2618
        %v3127 = vpack.c.b16 %v2623, %v2619
        %v3128 = vpack.c.b16 %v2624, %v2620
        %v3129 = vpack.c.b16 %v2629, %v2625
        %v3130 = vpack.c.b16 %v2630, %v2626
        %v3131 = vpack.c.b16 %v2631, %v2627
        %v3132 = vpack.c.b16 %v2632, %v2628
        %v3133 = vpack.c.b16 %v2637, %v2633
        %v3134 = vpack.c.b16 %v2638, %v2634
        %v3135 = vpack.c.b16 %v2639, %v2635
        %v3136 = vpack.c.b16 %v2640, %v2636
        %v3137 = vpack.c.b16 %v2645, %v2641
        %v3138 = vpack.c.b16 %v2646, %v2642
        %v3139 = vpack.c.b16 %v2647, %v2643
        %v3140 = vpack.c.b16 %v2648, %v2644
        %v3141 = vpack.c.b16 %v2653, %v2649
        %v3142 = vpack.c.b16 %v2654, %v2650
        %v3143 = vpack.c.b16 %v2655, %v2651
        %v3144 = vpack.c.b16 %v2656, %v2652
        %v3145 = vpack.c.b16 %v2661, %v2657
        %v3146 = vpack.c.b16 %v2662, %v2658
        %v3147 = vpack.c.b16 %v2663, %v2659
        %v3148 = vpack.c.b16 %v2664, %v2660
        %v3149 = vpack.c.b16 %v2669, %v2665
        %v3150 = vpack.c.b16 %v2670, %v2666
        %v3151 = vpack.c.b16 %v2671, %v2667
        %v3152 = vpack.c.b16 %v2672, %v2668
        %v3153 = vpack.c.b16 %v2677, %v2673
        %v3154 = vpack.c.b16 %v2678, %v2674
        %v3155 = vpack.c.b16 %v2679, %v2675
        %v3156 = vpack.c.b16 %v2680, %v2676
        %v3157 = vpack.c.b16 %v2685, %v2681
        %v3158 = vpack.c.b16 %v2686, %v2682
        %v3159 = vpack.c.b16 %v2687, %v2683
        %v3160 = vpack.c.b16 %v2688, %v2684
        %v3161 = vpack.c.b16 %v2693, %v2689
        %v3162 = vpack.c.b16 %v2694, %v2690
        %v3163 = vpack.c.b16 %v2695, %v2691
        %v3164 = vpack.c.b16 %v2696, %v2692
        %v3165 = vpack.c.b16 %v2701, %v2697
        %v3166 = vpack.c.b16 %v2702, %v2698
        %v3167 = vpack.c.b16 %v2703, %v2699
        %v3168 = vpack.c.b16 %v2704, %v2700
        %v3169 = vpack.c.b16 %v2709, %v2705
        %v3170 = vpack.c.b16 %v2710, %v2706
        %v3171 = vpack.c.b16 %v2711, %v2707
        %v3172 = vpack.c.b16 %v2712, %v2708
        %v3173 = vpack.c.b16 %v2717, %v2713
        %v3174 = vpack.c.b16 %v2718, %v2714
        %v3175 = vpack.c.b16 %v2719, %v2715
        %v3176 = vpack.c.b16 %v2720, %v2716
        %v3177 = vpack.c.b16 %v2725, %v2721
        %v3178 = vpack.c.b16 %v2726, %v2722
        %v3179 = vpack.c.b16 %v2727, %v2723
        %v3180 = vpack.c.b16 %v2728, %v2724
        %v3181 = vpack.c.b16 %v2733, %v2729
        %v3182 = vpack.c.b16 %v2734, %v2730
        %v3183 = vpack.c.b16 %v2735, %v2731
        %v3184 = vpack.c.b16 %v2736, %v2732
        %v3185 = vpack.c.b16 %v2741, %v2737
        %v3186 = vpack.c.b16 %v2742, %v2738
        %v3187 = vpack.c.b16 %v2743, %v2739
        %v3188 = vpack.c.b16 %v2744, %v2740
        %v3189 = vpack.c.b16 %v2749, %v2745
        %v3190 = vpack.c.b16 %v2750, %v2746
        %v3191 = vpack.c.b16 %v2751, %v2747
        %v3192 = vpack.c.b16 %v2752, %v2748
        %v3193 = vpack.c.b16 %v2757, %v2753
        %v3194 = vpack.c.b16 %v2758, %v2754
        %v3195 = vpack.c.b16 %v2759, %v2755
        %v3196 = vpack.c.b16 %v2760, %v2756
        %v3197 = vpack.c.b16 %v2765, %v2761
        %v3198 = vpack.c.b16 %v2766, %v2762
        %v3199 = vpack.c.b16 %v2767, %v2763
        %v3200 = vpack.c.b16 %v2768, %v2764
        %v3201 = vpack.c.b16 %v2773, %v2769
        %v3202 = vpack.c.b16 %v2774, %v2770
        %v3203 = vpack.c.b16 %v2775, %v2771
        %v3204 = vpack.c.b16 %v2776, %v2772
        %v3205 = vpack.c.b16 %v2781, %v2777
        %v3206 = vpack.c.b16 %v2782, %v2778
        %v3207 = vpack.c.b16 %v2783, %v2779
        %v3208 = vpack.c.b16 %v2784, %v2780
        %v3209 = vpack.c.b16 %v2789, %v2785
        %v3210 = vpack.c.b16 %v2790, %v2786
        %v3211 = vpack.c.b16 %v2791, %v2787
        %v3212 = vpack.c.b16 %v2792, %v2788
        %v3213 = vpack.c.b16 %v2797, %v2793
        %v3214 = vpack.c.b16 %v2798, %v2794
        %v3215 = vpack.c.b16 %v2799, %v2795
        %v3216 = vpack.c.b16 %v2800, %v2796
        %v3217 = vpack.c.b16 %v2805, %v2801
        %v3218 = vpack.c.b16 %v2806, %v2802
        %v3219 = vpack.c.b16 %v2807, %v2803
        %v3220 = vpack.c.b16 %v2808, %v2804
        %v3221 = vpack.c.b16 %v2813, %v2809
        %v3222 = vpack.c.b16 %v2814, %v2810
        %v3223 = vpack.c.b16 %v2815, %v2811
        %v3224 = vpack.c.b16 %v2816, %v2812
        %v3225 = vpack.c.b16 %v2821, %v2817
        %v3226 = vpack.c.b16 %v2822, %v2818
        %v3227 = vpack.c.b16 %v2823, %v2819
        %v3228 = vpack.c.b16 %v2824, %v2820
        %v3229 = vpack.c.b16 %v2829, %v2825
        %v3230 = vpack.c.b16 %v2830, %v2826
        %v3231 = vpack.c.b16 %v2831, %v2827
        %v3232 = vpack.c.b16 %v2832, %v2828
        %v3233 = vpack.c.b16 %v2837, %v2833
        %v3234 = vpack.c.b16 %v2838, %v2834
        %v3235 = vpack.c.b16 %v2839, %v2835
        %v3236 = vpack.c.b16 %v2840, %v2836
        %v3237 = vpack.c.b16 %v2845, %v2841
        %v3238 = vpack.c.b16 %v2846, %v2842
        %v3239 = vpack.c.b16 %v2847, %v2843
        %v3240 = vpack.c.b16 %v2848, %v2844
        %v3241 = vpack.c.b16 %v2853, %v2849
        %v3242 = vpack.c.b16 %v2854, %v2850
        %v3243 = vpack.c.b16 %v2855, %v2851
        %v3244 = vpack.c.b16 %v2856, %v2852
        %v3245 = vpack.c.b16 %v2861, %v2857
        %v3246 = vpack.c.b16 %v2862, %v2858
        %v3247 = vpack.c.b16 %v2863, %v2859
        %v3248 = vpack.c.b16 %v2864, %v2860
        %v3249 = vpack.c.b16 %v2869, %v2865
        %v3250 = vpack.c.b16 %v2870, %v2866
        %v3251 = vpack.c.b16 %v2871, %v2867
        %v3252 = vpack.c.b16 %v2872, %v2868
        %v3253 = vpack.c.b16 %v2877, %v2873
        %v3254 = vpack.c.b16 %v2878, %v2874
        %v3255 = vpack.c.b16 %v2879, %v2875
        %v3256 = vpack.c.b16 %v2880, %v2876
        %v3257 = vpack.c.b16 %v2885, %v2881
        %v3258 = vpack.c.b16 %v2886, %v2882
        %v3259 = vpack.c.b16 %v2887, %v2883
        %v3260 = vpack.c.b16 %v2888, %v2884
        %v3261 = vpack.c.b16 %v2893, %v2889
        %v3262 = vpack.c.b16 %v2894, %v2890
        %v3263 = vpack.c.b16 %v2895, %v2891
        %v3264 = vpack.c.b16 %v2896, %v2892
        %v3265 = vpack.c.b16 %v2901, %v2897
        %v3266 = vpack.c.b16 %v2902, %v2898
        %v3267 = vpack.c.b16 %v2903, %v2899
        %v3268 = vpack.c.b16 %v2904, %v2900
        %v3269 = vpack.c.b16 %v2909, %v2905
        %v3270 = vpack.c.b16 %v2910, %v2906
        %v3271 = vpack.c.b16 %v2911, %v2907
        %v3272 = vpack.c.b16 %v2912, %v2908
        %v3273 = vpack.c.b16 %v2917, %v2913
        %v3274 = vpack.c.b16 %v2918, %v2914
        %v3275 = vpack.c.b16 %v2919, %v2915
        %v3276 = vpack.c.b16 %v2920, %v2916
        %v3277 = vpack.c.b16 %v2925, %v2921
        %v3278 = vpack.c.b16 %v2926, %v2922
        %v3279 = vpack.c.b16 %v2927, %v2923
        %v3280 = vpack.c.b16 %v2928, %v2924
        %v3281 = vpack.c.b16 %v2933, %v2929
        %v3282 = vpack.c.b16 %v2934, %v2930
        %v3283 = vpack.c.b16 %v2935, %v2931
        %v3284 = vpack.c.b16 %v2936, %v2932
        %v3285 = vpack.c.b16 %v2941, %v2937
        %v3286 = vpack.c.b16 %v2942, %v2938
        %v3287 = vpack.c.b16 %v2943, %v2939
        %v3288 = vpack.c.b16 %v2944, %v2940
        %v3289 = vpack.c.b16 %v2949, %v2945
        %v3290 = vpack.c.b16 %v2950, %v2946
        %v3291 = vpack.c.b16 %v2951, %v2947
        %v3292 = vpack.c.b16 %v2952, %v2948
        %v3293 = vpack.c.b16 %v2957, %v2953
        %v3294 = vpack.c.b16 %v2958, %v2954
        %v3295 = vpack.c.b16 %v2959, %v2955
        %v3296 = vpack.c.b16 %v2960, %v2956
        %v3297 = vpack.c.b16 %v2965, %v2961
        %v3298 = vpack.c.b16 %v2966, %v2962
        %v3299 = vpack.c.b16 %v2967, %v2963
        %v3300 = vpack.c.b16 %v2968, %v2964
        %v3301 = vpack.c.b16 %v2973, %v2969
        %v3302 = vpack.c.b16 %v2974, %v2970
        %v3303 = vpack.c.b16 %v2975, %v2971
        %v3304 = vpack.c.b16 %v2976, %v2972
        %v3305 = vpack.c.b16 %v2981, %v2977
        %v3306 = vpack.c.b16 %v2982, %v2978
        %v3307 = vpack.c.b16 %v2983, %v2979
        %v3308 = vpack.c.b16 %v2984, %v2980
        %v3309 = vpack.c.b16 %v2989, %v2985
        %v3310 = vpack.c.b16 %v2990, %v2986
        %v3311 = vpack.c.b16 %v2991, %v2987
        %v3312 = vpack.c.b16 %v2992, %v2988
        %v3313 = vpack.c.b16 %v2997, %v2993
        %v3314 = vpack.c.b16 %v2998, %v2994
        %v3315 = vpack.c.b16 %v2999, %v2995
        %v3316 = vpack.c.b16 %v3000, %v2996
        %v3317 = vpack.c.b16 %v3005, %v3001
        %v3318 = vpack.c.b16 %v3006, %v3002
        %v3319 = vpack.c.b16 %v3007, %v3003
        %v3320 = vpack.c.b16 %v3008, %v3004
        %v3321 = vpack.c.b16 %v3013, %v3009
        %v3322 = vpack.c.b16 %v3014, %v3010
        %v3323 = vpack.c.b16 %v3015, %v3011
        %v3324 = vpack.c.b16 %v3016, %v3012
        %v3325 = vpack.c.b16 %v3021, %v3017
        %v3326 = vpack.c.b16 %v3022, %v3018
        %v3327 = vpack.c.b16 %v3023, %v3019
        %v3328 = vpack.c.b16 %v3024, %v3020
        %v3329 = vpack.c.b16 %v3029, %v3025
        %v3330 = vpack.c.b16 %v3030, %v3026
        %v3331 = vpack.c.b16 %v3031, %v3027
        %v3332 = vpack.c.b16 %v3032, %v3028
        %v3333 = vpack.c.b16 %v3037, %v3033
        %v3334 = vpack.c.b16 %v3038, %v3034
        %v3335 = vpack.c.b16 %v3039, %v3035
        %v3336 = vpack.c.b16 %v3040, %v3036
        %v3337 = vpack.c.b16 %v3045, %v3041
        %v3338 = vpack.c.b16 %v3046, %v3042
        %v3339 = vpack.c.b16 %v3047, %v3043
        %v3340 = vpack.c.b16 %v3048, %v3044
        %v3341 = vpack.c.b16 %v3053, %v3049
        %v3342 = vpack.c.b16 %v3054, %v3050
        %v3343 = vpack.c.b16 %v3055, %v3051
        %v3344 = vpack.c.b16 %v3056, %v3052
        %v3345 = vpack.c.b16 %v3061, %v3057
        %v3346 = vpack.c.b16 %v3062, %v3058
        %v3347 = vpack.c.b16 %v3063, %v3059
        %v3348 = vpack.c.b16 %v3064, %v3060
        %v3349 = vpack.c.b16 %v3069, %v3065
        %v3350 = vpack.c.b16 %v3070, %v3066
        %v3351 = vpack.c.b16 %v3071, %v3067
        %v3352 = vpack.c.b16 %v3072, %v3068
        %v3353 = vpack.c.b16 %v3077, %v3073
        %v3354 = vpack.c.b16 %v3078, %v3074
        %v3355 = vpack.c.b16 %v3079, %v3075
        %v3356 = vpack.c.b16 %v3080, %v3076
        %v3357 = vpack.c.b16 %v3085, %v3081
        %v3358 = vpack.c.b16 %v3086, %v3082
        %v3359 = vpack.c.b16 %v3087, %v3083
        %v3360 = vpack.c.b16 %v3088, %v3084
        %v3361 = vpack.c.b16 %v3093, %v3089
        %v3362 = vpack.c.b16 %v3094, %v3090
        %v3363 = vpack.c.b16 %v3095, %v3091
        %v3364 = vpack.c.b16 %v3096, %v3092
        %v3365 = vpack.c.b16 %v3101, %v3097
        %v3366 = vpack.c.b16 %v3102, %v3098
        %v3367 = vpack.c.b16 %v3103, %v3099
        %v3368 = vpack.c.b16 %v3104, %v3100
        %v3369 = vpack.c.b16 %v3109, %v3105
        %v3370 = vpack.c.b16 %v3110, %v3106
        %v3371 = vpack.c.b16 %v3111, %v3107
        %v3372 = vpack.c.b16 %v3112, %v3108
        %v3373 = vpack.c.b16 %v3117, %v3113
        %v3374 = vpack.c.b16 %v3118, %v3114
        %v3375 = vpack.c.b16 %v3119, %v3115
        %v3376 = vpack.c.b16 %v3120, %v3116
        %v3634 = vlaneseq
        %v3635 = vshrl.u32 %v3634, 7
        %v3636 = vsub.s32 0, %v3635
        %v3637 = vrot.slane %v2352, %v3636
        %v3638 = vlaneseq
        %v3639 = vshrl.u32 %v3638, 7
        %v3640 = vsub.s32 1, %v3639
        %v3641 = vrot.slane %v2352, %v3640
        %v3642 = vlaneseq
        %v3643 = vshrl.u32 %v3642, 7
        %v3644 = vsub.s32 2, %v3643
        %v3645 = vrot.slane %v2352, %v3644
        %v3646 = vlaneseq
        %v3647 = vshrl.u32 %v3646, 7
        %v3648 = vsub.s32 3, %v3647
        %v3649 = vrot.slane %v2352, %v3648
        %3654 = vmatprep.subr.bf16.mxu0 %v3150
        %3655 = vmatpush1.bf16.msra.mxu0 %v3149
        %3656 = vmatprep.subr.bf16.mxu0 %v3146
        %3657 = vmatpush1.bf16.msra.mxu0 %v3145
        %3658 = vmatprep.subr.bf16.mxu0 %v3142
        %3659 = vmatpush1.bf16.msra.mxu0 %v3141
        %3660 = vmatprep.subr.bf16.mxu0 %v3138
        %3661 = vmatpush1.bf16.msra.mxu0 %v3137
        %3662 = vmatprep.subr.bf16.mxu0 %v3134
        %3663 = vmatpush1.bf16.msra.mxu0 %v3133
        %3664 = vmatprep.subr.bf16.mxu0 %v3130
        %3665 = vmatpush1.bf16.msra.mxu0 %v3129
        %3666 = vmatprep.subr.bf16.mxu0 %v3126
        %3667 = vmatpush1.bf16.msra.mxu0 %v3125
        %3668 = vmatprep.subr.bf16.mxu0 %v3122
        %3669 = vmatpush1.bf16.msra.mxu0 %v3121
        %3670 = vmatprep.subr.bf16.mxu0 %v3182
        %3671 = vmatpush2.bf16.msra.mxu0 %v3181
        %3672 = vmatprep.subr.bf16.mxu0 %v3178
        %3673 = vmatpush2.bf16.msra.mxu0 %v3177
        %3674 = vmatprep.subr.bf16.mxu0 %v3174
        %3675 = vmatpush2.bf16.msra.mxu0 %v3173
        %3676 = vmatprep.subr.bf16.mxu0 %v3170
        %3677 = vmatpush2.bf16.msra.mxu0 %v3169
        %3678 = vmatprep.subr.bf16.mxu0 %v3166
        %3679 = vmatpush2.bf16.msra.mxu0 %v3165
        %3680 = vmatprep.subr.bf16.mxu0 %v3162
        %3681 = vmatpush2.bf16.msra.mxu0 %v3161
        %3682 = vmatprep.subr.bf16.mxu0 %v3158
        %3683 = vmatpush2.bf16.msra.mxu0 %v3157
        %3684 = vmatprep.subr.bf16.mxu0 %v3154
        %3685 = vmatpush2.bf16.msra.mxu0 %v3153
        %3686 = vmatprep.mubr.bf16.mxu0 %v2089
        %3687 = vmatmul.mubr.bf16.gmra.mxu0 %v2088
        %v3688 = vpop.f32.mrf.mxu0
        %v3689 = vadd.f32 %v3637, %v3688
        %v3690 = vpop.f32.mrf.mxu0
        %v3691 = vadd.f32 %v3641, %v3690
        %v3692 = vpop.f32.mrf.mxu0
        %v3693 = vpop.f32.mrf.mxu0
        %3694 = vdwg.mxu0
        %3695 = vmatprep.subr.bf16.mxu0 %v3214
        %3696 = vmatpush1.bf16.msra.mxu0 %v3213
        %3697 = vmatprep.subr.bf16.mxu0 %v3210
        %3698 = vmatpush1.bf16.msra.mxu0 %v3209
        %3699 = vmatprep.subr.bf16.mxu0 %v3206
        %3700 = vmatpush1.bf16.msra.mxu0 %v3205
        %3701 = vmatprep.subr.bf16.mxu0 %v3202
        %3702 = vmatpush1.bf16.msra.mxu0 %v3201
        %3703 = vmatprep.subr.bf16.mxu0 %v3198
        %3704 = vmatpush1.bf16.msra.mxu0 %v3197
        %3705 = vmatprep.subr.bf16.mxu0 %v3194
        %3706 = vmatpush1.bf16.msra.mxu0 %v3193
        %3707 = vmatprep.subr.bf16.mxu0 %v3190
        %3708 = vmatpush1.bf16.msra.mxu0 %v3189
        %3709 = vmatprep.subr.bf16.mxu0 %v3186
        %3710 = vmatpush1.bf16.msra.mxu0 %v3185
        %3711 = vmatprep.subr.bf16.mxu0 %v3246
        %3712 = vmatpush2.bf16.msra.mxu0 %v3245
        %3713 = vmatprep.subr.bf16.mxu0 %v3242
        %3714 = vmatpush2.bf16.msra.mxu0 %v3241
        %3715 = vmatprep.subr.bf16.mxu0 %v3238
        %3716 = vmatpush2.bf16.msra.mxu0 %v3237
        %3717 = vmatprep.subr.bf16.mxu0 %v3234
        %3718 = vmatpush2.bf16.msra.mxu0 %v3233
        %3719 = vmatprep.subr.bf16.mxu0 %v3230
        %3720 = vmatpush2.bf16.msra.mxu0 %v3229
        %3721 = vmatprep.subr.bf16.mxu0 %v3226
        %3722 = vmatpush2.bf16.msra.mxu0 %v3225
        %3723 = vmatprep.subr.bf16.mxu0 %v3222
        %3724 = vmatpush2.bf16.msra.mxu0 %v3221
        %3725 = vmatprep.subr.bf16.mxu0 %v3218
        %3726 = vmatpush2.bf16.msra.mxu0 %v3217
        %3727 = vmatprep.mubr.bf16.mxu0 %v2091
        %3728 = vmatmul.mubr.bf16.gmra.mxu0 %v2090
        %v3729 = vpop.f32.mrf.mxu0
        %v3730 = vadd.f32 %v3689, %v3729
        %v3731 = vpop.f32.mrf.mxu0
        %v3732 = vadd.f32 %v3691, %v3731
        %v3733 = vpop.f32.mrf.mxu0
        %v3734 = vpop.f32.mrf.mxu0
        %3735 = vdwg.mxu0
        %3736 = vmatprep.subr.bf16.mxu0 %v3278
        %3737 = vmatpush1.bf16.msra.mxu0 %v3277
        %3738 = vmatprep.subr.bf16.mxu0 %v3274
        %3739 = vmatpush1.bf16.msra.mxu0 %v3273
        %3740 = vmatprep.subr.bf16.mxu0 %v3270
        %3741 = vmatpush1.bf16.msra.mxu0 %v3269
        %3742 = vmatprep.subr.bf16.mxu0 %v3266
        %3743 = vmatpush1.bf16.msra.mxu0 %v3265
        %3744 = vmatprep.subr.bf16.mxu0 %v3262
        %3745 = vmatpush1.bf16.msra.mxu0 %v3261
        %3746 = vmatprep.subr.bf16.mxu0 %v3258
        %3747 = vmatpush1.bf16.msra.mxu0 %v3257
        %3748 = vmatprep.subr.bf16.mxu0 %v3254
        %3749 = vmatpush1.bf16.msra.mxu0 %v3253
        %3750 = vmatprep.subr.bf16.mxu0 %v3250
        %3751 = vmatpush1.bf16.msra.mxu0 %v3249
        %3752 = vmatprep.subr.bf16.mxu0 %v3310
        %3753 = vmatpush2.bf16.msra.mxu0 %v3309
        %3754 = vmatprep.subr.bf16.mxu0 %v3306
        %3755 = vmatpush2.bf16.msra.mxu0 %v3305
        %3756 = vmatprep.subr.bf16.mxu0 %v3302
        %3757 = vmatpush2.bf16.msra.mxu0 %v3301
        %3758 = vmatprep.subr.bf16.mxu0 %v3298
        %3759 = vmatpush2.bf16.msra.mxu0 %v3297
        %3760 = vmatprep.subr.bf16.mxu0 %v3294
        %3761 = vmatpush2.bf16.msra.mxu0 %v3293
        %3762 = vmatprep.subr.bf16.mxu0 %v3290
        %3763 = vmatpush2.bf16.msra.mxu0 %v3289
        %3764 = vmatprep.subr.bf16.mxu0 %v3286
        %3765 = vmatpush2.bf16.msra.mxu0 %v3285
        %3766 = vmatprep.subr.bf16.mxu0 %v3282
        %3767 = vmatpush2.bf16.msra.mxu0 %v3281
        %3768 = vmatprep.mubr.bf16.mxu0 %v2093
        %3769 = vmatmul.mubr.bf16.gmra.mxu0 %v2092
        %v3770 = vpop.f32.mrf.mxu0
        %v3771 = vadd.f32 %v3730, %v3770
        %v3772 = vpop.f32.mrf.mxu0
        %v3773 = vadd.f32 %v3732, %v3772
        %v3774 = vpop.f32.mrf.mxu0
        %v3775 = vpop.f32.mrf.mxu0
        %3776 = vdwg.mxu0
        %3777 = vmatprep.subr.bf16.mxu0 %v3342
        %3778 = vmatpush1.bf16.msra.mxu0 %v3341
        %3779 = vmatprep.subr.bf16.mxu0 %v3338
        %3780 = vmatpush1.bf16.msra.mxu0 %v3337
        %3781 = vmatprep.subr.bf16.mxu0 %v3334
        %3782 = vmatpush1.bf16.msra.mxu0 %v3333
        %3783 = vmatprep.subr.bf16.mxu0 %v3330
        %3784 = vmatpush1.bf16.msra.mxu0 %v3329
        %3785 = vmatprep.subr.bf16.mxu0 %v3326
        %3786 = vmatpush1.bf16.msra.mxu0 %v3325
        %3787 = vmatprep.subr.bf16.mxu0 %v3322
        %3788 = vmatpush1.bf16.msra.mxu0 %v3321
        %3789 = vmatprep.subr.bf16.mxu0 %v3318
        %3790 = vmatpush1.bf16.msra.mxu0 %v3317
        %3791 = vmatprep.subr.bf16.mxu0 %v3314
        %3792 = vmatpush1.bf16.msra.mxu0 %v3313
        %3793 = vmatprep.subr.bf16.mxu0 %v3374
        %3794 = vmatpush2.bf16.msra.mxu0 %v3373
        %3795 = vmatprep.subr.bf16.mxu0 %v3370
        %3796 = vmatpush2.bf16.msra.mxu0 %v3369
        %3797 = vmatprep.subr.bf16.mxu0 %v3366
        %3798 = vmatpush2.bf16.msra.mxu0 %v3365
        %3799 = vmatprep.subr.bf16.mxu0 %v3362
        %3800 = vmatpush2.bf16.msra.mxu0 %v3361
        %3801 = vmatprep.subr.bf16.mxu0 %v3358
        %3802 = vmatpush2.bf16.msra.mxu0 %v3357
        %3803 = vmatprep.subr.bf16.mxu0 %v3354
        %3804 = vmatpush2.bf16.msra.mxu0 %v3353
        %3805 = vmatprep.subr.bf16.mxu0 %v3350
        %3806 = vmatpush2.bf16.msra.mxu0 %v3349
        %3807 = vmatprep.subr.bf16.mxu0 %v3346
        %3808 = vmatpush2.bf16.msra.mxu0 %v3345
        %3809 = vmatprep.mubr.bf16.mxu0 %v2095
        %3810 = vmatmul.mubr.bf16.gmra.mxu0 %v2094
        %v3811 = vpop.f32.mrf.mxu0
        %v3812 = vadd.f32 %v3771, %v3811
        %v3813 = vpop.f32.mrf.mxu0
        %v3814 = vadd.f32 %v3773, %v3813
        %v3815 = vpop.f32.mrf.mxu0
        %v3816 = vpop.f32.mrf.mxu0
        %3817 = vdwg.mxu0
        %3818 = vmatprep.subr.bf16.mxu0 %v3152
        %3819 = vmatpush1.bf16.msra.mxu0 %v3151
        %3820 = vmatprep.subr.bf16.mxu0 %v3148
        %3821 = vmatpush1.bf16.msra.mxu0 %v3147
        %3822 = vmatprep.subr.bf16.mxu0 %v3144
        %3823 = vmatpush1.bf16.msra.mxu0 %v3143
        %3824 = vmatprep.subr.bf16.mxu0 %v3140
        %3825 = vmatpush1.bf16.msra.mxu0 %v3139
        %3826 = vmatprep.subr.bf16.mxu0 %v3136
        %3827 = vmatpush1.bf16.msra.mxu0 %v3135
        %3828 = vmatprep.subr.bf16.mxu0 %v3132
        %3829 = vmatpush1.bf16.msra.mxu0 %v3131
        %3830 = vmatprep.subr.bf16.mxu0 %v3128
        %3831 = vmatpush1.bf16.msra.mxu0 %v3127
        %3832 = vmatprep.subr.bf16.mxu0 %v3124
        %3833 = vmatpush1.bf16.msra.mxu0 %v3123
        %3834 = vmatprep.subr.bf16.mxu0 %v3184
        %3835 = vmatpush2.bf16.msra.mxu0 %v3183
        %3836 = vmatprep.subr.bf16.mxu0 %v3180
        %3837 = vmatpush2.bf16.msra.mxu0 %v3179
        %3838 = vmatprep.subr.bf16.mxu0 %v3176
        %3839 = vmatpush2.bf16.msra.mxu0 %v3175
        %3840 = vmatprep.subr.bf16.mxu0 %v3172
        %3841 = vmatpush2.bf16.msra.mxu0 %v3171
        %3842 = vmatprep.subr.bf16.mxu0 %v3168
        %3843 = vmatpush2.bf16.msra.mxu0 %v3167
        %3844 = vmatprep.subr.bf16.mxu0 %v3164
        %3845 = vmatpush2.bf16.msra.mxu0 %v3163
        %3846 = vmatprep.subr.bf16.mxu0 %v3160
        %3847 = vmatpush2.bf16.msra.mxu0 %v3159
        %3848 = vmatprep.subr.bf16.mxu0 %v3156
        %3849 = vmatpush2.bf16.msra.mxu0 %v3155
        %3850 = vmatprep.mubr.bf16.mxu0 %v2089
        %3851 = vmatmul.mubr.bf16.gmra.mxu0 %v2088
        %v3852 = vpop.f32.mrf.mxu0
        %v3853 = vadd.f32 %v3645, %v3852
        %v3854 = vpop.f32.mrf.mxu0
        %v3855 = vadd.f32 %v3649, %v3854
        %v3856 = vpop.f32.mrf.mxu0
        %v3857 = vpop.f32.mrf.mxu0
        %3858 = vdwg.mxu0
        %3859 = vmatprep.subr.bf16.mxu0 %v3216
        %3860 = vmatpush1.bf16.msra.mxu0 %v3215
        %3861 = vmatprep.subr.bf16.mxu0 %v3212
        %3862 = vmatpush1.bf16.msra.mxu0 %v3211
        %3863 = vmatprep.subr.bf16.mxu0 %v3208
        %3864 = vmatpush1.bf16.msra.mxu0 %v3207
        %3865 = vmatprep.subr.bf16.mxu0 %v3204
        %3866 = vmatpush1.bf16.msra.mxu0 %v3203
        %3867 = vmatprep.subr.bf16.mxu0 %v3200
        %3868 = vmatpush1.bf16.msra.mxu0 %v3199
        %3869 = vmatprep.subr.bf16.mxu0 %v3196
        %3870 = vmatpush1.bf16.msra.mxu0 %v3195
        %3871 = vmatprep.subr.bf16.mxu0 %v3192
        %3872 = vmatpush1.bf16.msra.mxu0 %v3191
        %3873 = vmatprep.subr.bf16.mxu0 %v3188
        %3874 = vmatpush1.bf16.msra.mxu0 %v3187
        %3875 = vmatprep.subr.bf16.mxu0 %v3248
        %3876 = vmatpush2.bf16.msra.mxu0 %v3247
        %3877 = vmatprep.subr.bf16.mxu0 %v3244
        %3878 = vmatpush2.bf16.msra.mxu0 %v3243
        %3879 = vmatprep.subr.bf16.mxu0 %v3240
        %3880 = vmatpush2.bf16.msra.mxu0 %v3239
        %3881 = vmatprep.subr.bf16.mxu0 %v3236
        %3882 = vmatpush2.bf16.msra.mxu0 %v3235
        %3883 = vmatprep.subr.bf16.mxu0 %v3232
        %3884 = vmatpush2.bf16.msra.mxu0 %v3231
        %3885 = vmatprep.subr.bf16.mxu0 %v3228
        %3886 = vmatpush2.bf16.msra.mxu0 %v3227
        %3887 = vmatprep.subr.bf16.mxu0 %v3224
        %3888 = vmatpush2.bf16.msra.mxu0 %v3223
        %3889 = vmatprep.subr.bf16.mxu0 %v3220
        %3890 = vmatpush2.bf16.msra.mxu0 %v3219
        %3891 = vmatprep.mubr.bf16.mxu0 %v2091
        %3892 = vmatmul.mubr.bf16.gmra.mxu0 %v2090
        %v3893 = vpop.f32.mrf.mxu0
        %v3894 = vadd.f32 %v3853, %v3893
        %v3895 = vpop.f32.mrf.mxu0
        %v3896 = vadd.f32 %v3855, %v3895
        %v3897 = vpop.f32.mrf.mxu0
        %v3898 = vpop.f32.mrf.mxu0
        %3899 = vdwg.mxu0
        %3900 = vmatprep.subr.bf16.mxu0 %v3280
        %3901 = vmatpush1.bf16.msra.mxu0 %v3279
        %3902 = vmatprep.subr.bf16.mxu0 %v3276
        %3903 = vmatpush1.bf16.msra.mxu0 %v3275
        %3904 = vmatprep.subr.bf16.mxu0 %v3272
        %3905 = vmatpush1.bf16.msra.mxu0 %v3271
        %3906 = vmatprep.subr.bf16.mxu0 %v3268
        %3907 = vmatpush1.bf16.msra.mxu0 %v3267
        %3908 = vmatprep.subr.bf16.mxu0 %v3264
        %3909 = vmatpush1.bf16.msra.mxu0 %v3263
        %3910 = vmatprep.subr.bf16.mxu0 %v3260
        %3911 = vmatpush1.bf16.msra.mxu0 %v3259
        %3912 = vmatprep.subr.bf16.mxu0 %v3256
        %3913 = vmatpush1.bf16.msra.mxu0 %v3255
        %3914 = vmatprep.subr.bf16.mxu0 %v3252
        %3915 = vmatpush1.bf16.msra.mxu0 %v3251
        %3916 = vmatprep.subr.bf16.mxu0 %v3312
        %3917 = vmatpush2.bf16.msra.mxu0 %v3311
        %3918 = vmatprep.subr.bf16.mxu0 %v3308
        %3919 = vmatpush2.bf16.msra.mxu0 %v3307
        %3920 = vmatprep.subr.bf16.mxu0 %v3304
        %3921 = vmatpush2.bf16.msra.mxu0 %v3303
        %3922 = vmatprep.subr.bf16.mxu0 %v3300
        %3923 = vmatpush2.bf16.msra.mxu0 %v3299
        %3924 = vmatprep.subr.bf16.mxu0 %v3296
        %3925 = vmatpush2.bf16.msra.mxu0 %v3295
        %3926 = vmatprep.subr.bf16.mxu0 %v3292
        %3927 = vmatpush2.bf16.msra.mxu0 %v3291
        %3928 = vmatprep.subr.bf16.mxu0 %v3288
        %3929 = vmatpush2.bf16.msra.mxu0 %v3287
        %3930 = vmatprep.subr.bf16.mxu0 %v3284
        %3931 = vmatpush2.bf16.msra.mxu0 %v3283
        %3932 = vmatprep.mubr.bf16.mxu0 %v2093
        %3933 = vmatmul.mubr.bf16.gmra.mxu0 %v2092
        %v3934 = vpop.f32.mrf.mxu0
        %v3935 = vadd.f32 %v3894, %v3934
        %v3936 = vpop.f32.mrf.mxu0
        %v3937 = vadd.f32 %v3896, %v3936
        %v3938 = vpop.f32.mrf.mxu0
        %v3939 = vpop.f32.mrf.mxu0
        %3940 = vdwg.mxu0
        %3941 = vmatprep.subr.bf16.mxu0 %v3344
        %3942 = vmatpush1.bf16.msra.mxu0 %v3343
        %3943 = vmatprep.subr.bf16.mxu0 %v3340
        %3944 = vmatpush1.bf16.msra.mxu0 %v3339
        %3945 = vmatprep.subr.bf16.mxu0 %v3336
        %3946 = vmatpush1.bf16.msra.mxu0 %v3335
        %3947 = vmatprep.subr.bf16.mxu0 %v3332
        %3948 = vmatpush1.bf16.msra.mxu0 %v3331
        %3949 = vmatprep.subr.bf16.mxu0 %v3328
        %3950 = vmatpush1.bf16.msra.mxu0 %v3327
        %3951 = vmatprep.subr.bf16.mxu0 %v3324
        %3952 = vmatpush1.bf16.msra.mxu0 %v3323
        %3953 = vmatprep.subr.bf16.mxu0 %v3320
        %3954 = vmatpush1.bf16.msra.mxu0 %v3319
        %3955 = vmatprep.subr.bf16.mxu0 %v3316
        %3956 = vmatpush1.bf16.msra.mxu0 %v3315
        %3957 = vmatprep.subr.bf16.mxu0 %v3376
        %3958 = vmatpush2.bf16.msra.mxu0 %v3375
        %3959 = vmatprep.subr.bf16.mxu0 %v3372
        %3960 = vmatpush2.bf16.msra.mxu0 %v3371
        %3961 = vmatprep.subr.bf16.mxu0 %v3368
        %3962 = vmatpush2.bf16.msra.mxu0 %v3367
        %3963 = vmatprep.subr.bf16.mxu0 %v3364
        %3964 = vmatpush2.bf16.msra.mxu0 %v3363
        %3965 = vmatprep.subr.bf16.mxu0 %v3360
        %3966 = vmatpush2.bf16.msra.mxu0 %v3359
        %3967 = vmatprep.subr.bf16.mxu0 %v3356
        %3968 = vmatpush2.bf16.msra.mxu0 %v3355
        %3969 = vmatprep.subr.bf16.mxu0 %v3352
        %3970 = vmatpush2.bf16.msra.mxu0 %v3351
        %3971 = vmatprep.subr.bf16.mxu0 %v3348
        %3972 = vmatpush2.bf16.msra.mxu0 %v3347
        %3973 = vmatprep.mubr.bf16.mxu0 %v2095
        %3974 = vmatmul.mubr.bf16.gmra.mxu0 %v2094
        %v3975 = vpop.f32.mrf.mxu0
        %v3976 = vadd.f32 %v3935, %v3975
        %v3977 = vpop.f32.mrf.mxu0
        %v3978 = vadd.f32 %v3937, %v3977
        %v3979 = vpop.f32.mrf.mxu0
        %v3980 = vpop.f32.mrf.mxu0
        %3981 = vdwg.mxu0
        %v3986 = vcombine.low %v3812, %v3814
        %v3987 = vcombine.low %v3976, %v3978
        %v3989 = vunpack.c.l.s4 1966171168
        %v3990 = vunpack.c.0.s8 %v3989
        %v3991 = vlaneseq
        %v3992 = vshrl.u32 %v3991, 7
        %v3993 = vsub.s32 %v3990, %v3992
        %v3994 = vrot.slane %v3986, %v3993
        %v3996 = vunpack.c.l.s4 1966171168
        %v3997 = vunpack.c.0.s8 %v3996
        %v3998 = vlaneseq
        %v3999 = vshrl.u32 %v3998, 7
        %v4000 = vsub.s32 %v3997, %v3999
        %v4001 = vrot.slane %v3987, %v4000
        %v4002 = vcombine.low %v3994, %v4001
        %v4004 = vunpack.c.l.s4 1966171168
        %v4005 = vunpack.c.0.s8 %v4004
        %v4006 = vlaneseq
        %v4007 = vshrl.u32 %v4006, 7
        %v4008 = vsub.s32 %v4005, %v4007
        %v4009 = vrot.slane %v4002, %v4008
        %v4011 = vlaneseq
        %vm4012 = vcmp.ge.s32.totalorder %v4011, 0
        %vm4013 = vcmp.lt.s32.totalorder %v4011, 512
        %vm4014 = vmand %vm4012, %vm4013
        %4015 = vst.msk [vmem:[#allocation3] sm:$0xf] %vm4014, %v4009
      $region80: #{siamese_pointnet_forward.4} parent=67 // pred_fallthru
        _
      %p4016 = scmp.ge.s32.totalorder %s28, 3
      // Predicated region
      $region81: #{siamese_pointnet_forward.4} parent=67 // pred_check
        %p4017 = pneg %p4016
      $region82: #{siamese_pointnet_forward.4} parent=67 // pred_check_branch
        %4019 = sbr.rel (%p4017) target = $region84
      $region83: #{siamese_pointnet_forward.4} parent=67 // pred_region
        %v4020 = vld [vmem:[%s8] sm:$0xff]
        %v4021 = vld [vmem:[%s8 + $0x8] sm:$0xff]
        %v4022 = vld [vmem:[%s8 + $0x10] sm:$0xff]
        %v4023 = vld [vmem:[%s8 + $0x18] sm:$0xff]
        %v4024 = vld [vmem:[%s8 + $0x20] sm:$0xff]
        %v4025 = vld [vmem:[%s8 + $0x28] sm:$0xff]
        %v4026 = vld [vmem:[%s8 + $0x30] sm:$0xff]
        %v4027 = vld [vmem:[%s8 + $0x38] sm:$0xff]
        %v4028 = vld [vmem:[%s8 + $0x40] sm:$0xff]
        %v4029 = vld [vmem:[%s8 + $0x48] sm:$0xff]
        %v4030 = vld [vmem:[%s8 + $0x50] sm:$0xff]
        %v4031 = vld [vmem:[%s8 + $0x58] sm:$0xff]
        %v4032 = vld [vmem:[%s8 + $0x60] sm:$0xff]
        %v4033 = vld [vmem:[%s8 + $0x68] sm:$0xff]
        %v4034 = vld [vmem:[%s8 + $0x70] sm:$0xff]
        %v4035 = vld [vmem:[%s8 + $0x78] sm:$0xff]
        %v4036 = vld [vmem:[#allocation3] sm:$0xf]
        %v4038 = vlaneseq
        %v4039 = vshrl.u32 %v4038, 7
        %v4040 = vsub.s32 0, %v4039
        %v4041 = vrot.slane %v4036, %v4040
        %v4042 = vlaneseq
        %v4043 = vshrl.u32 %v4042, 7
        %v4044 = vsub.s32 1, %v4043
        %v4045 = vrot.slane %v4036, %v4044
        %v4046 = vlaneseq
        %v4047 = vshrl.u32 %v4046, 7
        %v4048 = vsub.s32 2, %v4047
        %v4049 = vrot.slane %v4036, %v4048
        %v4050 = vlaneseq
        %v4051 = vshrl.u32 %v4050, 7
        %v4052 = vsub.s32 3, %v4051
        %v4053 = vrot.slane %v4036, %v4052
        %v4074 = vunpack.c.l.b16 %v4020
        %v4075 = vunpack.c.h.b16 %v4020
        %v4076 = vunpack.c.l.b16 %v4021
        %v4077 = vunpack.c.h.b16 %v4021
        %v4078 = vunpack.c.l.b16 %v4022
        %v4079 = vunpack.c.h.b16 %v4022
        %v4080 = vunpack.c.l.b16 %v4023
        %v4081 = vunpack.c.h.b16 %v4023
        %v4082 = vunpack.c.l.b16 %v4024
        %v4083 = vunpack.c.h.b16 %v4024
        %v4084 = vunpack.c.l.b16 %v4025
        %v4085 = vunpack.c.h.b16 %v4025
        %v4086 = vunpack.c.l.b16 %v4026
        %v4087 = vunpack.c.h.b16 %v4026
        %v4088 = vunpack.c.l.b16 %v4027
        %v4089 = vunpack.c.h.b16 %v4027
        %v4090 = vunpack.c.l.b16 %v4028
        %v4091 = vunpack.c.h.b16 %v4028
        %v4092 = vunpack.c.l.b16 %v4029
        %v4093 = vunpack.c.h.b16 %v4029
        %v4094 = vunpack.c.l.b16 %v4030
        %v4095 = vunpack.c.h.b16 %v4030
        %v4096 = vunpack.c.l.b16 %v4031
        %v4097 = vunpack.c.h.b16 %v4031
        %v4098 = vunpack.c.l.b16 %v4032
        %v4099 = vunpack.c.h.b16 %v4032
        %v4100 = vunpack.c.l.b16 %v4033
        %v4101 = vunpack.c.h.b16 %v4033
        %v4102 = vunpack.c.l.b16 %v4034
        %v4103 = vunpack.c.h.b16 %v4034
        %v4104 = vunpack.c.l.b16 %v4035
        %v4105 = vunpack.c.h.b16 %v4035
        %v4106 = vpack.c.b16 %v4078, %v4074
        %v4107 = vpack.c.b16 %v4079, %v4075
        %v4108 = vpack.c.b16 %v4080, %v4076
        %v4109 = vpack.c.b16 %v4081, %v4077
        %v4110 = vpack.c.b16 %v4086, %v4082
        %v4111 = vpack.c.b16 %v4087, %v4083
        %v4112 = vpack.c.b16 %v4088, %v4084
        %v4113 = vpack.c.b16 %v4089, %v4085
        %v4114 = vpack.c.b16 %v4094, %v4090
        %v4115 = vpack.c.b16 %v4095, %v4091
        %v4116 = vpack.c.b16 %v4096, %v4092
        %v4117 = vpack.c.b16 %v4097, %v4093
        %v4118 = vpack.c.b16 %v4102, %v4098
        %v4119 = vpack.c.b16 %v4103, %v4099
        %v4120 = vpack.c.b16 %v4104, %v4100
        %v4121 = vpack.c.b16 %v4105, %v4101
        %vm4138 = vcmask 523264
        %v4140 = vsel %vm4138, %v748, 0
        %v4143 = vsel %vm4138, %v749, 0
        %v4146 = vsel %vm4138, %v750, 0
        %v4149 = vsel %vm4138, %v751, 0
        %v4152 = vsel %vm4138, %v752, 0
        %v4155 = vsel %vm4138, %v753, 0
        %4157 = vmatprep.subr.bf16.mxu0 0
        %4158 = vmatpush1.bf16.msra.mxu0 0
        %4159 = vmatprep.subr.bf16.mxu0 0
        %4160 = vmatpush1.bf16.msra.mxu0 0
        %4161 = vmatprep.subr.bf16.mxu0 0
        %4162 = vmatpush1.bf16.msra.mxu0 0
        %4163 = vmatprep.subr.bf16.mxu0 0
        %4164 = vmatpush1.bf16.msra.mxu0 0
        %4165 = vmatprep.subr.bf16.mxu0 %v4119
        %4166 = vmatpush1.bf16.msra.mxu0 %v4118
        %4167 = vmatprep.subr.bf16.mxu0 %v4115
        %4168 = vmatpush1.bf16.msra.mxu0 %v4114
        %4169 = vmatprep.subr.bf16.mxu0 %v4111
        %4170 = vmatpush1.bf16.msra.mxu0 %v4110
        %4171 = vmatprep.subr.bf16.mxu0 %v4107
        %4172 = vmatpush1.bf16.msra.mxu0 %v4106
        %4173 = vmatprep.subr.bf16.mxu0 0
        %4174 = vmatpush2.bf16.msra.mxu0 0
        %4175 = vmatprep.subr.bf16.mxu0 0
        %4176 = vmatpush2.bf16.msra.mxu0 0
        %4177 = vmatprep.subr.bf16.mxu0 0
        %4178 = vmatpush2.bf16.msra.mxu0 0
        %4179 = vmatprep.subr.bf16.mxu0 0
        %4180 = vmatpush2.bf16.msra.mxu0 0
        %4181 = vmatprep.subr.bf16.mxu0 0
        %4182 = vmatpush2.bf16.msra.mxu0 0
        %4183 = vmatprep.subr.bf16.mxu0 0
        %4184 = vmatpush2.bf16.msra.mxu0 0
        %4185 = vmatprep.subr.bf16.mxu0 0
        %4186 = vmatpush2.bf16.msra.mxu0 0
        %4187 = vmatprep.subr.bf16.mxu0 0
        %4188 = vmatpush2.bf16.msra.mxu0 0
        %4189 = vmatprep.mubr.bf16.mxu0 0
        %4190 = vmatmul.mubr.bf16.gmra.mxu0 %v4140
        %v4191 = vpop.f32.mrf.mxu0
        %v4192 = vadd.f32 %v4041, %v4191
        %v4193 = vpop.f32.mrf.mxu0
        %v4194 = vadd.f32 %v4045, %v4193
        %v4195 = vpop.f32.mrf.mxu0
        %v4196 = vadd.f32 %v4041, %v4195
        %v4197 = vpop.f32.mrf.mxu0
        %v4198 = vadd.f32 %v4045, %v4197
        %4199 = vmatprep.mubr.bf16.mxu0 0
        %4200 = vmatmul.mubr.bf16.gmra.mxu0 %v4143
        %v4201 = vpop.f32.mrf.mxu0
        %v4202 = vadd.f32 %v4041, %v4201
        %v4203 = vpop.f32.mrf.mxu0
        %v4204 = vadd.f32 %v4045, %v4203
        %v4205 = vpop.f32.mrf.mxu0
        %v4206 = vadd.f32 %v4041, %v4205
        %v4207 = vpop.f32.mrf.mxu0
        %v4208 = vadd.f32 %v4045, %v4207
        %4209 = vmatprep.mubr.bf16.mxu0 0
        %4210 = vmatmul.mubr.bf16.gmra.mxu0 %v4146
        %v4211 = vpop.f32.mrf.mxu0
        %v4212 = vadd.f32 %v4041, %v4211
        %v4213 = vpop.f32.mrf.mxu0
        %v4214 = vadd.f32 %v4045, %v4213
        %v4215 = vpop.f32.mrf.mxu0
        %v4216 = vadd.f32 %v4041, %v4215
        %v4217 = vpop.f32.mrf.mxu0
        %v4218 = vadd.f32 %v4045, %v4217
        %4219 = vmatprep.mubr.bf16.mxu0 0
        %4220 = vmatmul.mubr.bf16.gmra.mxu0 %v4149
        %v4221 = vpop.f32.mrf.mxu0
        %v4222 = vadd.f32 %v4041, %v4221
        %v4223 = vpop.f32.mrf.mxu0
        %v4224 = vadd.f32 %v4045, %v4223
        %v4225 = vpop.f32.mrf.mxu0
        %v4226 = vadd.f32 %v4041, %v4225
        %v4227 = vpop.f32.mrf.mxu0
        %v4228 = vadd.f32 %v4045, %v4227
        %4229 = vmatprep.mubr.bf16.mxu0 0
        %4230 = vmatmul.mubr.bf16.gmra.mxu0 %v4152
        %v4231 = vpop.f32.mrf.mxu0
        %v4232 = vadd.f32 %v4041, %v4231
        %v4233 = vpop.f32.mrf.mxu0
        %v4234 = vadd.f32 %v4045, %v4233
        %v4235 = vpop.f32.mrf.mxu0
        %v4236 = vadd.f32 %v4041, %v4235
        %v4237 = vpop.f32.mrf.mxu0
        %v4238 = vadd.f32 %v4045, %v4237
        %4239 = vmatprep.mubr.bf16.mxu0 0
        %4240 = vmatmul.mubr.bf16.gmra.mxu0 %v4155
        %v4241 = vpop.f32.mrf.mxu0
        %v4242 = vadd.f32 %v4041, %v4241
        %v4243 = vpop.f32.mrf.mxu0
        %v4244 = vadd.f32 %v4045, %v4243
        %v4245 = vpop.f32.mrf.mxu0
        %v4246 = vadd.f32 %v4041, %v4245
        %v4247 = vpop.f32.mrf.mxu0
        %v4248 = vadd.f32 %v4045, %v4247
        %4249 = vdwg.mxu0
        %4250 = vmatprep.subr.bf16.mxu0 0
        %4251 = vmatpush1.bf16.msra.mxu0 0
        %4252 = vmatprep.subr.bf16.mxu0 0
        %4253 = vmatpush1.bf16.msra.mxu0 0
        %4254 = vmatprep.subr.bf16.mxu0 0
        %4255 = vmatpush1.bf16.msra.mxu0 0
        %4256 = vmatprep.subr.bf16.mxu0 0
        %4257 = vmatpush1.bf16.msra.mxu0 0
        %4258 = vmatprep.subr.bf16.mxu0 %v4121
        %4259 = vmatpush1.bf16.msra.mxu0 %v4120
        %4260 = vmatprep.subr.bf16.mxu0 %v4117
        %4261 = vmatpush1.bf16.msra.mxu0 %v4116
        %4262 = vmatprep.subr.bf16.mxu0 %v4113
        %4263 = vmatpush1.bf16.msra.mxu0 %v4112
        %4264 = vmatprep.subr.bf16.mxu0 %v4109
        %4265 = vmatpush1.bf16.msra.mxu0 %v4108
        %4266 = vmatprep.subr.bf16.mxu0 0
        %4267 = vmatpush2.bf16.msra.mxu0 0
        %4268 = vmatprep.subr.bf16.mxu0 0
        %4269 = vmatpush2.bf16.msra.mxu0 0
        %4270 = vmatprep.subr.bf16.mxu0 0
        %4271 = vmatpush2.bf16.msra.mxu0 0
        %4272 = vmatprep.subr.bf16.mxu0 0
        %4273 = vmatpush2.bf16.msra.mxu0 0
        %4274 = vmatprep.subr.bf16.mxu0 0
        %4275 = vmatpush2.bf16.msra.mxu0 0
        %4276 = vmatprep.subr.bf16.mxu0 0
        %4277 = vmatpush2.bf16.msra.mxu0 0
        %4278 = vmatprep.subr.bf16.mxu0 0
        %4279 = vmatpush2.bf16.msra.mxu0 0
        %4280 = vmatprep.subr.bf16.mxu0 0
        %4281 = vmatpush2.bf16.msra.mxu0 0
        %4282 = vmatprep.mubr.bf16.mxu0 0
        %4283 = vmatmul.mubr.bf16.gmra.mxu0 %v4140
        %v4284 = vpop.f32.mrf.mxu0
        %v4285 = vadd.f32 %v4049, %v4284
        %v4286 = vpop.f32.mrf.mxu0
        %v4287 = vadd.f32 %v4053, %v4286
        %v4288 = vpop.f32.mrf.mxu0
        %v4289 = vadd.f32 %v4049, %v4288
        %v4290 = vpop.f32.mrf.mxu0
        %v4291 = vadd.f32 %v4053, %v4290
        %4292 = vmatprep.mubr.bf16.mxu0 0
        %4293 = vmatmul.mubr.bf16.gmra.mxu0 %v4143
        %v4294 = vpop.f32.mrf.mxu0
        %v4295 = vadd.f32 %v4049, %v4294
        %v4296 = vpop.f32.mrf.mxu0
        %v4297 = vadd.f32 %v4053, %v4296
        %v4298 = vpop.f32.mrf.mxu0
        %v4299 = vadd.f32 %v4049, %v4298
        %v4300 = vpop.f32.mrf.mxu0
        %v4301 = vadd.f32 %v4053, %v4300
        %4302 = vmatprep.mubr.bf16.mxu0 0
        %4303 = vmatmul.mubr.bf16.gmra.mxu0 %v4146
        %v4304 = vpop.f32.mrf.mxu0
        %v4305 = vadd.f32 %v4049, %v4304
        %v4306 = vpop.f32.mrf.mxu0
        %v4307 = vadd.f32 %v4053, %v4306
        %v4308 = vpop.f32.mrf.mxu0
        %v4309 = vadd.f32 %v4049, %v4308
        %v4310 = vpop.f32.mrf.mxu0
        %v4311 = vadd.f32 %v4053, %v4310
        %4312 = vmatprep.mubr.bf16.mxu0 0
        %4313 = vmatmul.mubr.bf16.gmra.mxu0 %v4149
        %v4314 = vpop.f32.mrf.mxu0
        %v4315 = vadd.f32 %v4049, %v4314
        %v4316 = vpop.f32.mrf.mxu0
        %v4317 = vadd.f32 %v4053, %v4316
        %v4318 = vpop.f32.mrf.mxu0
        %v4319 = vadd.f32 %v4049, %v4318
        %v4320 = vpop.f32.mrf.mxu0
        %v4321 = vadd.f32 %v4053, %v4320
        %4322 = vmatprep.mubr.bf16.mxu0 0
        %4323 = vmatmul.mubr.bf16.gmra.mxu0 %v4152
        %v4324 = vpop.f32.mrf.mxu0
        %v4325 = vadd.f32 %v4049, %v4324
        %v4326 = vpop.f32.mrf.mxu0
        %v4327 = vadd.f32 %v4053, %v4326
        %v4328 = vpop.f32.mrf.mxu0
        %v4329 = vadd.f32 %v4049, %v4328
        %v4330 = vpop.f32.mrf.mxu0
        %v4331 = vadd.f32 %v4053, %v4330
        %4332 = vmatprep.mubr.bf16.mxu0 0
        %4333 = vmatmul.mubr.bf16.gmra.mxu0 %v4155
        %v4334 = vpop.f32.mrf.mxu0
        %v4335 = vadd.f32 %v4049, %v4334
        %v4336 = vpop.f32.mrf.mxu0
        %v4337 = vadd.f32 %v4053, %v4336
        %v4338 = vpop.f32.mrf.mxu0
        %v4339 = vadd.f32 %v4049, %v4338
        %v4340 = vpop.f32.mrf.mxu0
        %v4341 = vadd.f32 %v4053, %v4340
        %4342 = vdwg.mxu0
        %v4343 = vmax.f32 %v4192, 0.0
        %v4344 = vmax.f32 %v4194, 0.0
        %v4345 = vmax.f32 %v4285, 0.0
        %v4346 = vmax.f32 %v4287, 0.0
        %v4347 = vmax.f32 %v4196, 0.0
        %v4348 = vmax.f32 %v4198, 0.0
        %v4349 = vmax.f32 %v4289, 0.0
        %v4350 = vmax.f32 %v4291, 0.0
        %v4351 = vmax.f32 %v4202, 0.0
        %v4352 = vmax.f32 %v4204, 0.0
        %v4353 = vmax.f32 %v4295, 0.0
        %v4354 = vmax.f32 %v4297, 0.0
        %v4355 = vmax.f32 %v4206, 0.0
        %v4356 = vmax.f32 %v4208, 0.0
        %v4357 = vmax.f32 %v4299, 0.0
        %v4358 = vmax.f32 %v4301, 0.0
        %v4359 = vmax.f32 %v4212, 0.0
        %v4360 = vmax.f32 %v4214, 0.0
        %v4361 = vmax.f32 %v4305, 0.0
        %v4362 = vmax.f32 %v4307, 0.0
        %v4363 = vmax.f32 %v4216, 0.0
        %v4364 = vmax.f32 %v4218, 0.0
        %v4365 = vmax.f32 %v4309, 0.0
        %v4366 = vmax.f32 %v4311, 0.0
        %v4367 = vmax.f32 %v4222, 0.0
        %v4368 = vmax.f32 %v4224, 0.0
        %v4369 = vmax.f32 %v4315, 0.0
        %v4370 = vmax.f32 %v4317, 0.0
        %v4371 = vmax.f32 %v4226, 0.0
        %v4372 = vmax.f32 %v4228, 0.0
        %v4373 = vmax.f32 %v4319, 0.0
        %v4374 = vmax.f32 %v4321, 0.0
        %v4375 = vmax.f32 %v4232, 0.0
        %v4376 = vmax.f32 %v4234, 0.0
        %v4377 = vmax.f32 %v4325, 0.0
        %v4378 = vmax.f32 %v4327, 0.0
        %v4379 = vmax.f32 %v4236, 0.0
        %v4380 = vmax.f32 %v4238, 0.0
        %v4381 = vmax.f32 %v4329, 0.0
        %v4382 = vmax.f32 %v4331, 0.0
        %v4383 = vmax.f32 %v4242, 0.0
        %v4384 = vmax.f32 %v4244, 0.0
        %v4385 = vmax.f32 %v4335, 0.0
        %v4386 = vmax.f32 %v4337, 0.0
        %v4387 = vmax.f32 %v4246, 0.0
        %v4388 = vmax.f32 %v4248, 0.0
        %v4389 = vmax.f32 %v4339, 0.0
        %v4390 = vmax.f32 %v4341, 0.0
        %v4391 = vpack.c.bf16 %v4347, %v4343
        %v4392 = vpack.c.bf16 %v4348, %v4344
        %v4393 = vpack.c.bf16 %v4349, %v4345
        %v4394 = vpack.c.bf16 %v4350, %v4346
        %v4395 = vpack.c.bf16 %v4355, %v4351
        %v4396 = vpack.c.bf16 %v4356, %v4352
        %v4397 = vpack.c.bf16 %v4357, %v4353
        %v4398 = vpack.c.bf16 %v4358, %v4354
        %v4399 = vpack.c.bf16 %v4363, %v4359
        %v4400 = vpack.c.bf16 %v4364, %v4360
        %v4401 = vpack.c.bf16 %v4365, %v4361
        %v4402 = vpack.c.bf16 %v4366, %v4362
        %v4403 = vpack.c.bf16 %v4371, %v4367
        %v4404 = vpack.c.bf16 %v4372, %v4368
        %v4405 = vpack.c.bf16 %v4373, %v4369
        %v4406 = vpack.c.bf16 %v4374, %v4370
        %v4407 = vpack.c.bf16 %v4379, %v4375
        %v4408 = vpack.c.bf16 %v4380, %v4376
        %v4409 = vpack.c.bf16 %v4381, %v4377
        %v4410 = vpack.c.bf16 %v4382, %v4378
        %v4411 = vpack.c.bf16 %v4387, %v4383
        %v4412 = vpack.c.bf16 %v4388, %v4384
        %v4413 = vpack.c.bf16 %v4389, %v4385
        %v4414 = vpack.c.bf16 %v4390, %v4386
        %v4415 = vld [vmem:[%s10] sm:$0xff]
        %v4416 = vld [vmem:[%s10 + $0x8] sm:$0xff]
        %v4417 = vld [vmem:[%s10 + $0x10] sm:$0xff]
        %v4418 = vld [vmem:[%s10 + $0x18] sm:$0xff]
        %v4419 = vld [vmem:[%s10 + $0x20] sm:$0xff]
        %v4420 = vld [vmem:[%s10 + $0x28] sm:$0xff]
        %v4421 = vld [vmem:[%s10 + $0x30] sm:$0xff]
        %v4422 = vld [vmem:[%s10 + $0x38] sm:$0xff]
        %v4423 = vld [vmem:[%s10 + $0x40] sm:$0xff]
        %v4424 = vld [vmem:[%s10 + $0x48] sm:$0xff]
        %v4425 = vld [vmem:[%s10 + $0x50] sm:$0xff]
        %v4426 = vld [vmem:[%s10 + $0x58] sm:$0xff]
        %v4427 = vld [vmem:[%s10 + $0x60] sm:$0xff]
        %v4428 = vld [vmem:[%s10 + $0x68] sm:$0xff]
        %v4429 = vld [vmem:[%s10 + $0x70] sm:$0xff]
        %v4430 = vld [vmem:[%s10 + $0x78] sm:$0xff]
        %v4431 = vld [vmem:[%s10 + $0x80] sm:$0xff]
        %v4432 = vld [vmem:[%s10 + $0x88] sm:$0xff]
        %v4433 = vld [vmem:[%s10 + $0x90] sm:$0xff]
        %v4434 = vld [vmem:[%s10 + $0x98] sm:$0xff]
        %v4435 = vld [vmem:[%s10 + $0xa0] sm:$0xff]
        %v4436 = vld [vmem:[%s10 + $0xa8] sm:$0xff]
        %v4437 = vld [vmem:[%s10 + $0xb0] sm:$0xff]
        %v4438 = vld [vmem:[%s10 + $0xb8] sm:$0xff]
        %v4439 = vld [vmem:[%s10 + $0xc0] sm:$0xff]
        %v4440 = vld [vmem:[%s10 + $0xc8] sm:$0xff]
        %v4441 = vld [vmem:[%s10 + $0xd0] sm:$0xff]
        %v4442 = vld [vmem:[%s10 + $0xd8] sm:$0xff]
        %v4443 = vld [vmem:[%s10 + $0xe0] sm:$0xff]
        %v4444 = vld [vmem:[%s10 + $0xe8] sm:$0xff]
        %v4445 = vld [vmem:[%s10 + $0xf0] sm:$0xff]
        %v4446 = vld [vmem:[%s10 + $0xf8] sm:$0xff]
        %v4447 = vld [vmem:[%s10 + $0x100] sm:$0xff]
        %v4448 = vld [vmem:[%s10 + $0x108] sm:$0xff]
        %v4449 = vld [vmem:[%s10 + $0x110] sm:$0xff]
        %v4450 = vld [vmem:[%s10 + $0x118] sm:$0xff]
        %v4451 = vld [vmem:[%s10 + $0x120] sm:$0xff]
        %v4452 = vld [vmem:[%s10 + $0x128] sm:$0xff]
        %v4453 = vld [vmem:[%s10 + $0x130] sm:$0xff]
        %v4454 = vld [vmem:[%s10 + $0x138] sm:$0xff]
        %v4455 = vld [vmem:[%s10 + $0x140] sm:$0xff]
        %v4456 = vld [vmem:[%s10 + $0x148] sm:$0xff]
        %v4457 = vld [vmem:[%s10 + $0x150] sm:$0xff]
        %v4458 = vld [vmem:[%s10 + $0x158] sm:$0xff]
        %v4459 = vld [vmem:[%s10 + $0x160] sm:$0xff]
        %v4460 = vld [vmem:[%s10 + $0x168] sm:$0xff]
        %v4461 = vld [vmem:[%s10 + $0x170] sm:$0xff]
        %v4462 = vld [vmem:[%s10 + $0x178] sm:$0xff]
        %v4463 = vld [vmem:[%s10 + $0x180] sm:$0xff]
        %v4464 = vld [vmem:[%s10 + $0x188] sm:$0xff]
        %v4465 = vld [vmem:[%s10 + $0x190] sm:$0xff]
        %v4466 = vld [vmem:[%s10 + $0x198] sm:$0xff]
        %v4467 = vld [vmem:[%s10 + $0x1a0] sm:$0xff]
        %v4468 = vld [vmem:[%s10 + $0x1a8] sm:$0xff]
        %v4469 = vld [vmem:[%s10 + $0x1b0] sm:$0xff]
        %v4470 = vld [vmem:[%s10 + $0x1b8] sm:$0xff]
        %v4471 = vld [vmem:[%s10 + $0x1c0] sm:$0xff]
        %v4472 = vld [vmem:[%s10 + $0x1c8] sm:$0xff]
        %v4473 = vld [vmem:[%s10 + $0x1d0] sm:$0xff]
        %v4474 = vld [vmem:[%s10 + $0x1d8] sm:$0xff]
        %v4475 = vld [vmem:[%s10 + $0x1e0] sm:$0xff]
        %v4476 = vld [vmem:[%s10 + $0x1e8] sm:$0xff]
        %v4477 = vld [vmem:[%s10 + $0x1f0] sm:$0xff]
        %v4478 = vld [vmem:[%s10 + $0x1f8] sm:$0xff]
        %v4543 = vunpack.c.l.b16 %v4415
        %v4544 = vunpack.c.h.b16 %v4415
        %v4545 = vunpack.c.l.b16 %v4416
        %v4546 = vunpack.c.h.b16 %v4416
        %v4547 = vunpack.c.l.b16 %v4417
        %v4548 = vunpack.c.h.b16 %v4417
        %v4549 = vunpack.c.l.b16 %v4418
        %v4550 = vunpack.c.h.b16 %v4418
        %v4551 = vunpack.c.l.b16 %v4419
        %v4552 = vunpack.c.h.b16 %v4419
        %v4553 = vunpack.c.l.b16 %v4420
        %v4554 = vunpack.c.h.b16 %v4420
        %v4555 = vunpack.c.l.b16 %v4421
        %v4556 = vunpack.c.h.b16 %v4421
        %v4557 = vunpack.c.l.b16 %v4422
        %v4558 = vunpack.c.h.b16 %v4422
        %v4559 = vunpack.c.l.b16 %v4423
        %v4560 = vunpack.c.h.b16 %v4423
        %v4561 = vunpack.c.l.b16 %v4424
        %v4562 = vunpack.c.h.b16 %v4424
        %v4563 = vunpack.c.l.b16 %v4425
        %v4564 = vunpack.c.h.b16 %v4425
        %v4565 = vunpack.c.l.b16 %v4426
        %v4566 = vunpack.c.h.b16 %v4426
        %v4567 = vunpack.c.l.b16 %v4427
        %v4568 = vunpack.c.h.b16 %v4427
        %v4569 = vunpack.c.l.b16 %v4428
        %v4570 = vunpack.c.h.b16 %v4428
        %v4571 = vunpack.c.l.b16 %v4429
        %v4572 = vunpack.c.h.b16 %v4429
        %v4573 = vunpack.c.l.b16 %v4430
        %v4574 = vunpack.c.h.b16 %v4430
        %v4575 = vunpack.c.l.b16 %v4431
        %v4576 = vunpack.c.h.b16 %v4431
        %v4577 = vunpack.c.l.b16 %v4432
        %v4578 = vunpack.c.h.b16 %v4432
        %v4579 = vunpack.c.l.b16 %v4433
        %v4580 = vunpack.c.h.b16 %v4433
        %v4581 = vunpack.c.l.b16 %v4434
        %v4582 = vunpack.c.h.b16 %v4434
        %v4583 = vunpack.c.l.b16 %v4435
        %v4584 = vunpack.c.h.b16 %v4435
        %v4585 = vunpack.c.l.b16 %v4436
        %v4586 = vunpack.c.h.b16 %v4436
        %v4587 = vunpack.c.l.b16 %v4437
        %v4588 = vunpack.c.h.b16 %v4437
        %v4589 = vunpack.c.l.b16 %v4438
        %v4590 = vunpack.c.h.b16 %v4438
        %v4591 = vunpack.c.l.b16 %v4439
        %v4592 = vunpack.c.h.b16 %v4439
        %v4593 = vunpack.c.l.b16 %v4440
        %v4594 = vunpack.c.h.b16 %v4440
        %v4595 = vunpack.c.l.b16 %v4441
        %v4596 = vunpack.c.h.b16 %v4441
        %v4597 = vunpack.c.l.b16 %v4442
        %v4598 = vunpack.c.h.b16 %v4442
        %v4599 = vunpack.c.l.b16 %v4443
        %v4600 = vunpack.c.h.b16 %v4443
        %v4601 = vunpack.c.l.b16 %v4444
        %v4602 = vunpack.c.h.b16 %v4444
        %v4603 = vunpack.c.l.b16 %v4445
        %v4604 = vunpack.c.h.b16 %v4445
        %v4605 = vunpack.c.l.b16 %v4446
        %v4606 = vunpack.c.h.b16 %v4446
        %v4607 = vunpack.c.l.b16 %v4447
        %v4608 = vunpack.c.h.b16 %v4447
        %v4609 = vunpack.c.l.b16 %v4448
        %v4610 = vunpack.c.h.b16 %v4448
        %v4611 = vunpack.c.l.b16 %v4449
        %v4612 = vunpack.c.h.b16 %v4449
        %v4613 = vunpack.c.l.b16 %v4450
        %v4614 = vunpack.c.h.b16 %v4450
        %v4615 = vunpack.c.l.b16 %v4451
        %v4616 = vunpack.c.h.b16 %v4451
        %v4617 = vunpack.c.l.b16 %v4452
        %v4618 = vunpack.c.h.b16 %v4452
        %v4619 = vunpack.c.l.b16 %v4453
        %v4620 = vunpack.c.h.b16 %v4453
        %v4621 = vunpack.c.l.b16 %v4454
        %v4622 = vunpack.c.h.b16 %v4454
        %v4623 = vunpack.c.l.b16 %v4455
        %v4624 = vunpack.c.h.b16 %v4455
        %v4625 = vunpack.c.l.b16 %v4456
        %v4626 = vunpack.c.h.b16 %v4456
        %v4627 = vunpack.c.l.b16 %v4457
        %v4628 = vunpack.c.h.b16 %v4457
        %v4629 = vunpack.c.l.b16 %v4458
        %v4630 = vunpack.c.h.b16 %v4458
        %v4631 = vunpack.c.l.b16 %v4459
        %v4632 = vunpack.c.h.b16 %v4459
        %v4633 = vunpack.c.l.b16 %v4460
        %v4634 = vunpack.c.h.b16 %v4460
        %v4635 = vunpack.c.l.b16 %v4461
        %v4636 = vunpack.c.h.b16 %v4461
        %v4637 = vunpack.c.l.b16 %v4462
        %v4638 = vunpack.c.h.b16 %v4462
        %v4639 = vunpack.c.l.b16 %v4463
        %v4640 = vunpack.c.h.b16 %v4463
        %v4641 = vunpack.c.l.b16 %v4464
        %v4642 = vunpack.c.h.b16 %v4464
        %v4643 = vunpack.c.l.b16 %v4465
        %v4644 = vunpack.c.h.b16 %v4465
        %v4645 = vunpack.c.l.b16 %v4466
        %v4646 = vunpack.c.h.b16 %v4466
        %v4647 = vunpack.c.l.b16 %v4467
        %v4648 = vunpack.c.h.b16 %v4467
        %v4649 = vunpack.c.l.b16 %v4468
        %v4650 = vunpack.c.h.b16 %v4468
        %v4651 = vunpack.c.l.b16 %v4469
        %v4652 = vunpack.c.h.b16 %v4469
        %v4653 = vunpack.c.l.b16 %v4470
        %v4654 = vunpack.c.h.b16 %v4470
        %v4655 = vunpack.c.l.b16 %v4471
        %v4656 = vunpack.c.h.b16 %v4471
        %v4657 = vunpack.c.l.b16 %v4472
        %v4658 = vunpack.c.h.b16 %v4472
        %v4659 = vunpack.c.l.b16 %v4473
        %v4660 = vunpack.c.h.b16 %v4473
        %v4661 = vunpack.c.l.b16 %v4474
        %v4662 = vunpack.c.h.b16 %v4474
        %v4663 = vunpack.c.l.b16 %v4475
        %v4664 = vunpack.c.h.b16 %v4475
        %v4665 = vunpack.c.l.b16 %v4476
        %v4666 = vunpack.c.h.b16 %v4476
        %v4667 = vunpack.c.l.b16 %v4477
        %v4668 = vunpack.c.h.b16 %v4477
        %v4669 = vunpack.c.l.b16 %v4478
        %v4670 = vunpack.c.h.b16 %v4478
        %v4671 = vpack.c.b16 %v4545, %v4543
        %v4672 = vpack.c.b16 %v4546, %v4544
        %v4673 = vpack.c.b16 %v4549, %v4547
        %v4674 = vpack.c.b16 %v4550, %v4548
        %v4675 = vpack.c.b16 %v4553, %v4551
        %v4676 = vpack.c.b16 %v4554, %v4552
        %v4677 = vpack.c.b16 %v4557, %v4555
        %v4678 = vpack.c.b16 %v4558, %v4556
        %v4679 = vpack.c.b16 %v4561, %v4559
        %v4680 = vpack.c.b16 %v4562, %v4560
        %v4681 = vpack.c.b16 %v4565, %v4563
        %v4682 = vpack.c.b16 %v4566, %v4564
        %v4683 = vpack.c.b16 %v4569, %v4567
        %v4684 = vpack.c.b16 %v4570, %v4568
        %v4685 = vpack.c.b16 %v4573, %v4571
        %v4686 = vpack.c.b16 %v4574, %v4572
        %v4687 = vpack.c.b16 %v4577, %v4575
        %v4688 = vpack.c.b16 %v4578, %v4576
        %v4689 = vpack.c.b16 %v4581, %v4579
        %v4690 = vpack.c.b16 %v4582, %v4580
        %v4691 = vpack.c.b16 %v4585, %v4583
        %v4692 = vpack.c.b16 %v4586, %v4584
        %v4693 = vpack.c.b16 %v4589, %v4587
        %v4694 = vpack.c.b16 %v4590, %v4588
        %v4695 = vpack.c.b16 %v4593, %v4591
        %v4696 = vpack.c.b16 %v4594, %v4592
        %v4697 = vpack.c.b16 %v4597, %v4595
        %v4698 = vpack.c.b16 %v4598, %v4596
        %v4699 = vpack.c.b16 %v4601, %v4599
        %v4700 = vpack.c.b16 %v4602, %v4600
        %v4701 = vpack.c.b16 %v4605, %v4603
        %v4702 = vpack.c.b16 %v4606, %v4604
        %v4703 = vpack.c.b16 %v4609, %v4607
        %v4704 = vpack.c.b16 %v4610, %v4608
        %v4705 = vpack.c.b16 %v4613, %v4611
        %v4706 = vpack.c.b16 %v4614, %v4612
        %v4707 = vpack.c.b16 %v4617, %v4615
        %v4708 = vpack.c.b16 %v4618, %v4616
        %v4709 = vpack.c.b16 %v4621, %v4619
        %v4710 = vpack.c.b16 %v4622, %v4620
        %v4711 = vpack.c.b16 %v4625, %v4623
        %v4712 = vpack.c.b16 %v4626, %v4624
        %v4713 = vpack.c.b16 %v4629, %v4627
        %v4714 = vpack.c.b16 %v4630, %v4628
        %v4715 = vpack.c.b16 %v4633, %v4631
        %v4716 = vpack.c.b16 %v4634, %v4632
        %v4717 = vpack.c.b16 %v4637, %v4635
        %v4718 = vpack.c.b16 %v4638, %v4636
        %v4719 = vpack.c.b16 %v4641, %v4639
        %v4720 = vpack.c.b16 %v4642, %v4640
        %v4721 = vpack.c.b16 %v4645, %v4643
        %v4722 = vpack.c.b16 %v4646, %v4644
        %v4723 = vpack.c.b16 %v4649, %v4647
        %v4724 = vpack.c.b16 %v4650, %v4648
        %v4725 = vpack.c.b16 %v4653, %v4651
        %v4726 = vpack.c.b16 %v4654, %v4652
        %v4727 = vpack.c.b16 %v4657, %v4655
        %v4728 = vpack.c.b16 %v4658, %v4656
        %v4729 = vpack.c.b16 %v4661, %v4659
        %v4730 = vpack.c.b16 %v4662, %v4660
        %v4731 = vpack.c.b16 %v4665, %v4663
        %v4732 = vpack.c.b16 %v4666, %v4664
        %v4733 = vpack.c.b16 %v4669, %v4667
        %v4734 = vpack.c.b16 %v4670, %v4668
        %4799 = vmatprep.subr.bf16.mxu0 %v4686
        %4800 = vmatpush1.bf16.msra.mxu0 %v4685
        %4801 = vmatprep.subr.bf16.mxu0 %v4684
        %4802 = vmatpush1.bf16.msra.mxu0 %v4683
        %4803 = vmatprep.subr.bf16.mxu0 %v4682
        %4804 = vmatpush1.bf16.msra.mxu0 %v4681
        %4805 = vmatprep.subr.bf16.mxu0 %v4680
        %4806 = vmatpush1.bf16.msra.mxu0 %v4679
        %4807 = vmatprep.subr.bf16.mxu0 %v4678
        %4808 = vmatpush1.bf16.msra.mxu0 %v4677
        %4809 = vmatprep.subr.bf16.mxu0 %v4676
        %4810 = vmatpush1.bf16.msra.mxu0 %v4675
        %4811 = vmatprep.subr.bf16.mxu0 %v4674
        %4812 = vmatpush1.bf16.msra.mxu0 %v4673
        %4813 = vmatprep.subr.bf16.mxu0 %v4672
        %4814 = vmatpush1.bf16.msra.mxu0 %v4671
        %4815 = vmatprep.subr.bf16.mxu0 %v4702
        %4816 = vmatpush2.bf16.msra.mxu0 %v4701
        %4817 = vmatprep.subr.bf16.mxu0 %v4700
        %4818 = vmatpush2.bf16.msra.mxu0 %v4699
        %4819 = vmatprep.subr.bf16.mxu0 %v4698
        %4820 = vmatpush2.bf16.msra.mxu0 %v4697
        %4821 = vmatprep.subr.bf16.mxu0 %v4696
        %4822 = vmatpush2.bf16.msra.mxu0 %v4695
        %4823 = vmatprep.subr.bf16.mxu0 %v4694
        %4824 = vmatpush2.bf16.msra.mxu0 %v4693
        %4825 = vmatprep.subr.bf16.mxu0 %v4692
        %4826 = vmatpush2.bf16.msra.mxu0 %v4691
        %4827 = vmatprep.subr.bf16.mxu0 %v4690
        %4828 = vmatpush2.bf16.msra.mxu0 %v4689
        %4829 = vmatprep.subr.bf16.mxu0 %v4688
        %4830 = vmatpush2.bf16.msra.mxu0 %v4687
        %4831 = vmatprep.mubr.bf16.mxu0 %v4392
        %4832 = vmatmul.mubr.bf16.gmra.mxu0 %v4391
        %v4833 = vpop.f32.mrf.mxu0
        %v4834 = vadd.f32 0.0, %v4833
        %v4835 = vpop.f32.mrf.mxu0
        %v4836 = vadd.f32 0.0, %v4835
        %v4837 = vpop.f32.mrf.mxu0
        %v4838 = vadd.f32 0.0, %v4837
        %v4839 = vpop.f32.mrf.mxu0
        %v4840 = vadd.f32 0.0, %v4839
        %4841 = vmatprep.mubr.bf16.mxu0 %v4396
        %4842 = vmatmul.mubr.bf16.gmra.mxu0 %v4395
        %v4843 = vpop.f32.mrf.mxu0
        %v4844 = vadd.f32 0.0, %v4843
        %v4845 = vpop.f32.mrf.mxu0
        %v4846 = vadd.f32 0.0, %v4845
        %v4847 = vpop.f32.mrf.mxu0
        %v4848 = vadd.f32 0.0, %v4847
        %v4849 = vpop.f32.mrf.mxu0
        %v4850 = vadd.f32 0.0, %v4849
        %4851 = vmatprep.mubr.bf16.mxu0 %v4400
        %4852 = vmatmul.mubr.bf16.gmra.mxu0 %v4399
        %v4853 = vpop.f32.mrf.mxu0
        %v4854 = vadd.f32 0.0, %v4853
        %v4855 = vpop.f32.mrf.mxu0
        %v4856 = vadd.f32 0.0, %v4855
        %v4857 = vpop.f32.mrf.mxu0
        %v4858 = vadd.f32 0.0, %v4857
        %v4859 = vpop.f32.mrf.mxu0
        %v4860 = vadd.f32 0.0, %v4859
        %4861 = vmatprep.mubr.bf16.mxu0 %v4404
        %4862 = vmatmul.mubr.bf16.gmra.mxu0 %v4403
        %v4863 = vpop.f32.mrf.mxu0
        %v4864 = vadd.f32 0.0, %v4863
        %v4865 = vpop.f32.mrf.mxu0
        %v4866 = vadd.f32 0.0, %v4865
        %v4867 = vpop.f32.mrf.mxu0
        %v4868 = vadd.f32 0.0, %v4867
        %v4869 = vpop.f32.mrf.mxu0
        %v4870 = vadd.f32 0.0, %v4869
        %4871 = vmatprep.mubr.bf16.mxu0 %v4408
        %4872 = vmatmul.mubr.bf16.gmra.mxu0 %v4407
        %v4873 = vpop.f32.mrf.mxu0
        %v4874 = vadd.f32 0.0, %v4873
        %v4875 = vpop.f32.mrf.mxu0
        %v4876 = vadd.f32 0.0, %v4875
        %v4877 = vpop.f32.mrf.mxu0
        %v4878 = vadd.f32 0.0, %v4877
        %v4879 = vpop.f32.mrf.mxu0
        %v4880 = vadd.f32 0.0, %v4879
        %4881 = vmatprep.mubr.bf16.mxu0 %v4412
        %4882 = vmatmul.mubr.bf16.gmra.mxu0 %v4411
        %v4883 = vpop.f32.mrf.mxu0
        %v4884 = vadd.f32 0.0, %v4883
        %v4885 = vpop.f32.mrf.mxu0
        %v4886 = vadd.f32 0.0, %v4885
        %v4887 = vpop.f32.mrf.mxu0
        %v4888 = vadd.f32 0.0, %v4887
        %v4889 = vpop.f32.mrf.mxu0
        %v4890 = vadd.f32 0.0, %v4889
        %4891 = vdwg.mxu0
        %4892 = vmatprep.subr.bf16.mxu0 %v4718
        %4893 = vmatpush1.bf16.msra.mxu0 %v4717
        %4894 = vmatprep.subr.bf16.mxu0 %v4716
        %4895 = vmatpush1.bf16.msra.mxu0 %v4715
        %4896 = vmatprep.subr.bf16.mxu0 %v4714
        %4897 = vmatpush1.bf16.msra.mxu0 %v4713
        %4898 = vmatprep.subr.bf16.mxu0 %v4712
        %4899 = vmatpush1.bf16.msra.mxu0 %v4711
        %4900 = vmatprep.subr.bf16.mxu0 %v4710
        %4901 = vmatpush1.bf16.msra.mxu0 %v4709
        %4902 = vmatprep.subr.bf16.mxu0 %v4708
        %4903 = vmatpush1.bf16.msra.mxu0 %v4707
        %4904 = vmatprep.subr.bf16.mxu0 %v4706
        %4905 = vmatpush1.bf16.msra.mxu0 %v4705
        %4906 = vmatprep.subr.bf16.mxu0 %v4704
        %4907 = vmatpush1.bf16.msra.mxu0 %v4703
        %4908 = vmatprep.subr.bf16.mxu0 %v4734
        %4909 = vmatpush2.bf16.msra.mxu0 %v4733
        %4910 = vmatprep.subr.bf16.mxu0 %v4732
        %4911 = vmatpush2.bf16.msra.mxu0 %v4731
        %4912 = vmatprep.subr.bf16.mxu0 %v4730
        %4913 = vmatpush2.bf16.msra.mxu0 %v4729
        %4914 = vmatprep.subr.bf16.mxu0 %v4728
        %4915 = vmatpush2.bf16.msra.mxu0 %v4727
        %4916 = vmatprep.subr.bf16.mxu0 %v4726
        %4917 = vmatpush2.bf16.msra.mxu0 %v4725
        %4918 = vmatprep.subr.bf16.mxu0 %v4724
        %4919 = vmatpush2.bf16.msra.mxu0 %v4723
        %4920 = vmatprep.subr.bf16.mxu0 %v4722
        %4921 = vmatpush2.bf16.msra.mxu0 %v4721
        %4922 = vmatprep.subr.bf16.mxu0 %v4720
        %4923 = vmatpush2.bf16.msra.mxu0 %v4719
        %4924 = vmatprep.mubr.bf16.mxu0 %v4394
        %4925 = vmatmul.mubr.bf16.gmra.mxu0 %v4393
        %v4926 = vpop.f32.mrf.mxu0
        %v4927 = vadd.f32 %v4834, %v4926
        %v4928 = vpop.f32.mrf.mxu0
        %v4929 = vadd.f32 %v4836, %v4928
        %v4930 = vpop.f32.mrf.mxu0
        %v4931 = vadd.f32 %v4838, %v4930
        %v4932 = vpop.f32.mrf.mxu0
        %v4933 = vadd.f32 %v4840, %v4932
        %4934 = vmatprep.mubr.bf16.mxu0 %v4398
        %4935 = vmatmul.mubr.bf16.gmra.mxu0 %v4397
        %v4936 = vpop.f32.mrf.mxu0
        %v4937 = vadd.f32 %v4844, %v4936
        %v4938 = vpop.f32.mrf.mxu0
        %v4939 = vadd.f32 %v4846, %v4938
        %v4940 = vpop.f32.mrf.mxu0
        %v4941 = vadd.f32 %v4848, %v4940
        %v4942 = vpop.f32.mrf.mxu0
        %v4943 = vadd.f32 %v4850, %v4942
        %4944 = vmatprep.mubr.bf16.mxu0 %v4402
        %4945 = vmatmul.mubr.bf16.gmra.mxu0 %v4401
        %v4946 = vpop.f32.mrf.mxu0
        %v4947 = vadd.f32 %v4854, %v4946
        %v4948 = vpop.f32.mrf.mxu0
        %v4949 = vadd.f32 %v4856, %v4948
        %v4950 = vpop.f32.mrf.mxu0
        %v4951 = vadd.f32 %v4858, %v4950
        %v4952 = vpop.f32.mrf.mxu0
        %v4953 = vadd.f32 %v4860, %v4952
        %4954 = vmatprep.mubr.bf16.mxu0 %v4406
        %4955 = vmatmul.mubr.bf16.gmra.mxu0 %v4405
        %v4956 = vpop.f32.mrf.mxu0
        %v4957 = vadd.f32 %v4864, %v4956
        %v4958 = vpop.f32.mrf.mxu0
        %v4959 = vadd.f32 %v4866, %v4958
        %v4960 = vpop.f32.mrf.mxu0
        %v4961 = vadd.f32 %v4868, %v4960
        %v4962 = vpop.f32.mrf.mxu0
        %v4963 = vadd.f32 %v4870, %v4962
        %4964 = vmatprep.mubr.bf16.mxu0 %v4410
        %4965 = vmatmul.mubr.bf16.gmra.mxu0 %v4409
        %v4966 = vpop.f32.mrf.mxu0
        %v4967 = vadd.f32 %v4874, %v4966
        %v4968 = vpop.f32.mrf.mxu0
        %v4969 = vadd.f32 %v4876, %v4968
        %v4970 = vpop.f32.mrf.mxu0
        %v4971 = vadd.f32 %v4878, %v4970
        %v4972 = vpop.f32.mrf.mxu0
        %v4973 = vadd.f32 %v4880, %v4972
        %4974 = vmatprep.mubr.bf16.mxu0 %v4414
        %4975 = vmatmul.mubr.bf16.gmra.mxu0 %v4413
        %v4976 = vpop.f32.mrf.mxu0
        %v4977 = vadd.f32 %v4884, %v4976
        %v4978 = vpop.f32.mrf.mxu0
        %v4979 = vadd.f32 %v4886, %v4978
        %v4980 = vpop.f32.mrf.mxu0
        %v4981 = vadd.f32 %v4888, %v4980
        %v4982 = vpop.f32.mrf.mxu0
        %v4983 = vadd.f32 %v4890, %v4982
        %4984 = vdwg.mxu0
        %v4985 = vsel %vm794, 1, 0
        %v4986 = vsel %vm795, 1, 0
        %v4987 = vsel %vm796, 1, 0
        %v4988 = vsel %vm797, 1, 0
        %v4989 = vsel %vm798, 1, 0
        %v4990 = vsel %vm799, 1, 0
        %v4991 = vsel %vm800, 1, 0
        %v4992 = vsel %vm801, 1, 0
        %v4993 = vsel %vm802, 1, 0
        %v4994 = vsel %vm803, 1, 0
        %v4995 = vsel %vm804, 1, 0
        %v4996 = vsel %vm805, 1, 0
        %vm4997 = vcmp.eq.s32.totalorder %v4985, 1
        %vm4998 = vcmp.eq.s32.totalorder %v4986, 1
        %vm4999 = vcmp.eq.s32.totalorder %v4987, 1
        %vm5000 = vcmp.eq.s32.totalorder %v4988, 1
        %vm5001 = vcmp.eq.s32.totalorder %v4989, 1
        %vm5002 = vcmp.eq.s32.totalorder %v4990, 1
        %vm5003 = vcmp.eq.s32.totalorder %v4991, 1
        %vm5004 = vcmp.eq.s32.totalorder %v4992, 1
        %vm5005 = vcmp.eq.s32.totalorder %v4993, 1
        %vm5006 = vcmp.eq.s32.totalorder %v4994, 1
        %vm5007 = vcmp.eq.s32.totalorder %v4995, 1
        %vm5008 = vcmp.eq.s32.totalorder %v4996, 1
        %v5009 = vsel %vm4997, %v4927, -inf
        %v5010 = vsel %vm4997, %v4929, -inf
        %v5011 = vsel %vm4998, %v4931, -inf
        %v5012 = vsel %vm4998, %v4933, -inf
        %v5013 = vsel %vm4999, %v4937, -inf
        %v5014 = vsel %vm4999, %v4939, -inf
        %v5015 = vsel %vm5000, %v4941, -inf
        %v5016 = vsel %vm5000, %v4943, -inf
        %v5017 = vsel %vm5001, %v4947, -inf
        %v5018 = vsel %vm5001, %v4949, -inf
        %v5019 = vsel %vm5002, %v4951, -inf
        %v5020 = vsel %vm5002, %v4953, -inf
        %v5021 = vsel %vm5003, %v4957, -inf
        %v5022 = vsel %vm5003, %v4959, -inf
        %v5023 = vsel %vm5004, %v4961, -inf
        %v5024 = vsel %vm5004, %v4963, -inf
        %v5025 = vsel %vm5005, %v4967, -inf
        %v5026 = vsel %vm5005, %v4969, -inf
        %v5027 = vsel %vm5006, %v4971, -inf
        %v5028 = vsel %vm5006, %v4973, -inf
        %v5029 = vsel %vm5007, %v4977, -inf
        %v5030 = vsel %vm5007, %v4979, -inf
        %v5031 = vsel %vm5008, %v4981, -inf
        %v5032 = vsel %vm5008, %v4983, -inf
        %v5033 = vld [vmem:[#allocation4] sm:$0x3]
        %v5034 = vmax.f32 %v5009, %v5013
        %v5035 = vmax.f32 %v5011, %v5015
        %v5036 = vmax.f32 %v5034, %v5017
        %v5037 = vmax.f32 %v5035, %v5019
        %v5038 = vmax.f32 %v5036, %v5021
        %v5039 = vmax.f32 %v5037, %v5023
        %v5040 = vmax.f32 %v5038, %v5025
        %v5041 = vmax.f32 %v5039, %v5027
        %v5042 = vmax.f32 %v5040, %v5029
        %v5043 = vmax.f32 %v5041, %v5031
        %v5044 = vmax.f32 %v5042, %v5043
        %v5045 = vrot.slane %v5044, 4
        %v5046 = vmax.f32 %v5044, %v5045
        %v5047 = vrot.slane %v5046, 2
        %v5048 = vmax.f32 %v5046, %v5047
        %v5049 = vrot.slane %v5048, 1
        %v5050 = vmax.f32 %v5048, %v5049
        %v5051 = vmax.f32 %v5010, %v5014
        %v5052 = vmax.f32 %v5012, %v5016
        %v5053 = vmax.f32 %v5051, %v5018
        %v5054 = vmax.f32 %v5052, %v5020
        %v5055 = vmax.f32 %v5053, %v5022
        %v5056 = vmax.f32 %v5054, %v5024
        %v5057 = vmax.f32 %v5055, %v5026
        %v5058 = vmax.f32 %v5056, %v5028
        %v5059 = vmax.f32 %v5057, %v5030
        %v5060 = vmax.f32 %v5058, %v5032
        %v5061 = vmax.f32 %v5059, %v5060
        %v5062 = vrot.slane %v5061, 4
        %v5063 = vmax.f32 %v5061, %v5062
        %v5064 = vrot.slane %v5063, 2
        %v5065 = vmax.f32 %v5063, %v5064
        %v5066 = vrot.slane %v5065, 1
        %v5067 = vmax.f32 %v5065, %v5066
        %v5070 = vcombine.low %v5050, %v5067
        %v5072 = vunpack.c.l.s4 1966171168
        %v5073 = vunpack.c.0.s8 %v5072
        %v5074 = vlaneseq
        %v5075 = vshrl.u32 %v5074, 7
        %v5076 = vsub.s32 %v5073, %v5075
        %v5077 = vrot.slane %v5070, %v5076
        %v5079 = vunpack.c.l.s4 1966171168
        %v5080 = vunpack.c.0.s8 %v5079
        %v5081 = vlaneseq
        %v5082 = vshrl.u32 %v5081, 7
        %v5083 = vsub.s32 %v5080, %v5082
        %v5084 = vrot.slane %v5077, %v5083
        %v5086 = vmax.f32 %v5033, %v5084
        %v5087 = vlaneseq
        %vm5088 = vcmp.ge.s32.totalorder %v5087, 0
        %vm5089 = vcmp.lt.s32.totalorder %v5087, 256
        %vm5090 = vmand %vm5088, %vm5089
        %5091 = vst.msk [vmem:[#allocation4] sm:$0x3] %vm5090, %v5086
      $region84: #{siamese_pointnet_forward.4} parent=67 // pred_fallthru
        _
      %p5092 = scmp.eq.s32.totalorder %s28, 5
      // Predicated region
      $region85: #{siamese_pointnet_forward.4} parent=67 // pred_check
        %p5093 = pneg %p5092
      $region86: #{siamese_pointnet_forward.4} parent=67 // pred_check_branch
        %5095 = sbr.rel (%p5093) target = $region88
      $region87: #{siamese_pointnet_forward.4} parent=67 // pred_region
        %v5096 = vld [vmem:[#allocation4] sm:$0x3]
        %v5097 = vld [vmem:[%s11] sm:$0x3]
        %v5098 = vadd.f32 %v5096, %v5097
        %v5099 = vmax.f32 %v5098, 0.0
        %v5100 = vlaneseq
        %vm5101 = vcmp.ge.s32.totalorder %v5100, 0
        %vm5102 = vcmp.lt.s32.totalorder %v5100, 256
        %vm5103 = vmand %vm5101, %vm5102
        %5104 = vst.msk [vmem:[%s567] sm:$0x3] %vm5103, %v5099
      $region88: #{siamese_pointnet_forward.4} parent=67 // pred_fallthru
        _
      %p5105 = scmp.lt.s32.totalorder %s27, 3
      %s5106 = scalar_select %p5105, %s27, 3
      %s5107 = smul.addr %s5106, 2
      %s5108 = scalar_lea.vmem %s12, %s5107
      // Predicated region
      $region89: #{siamese_pointnet_forward.4} parent=67 // pred_check
        %p5109 = pneg %p343
      $region90: #{siamese_pointnet_forward.4} parent=67 // pred_check_branch
        %5111 = sbr.rel (%p5109) target = $region92
      $region91: #{siamese_pointnet_forward.4} parent=67 // pred_region
        _
      $region92: #{siamese_pointnet_forward.4} parent=67 // pred_fallthru
        _
    $region68: #{siamese_pointnet_forward.4} parent=5 // pred_fallthru
      _
    %p5112 = scmp.le.s32.totalorder 2, %s18
    // Predicated region
    $region93: #{siamese_pointnet_forward.4} parent=5 // pred_check
      %p5113 = pneg %p5112
    $region94: #{siamese_pointnet_forward.4} parent=5 // pred_check_branch
      %5115 = sbr.rel (%p5113) target = $region96
    $region95: #{siamese_pointnet_forward.4} parent=5 // pred_region
      %s5116 = ssub.s32 %s18, 2
      // Predicated region
      $region97: #{siamese_pointnet_forward.4} parent=95 // pred_check
        %p5117 = pneg %p349
      $region98: #{siamese_pointnet_forward.4} parent=95 // pred_check_branch
        %5119 = sbr.rel (%p5117) target = $region100
      $region99: #{siamese_pointnet_forward.4} parent=95 // pred_region
        %p5120 = scmp.lt.s32.totalorder %s29, 3
        %s5121 = scalar_select %p5120, %s29, 3
        %s5122 = smul.addr %s5121, 2
        %s5123 = scalar_lea.vmem %s12, %s5122
      $region100: #{siamese_pointnet_forward.4} parent=95 // pred_fallthru
        _
    $region96: #{siamese_pointnet_forward.4} parent=5 // pred_fallthru
      _
  $region6: #{siamese_pointnet_forward.4} parent=0 // loop_footer
    %s22 = sadd.s32 1, %s18
  $region7: #{siamese_pointnet_forward.4} parent=0 // loop_footer_branch
    %17 = sbr.rel target = $region3
  $region8: #{siamese_pointnet_forward.4} parent=0 // loop_exit
    _

</llo_original>
